<compile_context>
chip_gen: v7x
topology: tpu7x:2x2x1
jax: 0.10.0
libtpu: 0.0.40
codegen_flags: <defaults>
</compile_context>

<pallas_src>
import functools

import jax
import jax.numpy as jnp
from jax.experimental import pallas as pl
from jax.experimental.pallas import tpu as pltpu


def _round_up(x, m):
    return ((x + m - 1) // m) * m


_PARALLEL1 = pltpu.CompilerParams(dimension_semantics=("parallel",))


# ----------------------------- Pallas kernels ------------------------------

def _conv_mm_kernel(w_ref, p_ref, b_ref, o_ref, *, activation):
    # w: (O, K) bf16, p: (K, TM) bf16, b: (O, 1) f32 -> o: (O, TM) f32
    acc = jnp.dot(w_ref[...], p_ref[...], preferred_element_type=jnp.float32)
    acc = acc + b_ref[...]
    if activation == "relu":
        acc = jnp.maximum(acc, 0.0)
    o_ref[...] = acc


def _max4_kernel(x_ref, o_ref):
    # x: (4, C, TL) -- the four 2x2-window taps; pure max reduce (ReLU fused upstream).
    o_ref[...] = jnp.max(x_ref[...], axis=0)


def _fused_fc_kernel(x_ref, w1_ref, b1_ref, w2_ref, b2_ref, o_ref, *, final):
    # x: (K, TN); W1: (O1, K); W2: (O2, O1); out: (O2, TN)  (N on lanes)
    h = jnp.dot(w1_ref[...], x_ref[...], preferred_element_type=jnp.float32)
    h = jnp.maximum(h + b1_ref[...], 0.0)
    z = jnp.dot(w2_ref[...], h, preferred_element_type=jnp.float32) + b2_ref[...]
    if final == "log_softmax":
        m = jnp.max(z, axis=0, keepdims=True)
        e = z - m
        z = e - jnp.log(jnp.sum(jnp.exp(e), axis=0, keepdims=True))
    o_ref[...] = z


def _grid_sample_kernel(wyT_ref, img_ref, wxT_ref, o_ref):
    # wyT: (Bt, H, P) bf16; img: (Bt, H, W) bf16; wxT: (Bt, W, P) bf16 -> o: (Bt, P) f32
    # t[b, c, p] = sum_r img[b, r, c] * Wy[b, r, p]   (P=784 on lanes)
    t = jnp.einsum("brc,brp->bcp", img_ref[...], wyT_ref[...],
                   preferred_element_type=jnp.float32)            # (Bt, W, P)
    # out[b, p] = sum_c t[b, c, p] * Wx[b, c, p]  (cross-sublane reduce, lane-dense)
    o_ref[...] = jnp.sum(t * wxT_ref[...].astype(jnp.float32), axis=1)


# ------------------------------ wrappers -----------------------------------

def _matmul_lane_dense(w_mat, patches, b, activation):
    """out(O, M) = act(W(O, K) @ patches(K, M) + b); tiled over M, bf16 operands."""
    o, k = w_mat.shape
    m = patches.shape[1]
    tm = min(512, _round_up(m, 128))
    mp = _round_up(m, tm)
    patches = jnp.pad(patches, ((0, 0), (0, mp - m)))
    out = pl.pallas_call(
        functools.partial(_conv_mm_kernel, activation=activation),
        out_shape=jax.ShapeDtypeStruct((o, mp), jnp.float32),
        grid=(mp // tm,),
        in_specs=[
            pl.BlockSpec((o, k), lambda i: (0, 0)),
            pl.BlockSpec((k, tm), lambda i: (0, i)),
            pl.BlockSpec((o, 1), lambda i: (0, 0)),
        ],
        out_specs=pl.BlockSpec((o, tm), lambda i: (0, i)),
        compiler_params=_PARALLEL1,
    )(w_mat.astype(jnp.bfloat16), patches.astype(jnp.bfloat16),
      b.reshape(o, 1).astype(jnp.float32))
    return out[:, :m]


def conv2d_cf(x, w, b, activation=None):
    """Valid conv, stride 1. x: (C, N, H, W) channel-first-flat; w: (O, C, kh, kw)."""
    c, n, h, wd = x.shape
    o, _, kh, kw = w.shape
    ho, wo = h - kh + 1, wd - kw + 1
    cols = []
    for di in range(kh):
        for dj in range(kw):
            cols.append(x[:, :, di:di + ho, dj:dj + wo])
    # K-axis order (c, dh, dw) matches w.reshape(O, C*kh*kw)
    patches = jnp.stack(cols, axis=1).reshape(c * kh * kw, n * ho * wo)
    out = _matmul_lane_dense(w.reshape(o, c * kh * kw), patches, b, activation)
    return out.reshape(o, n, ho, wo)


def maxpool2_cf(x):
    """2x2 max pool (stride 2). x: (C, N, H, W); ReLU already fused upstream."""
    c, n, h, w = x.shape
    ho, wo = h // 2, w // 2
    xc = x[:, :, : ho * 2, : wo * 2]
    taps = jnp.stack(
        [xc[:, :, 0::2, 0::2], xc[:, :, 0::2, 1::2],
         xc[:, :, 1::2, 0::2], xc[:, :, 1::2, 1::2]],
        axis=0,
    ).reshape(4, c, n * ho * wo)
    l = n * ho * wo
    tl = min(512, _round_up(l, 128))
    lp = _round_up(l, tl)
    taps = jnp.pad(taps, ((0, 0), (0, 0), (0, lp - l)))
    out = pl.pallas_call(
        _max4_kernel,
        out_shape=jax.ShapeDtypeStruct((c, lp), jnp.float32),
        grid=(lp // tl,),
        in_specs=[pl.BlockSpec((4, c, tl), lambda i: (0, 0, i))],
        out_specs=pl.BlockSpec((c, tl), lambda i: (0, i)),
        compiler_params=_PARALLEL1,
    )(taps)
    return out[:, :l].reshape(c, n, ho, wo)


def fused_fc(xT, w1, b1, w2, b2, final=None):
    """out(O2, N) = [log_softmax]( W2 @ relu(W1 @ x(K, N) + b1) + b2 ); tiled over N."""
    k, n = xT.shape
    o1 = w1.shape[0]
    o2 = w2.shape[0]
    tn = min(512, _round_up(n, 128))
    npad = _round_up(n, tn)
    xT = jnp.pad(xT, ((0, 0), (0, npad - n)))
    out = pl.pallas_call(
        functools.partial(_fused_fc_kernel, final=final),
        out_shape=jax.ShapeDtypeStruct((o2, npad), jnp.float32),
        grid=(npad // tn,),
        in_specs=[
            pl.BlockSpec((k, tn), lambda i: (0, i)),
            pl.BlockSpec((o1, k), lambda i: (0, 0)),
            pl.BlockSpec((o1, 1), lambda i: (0, 0)),
            pl.BlockSpec((o2, o1), lambda i: (0, 0)),
            pl.BlockSpec((o2, 1), lambda i: (0, 0)),
        ],
        out_specs=pl.BlockSpec((o2, tn), lambda i: (0, i)),
        compiler_params=_PARALLEL1,
    )(xT, w1, b1.reshape(o1, 1), w2, b2.reshape(o2, 1))
    return out[:, :n]


def _bilinear_weights_t(coord, size):
    """coord: (N, P) pixel coords -> (N, size, P) bilinear weights (zeros padding)."""
    i0 = jnp.floor(coord)
    w1 = coord - i0
    w0 = 1.0 - w1
    i0i = i0.astype(jnp.int32)
    i1i = i0i + 1
    idx = jnp.arange(size, dtype=jnp.int32)[None, :, None]        # (1, size, 1)
    oh0 = (i0i[:, None, :] == idx).astype(jnp.float32)            # OOB rows -> all zeros
    oh1 = (i1i[:, None, :] == idx).astype(jnp.float32)
    return w0[:, None, :] * oh0 + w1[:, None, :] * oh1


def grid_sample_affine(img, theta, bt=8):
    """F.grid_sample(x, F.affine_grid(theta)), bilinear, zeros padding,
    align_corners=False. img: (N, H, W), theta: (N, 2, 3) -> (N, H*W)."""
    n, h, w = img.shape
    p = h * w
    xs = (2.0 * jnp.arange(w, dtype=jnp.float32) + 1.0) / w - 1.0
    ys = (2.0 * jnp.arange(h, dtype=jnp.float32) + 1.0) / h - 1.0
    gx, gy = jnp.meshgrid(xs, ys)                                  # (H, W)
    base = jnp.stack([gx, gy, jnp.ones_like(gx)], axis=-1).reshape(p, 3)
    g = jnp.einsum("pk,nik->npi", base, theta)                     # (N, P, 2)
    ix = ((g[..., 0] + 1.0) * w - 1.0) / 2.0
    iy = ((g[..., 1] + 1.0) * h - 1.0) / 2.0
    wxT = _bilinear_weights_t(ix, w)                               # (N, W, P)
    wyT = _bilinear_weights_t(iy, h)                               # (N, H, P)

    bt = min(bt, _round_up(n, 8))
    npad = _round_up(n, bt)
    pad = ((0, npad - n), (0, 0), (0, 0))
    wyT = jnp.pad(wyT, pad).astype(jnp.bfloat16)
    wxT = jnp.pad(wxT, pad).astype(jnp.bfloat16)
    imgp = jnp.pad(img, pad).astype(jnp.bfloat16)

    out = pl.pallas_call(
        _grid_sample_kernel,
        out_shape=jax.ShapeDtypeStruct((npad, p), jnp.float32),
        grid=(npad // bt,),
        in_specs=[
            pl.BlockSpec((bt, h, p), lambda i: (i, 0, 0)),
            pl.BlockSpec((bt, h, w), lambda i: (i, 0, 0)),
            pl.BlockSpec((bt, w, p), lambda i: (i, 0, 0)),
        ],
        out_specs=pl.BlockSpec((bt, p), lambda i: (i, 0)),
        compiler_params=_PARALLEL1,
    )(wyT, imgp, wxT)
    return out[:n]


# ------------------------------ parameters ---------------------------------

def init_params(key):
    ks = jax.random.split(key, 12)

    def rnd(k, shape, scale=0.05):
        return scale * jax.random.normal(k, shape, dtype=jnp.float32)

    return {
        # localization network
        "loc_w1": rnd(ks[0], (8, 1, 7, 7)),  "loc_b1": rnd(ks[1], (8,)),
        "loc_w2": rnd(ks[2], (10, 8, 5, 5)), "loc_b2": rnd(ks[3], (10,)),
        "floc_w1": rnd(ks[4], (32, 90)),     "floc_b1": rnd(ks[5], (32,)),
        # fc_loc[2] is initialized to identity affine (as in the PyTorch module)
        "floc_w2": jnp.zeros((6, 32), jnp.float32),
        "floc_b2": jnp.array([1.0, 0.0, 0.0, 0.0, 1.0, 0.0], jnp.float32),
        # main classifier
        "c1_w": rnd(ks[6], (10, 1, 5, 5)),   "c1_b": rnd(ks[7], (10,)),
        "c2_w": rnd(ks[8], (20, 10, 5, 5)),  "c2_b": rnd(ks[9], (20,)),
        "fc1_w": rnd(ks[10], (50, 320)),     "fc1_b": jnp.zeros((50,), jnp.float32),
        "fc2_w": rnd(ks[11], (10, 50)),      "fc2_b": jnp.zeros((10,), jnp.float32),
    }


# -------------------------------- forward ----------------------------------

def forward(x, p):
    """x: (N, 1, 28, 28) NCHW -> (N, 10) log-probs (eval mode; dropout = identity)."""
    n, c, hh, ww = x.shape
    x_cf = x.reshape(1, n, hh, ww)                   # (C=1, N, H, W)  (pure reshape, C==1)

    # --- stn: localization (ReLU fused into conv epilogue; pool is pure max) ---
    h = conv2d_cf(x_cf, p["loc_w1"], p["loc_b1"], activation="relu")   # (8, N, 22, 22)
    h = maxpool2_cf(h)                                                 # (8, N, 11, 11)
    h = conv2d_cf(h, p["loc_w2"], p["loc_b2"], activation="relu")      # (10, N, 7, 7)
    h = maxpool2_cf(h)                                                 # (10, N, 3, 3)
    xsT = h.transpose(0, 2, 3, 1).reshape(90, n)                       # (90, N), (C,H,W) order
    thetaT = fused_fc(xsT, p["floc_w1"], p["floc_b1"],
                      p["floc_w2"], p["floc_b2"], final=None)          # (6, N)
    theta = thetaT.T.reshape(n, 2, 3)

    xt = grid_sample_affine(x.reshape(n, hh, ww), theta)               # (N, 784)
    xt_cf = xt.reshape(n, hh, ww).reshape(1, n, hh, ww)                # (1, N, 28, 28)

    # --- classifier ---
    h = conv2d_cf(xt_cf, p["c1_w"], p["c1_b"], activation="relu")      # (10, N, 24, 24)
    h = maxpool2_cf(h)                                                 # (10, N, 12, 12)
    # Dropout2d: identity in eval mode
    h = conv2d_cf(h, p["c2_w"], p["c2_b"], activation="relu")          # (20, N, 8, 8)
    h = maxpool2_cf(h)                                                 # (20, N, 4, 4)
    hT = h.transpose(0, 2, 3, 1).reshape(320, n)                       # (320, N), (C,H,W) order
    # F.dropout(training=False): identity in eval mode
    outT = fused_fc(hT, p["fc1_w"], p["fc1_b"],
                    p["fc2_w"], p["fc2_b"], final="log_softmax")       # (10, N)
    return outT.T                                                      # (N, 10)


if __name__ == "__main__":
    key = jax.random.PRNGKey(0)
    pkey, xkey = jax.random.split(key)
    params = init_params(pkey)
    # MNIST-shaped input (the module's fc1(320) / fc_loc(90) require 28x28).
    x = jax.random.normal(xkey, (2, 1, 28, 28), dtype=jnp.float32)

    out = jax.jit(forward)(x, params)
    out = jax.block_until_ready(out)

    assert out.shape == (2, 10)
    assert bool(jnp.all(jnp.isfinite(out)))
    print("KERNEL_OK")
</pallas_src>

<mosaic_0001>
module attributes {stable_mosaic.version = 11 : i64} {
  func.func @_conv_mm_kernel(%arg0: i32, %arg1: memref<8x49xbf16, #tpu.memory_space<vmem>>, %arg2: memref<49x512xbf16, #tpu.memory_space<vmem>>, %arg3: memref<8x1xf32, #tpu.memory_space<vmem>>, %arg4: memref<8x512xf32, #tpu.memory_space<vmem>>) attributes {dimension_semantics = [#tpu.dimension_semantics<parallel>], iteration_bounds = array<i64: 2>, scalar_prefetch = 0 : i64, scratch_operands = 0 : i64, tpu.core_type = #tpu.core_type<tc>, window_params = [{pipeline_mode = #tpu.pipeline_mode<synchronous>, transform_indices = @transform_0, window_bounds = array<i64: 8, 49>}, {transform_indices = @transform_1, window_bounds = array<i64: 49, 512>}, {pipeline_mode = #tpu.pipeline_mode<synchronous>, transform_indices = @transform_2, window_bounds = array<i64: 8, 1>}, {transform_indices = @transform_3, window_bounds = array<i64: 8, 512>}]} {
    %c0 = arith.constant 0 : index
    %c0_0 = arith.constant 0 : index
    %0 = vector.load %arg1[%c0, %c0_0] : memref<8x49xbf16, #tpu.memory_space<vmem>>, vector<8x49xbf16>
    %c0_1 = arith.constant 0 : index
    %c0_2 = arith.constant 0 : index
    %1 = vector.load %arg2[%c0_1, %c0_2] : memref<49x512xbf16, #tpu.memory_space<vmem>>, vector<49x512xbf16>
    %cst = arith.constant dense<0.000000e+00> : vector<8x512xf32>
    %2 = tpu.matmul %0, %1, %cst {dimension_numbers = #tpu.dot_dimension_numbers<[1], [0], [0], [1], [0, 0, 1, 1], [], []>} : vector<8x49xbf16>, vector<49x512xbf16>, vector<8x512xf32> -> vector<8x512xf32>
    %c0_3 = arith.constant 0 : index
    %c0_4 = arith.constant 0 : index
    %3 = vector.load %arg3[%c0_3, %c0_4] : memref<8x1xf32, #tpu.memory_space<vmem>>, vector<8x1xf32>
    %4 = vector.broadcast %3 : vector<8x1xf32> to vector<8x512xf32>
    %5 = arith.addf %2, %4 : vector<8x512xf32>
    %cst_5 = arith.constant 0.000000e+00 : f32
    %6 = vector.broadcast %cst_5 : f32 to vector<8x512xf32>
    %7 = arith.maximumf %5, %6 : vector<8x512xf32>
    %c0_6 = arith.constant 0 : index
    %c0_7 = arith.constant 0 : index
    %8 = vector.load %arg4[%c0_6, %c0_7] : memref<8x512xf32, #tpu.memory_space<vmem>>, vector<8x512xf32>
    tpu.vector_store %arg4[%c0_6, %c0_7], %7 {strides = array<i32>} : memref<8x512xf32, #tpu.memory_space<vmem>>, vector<8x512xf32>,
    return
  }
  func.func @transform_0(%arg0: i32) -> (i32, i32) {
    %c0_i32 = arith.constant 0 : i32
    %c0_i32_0 = arith.constant 0 : i32
    %c0_i32_1 = arith.constant 0 : i32
    return %c0_i32, %c0_i32_0 : i32, i32
  }
  func.func @transform_1(%arg0: i32) -> (i32, i32) {
    %c0_i32 = arith.constant 0 : i32
    %c0_i32_0 = arith.constant 0 : i32
    return %c0_i32, %arg0 : i32, i32
  }
  func.func @transform_2(%arg0: i32) -> (i32, i32) {
    %c0_i32 = arith.constant 0 : i32
    %c0_i32_0 = arith.constant 0 : i32
    %c0_i32_1 = arith.constant 0 : i32
    return %c0_i32, %c0_i32_0 : i32, i32
  }
  func.func @transform_3(%arg0: i32) -> (i32, i32) {
    %c0_i32 = arith.constant 0 : i32
    %c0_i32_0 = arith.constant 0 : i32
    return %c0_i32, %arg0 : i32, i32
  }
}

module attributes {stable_mosaic.version = 11 : i64} {
  func.func @_max4_kernel(%arg0: i32, %arg1: memref<4x8x256xf32, #tpu.memory_space<vmem>>, %arg2: memref<8x256xf32, #tpu.memory_space<vmem>>) attributes {dimension_semantics = [#tpu.dimension_semantics<parallel>], iteration_bounds = array<i64: 1>, scalar_prefetch = 0 : i64, scratch_operands = 0 : i64, tpu.core_type = #tpu.core_type<tc>, window_params = [{transform_indices = @transform_0, window_bounds = array<i64: 4, 8, 256>}, {transform_indices = @transform_1, window_bounds = array<i64: 8, 256>}]} {
    %c0 = arith.constant 0 : index
    %c0_0 = arith.constant 0 : index
    %c0_1 = arith.constant 0 : index
    %0 = vector.load %arg1[%c0, %c0_0, %c0_1] : memref<4x8x256xf32, #tpu.memory_space<vmem>>, vector<4x8x256xf32>
    %cst = arith.constant dense<0xFF800000> : vector<8x256xf32>
    %1 = vector.multi_reduction <maximumf>, %0, %cst [0] : vector<4x8x256xf32> to vector<8x256xf32>
    %c0_2 = arith.constant 0 : index
    %c0_3 = arith.constant 0 : index
    %2 = vector.load %arg2[%c0_2, %c0_3] : memref<8x256xf32, #tpu.memory_space<vmem>>, vector<8x256xf32>
    tpu.vector_store %arg2[%c0_2, %c0_3], %1 {strides = array<i32>} : memref<8x256xf32, #tpu.memory_space<vmem>>, vector<8x256xf32>,
    return
  }
  func.func @transform_0(%arg0: i32) -> (i32, i32, i32) {
    %c0_i32 = arith.constant 0 : i32
    %c0_i32_0 = arith.constant 0 : i32
    %c0_i32_1 = arith.constant 0 : i32
    return %c0_i32, %c0_i32_0, %arg0 : i32, i32, i32
  }
  func.func @transform_1(%arg0: i32) -> (i32, i32) {
    %c0_i32 = arith.constant 0 : i32
    %c0_i32_0 = arith.constant 0 : i32
    return %c0_i32, %arg0 : i32, i32
  }
}

module attributes {stable_mosaic.version = 11 : i64} {
  func.func @_conv_mm_kernel(%arg0: i32, %arg1: memref<10x200xbf16, #tpu.memory_space<vmem>>, %arg2: memref<200x128xbf16, #tpu.memory_space<vmem>>, %arg3: memref<10x1xf32, #tpu.memory_space<vmem>>, %arg4: memref<10x128xf32, #tpu.memory_space<vmem>>) attributes {dimension_semantics = [#tpu.dimension_semantics<parallel>], iteration_bounds = array<i64: 1>, scalar_prefetch = 0 : i64, scratch_operands = 0 : i64, tpu.core_type = #tpu.core_type<tc>, window_params = [{pipeline_mode = #tpu.pipeline_mode<synchronous>, transform_indices = @transform_0, window_bounds = array<i64: 10, 200>}, {transform_indices = @transform_1, window_bounds = array<i64: 200, 128>}, {pipeline_mode = #tpu.pipeline_mode<synchronous>, transform_indices = @transform_2, window_bounds = array<i64: 10, 1>}, {transform_indices = @transform_3, window_bounds = array<i64: 10, 128>}]} {
    %c0 = arith.constant 0 : index
    %c0_0 = arith.constant 0 : index
    %0 = vector.load %arg1[%c0, %c0_0] : memref<10x200xbf16, #tpu.memory_space<vmem>>, vector<10x200xbf16>
    %c0_1 = arith.constant 0 : index
    %c0_2 = arith.constant 0 : index
    %1 = vector.load %arg2[%c0_1, %c0_2] : memref<200x128xbf16, #tpu.memory_space<vmem>>, vector<200x128xbf16>
    %cst = arith.constant dense<0.000000e+00> : vector<10x128xf32>
    %2 = tpu.matmul %0, %1, %cst {dimension_numbers = #tpu.dot_dimension_numbers<[1], [0], [0], [1], [0, 0, 1, 1], [], []>} : vector<10x200xbf16>, vector<200x128xbf16>, vector<10x128xf32> -> vector<10x128xf32>
    %c0_3 = arith.constant 0 : index
    %c0_4 = arith.constant 0 : index
    %3 = vector.load %arg3[%c0_3, %c0_4] : memref<10x1xf32, #tpu.memory_space<vmem>>, vector<10x1xf32>
    %4 = vector.broadcast %3 : vector<10x1xf32> to vector<10x128xf32>
    %5 = arith.addf %2, %4 : vector<10x128xf32>
    %cst_5 = arith.constant 0.000000e+00 : f32
    %6 = vector.broadcast %cst_5 : f32 to vector<10x128xf32>
    %7 = arith.maximumf %5, %6 : vector<10x128xf32>
    %c0_6 = arith.constant 0 : index
    %c0_7 = arith.constant 0 : index
    %8 = vector.load %arg4[%c0_6, %c0_7] : memref<10x128xf32, #tpu.memory_space<vmem>>, vector<10x128xf32>
    tpu.vector_store %arg4[%c0_6, %c0_7], %7 {strides = array<i32>} : memref<10x128xf32, #tpu.memory_space<vmem>>, vector<10x128xf32>,
    return
  }
  func.func @transform_0(%arg0: i32) -> (i32, i32) {
    %c0_i32 = arith.constant 0 : i32
    %c0_i32_0 = arith.constant 0 : i32
    %c0_i32_1 = arith.constant 0 : i32
    return %c0_i32, %c0_i32_0 : i32, i32
  }
  func.func @transform_1(%arg0: i32) -> (i32, i32) {
    %c0_i32 = arith.constant 0 : i32
    %c0_i32_0 = arith.constant 0 : i32
    return %c0_i32, %arg0 : i32, i32
  }
  func.func @transform_2(%arg0: i32) -> (i32, i32) {
    %c0_i32 = arith.constant 0 : i32
    %c0_i32_0 = arith.constant 0 : i32
    %c0_i32_1 = arith.constant 0 : i32
    return %c0_i32, %c0_i32_0 : i32, i32
  }
  func.func @transform_3(%arg0: i32) -> (i32, i32) {
    %c0_i32 = arith.constant 0 : i32
    %c0_i32_0 = arith.constant 0 : i32
    return %c0_i32, %arg0 : i32, i32
  }
}

module attributes {stable_mosaic.version = 11 : i64} {
  func.func @_max4_kernel(%arg0: i32, %arg1: memref<4x10x128xf32, #tpu.memory_space<vmem>>, %arg2: memref<10x128xf32, #tpu.memory_space<vmem>>) attributes {dimension_semantics = [#tpu.dimension_semantics<parallel>], iteration_bounds = array<i64: 1>, scalar_prefetch = 0 : i64, scratch_operands = 0 : i64, tpu.core_type = #tpu.core_type<tc>, window_params = [{transform_indices = @transform_0, window_bounds = array<i64: 4, 10, 128>}, {transform_indices = @transform_1, window_bounds = array<i64: 10, 128>}]} {
    %c0 = arith.constant 0 : index
    %c0_0 = arith.constant 0 : index
    %c0_1 = arith.constant 0 : index
    %0 = vector.load %arg1[%c0, %c0_0, %c0_1] : memref<4x10x128xf32, #tpu.memory_space<vmem>>, vector<4x10x128xf32>
    %cst = arith.constant dense<0xFF800000> : vector<10x128xf32>
    %1 = vector.multi_reduction <maximumf>, %0, %cst [0] : vector<4x10x128xf32> to vector<10x128xf32>
    %c0_2 = arith.constant 0 : index
    %c0_3 = arith.constant 0 : index
    %2 = vector.load %arg2[%c0_2, %c0_3] : memref<10x128xf32, #tpu.memory_space<vmem>>, vector<10x128xf32>
    tpu.vector_store %arg2[%c0_2, %c0_3], %1 {strides = array<i32>} : memref<10x128xf32, #tpu.memory_space<vmem>>, vector<10x128xf32>,
    return
  }
  func.func @transform_0(%arg0: i32) -> (i32, i32, i32) {
    %c0_i32 = arith.constant 0 : i32
    %c0_i32_0 = arith.constant 0 : i32
    %c0_i32_1 = arith.constant 0 : i32
    return %c0_i32, %c0_i32_0, %arg0 : i32, i32, i32
  }
  func.func @transform_1(%arg0: i32) -> (i32, i32) {
    %c0_i32 = arith.constant 0 : i32
    %c0_i32_0 = arith.constant 0 : i32
    return %c0_i32, %arg0 : i32, i32
  }
}

module attributes {stable_mosaic.version = 11 : i64} {
  func.func @_fused_fc_kernel(%arg0: i32, %arg1: memref<90x128xf32, #tpu.memory_space<vmem>>, %arg2: memref<32x90xf32, #tpu.memory_space<vmem>>, %arg3: memref<32x1xf32, #tpu.memory_space<vmem>>, %arg4: memref<6x32xf32, #tpu.memory_space<vmem>>, %arg5: memref<6x1xf32, #tpu.memory_space<vmem>>, %arg6: memref<6x128xf32, #tpu.memory_space<vmem>>) attributes {dimension_semantics = [#tpu.dimension_semantics<parallel>], iteration_bounds = array<i64: 1>, scalar_prefetch = 0 : i64, scratch_operands = 0 : i64, tpu.core_type = #tpu.core_type<tc>, window_params = [{transform_indices = @transform_0, window_bounds = array<i64: 90, 128>}, {pipeline_mode = #tpu.pipeline_mode<synchronous>, transform_indices = @transform_1, window_bounds = array<i64: 32, 90>}, {pipeline_mode = #tpu.pipeline_mode<synchronous>, transform_indices = @transform_2, window_bounds = array<i64: 32, 1>}, {pipeline_mode = #tpu.pipeline_mode<synchronous>, transform_indices = @transform_3, window_bounds = array<i64: 6, 32>}, {pipeline_mode = #tpu.pipeline_mode<synchronous>, transform_indices = @transform_4, window_bounds = array<i64: 6, 1>}, {transform_indices = @transform_5, window_bounds = array<i64: 6, 128>}]} {
    %c0 = arith.constant 0 : index
    %c0_0 = arith.constant 0 : index
    %0 = vector.load %arg2[%c0, %c0_0] : memref<32x90xf32, #tpu.memory_space<vmem>>, vector<32x90xf32>
    %c0_1 = arith.constant 0 : index
    %c0_2 = arith.constant 0 : index
    %1 = vector.load %arg1[%c0_1, %c0_2] : memref<90x128xf32, #tpu.memory_space<vmem>>, vector<90x128xf32>
    %cst = arith.constant dense<0.000000e+00> : vector<32x128xf32>
    %2 = tpu.matmul %0, %1, %cst {dimension_numbers = #tpu.dot_dimension_numbers<[1], [0], [0], [1], [0, 0, 1, 1], [], []>} : vector<32x90xf32>, vector<90x128xf32>, vector<32x128xf32> -> vector<32x128xf32>
    %c0_3 = arith.constant 0 : index
    %c0_4 = arith.constant 0 : index
    %3 = vector.load %arg3[%c0_3, %c0_4] : memref<32x1xf32, #tpu.memory_space<vmem>>, vector<32x1xf32>
    %4 = vector.broadcast %3 : vector<32x1xf32> to vector<32x128xf32>
    %5 = arith.addf %2, %4 : vector<32x128xf32>
    %cst_5 = arith.constant 0.000000e+00 : f32
    %6 = vector.broadcast %cst_5 : f32 to vector<32x128xf32>
    %7 = arith.maximumf %5, %6 : vector<32x128xf32>
    %c0_6 = arith.constant 0 : index
    %c0_7 = arith.constant 0 : index
    %8 = vector.load %arg4[%c0_6, %c0_7] : memref<6x32xf32, #tpu.memory_space<vmem>>, vector<6x32xf32>
    %cst_8 = arith.constant dense<0.000000e+00> : vector<6x128xf32>
    %9 = tpu.matmul %8, %7, %cst_8 {dimension_numbers = #tpu.dot_dimension_numbers<[1], [0], [0], [1], [0, 0, 1, 1], [], []>} : vector<6x32xf32>, vector<32x128xf32>, vector<6x128xf32> -> vector<6x128xf32>
    %c0_9 = arith.constant 0 : index
    %c0_10 = arith.constant 0 : index
    %10 = vector.load %arg5[%c0_9, %c0_10] : memref<6x1xf32, #tpu.memory_space<vmem>>, vector<6x1xf32>
    %11 = vector.broadcast %10 : vector<6x1xf32> to vector<6x128xf32>
    %12 = arith.addf %9, %11 : vector<6x128xf32>
    %c0_11 = arith.constant 0 : index
    %c0_12 = arith.constant 0 : index
    %13 = vector.load %arg6[%c0_11, %c0_12] : memref<6x128xf32, #tpu.memory_space<vmem>>, vector<6x128xf32>
    tpu.vector_store %arg6[%c0_11, %c0_12], %12 {strides = array<i32>} : memref<6x128xf32, #tpu.memory_space<vmem>>, vector<6x128xf32>,
    return
  }
  func.func @transform_0(%arg0: i32) -> (i32, i32) {
    %c0_i32 = arith.constant 0 : i32
    %c0_i32_0 = arith.constant 0 : i32
    return %c0_i32, %arg0 : i32, i32
  }
  func.func @transform_1(%arg0: i32) -> (i32, i32) {
    %c0_i32 = arith.constant 0 : i32
    %c0_i32_0 = arith.constant 0 : i32
    %c0_i32_1 = arith.constant 0 : i32
    return %c0_i32, %c0_i32_0 : i32, i32
  }
  func.func @transform_2(%arg0: i32) -> (i32, i32) {
    %c0_i32 = arith.constant 0 : i32
    %c0_i32_0 = arith.constant 0 : i32
    %c0_i32_1 = arith.constant 0 : i32
    return %c0_i32, %c0_i32_0 : i32, i32
  }
  func.func @transform_3(%arg0: i32) -> (i32, i32) {
    %c0_i32 = arith.constant 0 : i32
    %c0_i32_0 = arith.constant 0 : i32
    %c0_i32_1 = arith.constant 0 : i32
    return %c0_i32, %c0_i32_0 : i32, i32
  }
  func.func @transform_4(%arg0: i32) -> (i32, i32) {
    %c0_i32 = arith.constant 0 : i32
    %c0_i32_0 = arith.constant 0 : i32
    %c0_i32_1 = arith.constant 0 : i32
    return %c0_i32, %c0_i32_0 : i32, i32
  }
  func.func @transform_5(%arg0: i32) -> (i32, i32) {
    %c0_i32 = arith.constant 0 : i32
    %c0_i32_0 = arith.constant 0 : i32
    return %c0_i32, %arg0 : i32, i32
  }
}

module attributes {stable_mosaic.version = 11 : i64} {
  func.func @_grid_sample_kernel(%arg0: i32, %arg1: memref<8x28x784xbf16, #tpu.memory_space<vmem>>, %arg2: memref<8x28x28xbf16, #tpu.memory_space<vmem>>, %arg3: memref<8x28x784xbf16, #tpu.memory_space<vmem>>, %arg4: memref<8x784xf32, #tpu.memory_space<vmem>>) attributes {dimension_semantics = [#tpu.dimension_semantics<parallel>], iteration_bounds = array<i64: 1>, scalar_prefetch = 0 : i64, scratch_operands = 0 : i64, tpu.core_type = #tpu.core_type<tc>, window_params = [{transform_indices = @transform_0, window_bounds = array<i64: 8, 28, 784>}, {transform_indices = @transform_1, window_bounds = array<i64: 8, 28, 28>}, {transform_indices = @transform_2, window_bounds = array<i64: 8, 28, 784>}, {transform_indices = @transform_3, window_bounds = array<i64: 8, 784>}]} {
    %c0 = arith.constant 0 : index
    %c0_0 = arith.constant 0 : index
    %c0_1 = arith.constant 0 : index
    %0 = vector.load %arg2[%c0, %c0_0, %c0_1] : memref<8x28x28xbf16, #tpu.memory_space<vmem>>, vector<8x28x28xbf16>
    %c0_2 = arith.constant 0 : index
    %c0_3 = arith.constant 0 : index
    %c0_4 = arith.constant 0 : index
    %1 = vector.load %arg1[%c0_2, %c0_3, %c0_4] : memref<8x28x784xbf16, #tpu.memory_space<vmem>>, vector<8x28x784xbf16>
    "tpu.trace_start"() <{level = 10 : i32, message = "brc,brp->bcp"}> : () -> ()
    %cst = arith.constant dense<0.000000e+00> : vector<8x28x784xf32>
    %2 = tpu.matmul %0, %1, %cst {dimension_numbers = #tpu.dot_dimension_numbers<[1], [1], [2], [2], [0, 0, 0, 2, 1, 2], [0], [0]>} : vector<8x28x28xbf16>, vector<8x28x784xbf16>, vector<8x28x784xf32> -> vector<8x28x784xf32>
    "tpu.trace_stop"() : () -> ()
    %c0_5 = arith.constant 0 : index
    %c0_6 = arith.constant 0 : index
    %c0_7 = arith.constant 0 : index
    %3 = vector.load %arg3[%c0_5, %c0_6, %c0_7] : memref<8x28x784xbf16, #tpu.memory_space<vmem>>, vector<8x28x784xbf16>
    %4 = arith.extf %3 : vector<8x28x784xbf16> to vector<8x28x784xf32>
    %5 = arith.mulf %2, %4 : vector<8x28x784xf32>
    %cst_8 = arith.constant dense<0.000000e+00> : vector<8x784xf32>
    %6 = vector.multi_reduction <add>, %5, %cst_8 [1] : vector<8x28x784xf32> to vector<8x784xf32>
    %c0_9 = arith.constant 0 : index
    %c0_10 = arith.constant 0 : index
    %7 = vector.load %arg4[%c0_9, %c0_10] : memref<8x784xf32, #tpu.memory_space<vmem>>, vector<8x784xf32>
    tpu.vector_store %arg4[%c0_9, %c0_10], %6 {strides = array<i32>} : memref<8x784xf32, #tpu.memory_space<vmem>>, vector<8x784xf32>,
    return
  }
  func.func @transform_0(%arg0: i32) -> (i32, i32, i32) {
    %c0_i32 = arith.constant 0 : i32
    %c0_i32_0 = arith.constant 0 : i32
    %c0_i32_1 = arith.constant 0 : i32
    return %arg0, %c0_i32, %c0_i32_0 : i32, i32, i32
  }
  func.func @transform_1(%arg0: i32) -> (i32, i32, i32) {
    %c0_i32 = arith.constant 0 : i32
    %c0_i32_0 = arith.constant 0 : i32
    %c0_i32_1 = arith.constant 0 : i32
    return %arg0, %c0_i32, %c0_i32_0 : i32, i32, i32
  }
  func.func @transform_2(%arg0: i32) -> (i32, i32, i32) {
    %c0_i32 = arith.constant 0 : i32
    %c0_i32_0 = arith.constant 0 : i32
    %c0_i32_1 = arith.constant 0 : i32
    return %arg0, %c0_i32, %c0_i32_0 : i32, i32, i32
  }
  func.func @transform_3(%arg0: i32) -> (i32, i32) {
    %c0_i32 = arith.constant 0 : i32
    %c0_i32_0 = arith.constant 0 : i32
    return %arg0, %c0_i32 : i32, i32
  }
}

module attributes {stable_mosaic.version = 11 : i64} {
  func.func @_conv_mm_kernel(%arg0: i32, %arg1: memref<10x25xbf16, #tpu.memory_space<vmem>>, %arg2: memref<25x512xbf16, #tpu.memory_space<vmem>>, %arg3: memref<10x1xf32, #tpu.memory_space<vmem>>, %arg4: memref<10x512xf32, #tpu.memory_space<vmem>>) attributes {dimension_semantics = [#tpu.dimension_semantics<parallel>], iteration_bounds = array<i64: 3>, scalar_prefetch = 0 : i64, scratch_operands = 0 : i64, tpu.core_type = #tpu.core_type<tc>, window_params = [{pipeline_mode = #tpu.pipeline_mode<synchronous>, transform_indices = @transform_0, window_bounds = array<i64: 10, 25>}, {transform_indices = @transform_1, window_bounds = array<i64: 25, 512>}, {pipeline_mode = #tpu.pipeline_mode<synchronous>, transform_indices = @transform_2, window_bounds = array<i64: 10, 1>}, {transform_indices = @transform_3, window_bounds = array<i64: 10, 512>}]} {
    %c0 = arith.constant 0 : index
    %c0_0 = arith.constant 0 : index
    %0 = vector.load %arg1[%c0, %c0_0] : memref<10x25xbf16, #tpu.memory_space<vmem>>, vector<10x25xbf16>
    %c0_1 = arith.constant 0 : index
    %c0_2 = arith.constant 0 : index
    %1 = vector.load %arg2[%c0_1, %c0_2] : memref<25x512xbf16, #tpu.memory_space<vmem>>, vector<25x512xbf16>
    %cst = arith.constant dense<0.000000e+00> : vector<10x512xf32>
    %2 = tpu.matmul %0, %1, %cst {dimension_numbers = #tpu.dot_dimension_numbers<[1], [0], [0], [1], [0, 0, 1, 1], [], []>} : vector<10x25xbf16>, vector<25x512xbf16>, vector<10x512xf32> -> vector<10x512xf32>
    %c0_3 = arith.constant 0 : index
    %c0_4 = arith.constant 0 : index
    %3 = vector.load %arg3[%c0_3, %c0_4] : memref<10x1xf32, #tpu.memory_space<vmem>>, vector<10x1xf32>
    %4 = vector.broadcast %3 : vector<10x1xf32> to vector<10x512xf32>
    %5 = arith.addf %2, %4 : vector<10x512xf32>
    %cst_5 = arith.constant 0.000000e+00 : f32
    %6 = vector.broadcast %cst_5 : f32 to vector<10x512xf32>
    %7 = arith.maximumf %5, %6 : vector<10x512xf32>
    %c0_6 = arith.constant 0 : index
    %c0_7 = arith.constant 0 : index
    %8 = vector.load %arg4[%c0_6, %c0_7] : memref<10x512xf32, #tpu.memory_space<vmem>>, vector<10x512xf32>
    tpu.vector_store %arg4[%c0_6, %c0_7], %7 {strides = array<i32>} : memref<10x512xf32, #tpu.memory_space<vmem>>, vector<10x512xf32>,
    return
  }
  func.func @transform_0(%arg0: i32) -> (i32, i32) {
    %c0_i32 = arith.constant 0 : i32
    %c0_i32_0 = arith.constant 0 : i32
    %c0_i32_1 = arith.constant 0 : i32
    return %c0_i32, %c0_i32_0 : i32, i32
  }
  func.func @transform_1(%arg0: i32) -> (i32, i32) {
    %c0_i32 = arith.constant 0 : i32
    %c0_i32_0 = arith.constant 0 : i32
    return %c0_i32, %arg0 : i32, i32
  }
  func.func @transform_2(%arg0: i32) -> (i32, i32) {
    %c0_i32 = arith.constant 0 : i32
    %c0_i32_0 = arith.constant 0 : i32
    %c0_i32_1 = arith.constant 0 : i32
    return %c0_i32, %c0_i32_0 : i32, i32
  }
  func.func @transform_3(%arg0: i32) -> (i32, i32) {
    %c0_i32 = arith.constant 0 : i32
    %c0_i32_0 = arith.constant 0 : i32
    return %c0_i32, %arg0 : i32, i32
  }
}

module attributes {stable_mosaic.version = 11 : i64} {
  func.func @_max4_kernel(%arg0: i32, %arg1: memref<4x10x384xf32, #tpu.memory_space<vmem>>, %arg2: memref<10x384xf32, #tpu.memory_space<vmem>>) attributes {dimension_semantics = [#tpu.dimension_semantics<parallel>], iteration_bounds = array<i64: 1>, scalar_prefetch = 0 : i64, scratch_operands = 0 : i64, tpu.core_type = #tpu.core_type<tc>, window_params = [{transform_indices = @transform_0, window_bounds = array<i64: 4, 10, 384>}, {transform_indices = @transform_1, window_bounds = array<i64: 10, 384>}]} {
    %c0 = arith.constant 0 : index
    %c0_0 = arith.constant 0 : index
    %c0_1 = arith.constant 0 : index
    %0 = vector.load %arg1[%c0, %c0_0, %c0_1] : memref<4x10x384xf32, #tpu.memory_space<vmem>>, vector<4x10x384xf32>
    %cst = arith.constant dense<0xFF800000> : vector<10x384xf32>
    %1 = vector.multi_reduction <maximumf>, %0, %cst [0] : vector<4x10x384xf32> to vector<10x384xf32>
    %c0_2 = arith.constant 0 : index
    %c0_3 = arith.constant 0 : index
    %2 = vector.load %arg2[%c0_2, %c0_3] : memref<10x384xf32, #tpu.memory_space<vmem>>, vector<10x384xf32>
    tpu.vector_store %arg2[%c0_2, %c0_3], %1 {strides = array<i32>} : memref<10x384xf32, #tpu.memory_space<vmem>>, vector<10x384xf32>,
    return
  }
  func.func @transform_0(%arg0: i32) -> (i32, i32, i32) {
    %c0_i32 = arith.constant 0 : i32
    %c0_i32_0 = arith.constant 0 : i32
    %c0_i32_1 = arith.constant 0 : i32
    return %c0_i32, %c0_i32_0, %arg0 : i32, i32, i32
  }
  func.func @transform_1(%arg0: i32) -> (i32, i32) {
    %c0_i32 = arith.constant 0 : i32
    %c0_i32_0 = arith.constant 0 : i32
    return %c0_i32, %arg0 : i32, i32
  }
}

module attributes {stable_mosaic.version = 11 : i64} {
  func.func @_conv_mm_kernel(%arg0: i32, %arg1: memref<20x250xbf16, #tpu.memory_space<vmem>>, %arg2: memref<250x128xbf16, #tpu.memory_space<vmem>>, %arg3: memref<20x1xf32, #tpu.memory_space<vmem>>, %arg4: memref<20x128xf32, #tpu.memory_space<vmem>>) attributes {dimension_semantics = [#tpu.dimension_semantics<parallel>], iteration_bounds = array<i64: 1>, scalar_prefetch = 0 : i64, scratch_operands = 0 : i64, tpu.core_type = #tpu.core_type<tc>, window_params = [{pipeline_mode = #tpu.pipeline_mode<synchronous>, transform_indices = @transform_0, window_bounds = array<i64: 20, 250>}, {transform_indices = @transform_1, window_bounds = array<i64: 250, 128>}, {pipeline_mode = #tpu.pipeline_mode<synchronous>, transform_indices = @transform_2, window_bounds = array<i64: 20, 1>}, {transform_indices = @transform_3, window_bounds = array<i64: 20, 128>}]} {
    %c0 = arith.constant 0 : index
    %c0_0 = arith.constant 0 : index
    %0 = vector.load %arg1[%c0, %c0_0] : memref<20x250xbf16, #tpu.memory_space<vmem>>, vector<20x250xbf16>
    %c0_1 = arith.constant 0 : index
    %c0_2 = arith.constant 0 : index
    %1 = vector.load %arg2[%c0_1, %c0_2] : memref<250x128xbf16, #tpu.memory_space<vmem>>, vector<250x128xbf16>
    %cst = arith.constant dense<0.000000e+00> : vector<20x128xf32>
    %2 = tpu.matmul %0, %1, %cst {dimension_numbers = #tpu.dot_dimension_numbers<[1], [0], [0], [1], [0, 0, 1, 1], [], []>} : vector<20x250xbf16>, vector<250x128xbf16>, vector<20x128xf32> -> vector<20x128xf32>
    %c0_3 = arith.constant 0 : index
    %c0_4 = arith.constant 0 : index
    %3 = vector.load %arg3[%c0_3, %c0_4] : memref<20x1xf32, #tpu.memory_space<vmem>>, vector<20x1xf32>
    %4 = vector.broadcast %3 : vector<20x1xf32> to vector<20x128xf32>
    %5 = arith.addf %2, %4 : vector<20x128xf32>
    %cst_5 = arith.constant 0.000000e+00 : f32
    %6 = vector.broadcast %cst_5 : f32 to vector<20x128xf32>
    %7 = arith.maximumf %5, %6 : vector<20x128xf32>
    %c0_6 = arith.constant 0 : index
    %c0_7 = arith.constant 0 : index
    %8 = vector.load %arg4[%c0_6, %c0_7] : memref<20x128xf32, #tpu.memory_space<vmem>>, vector<20x128xf32>
    tpu.vector_store %arg4[%c0_6, %c0_7], %7 {strides = array<i32>} : memref<20x128xf32, #tpu.memory_space<vmem>>, vector<20x128xf32>,
    return
  }
  func.func @transform_0(%arg0: i32) -> (i32, i32) {
    %c0_i32 = arith.constant 0 : i32
    %c0_i32_0 = arith.constant 0 : i32
    %c0_i32_1 = arith.constant 0 : i32
    return %c0_i32, %c0_i32_0 : i32, i32
  }
  func.func @transform_1(%arg0: i32) -> (i32, i32) {
    %c0_i32 = arith.constant 0 : i32
    %c0_i32_0 = arith.constant 0 : i32
    return %c0_i32, %arg0 : i32, i32
  }
  func.func @transform_2(%arg0: i32) -> (i32, i32) {
    %c0_i32 = arith.constant 0 : i32
    %c0_i32_0 = arith.constant 0 : i32
    %c0_i32_1 = arith.constant 0 : i32
    return %c0_i32, %c0_i32_0 : i32, i32
  }
  func.func @transform_3(%arg0: i32) -> (i32, i32) {
    %c0_i32 = arith.constant 0 : i32
    %c0_i32_0 = arith.constant 0 : i32
    return %c0_i32, %arg0 : i32, i32
  }
}

module attributes {stable_mosaic.version = 11 : i64} {
  func.func @_max4_kernel(%arg0: i32, %arg1: memref<4x20x128xf32, #tpu.memory_space<vmem>>, %arg2: memref<20x128xf32, #tpu.memory_space<vmem>>) attributes {dimension_semantics = [#tpu.dimension_semantics<parallel>], iteration_bounds = array<i64: 1>, scalar_prefetch = 0 : i64, scratch_operands = 0 : i64, tpu.core_type = #tpu.core_type<tc>, window_params = [{transform_indices = @transform_0, window_bounds = array<i64: 4, 20, 128>}, {transform_indices = @transform_1, window_bounds = array<i64: 20, 128>}]} {
    %c0 = arith.constant 0 : index
    %c0_0 = arith.constant 0 : index
    %c0_1 = arith.constant 0 : index
    %0 = vector.load %arg1[%c0, %c0_0, %c0_1] : memref<4x20x128xf32, #tpu.memory_space<vmem>>, vector<4x20x128xf32>
    %cst = arith.constant dense<0xFF800000> : vector<20x128xf32>
    %1 = vector.multi_reduction <maximumf>, %0, %cst [0] : vector<4x20x128xf32> to vector<20x128xf32>
    %c0_2 = arith.constant 0 : index
    %c0_3 = arith.constant 0 : index
    %2 = vector.load %arg2[%c0_2, %c0_3] : memref<20x128xf32, #tpu.memory_space<vmem>>, vector<20x128xf32>
    tpu.vector_store %arg2[%c0_2, %c0_3], %1 {strides = array<i32>} : memref<20x128xf32, #tpu.memory_space<vmem>>, vector<20x128xf32>,
    return
  }
  func.func @transform_0(%arg0: i32) -> (i32, i32, i32) {
    %c0_i32 = arith.constant 0 : i32
    %c0_i32_0 = arith.constant 0 : i32
    %c0_i32_1 = arith.constant 0 : i32
    return %c0_i32, %c0_i32_0, %arg0 : i32, i32, i32
  }
  func.func @transform_1(%arg0: i32) -> (i32, i32) {
    %c0_i32 = arith.constant 0 : i32
    %c0_i32_0 = arith.constant 0 : i32
    return %c0_i32, %arg0 : i32, i32
  }
}

module attributes {stable_mosaic.version = 11 : i64} {
  func.func @_fused_fc_kernel(%arg0: i32, %arg1: memref<320x128xf32, #tpu.memory_space<vmem>>, %arg2: memref<50x320xf32, #tpu.memory_space<vmem>>, %arg3: memref<50x1xf32, #tpu.memory_space<vmem>>, %arg4: memref<10x50xf32, #tpu.memory_space<vmem>>, %arg5: memref<10x1xf32, #tpu.memory_space<vmem>>, %arg6: memref<10x128xf32, #tpu.memory_space<vmem>>) attributes {dimension_semantics = [#tpu.dimension_semantics<parallel>], iteration_bounds = array<i64: 1>, scalar_prefetch = 0 : i64, scratch_operands = 0 : i64, tpu.core_type = #tpu.core_type<tc>, window_params = [{transform_indices = @transform_0, window_bounds = array<i64: 320, 128>}, {pipeline_mode = #tpu.pipeline_mode<synchronous>, transform_indices = @transform_1, window_bounds = array<i64: 50, 320>}, {pipeline_mode = #tpu.pipeline_mode<synchronous>, transform_indices = @transform_2, window_bounds = array<i64: 50, 1>}, {pipeline_mode = #tpu.pipeline_mode<synchronous>, transform_indices = @transform_3, window_bounds = array<i64: 10, 50>}, {pipeline_mode = #tpu.pipeline_mode<synchronous>, transform_indices = @transform_4, window_bounds = array<i64: 10, 1>}, {transform_indices = @transform_5, window_bounds = array<i64: 10, 128>}]} {
    %c0 = arith.constant 0 : index
    %c0_0 = arith.constant 0 : index
    %0 = vector.load %arg2[%c0, %c0_0] : memref<50x320xf32, #tpu.memory_space<vmem>>, vector<50x320xf32>
    %c0_1 = arith.constant 0 : index
    %c0_2 = arith.constant 0 : index
    %1 = vector.load %arg1[%c0_1, %c0_2] : memref<320x128xf32, #tpu.memory_space<vmem>>, vector<320x128xf32>
    %cst = arith.constant dense<0.000000e+00> : vector<50x128xf32>
    %2 = tpu.matmul %0, %1, %cst {dimension_numbers = #tpu.dot_dimension_numbers<[1], [0], [0], [1], [0, 0, 1, 1], [], []>} : vector<50x320xf32>, vector<320x128xf32>, vector<50x128xf32> -> vector<50x128xf32>
    %c0_3 = arith.constant 0 : index
    %c0_4 = arith.constant 0 : index
    %3 = vector.load %arg3[%c0_3, %c0_4] : memref<50x1xf32, #tpu.memory_space<vmem>>, vector<50x1xf32>
    %4 = vector.broadcast %3 : vector<50x1xf32> to vector<50x128xf32>
    %5 = arith.addf %2, %4 : vector<50x128xf32>
    %cst_5 = arith.constant 0.000000e+00 : f32
    %6 = vector.broadcast %cst_5 : f32 to vector<50x128xf32>
    %7 = arith.maximumf %5, %6 : vector<50x128xf32>
    %c0_6 = arith.constant 0 : index
    %c0_7 = arith.constant 0 : index
    %8 = vector.load %arg4[%c0_6, %c0_7] : memref<10x50xf32, #tpu.memory_space<vmem>>, vector<10x50xf32>
    %cst_8 = arith.constant dense<0.000000e+00> : vector<10x128xf32>
    %9 = tpu.matmul %8, %7, %cst_8 {dimension_numbers = #tpu.dot_dimension_numbers<[1], [0], [0], [1], [0, 0, 1, 1], [], []>} : vector<10x50xf32>, vector<50x128xf32>, vector<10x128xf32> -> vector<10x128xf32>
    %c0_9 = arith.constant 0 : index
    %c0_10 = arith.constant 0 : index
    %10 = vector.load %arg5[%c0_9, %c0_10] : memref<10x1xf32, #tpu.memory_space<vmem>>, vector<10x1xf32>
    %11 = vector.broadcast %10 : vector<10x1xf32> to vector<10x128xf32>
    %12 = arith.addf %9, %11 : vector<10x128xf32>
    %cst_11 = arith.constant dense<0xFF800000> : vector<128xf32>
    %13 = vector.multi_reduction <maximumf>, %12, %cst_11 [0] : vector<10x128xf32> to vector<128xf32>
    %14 = vector.shape_cast %13 : vector<128xf32> to vector<1x128xf32>
    %15 = vector.broadcast %14 : vector<1x128xf32> to vector<10x128xf32>
    %16 = arith.subf %12, %15 : vector<10x128xf32>
    %17 = math.exp %16 : vector<10x128xf32>
    %cst_12 = arith.constant dense<0.000000e+00> : vector<128xf32>
    %18 = vector.multi_reduction <add>, %17, %cst_12 [0] : vector<10x128xf32> to vector<128xf32>
    %19 = vector.shape_cast %18 : vector<128xf32> to vector<1x128xf32>
    %20 = math.log %19 : vector<1x128xf32>
    %21 = vector.broadcast %20 : vector<1x128xf32> to vector<10x128xf32>
    %22 = arith.subf %16, %21 : vector<10x128xf32>
    %c0_13 = arith.constant 0 : index
    %c0_14 = arith.constant 0 : index
    %23 = vector.load %arg6[%c0_13, %c0_14] : memref<10x128xf32, #tpu.memory_space<vmem>>, vector<10x128xf32>
    tpu.vector_store %arg6[%c0_13, %c0_14], %22 {strides = array<i32>} : memref<10x128xf32, #tpu.memory_space<vmem>>, vector<10x128xf32>,
    return
  }
  func.func @transform_0(%arg0: i32) -> (i32, i32) {
    %c0_i32 = arith.constant 0 : i32
    %c0_i32_0 = arith.constant 0 : i32
    return %c0_i32, %arg0 : i32, i32
  }
  func.func @transform_1(%arg0: i32) -> (i32, i32) {
    %c0_i32 = arith.constant 0 : i32
    %c0_i32_0 = arith.constant 0 : i32
    %c0_i32_1 = arith.constant 0 : i32
    return %c0_i32, %c0_i32_0 : i32, i32
  }
  func.func @transform_2(%arg0: i32) -> (i32, i32) {
    %c0_i32 = arith.constant 0 : i32
    %c0_i32_0 = arith.constant 0 : i32
    %c0_i32_1 = arith.constant 0 : i32
    return %c0_i32, %c0_i32_0 : i32, i32
  }
  func.func @transform_3(%arg0: i32) -> (i32, i32) {
    %c0_i32 = arith.constant 0 : i32
    %c0_i32_0 = arith.constant 0 : i32
    %c0_i32_1 = arith.constant 0 : i32
    return %c0_i32, %c0_i32_0 : i32, i32
  }
  func.func @transform_4(%arg0: i32) -> (i32, i32) {
    %c0_i32 = arith.constant 0 : i32
    %c0_i32_0 = arith.constant 0 : i32
    %c0_i32_1 = arith.constant 0 : i32
    return %c0_i32, %c0_i32_0 : i32, i32
  }
  func.func @transform_5(%arg0: i32) -> (i32, i32) {
    %c0_i32 = arith.constant 0 : i32
    %c0_i32_0 = arith.constant 0 : i32
    return %c0_i32, %arg0 : i32, i32
  }
}

</mosaic_0001>

<llo_original>
// kernel: forward.11
$region0: #{forward.11}
  #allocation0 [shape = 'u32[]', space=smem, size = 0x4, offset = 0x4, fixed_abs, tag = 'smem constant byte address 0x4 - core index']
  #allocation1 [shape = 'u32[144,128]{1,0:T(1,128)}', space=vmem, size = 0x12000, scoped, tag = 'internal scratch']
  %s0 = inlined_call_operand.vmem [shape: bf16[8,49], index: 0, kind: input, shape index: {}]
  %s1 = inlined_call_operand.vmem [shape: bf16[49,1024], index: 1, kind: input, shape index: {}]
  %s2 = inlined_call_operand.vmem [shape: f32[8,1], index: 2, kind: input, shape index: {}]
  %s3 = inlined_call_operand.vmem [shape: f32[8,1024], index: 3, kind: output, shape index: {}]
  %s4 = sld [smem:[#allocation0]]
  $region68: #{forward.11} parent=0
    _
  %s6 = ssub.s32 1, %s4
  %s7 = scalar_select 0, %s6, %s4
  $region1: #{forward.11} parent=0
    #allocation2 [shape = 'u8[114688]{0}', space=vmem, size = 0x1c000, scoped, tag = 'input window, operand 1']
    loop: start=0, step=1, limit=4
    $region2: #{forward.11} parent=1 // loop_pre_header
      _
    $region3: #{forward.11} parent=1 // loop_header
      %s9 = sphi 0, %s13
      %p10 = scmp.ge.s32.totalorder %s9, 4
      %s17 = sphi 0, %s17
      %s19 = sphi 0, %s17
      %s20 = sphi 0, %s19
      %s34 = sphi 0, %s20
      %s40 = sphi 0, %s42
      %s43 = sphi 0, %s40
      %s44 = sphi 0, %s43
      %s60 = sphi 0, %s44
      %s64 = sphi 0, %s64
      %s66 = sphi 0, %s64
      %s67 = sphi 0, %s66
      %s81 = sphi 0, %s67
      %s87 = sphi 0, %s89
      %s90 = sphi 0, %s87
      %s91 = sphi 0, %s90
      %s107 = sphi 0, %s91
    $region4: #{forward.11} parent=1 // loop_header_branch
      %12 = sbr.rel (%p10) target = $region8
    $region5: #{forward.11} parent=1 // loop_body
      %s14 = ssub.s32 %s9, 1
      %s15 = ssub.s32 %s9, 2
      %s16 = sadd.s32 %s9, 1
      %s18 = sadd.s32 %s17, 1
      %p21 = scmp.eq.s32.totalorder %s9, 1
      %p22 = scmp.ne.s32.totalorder %s17, %s19
      %p23 = scmp.eq.s32.totalorder %s9, 0
      %p24 = por %p22, %p23
      %p25 = scmp.ne.s32.totalorder %s17, %s19
      %p26 = scmp.eq.s32.totalorder %s14, 1
      %p27 = por %p25, %p26
      %p28 = scmp.ne.s32.totalorder %s19, %s20
      %p29 = scmp.eq.s32.totalorder %s14, 0
      %p30 = por %p28, %p29
      %p31 = scmp.ne.s32.totalorder %s19, %s20
      %p32 = scmp.eq.s32.totalorder %s15, 1
      %p33 = por %p31, %p32
      %p35 = scmp.ne.s32.totalorder %s20, %s34
      %p36 = scmp.eq.s32.totalorder %s15, 0
      %p37 = por %p35, %p36
      %s38 = ssub.s32 %s9, %s16
      %p39 = scmp.eq.s32.totalorder %s38, 0
      %s41 = sadd.s32 %s40, 1
      %s42 = scalar_select %p39, %s40, %s41
      %p45 = pneg %p39
      %p46 = scmp.eq.s32.totalorder %s9, 1
      %p47 = por %p45, %p46
      %p48 = scmp.ne.s32.totalorder %s40, %s43
      %p49 = scmp.eq.s32.totalorder %s9, 0
      %p50 = por %p48, %p49
      %p51 = scmp.ne.s32.totalorder %s40, %s43
      %p52 = scmp.eq.s32.totalorder %s14, 1
      %p53 = por %p51, %p52
      %p54 = scmp.ne.s32.totalorder %s43, %s44
      %p55 = scmp.eq.s32.totalorder %s14, 0
      %p56 = por %p54, %p55
      %p57 = scmp.ne.s32.totalorder %s43, %s44
      %p58 = scmp.eq.s32.totalorder %s15, 1
      %p59 = por %p57, %p58
      %p61 = scmp.ne.s32.totalorder %s44, %s60
      %p62 = scmp.eq.s32.totalorder %s15, 0
      %p63 = por %p61, %p62
      %s65 = sadd.s32 %s64, 1
      %p68 = scmp.eq.s32.totalorder %s9, 1
      %p69 = scmp.ne.s32.totalorder %s64, %s66
      %p70 = scmp.eq.s32.totalorder %s9, 0
      %p71 = por %p69, %p70
      %p72 = scmp.ne.s32.totalorder %s64, %s66
      %p73 = scmp.eq.s32.totalorder %s14, 1
      %p74 = por %p72, %p73
      %p75 = scmp.ne.s32.totalorder %s66, %s67
      %p76 = scmp.eq.s32.totalorder %s14, 0
      %p77 = por %p75, %p76
      %p78 = scmp.ne.s32.totalorder %s66, %s67
      %p79 = scmp.eq.s32.totalorder %s15, 1
      %p80 = por %p78, %p79
      %p82 = scmp.ne.s32.totalorder %s67, %s81
      %p83 = scmp.eq.s32.totalorder %s15, 0
      %p84 = por %p82, %p83
      %s85 = ssub.s32 %s9, %s16
      %p86 = scmp.eq.s32.totalorder %s85, 0
      %s88 = sadd.s32 %s87, 1
      %s89 = scalar_select %p86, %s87, %s88
      %p92 = pneg %p86
      %p93 = scmp.eq.s32.totalorder %s9, 1
      %p94 = por %p92, %p93
      %p95 = scmp.ne.s32.totalorder %s87, %s90
      %p96 = scmp.eq.s32.totalorder %s9, 0
      %p97 = por %p95, %p96
      %p98 = scmp.ne.s32.totalorder %s87, %s90
      %p99 = scmp.eq.s32.totalorder %s14, 1
      %p100 = por %p98, %p99
      %p101 = scmp.ne.s32.totalorder %s90, %s91
      %p102 = scmp.eq.s32.totalorder %s14, 0
      %p103 = por %p101, %p102
      %p104 = scmp.ne.s32.totalorder %s90, %s91
      %p105 = scmp.eq.s32.totalorder %s15, 1
      %p106 = por %p104, %p105
      %p108 = scmp.ne.s32.totalorder %s91, %s107
      %p109 = scmp.eq.s32.totalorder %s15, 0
      %p110 = por %p108, %p109
      %p111 = scmp.le.s32.totalorder 1, %s9
      %p112 = scmp.lt.s32.totalorder %s9, 3
      %p113 = pnand %p111, %p112
      %p114 = pneg %p113
      // Predicated region
      $region9: #{forward.11} parent=5 // pred_check
        _
      $region10: #{forward.11} parent=5 // pred_check_branch
        %116 = sbr.rel (%p113) target = $region12
      $region11: #{forward.11} parent=5 // pred_region
        %s117 = ssub.s32 %s9, 1
        // Predicated region
        $region13: #{forward.11} parent=11 // pred_check
          %p118 = pneg %p30
        $region14: #{forward.11} parent=11 // pred_check_branch
          %120 = sbr.rel (%p118) target = $region16
        $region15: #{forward.11} parent=11 // pred_region
          _
        $region16: #{forward.11} parent=11 // pred_fallthru
          _
        // Predicated region
        $region17: #{forward.11} parent=11 // pred_check
          %p121 = pneg %p77
        $region18: #{forward.11} parent=11 // pred_check_branch
          %123 = sbr.rel (%p121) target = $region20
        $region19: #{forward.11} parent=11 // pred_region
          _
        $region20: #{forward.11} parent=11 // pred_fallthru
          _
      $region12: #{forward.11} parent=5 // pred_fallthru
        _
      %p124 = scmp.lt.s32.totalorder %s9, 2
      // Predicated region
      $region21: #{forward.11} parent=5 // pred_check
        %p125 = pneg %p124
      $region22: #{forward.11} parent=5 // pred_check_branch
        %127 = sbr.rel (%p125) target = $region24
      $region23: #{forward.11} parent=5 // pred_region
        // Predicated region
        $region25: #{forward.11} parent=23 // pred_check
          %p128 = pneg %p50
        $region26: #{forward.11} parent=23 // pred_check_branch
          %130 = sbr.rel (%p128) target = $region28
        $region27: #{forward.11} parent=23 // pred_region
          %s131 = sand.u32 %s40, 1
          %s132 = sand.u32 %s40, 1
          %s133 = smul.addr %s132, 112
          %s134 = scalar_lea.vmem [#allocation2], %s133
          %s135 = smul.u32 4, %s9
          %s136 = smul.addr %s135, 4
          %s137 = scalar_lea.vmem %s1, %s136
          // Predicated region
          $region29: #{forward.11} parent=27 // pred_check
            _
          $region30: #{forward.11} parent=27 // pred_check_branch
            %139 = sbr.rel (0) target = $region32
          $region31: #{forward.11} parent=27 // pred_region
            // Predicated region
            $region33: #{forward.11} parent=31 // pred_check
              _
            $region34: #{forward.11} parent=31 // pred_check_branch
              %141 = sbr.rel (0) target = $region36
            $region35: #{forward.11} parent=31 // pred_region
              loop: start=0, step=1, limit=1
              $region37: #{forward.11} parent=35 // loop_pre_header
                _
              $region38: #{forward.11} parent=35 // loop_header
                %s143 = sphi 0, %s147
                %p144 = scmp.ge.s32.totalorder %s143, 1
                %s148 = sphi %s137, %s137
                %s149 = sphi %s134, %s134
              $region39: #{forward.11} parent=35 // loop_header_branch
                %146 = sbr.rel (%p144) target = $region43
              $region40: #{forward.11} parent=35 // loop_body
                %v150 = vld [vmem:[%s148] sm:$0xff]
                %151 = vst [vmem:[%s149] sm:$0xff] %v150
                %v152 = vld [vmem:[%s148 + $0x8] sm:$0xff]
                %153 = vst [vmem:[%s149 + $0x8] sm:$0xff] %v152
                %v154 = vld [vmem:[%s148 + $0x20] sm:$0xff]
                %155 = vst [vmem:[%s149 + $0x10] sm:$0xff] %v154
                %v156 = vld [vmem:[%s148 + $0x28] sm:$0xff]
                %157 = vst [vmem:[%s149 + $0x18] sm:$0xff] %v156
                %v158 = vld [vmem:[%s148 + $0x40] sm:$0xff]
                %159 = vst [vmem:[%s149 + $0x20] sm:$0xff] %v158
                %v160 = vld [vmem:[%s148 + $0x48] sm:$0xff]
                %161 = vst [vmem:[%s149 + $0x28] sm:$0xff] %v160
                %v162 = vld [vmem:[%s148 + $0x60] sm:$0xff]
                %163 = vst [vmem:[%s149 + $0x30] sm:$0xff] %v162
                %v164 = vld [vmem:[%s148 + $0x68] sm:$0xff]
                %165 = vst [vmem:[%s149 + $0x38] sm:$0xff] %v164
                %v166 = vld [vmem:[%s148 + $0x80] sm:$0xff]
                %167 = vst [vmem:[%s149 + $0x40] sm:$0xff] %v166
                %v168 = vld [vmem:[%s148 + $0x88] sm:$0xff]
                %169 = vst [vmem:[%s149 + $0x48] sm:$0xff] %v168
                %v170 = vld [vmem:[%s148 + $0xa0] sm:$0xff]
                %171 = vst [vmem:[%s149 + $0x50] sm:$0xff] %v170
                %v172 = vld [vmem:[%s148 + $0xa8] sm:$0xff]
                %173 = vst [vmem:[%s149 + $0x58] sm:$0xff] %v172
                %v174 = vld [vmem:[%s148 + $0xc0] sm:$0xff]
                %175 = vst [vmem:[%s149 + $0x60] sm:$0xff] %v174
                %v176 = vld [vmem:[%s148 + $0xc8] sm:$0xff]
                %177 = vst [vmem:[%s149 + $0x68] sm:$0xff] %v176
              $region41: #{forward.11} parent=35 // loop_footer
                %s147 = sadd.s32 1, %s143
              $region42: #{forward.11} parent=35 // loop_footer_branch
                %142 = sbr.rel target = $region38
              $region43: #{forward.11} parent=35 // loop_exit
                _
            $region36: #{forward.11} parent=31 // pred_fallthru
              _
            // Predicated region
            $region44: #{forward.11} parent=31 // pred_check
              _
            $region45: #{forward.11} parent=31 // pred_check_branch
              %179 = sbr.rel target = $region47
            $region46: #{forward.11} parent=31 // pred_region
              _
            $region47: #{forward.11} parent=31 // pred_fallthru
              _
          $region32: #{forward.11} parent=27 // pred_fallthru
            _
          %180 = vnop
        $region28: #{forward.11} parent=23 // pred_fallthru
          _
      $region24: #{forward.11} parent=5 // pred_fallthru
        _
      %p181 = scmp.le.s32.totalorder 1, %s9
      %p182 = scmp.lt.s32.totalorder %s9, 3
      %p183 = pnand %p181, %p182
      %p184 = pneg %p183
      // Predicated region
      $region48: #{forward.11} parent=5 // pred_check
        _
      $region49: #{forward.11} parent=5 // pred_check_branch
        %186 = sbr.rel (%p183) target = $region51
      $region50: #{forward.11} parent=5 // pred_region
        %s187 = ssub.s32 %s9, 1
        %s188 = sand.u32 %s43, 1
        %s189 = sand.u32 %s43, 1
        %s190 = smul.addr %s189, 112
        %s191 = scalar_lea.vmem [#allocation2], %s190
        // Predicated region
        $region52: #{forward.11} parent=50 // pred_check
          %p192 = pneg %p56
        $region53: #{forward.11} parent=50 // pred_check_branch
          %194 = sbr.rel (%p192) target = $region55
        $region54: #{forward.11} parent=50 // pred_region
          _
        $region55: #{forward.11} parent=50 // pred_fallthru
          _
        %p195 = pneg %p30
        %p196 = pneg %p27
        %s197 = sand.u32 %s43, 1
        %s198 = sand.u32 %s43, 1
        %s199 = smul.addr %s198, 112
        %s200 = scalar_lea.vmem [#allocation2], %s199
        %p201 = pneg %p56
        %p202 = pneg %p53
        %p203 = pneg %p77
        %p204 = pneg %p74
        %p205 = pneg %p103
        %p206 = pneg %p100
        %s207 = smul.u32 4, %s14
        %p208 = scmp.lt.s32.totalorder %s207, 7
        %s209 = scalar_select %p208, %s207, 7
        %s210 = smul.addr %s209, 8
        %s211 = scalar_lea.vmem %s3, %s210
        %s212 = smul.u32 4, %s14
        %s213 = smul.u32 4, %s14
        %p214 = scmp.lt.s32.totalorder %s213, 7
        %s215 = scalar_select %p214, %s213, 7
        %s216 = smul.addr %s215, 8
        %s217 = scalar_lea.vmem %s3, %s216
        %s218 = smul.u32 4, %s14
        %v220 = vld [vmem:[%s0] sm:$0xf]
        %v221 = vld [vmem:[%s191] sm:$0xff]
        %v222 = vld [vmem:[%s191 + $0x8] sm:$0xff]
        %v223 = vld [vmem:[%s191 + $0x10] sm:$0xff]
        %v224 = vld [vmem:[%s191 + $0x18] sm:$0xff]
        %v225 = vld [vmem:[%s191 + $0x20] sm:$0xff]
        %v226 = vld [vmem:[%s191 + $0x28] sm:$0xff]
        %v227 = vld [vmem:[%s191 + $0x30] sm:$0xff]
        %v228 = vld [vmem:[%s191 + $0x38] sm:$0xff]
        %v229 = vld [vmem:[%s191 + $0x40] sm:$0xff]
        %v230 = vld [vmem:[%s191 + $0x48] sm:$0xff]
        %v231 = vld [vmem:[%s191 + $0x50] sm:$0xff]
        %v232 = vld [vmem:[%s191 + $0x58] sm:$0xff]
        %v233 = vld [vmem:[%s191 + $0x60] sm:$0x11]
        %v234 = vld [vmem:[%s191 + $0x68] sm:$0x11]
        %v235 = vld [vmem:[%s2] sm:$0xff]
        %237 = vset.pattern.permute.xlu0 0
        %238 = vperm.xlu0 %237, %v235
        %v239 = vpop.permute.xlu0 %238
        %v255 = vunpack.c.l.b16 %v221
        %v256 = vunpack.c.h.b16 %v221
        %v257 = vunpack.c.l.b16 %v222
        %v258 = vunpack.c.h.b16 %v222
        %v259 = vunpack.c.l.b16 %v223
        %v260 = vunpack.c.h.b16 %v223
        %v261 = vunpack.c.l.b16 %v224
        %v262 = vunpack.c.h.b16 %v224
        %v263 = vunpack.c.l.b16 %v225
        %v264 = vunpack.c.h.b16 %v225
        %v265 = vunpack.c.l.b16 %v226
        %v266 = vunpack.c.h.b16 %v226
        %v267 = vunpack.c.l.b16 %v227
        %v268 = vunpack.c.h.b16 %v227
        %v269 = vunpack.c.l.b16 %v228
        %v270 = vunpack.c.h.b16 %v228
        %v271 = vunpack.c.l.b16 %v229
        %v272 = vunpack.c.h.b16 %v229
        %v273 = vunpack.c.l.b16 %v230
        %v274 = vunpack.c.h.b16 %v230
        %v275 = vunpack.c.l.b16 %v231
        %v276 = vunpack.c.h.b16 %v231
        %v277 = vunpack.c.l.b16 %v232
        %v278 = vunpack.c.h.b16 %v232
        %v279 = vunpack.c.l.b16 %v233
        %v280 = vunpack.c.h.b16 %v233
        %v281 = vunpack.c.l.b16 %v234
        %v282 = vunpack.c.h.b16 %v234
        %v283 = vpack.c.b16 %v259, %v255
        %v284 = vpack.c.b16 %v260, %v256
        %v285 = vpack.c.b16 %v261, %v257
        %v286 = vpack.c.b16 %v262, %v258
        %v287 = vpack.c.b16 %v267, %v263
        %v288 = vpack.c.b16 %v268, %v264
        %v289 = vpack.c.b16 %v269, %v265
        %v290 = vpack.c.b16 %v270, %v266
        %v291 = vpack.c.b16 %v275, %v271
        %v292 = vpack.c.b16 %v276, %v272
        %v293 = vpack.c.b16 %v277, %v273
        %v294 = vpack.c.b16 %v278, %v274
        %v295 = vpack.c.b16 %v279, %v279
        %v296 = vpack.c.b16 %v280, %v280
        %v297 = vpack.c.b16 %v281, %v281
        %v298 = vpack.c.b16 %v282, %v282
        %vm311 = vcmask 400384
        %v313 = vsel %vm311, %v220, 0
        %vm315 = vcmask 1040384
        %v316 = vsel 0, 4294967295, 65535
        %v317 = vsel %vm315, %v316, 0
        %v319 = vand.u32 %v295, %v317
        %v322 = vand.u32 %v296, %v317
        %v325 = vand.u32 %v297, %v317
        %v328 = vand.u32 %v298, %v317
        %330 = vmatprep.subr.bf16.mxu0 %v284
        %331 = vmatpush1.bf16.msra.mxu0 %v283
        %332 = vmatprep.subr.bf16.mxu0 %v288
        %333 = vmatpush1.bf16.msra.mxu0 %v287
        %334 = vmatprep.subr.bf16.mxu0 %v292
        %335 = vmatpush1.bf16.msra.mxu0 %v291
        %336 = vmatprep.subr.bf16.mxu0 %v322
        %337 = vmatpush1.bf16.msra.mxu0 %v319
        %338 = vmatprep.subr.bf16.mxu0 0
        %339 = vmatpush1.bf16.msra.mxu0 0
        %340 = vmatprep.subr.bf16.mxu0 0
        %341 = vmatpush1.bf16.msra.mxu0 0
        %342 = vmatprep.subr.bf16.mxu0 0
        %343 = vmatpush1.bf16.msra.mxu0 0
        %344 = vmatprep.subr.bf16.mxu0 0
        %345 = vmatpush1.bf16.msra.mxu0 0
        %346 = vmatprep.subr.bf16.mxu0 0
        %347 = vmatpush1.bf16.msra.mxu0 0
        %348 = vmatprep.subr.bf16.mxu0 0
        %349 = vmatpush1.bf16.msra.mxu0 0
        %350 = vmatprep.subr.bf16.mxu0 0
        %351 = vmatpush1.bf16.msra.mxu0 0
        %352 = vmatprep.subr.bf16.mxu0 0
        %353 = vmatpush1.bf16.msra.mxu0 0
        %354 = vmatprep.subr.bf16.mxu0 0
        %355 = vmatpush1.bf16.msra.mxu0 0
        %356 = vmatprep.subr.bf16.mxu0 0
        %357 = vmatpush1.bf16.msra.mxu0 0
        %358 = vmatprep.subr.bf16.mxu0 0
        %359 = vmatpush1.bf16.msra.mxu0 0
        %360 = vmatprep.subr.bf16.mxu0 0
        %361 = vmatpush1.bf16.msra.mxu0 0
        %362 = vmatprep.mubr.bf16.mxu0 0
        %363 = vmatmul.mubr.bf16.gmra.mrb[0].mxu0 %v313
        %v364 = vpop.f32.mrb[0].mxu0
        %v365 = vadd.f32 %v239, %v364
        %v366 = vpop.f32.mrb[0].mxu0
        %v367 = vadd.f32 %v239, %v366
        %v368 = vpop.f32.mrb[0].mxu0
        %v369 = vpop.f32.mrb[0].mxu0
        %370 = vdwg.mxu0
        %371 = vmatprep.subr.bf16.mxu0 %v286
        %372 = vmatpush1.bf16.msra.mxu0 %v285
        %373 = vmatprep.subr.bf16.mxu0 %v290
        %374 = vmatpush1.bf16.msra.mxu0 %v289
        %375 = vmatprep.subr.bf16.mxu0 %v294
        %376 = vmatpush1.bf16.msra.mxu0 %v293
        %377 = vmatprep.subr.bf16.mxu0 %v328
        %378 = vmatpush1.bf16.msra.mxu0 %v325
        %379 = vmatprep.subr.bf16.mxu0 0
        %380 = vmatpush1.bf16.msra.mxu0 0
        %381 = vmatprep.subr.bf16.mxu0 0
        %382 = vmatpush1.bf16.msra.mxu0 0
        %383 = vmatprep.subr.bf16.mxu0 0
        %384 = vmatpush1.bf16.msra.mxu0 0
        %385 = vmatprep.subr.bf16.mxu0 0
        %386 = vmatpush1.bf16.msra.mxu0 0
        %387 = vmatprep.subr.bf16.mxu0 0
        %388 = vmatpush1.bf16.msra.mxu0 0
        %389 = vmatprep.subr.bf16.mxu0 0
        %390 = vmatpush1.bf16.msra.mxu0 0
        %391 = vmatprep.subr.bf16.mxu0 0
        %392 = vmatpush1.bf16.msra.mxu0 0
        %393 = vmatprep.subr.bf16.mxu0 0
        %394 = vmatpush1.bf16.msra.mxu0 0
        %395 = vmatprep.subr.bf16.mxu0 0
        %396 = vmatpush1.bf16.msra.mxu0 0
        %397 = vmatprep.subr.bf16.mxu0 0
        %398 = vmatpush1.bf16.msra.mxu0 0
        %399 = vmatprep.subr.bf16.mxu0 0
        %400 = vmatpush1.bf16.msra.mxu0 0
        %401 = vmatprep.subr.bf16.mxu0 0
        %402 = vmatpush1.bf16.msra.mxu0 0
        %403 = vmatprep.mubr.bf16.mxu0 0
        %404 = vmatmul.mubr.bf16.gmra.mrb[0].mxu0 %v313
        %v405 = vpop.f32.mrb[0].mxu0
        %v406 = vadd.f32 %v239, %v405
        %v407 = vpop.f32.mrb[0].mxu0
        %v408 = vadd.f32 %v239, %v407
        %v409 = vpop.f32.mrb[0].mxu0
        %v410 = vpop.f32.mrb[0].mxu0
        %411 = vdwg.mxu0
        %v412 = vmax.f32 %v365, 0.0
        %v413 = vmax.f32 %v367, 0.0
        %v414 = vmax.f32 %v406, 0.0
        %v415 = vmax.f32 %v408, 0.0
        %416 = vst [vmem:[%s217] sm:$0xff] %v412
        %417 = vst [vmem:[%s217 + $0x8] sm:$0xff] %v413
        %418 = vst [vmem:[%s217 + $0x10] sm:$0xff] %v414
        %419 = vst [vmem:[%s217 + $0x18] sm:$0xff] %v415
        %s420 = smul.u32 4, %s14
        %p421 = scmp.lt.s32.totalorder %s420, 7
        %s422 = scalar_select %p421, %s420, 7
        %s423 = smul.addr %s422, 8
        %s424 = scalar_lea.vmem %s3, %s423
        // Predicated region
        $region56: #{forward.11} parent=50 // pred_check
          %p425 = pneg %p100
        $region57: #{forward.11} parent=50 // pred_check_branch
          %427 = sbr.rel (%p425) target = $region59
        $region58: #{forward.11} parent=50 // pred_region
          %s428 = smul.u32 4, %s14
        $region59: #{forward.11} parent=50 // pred_fallthru
          _
      $region51: #{forward.11} parent=5 // pred_fallthru
        _
      %p429 = scmp.le.s32.totalorder 2, %s9
      // Predicated region
      $region60: #{forward.11} parent=5 // pred_check
        %p430 = pneg %p429
      $region61: #{forward.11} parent=5 // pred_check_branch
        %432 = sbr.rel (%p430) target = $region63
      $region62: #{forward.11} parent=5 // pred_region
        %s433 = ssub.s32 %s9, 2
        // Predicated region
        $region64: #{forward.11} parent=62 // pred_check
          %p434 = pneg %p106
        $region65: #{forward.11} parent=62 // pred_check_branch
          %436 = sbr.rel (%p434) target = $region67
        $region66: #{forward.11} parent=62 // pred_region
          %s437 = smul.u32 4, %s15
          %p438 = scmp.lt.s32.totalorder %s437, 7
          %s439 = scalar_select %p438, %s437, 7
          %s440 = smul.addr %s439, 8
          %s441 = scalar_lea.vmem %s3, %s440
        $region67: #{forward.11} parent=62 // pred_fallthru
          _
      $region63: #{forward.11} parent=5 // pred_fallthru
        _
    $region6: #{forward.11} parent=1 // loop_footer
      %s13 = sadd.s32 1, %s9
    $region7: #{forward.11} parent=1 // loop_footer_branch
      %8 = sbr.rel target = $region3
    $region8: #{forward.11} parent=1 // loop_exit
      _

// kernel: forward.12
$region0: #{forward.12}
  #allocation0 [shape = 'u32[]', space=smem, size = 0x4, offset = 0x4, fixed_abs, tag = 'smem constant byte address 0x4 - core index']
  #allocation1 [shape = 'u32[144,128]{1,0:T(1,128)}', space=vmem, size = 0x12000, scoped, tag = 'internal scratch']
  %s0 = inlined_call_operand.vmem [shape: f32[4,8,256], index: 0, kind: input, shape index: {}]
  %s1 = inlined_call_operand.vmem [shape: f32[8,256], index: 1, kind: output, shape index: {}]
  %s2 = sld [smem:[#allocation0]]
  $region14: #{forward.12} parent=0
    _
  %s4 = ssub.s32 1, %s2
  %s5 = scalar_select 0, %s4, %s2
  // Predicated region
  $region2: #{forward.12} parent=0 // pred_check
    _
  $region3: #{forward.12} parent=0 // pred_check_branch
    %7 = sbr.rel (0) target = $region5
  $region4: #{forward.12} parent=0 // pred_region
    _
  $region5: #{forward.12} parent=0 // pred_fallthru
    _
  %v8 = vld [vmem:[%s0] sm:$0xff]
  %v9 = vld [vmem:[%s0 + $0x8] sm:$0xff]
  %v10 = vld [vmem:[%s0 + $0x10] sm:$0xff]
  %v11 = vld [vmem:[%s0 + $0x18] sm:$0xff]
  %v12 = vld [vmem:[%s0 + $0x20] sm:$0xff]
  %v13 = vld [vmem:[%s0 + $0x28] sm:$0xff]
  %v14 = vld [vmem:[%s0 + $0x30] sm:$0xff]
  %v15 = vld [vmem:[%s0 + $0x38] sm:$0xff]
  %v16 = vmax.f32 %v8, %v12
  %v17 = vmax.f32 %v10, %v14
  %v18 = vmax.f32 %v16, %v17
  %v19 = vmax.f32 %v9, %v13
  %v20 = vmax.f32 %v11, %v15
  %v21 = vmax.f32 %v19, %v20
  %22 = vst [vmem:[%s1] sm:$0xff] %v18
  %23 = vst [vmem:[%s1 + $0x8] sm:$0xff] %v21
  // Predicated region
  $region6: #{forward.12} parent=0 // pred_check
    _
  $region7: #{forward.12} parent=0 // pred_check_branch
    %25 = sbr.rel (0) target = $region9
  $region8: #{forward.12} parent=0 // pred_region
    _
  $region9: #{forward.12} parent=0 // pred_fallthru
    _
  // Predicated region
  $region10: #{forward.12} parent=0 // pred_check
    _
  $region11: #{forward.12} parent=0 // pred_check_branch
    %27 = sbr.rel (0) target = $region13
  $region12: #{forward.12} parent=0 // pred_region
    _
  $region13: #{forward.12} parent=0 // pred_fallthru
    _

// kernel: forward.13
$region0: #{forward.13}
  #allocation0 [shape = 'u32[]', space=smem, size = 0x4, offset = 0x4, fixed_abs, tag = 'smem constant byte address 0x4 - core index']
  #allocation1 [shape = 'u32[144,128]{1,0:T(1,128)}', space=vmem, size = 0x12000, scoped, tag = 'internal scratch']
  %s0 = inlined_call_operand.vmem [shape: bf16[10,200], index: 0, kind: input, shape index: {}]
  %s1 = inlined_call_operand.vmem [shape: bf16[200,128], index: 1, kind: input, shape index: {}]
  %s2 = inlined_call_operand.vmem [shape: f32[10,1], index: 2, kind: input, shape index: {}]
  %s3 = inlined_call_operand.vmem [shape: f32[10,128], index: 3, kind: output, shape index: {}]
  %s4 = sld [smem:[#allocation0]]
  $region22: #{forward.13} parent=0
    _
  %s6 = ssub.s32 1, %s4
  %s7 = scalar_select 0, %s6, %s4
  // Predicated region
  $region2: #{forward.13} parent=0 // pred_check
    _
  $region3: #{forward.13} parent=0 // pred_check_branch
    %9 = sbr.rel (0) target = $region5
  $region4: #{forward.13} parent=0 // pred_region
    _
  $region5: #{forward.13} parent=0 // pred_fallthru
    _
  // Predicated region
  $region6: #{forward.13} parent=0 // pred_check
    _
  $region7: #{forward.13} parent=0 // pred_check_branch
    %11 = sbr.rel (0) target = $region9
  $region8: #{forward.13} parent=0 // pred_region
    _
  $region9: #{forward.13} parent=0 // pred_fallthru
    _
  // Predicated region
  $region10: #{forward.13} parent=0 // pred_check
    _
  $region11: #{forward.13} parent=0 // pred_check_branch
    %13 = sbr.rel (0) target = $region13
  $region12: #{forward.13} parent=0 // pred_region
    _
  $region13: #{forward.13} parent=0 // pred_fallthru
    _
  %v15 = vld [vmem:[%s0] sm:$0xff]
  %v16 = vld [vmem:[%s0 + $0x8] sm:$0x11]
  %v17 = vld [vmem:[%s1] sm:$0xf]
  %v18 = vld [vmem:[%s1 + $0x4] sm:$0xf]
  %v19 = vld [vmem:[%s1 + $0x8] sm:$0xf]
  %v20 = vld [vmem:[%s1 + $0xc] sm:$0xf]
  %v21 = vld [vmem:[%s1 + $0x10] sm:$0xf]
  %v22 = vld [vmem:[%s1 + $0x14] sm:$0xf]
  %v23 = vld [vmem:[%s1 + $0x18] sm:$0xf]
  %v24 = vld [vmem:[%s1 + $0x1c] sm:$0xf]
  %v25 = vld [vmem:[%s1 + $0x20] sm:$0xf]
  %v26 = vld [vmem:[%s1 + $0x24] sm:$0xf]
  %v27 = vld [vmem:[%s1 + $0x28] sm:$0xf]
  %v28 = vld [vmem:[%s1 + $0x2c] sm:$0xf]
  %v29 = vld [vmem:[%s1 + $0x30] sm:$0xf]
  %v30 = vld [vmem:[%s1 + $0x34] sm:$0xf]
  %v31 = vld [vmem:[%s1 + $0x38] sm:$0xf]
  %v32 = vld [vmem:[%s1 + $0x3c] sm:$0xf]
  %v33 = vld [vmem:[%s1 + $0x40] sm:$0xf]
  %v34 = vld [vmem:[%s1 + $0x44] sm:$0xf]
  %v35 = vld [vmem:[%s1 + $0x48] sm:$0xf]
  %v36 = vld [vmem:[%s1 + $0x4c] sm:$0xf]
  %v37 = vld [vmem:[%s1 + $0x50] sm:$0xf]
  %v38 = vld [vmem:[%s1 + $0x54] sm:$0xf]
  %v39 = vld [vmem:[%s1 + $0x58] sm:$0xf]
  %v40 = vld [vmem:[%s1 + $0x5c] sm:$0xf]
  %v41 = vld [vmem:[%s1 + $0x60] sm:$0xf]
  %v42 = vld [vmem:[%s2] sm:$0xff]
  %v43 = vld [vmem:[%s2 + $0x8] sm:$0x3]
  %45 = vset.pattern.permute.xlu0 0
  %46 = vperm.xlu0 %45, %v42
  %v47 = vpop.permute.xlu0 %46
  %50 = vset.pattern.permute.xlu0 0
  %51 = vperm.xlu0 %50, %v43
  %v52 = vpop.permute.xlu0 %51
  %v56 = vunpack.c.l.b16 %v15
  %v57 = vunpack.c.h.b16 %v15
  %v58 = vunpack.c.l.b16 %v16
  %v59 = vunpack.c.h.b16 %v16
  %v60 = vpack.c.b16 %v58, %v56
  %v61 = vpack.c.b16 %v59, %v57
  %v88 = vunpack.c.l.b16 %v17
  %v89 = vunpack.c.l.b16 %v18
  %v90 = vunpack.c.l.b16 %v19
  %v91 = vunpack.c.l.b16 %v20
  %v92 = vunpack.c.l.b16 %v21
  %v93 = vunpack.c.l.b16 %v22
  %v94 = vunpack.c.l.b16 %v23
  %v95 = vunpack.c.l.b16 %v24
  %v96 = vunpack.c.l.b16 %v25
  %v97 = vunpack.c.l.b16 %v26
  %v98 = vunpack.c.l.b16 %v27
  %v99 = vunpack.c.l.b16 %v28
  %v100 = vunpack.c.l.b16 %v29
  %v101 = vunpack.c.l.b16 %v30
  %v102 = vunpack.c.l.b16 %v31
  %v103 = vunpack.c.l.b16 %v32
  %v104 = vunpack.c.l.b16 %v33
  %v105 = vunpack.c.l.b16 %v34
  %v106 = vunpack.c.l.b16 %v35
  %v107 = vunpack.c.l.b16 %v36
  %v108 = vunpack.c.l.b16 %v37
  %v109 = vunpack.c.l.b16 %v38
  %v110 = vunpack.c.l.b16 %v39
  %v111 = vunpack.c.l.b16 %v40
  %v112 = vunpack.c.l.b16 %v41
  %v113 = vpack.c.b16 %v89, %v88
  %v114 = vpack.c.b16 %v91, %v90
  %v115 = vpack.c.b16 %v93, %v92
  %v116 = vpack.c.b16 %v95, %v94
  %v117 = vpack.c.b16 %v97, %v96
  %v118 = vpack.c.b16 %v99, %v98
  %v119 = vpack.c.b16 %v101, %v100
  %v120 = vpack.c.b16 %v103, %v102
  %v121 = vpack.c.b16 %v105, %v104
  %v122 = vpack.c.b16 %v107, %v106
  %v123 = vpack.c.b16 %v109, %v108
  %v124 = vpack.c.b16 %v111, %v110
  %v125 = vpack.c.b16 %v112, %v112
  %vm138 = vcmask 588800
  %v140 = vsel %vm138, %v61, 0
  %vm142 = vcmask 1043456
  %v144 = vsel %vm142, %v125, 0
  %146 = vmatprep.subr.bf16.mxu0 0
  %147 = vmatpush1.bf16.msra.mxu0 %v113
  %148 = vmatprep.subr.bf16.mxu0 0
  %149 = vmatpush1.bf16.msra.mxu0 %v114
  %150 = vmatprep.subr.bf16.mxu0 0
  %151 = vmatpush1.bf16.msra.mxu0 %v115
  %152 = vmatprep.subr.bf16.mxu0 0
  %153 = vmatpush1.bf16.msra.mxu0 %v116
  %154 = vmatprep.subr.bf16.mxu0 0
  %155 = vmatpush1.bf16.msra.mxu0 %v117
  %156 = vmatprep.subr.bf16.mxu0 0
  %157 = vmatpush1.bf16.msra.mxu0 %v118
  %158 = vmatprep.subr.bf16.mxu0 0
  %159 = vmatpush1.bf16.msra.mxu0 %v119
  %160 = vmatprep.subr.bf16.mxu0 0
  %161 = vmatpush1.bf16.msra.mxu0 %v120
  %162 = vmatprep.subr.bf16.mxu0 0
  %163 = vmatpush1.bf16.msra.mxu0 %v121
  %164 = vmatprep.subr.bf16.mxu0 0
  %165 = vmatpush1.bf16.msra.mxu0 %v122
  %166 = vmatprep.subr.bf16.mxu0 0
  %167 = vmatpush1.bf16.msra.mxu0 %v123
  %168 = vmatprep.subr.bf16.mxu0 0
  %169 = vmatpush1.bf16.msra.mxu0 %v124
  %170 = vmatprep.subr.bf16.mxu0 0
  %171 = vmatpush1.bf16.msra.mxu0 %v144
  %172 = vmatprep.subr.bf16.mxu0 0
  %173 = vmatpush1.bf16.msra.mxu0 0
  %174 = vmatprep.subr.bf16.mxu0 0
  %175 = vmatpush1.bf16.msra.mxu0 0
  %176 = vmatprep.subr.bf16.mxu0 0
  %177 = vmatpush1.bf16.msra.mxu0 0
  %178 = vmatprep.mubr.bf16.mxu0 %v140
  %179 = vmatmul.mubr.bf16.gmra.mrb[0].mxu0 %v60
  %v180 = vpop.f32.mrb[0].mxu0
  %v181 = vadd.f32 %v47, %v180
  %v182 = vpop.f32.mrb[0].mxu0
  %v183 = vpop.f32.mrb[0].mxu0
  %v184 = vadd.f32 %v52, %v183
  %v185 = vpop.f32.mrb[0].mxu0
  %186 = vdwg.mxu0
  %v187 = vmax.f32 %v181, 0.0
  %v188 = vmax.f32 %v184, 0.0
  %189 = vst [vmem:[%s3] sm:$0xff] %v187
  %190 = vst [vmem:[%s3 + $0x8] sm:$0x3] %v188
  // Predicated region
  $region14: #{forward.13} parent=0 // pred_check
    _
  $region15: #{forward.13} parent=0 // pred_check_branch
    %192 = sbr.rel (0) target = $region17
  $region16: #{forward.13} parent=0 // pred_region
    _
  $region17: #{forward.13} parent=0 // pred_fallthru
    _
  // Predicated region
  $region18: #{forward.13} parent=0 // pred_check
    _
  $region19: #{forward.13} parent=0 // pred_check_branch
    %194 = sbr.rel (0) target = $region21
  $region20: #{forward.13} parent=0 // pred_region
    _
  $region21: #{forward.13} parent=0 // pred_fallthru
    _

// kernel: forward.14
$region0: #{forward.14}
  #allocation0 [shape = 'u32[]', space=smem, size = 0x4, offset = 0x4, fixed_abs, tag = 'smem constant byte address 0x4 - core index']
  #allocation1 [shape = 'u32[144,128]{1,0:T(1,128)}', space=vmem, size = 0x12000, scoped, tag = 'internal scratch']
  %s0 = inlined_call_operand.vmem [shape: f32[4,10,128], index: 0, kind: input, shape index: {}]
  %s1 = inlined_call_operand.vmem [shape: f32[10,128], index: 1, kind: output, shape index: {}]
  %s2 = sld [smem:[#allocation0]]
  $region14: #{forward.14} parent=0
    _
  %s4 = ssub.s32 1, %s2
  %s5 = scalar_select 0, %s4, %s2
  // Predicated region
  $region2: #{forward.14} parent=0 // pred_check
    _
  $region3: #{forward.14} parent=0 // pred_check_branch
    %7 = sbr.rel (0) target = $region5
  $region4: #{forward.14} parent=0 // pred_region
    _
  $region5: #{forward.14} parent=0 // pred_fallthru
    _
  %v8 = vld [vmem:[%s0] sm:$0xff]
  %v9 = vld [vmem:[%s0 + $0x8] sm:$0x3]
  %v10 = vld [vmem:[%s0 + $0x10] sm:$0xff]
  %v11 = vld [vmem:[%s0 + $0x18] sm:$0x3]
  %v12 = vld [vmem:[%s0 + $0x20] sm:$0xff]
  %v13 = vld [vmem:[%s0 + $0x28] sm:$0x3]
  %v14 = vld [vmem:[%s0 + $0x30] sm:$0xff]
  %v15 = vld [vmem:[%s0 + $0x38] sm:$0x3]
  %v16 = vmax.f32 %v8, %v12
  %v17 = vmax.f32 %v10, %v14
  %v18 = vmax.f32 %v16, %v17
  %vm19 = vcmask 1041408
  %v20 = vsel %vm19, %v9, -inf
  %v21 = vsel %vm19, %v11, -inf
  %v22 = vsel %vm19, %v13, -inf
  %v23 = vmax.f32 %v20, %v22
  %v24 = vsel %vm19, %v15, -inf
  %v25 = vmax.f32 %v21, %v24
  %v26 = vmax.f32 %v23, %v25
  %27 = vst [vmem:[%s1] sm:$0xff] %v18
  %28 = vst [vmem:[%s1 + $0x8] sm:$0x3] %v26
  // Predicated region
  $region6: #{forward.14} parent=0 // pred_check
    _
  $region7: #{forward.14} parent=0 // pred_check_branch
    %30 = sbr.rel (0) target = $region9
  $region8: #{forward.14} parent=0 // pred_region
    _
  $region9: #{forward.14} parent=0 // pred_fallthru
    _
  // Predicated region
  $region10: #{forward.14} parent=0 // pred_check
    _
  $region11: #{forward.14} parent=0 // pred_check_branch
    %32 = sbr.rel (0) target = $region13
  $region12: #{forward.14} parent=0 // pred_region
    _
  $region13: #{forward.14} parent=0 // pred_fallthru
    _

// kernel: forward.15
$region0: #{forward.15}
  #allocation0 [shape = 'u32[]', space=smem, size = 0x4, offset = 0x4, fixed_abs, tag = 'smem constant byte address 0x4 - core index']
  #allocation1 [shape = 'u32[144,128]{1,0:T(1,128)}', space=vmem, size = 0x12000, scoped, tag = 'internal scratch']
  %s0 = inlined_call_operand.vmem [shape: f32[90,128], index: 0, kind: input, shape index: {}]
  %s1 = inlined_call_operand.vmem [shape: f32[32,90], index: 1, kind: input, shape index: {}]
  %s2 = inlined_call_operand.vmem [shape: f32[32,1], index: 2, kind: input, shape index: {}]
  %s3 = inlined_call_operand.vmem [shape: f32[6,32], index: 3, kind: input, shape index: {}]
  %s4 = inlined_call_operand.vmem [shape: f32[6,1], index: 4, kind: input, shape index: {}]
  %s5 = inlined_call_operand.vmem [shape: f32[6,128], index: 5, kind: output, shape index: {}]
  %s6 = sld [smem:[#allocation0]]
  $region30: #{forward.15} parent=0
    _
  %s8 = ssub.s32 1, %s6
  %s9 = scalar_select 0, %s8, %s6
  // Predicated region
  $region2: #{forward.15} parent=0 // pred_check
    _
  $region3: #{forward.15} parent=0 // pred_check_branch
    %11 = sbr.rel (0) target = $region5
  $region4: #{forward.15} parent=0 // pred_region
    _
  $region5: #{forward.15} parent=0 // pred_fallthru
    _
  // Predicated region
  $region6: #{forward.15} parent=0 // pred_check
    _
  $region7: #{forward.15} parent=0 // pred_check_branch
    %13 = sbr.rel (0) target = $region9
  $region8: #{forward.15} parent=0 // pred_region
    _
  $region9: #{forward.15} parent=0 // pred_fallthru
    _
  // Predicated region
  $region10: #{forward.15} parent=0 // pred_check
    _
  $region11: #{forward.15} parent=0 // pred_check_branch
    %15 = sbr.rel (0) target = $region13
  $region12: #{forward.15} parent=0 // pred_region
    _
  $region13: #{forward.15} parent=0 // pred_fallthru
    _
  // Predicated region
  $region14: #{forward.15} parent=0 // pred_check
    _
  $region15: #{forward.15} parent=0 // pred_check_branch
    %17 = sbr.rel (0) target = $region17
  $region16: #{forward.15} parent=0 // pred_region
    _
  $region17: #{forward.15} parent=0 // pred_fallthru
    _
  // Predicated region
  $region18: #{forward.15} parent=0 // pred_check
    _
  $region19: #{forward.15} parent=0 // pred_check_branch
    %19 = sbr.rel (0) target = $region21
  $region20: #{forward.15} parent=0 // pred_region
    _
  $region21: #{forward.15} parent=0 // pred_fallthru
    _
  %v20 = vld [vmem:[%s1] sm:$0xff]
  %v21 = vld [vmem:[%s1 + $0x8] sm:$0xff]
  %v22 = vld [vmem:[%s1 + $0x10] sm:$0xff]
  %v23 = vld [vmem:[%s1 + $0x18] sm:$0xff]
  %v24 = vld [vmem:[%s0] sm:$0xff]
  %v25 = vld [vmem:[%s0 + $0x8] sm:$0xff]
  %v26 = vld [vmem:[%s0 + $0x10] sm:$0xff]
  %v27 = vld [vmem:[%s0 + $0x18] sm:$0xff]
  %v28 = vld [vmem:[%s0 + $0x20] sm:$0xff]
  %v29 = vld [vmem:[%s0 + $0x28] sm:$0xff]
  %v30 = vld [vmem:[%s0 + $0x30] sm:$0xff]
  %v31 = vld [vmem:[%s0 + $0x38] sm:$0xff]
  %v32 = vld [vmem:[%s0 + $0x40] sm:$0xff]
  %v33 = vld [vmem:[%s0 + $0x48] sm:$0xff]
  %v34 = vld [vmem:[%s0 + $0x50] sm:$0xff]
  %v35 = vld [vmem:[%s0 + $0x58] sm:$0x3]
  %v36 = vld [vmem:[%s2] sm:$0xff]
  %v37 = vld [vmem:[%s2 + $0x8] sm:$0xff]
  %v38 = vld [vmem:[%s2 + $0x10] sm:$0xff]
  %v39 = vld [vmem:[%s2 + $0x18] sm:$0xff]
  %41 = vset.pattern.permute.xlu0 0
  %42 = vperm.xlu0 %41, %v36
  %v43 = vpop.permute.xlu0 %42
  %46 = vset.pattern.permute.xlu0 0
  %47 = vperm.xlu0 %46, %v37
  %v48 = vpop.permute.xlu0 %47
  %51 = vset.pattern.permute.xlu0 0
  %52 = vperm.xlu0 %51, %v38
  %v53 = vpop.permute.xlu0 %52
  %56 = vset.pattern.permute.xlu0 0
  %57 = vperm.xlu0 %56, %v39
  %v58 = vpop.permute.xlu0 %57
  %vm60 = vcmask 736256
  %v62 = vsel %vm60, %v20, 0
  %v65 = vsel %vm60, %v21, 0
  %v68 = vsel %vm60, %v22, 0
  %v71 = vsel %vm60, %v23, 0
  %vm73 = vcmask 1041408
  %v75 = vsel %vm73, %v35, 0
  %77 = vmatprep.subr.mxu0 0.0
  %78 = vmatpush1.msra.mxu0 %v24
  %79 = vmatprep.subr.mxu0 0.0
  %80 = vmatpush1.msra.mxu0 %v25
  %81 = vmatprep.subr.mxu0 0.0
  %82 = vmatpush1.msra.mxu0 %v26
  %83 = vmatprep.subr.mxu0 0.0
  %84 = vmatpush1.msra.mxu0 %v27
  %85 = vmatprep.subr.mxu0 0.0
  %86 = vmatpush1.msra.mxu0 %v28
  %87 = vmatprep.subr.mxu0 0.0
  %88 = vmatpush1.msra.mxu0 %v29
  %89 = vmatprep.subr.mxu0 0.0
  %90 = vmatpush1.msra.mxu0 %v30
  %91 = vmatprep.subr.mxu0 0.0
  %92 = vmatpush1.msra.mxu0 %v31
  %93 = vmatprep.subr.mxu0 0.0
  %94 = vmatpush1.msra.mxu0 %v32
  %95 = vmatprep.subr.mxu0 0.0
  %96 = vmatpush1.msra.mxu0 %v33
  %97 = vmatprep.subr.mxu0 0.0
  %98 = vmatpush1.msra.mxu0 %v34
  %99 = vmatprep.subr.mxu0 0.0
  %100 = vmatpush1.msra.mxu0 %v75
  %101 = vmatprep.subr.mxu0 0.0
  %102 = vmatpush1.msra.mxu0 0.0
  %103 = vmatprep.subr.mxu0 0.0
  %104 = vmatpush1.msra.mxu0 0.0
  %105 = vmatprep.subr.mxu0 0.0
  %106 = vmatpush1.msra.mxu0 0.0
  %107 = vmatprep.subr.mxu0 0.0
  %108 = vmatpush1.msra.mxu0 0.0
  %109 = vmatprep.subr.mxu0 0.0
  %110 = vmatpush1.msra.mxu0 0.0
  %111 = vmatprep.subr.mxu0 0.0
  %112 = vmatpush1.msra.mxu0 0.0
  %113 = vmatprep.subr.mxu0 0.0
  %114 = vmatpush1.msra.mxu0 0.0
  %115 = vmatprep.subr.mxu0 0.0
  %116 = vmatpush1.msra.mxu0 0.0
  %117 = vmatprep.subr.mxu0 0.0
  %118 = vmatpush1.msra.mxu0 0.0
  %119 = vmatprep.subr.mxu0 0.0
  %120 = vmatpush1.msra.mxu0 0.0
  %121 = vmatprep.subr.mxu0 0.0
  %122 = vmatpush1.msra.mxu0 0.0
  %123 = vmatprep.subr.mxu0 0.0
  %124 = vmatpush1.msra.mxu0 0.0
  %125 = vmatprep.subr.mxu0 0.0
  %126 = vmatpush1.msra.mxu0 0.0
  %127 = vmatprep.subr.mxu0 0.0
  %128 = vmatpush1.msra.mxu0 0.0
  %129 = vmatprep.subr.mxu0 0.0
  %130 = vmatpush1.msra.mxu0 0.0
  %131 = vmatprep.subr.mxu0 0.0
  %132 = vmatpush1.msra.mxu0 0.0
  %133 = vmatprep.subr.mxu0 0.0
  %134 = vmatpush1.msra.mxu0 0.0
  %135 = vmatprep.subr.mxu0 0.0
  %136 = vmatpush1.msra.mxu0 0.0
  %137 = vmatprep.subr.mxu0 0.0
  %138 = vmatpush1.msra.mxu0 0.0
  %139 = vmatprep.subr.mxu0 0.0
  %140 = vmatpush1.msra.mxu0 0.0
  %141 = vmatprep.mubr.f32.mxu0 0.0
  %142 = vmatmul.mubr.f32.gmra.mrb[0].mxu0 %v62
  %v143 = vpop.f32.mrb[0].mxu0
  %v144 = vadd.f32 %v43, %v143
  %v145 = vpop.f32.mrb[0].mxu0
  %146 = vmatprep.mubr.f32.mxu0 0.0
  %147 = vmatmul.mubr.f32.gmra.mrb[0].mxu0 %v65
  %v148 = vpop.f32.mrb[0].mxu0
  %v149 = vadd.f32 %v48, %v148
  %v150 = vpop.f32.mrb[0].mxu0
  %151 = vmatprep.mubr.f32.mxu0 0.0
  %152 = vmatmul.mubr.f32.gmra.mrb[0].mxu0 %v68
  %v153 = vpop.f32.mrb[0].mxu0
  %v154 = vadd.f32 %v53, %v153
  %v155 = vpop.f32.mrb[0].mxu0
  %156 = vmatprep.mubr.f32.mxu0 0.0
  %157 = vmatmul.mubr.f32.gmra.mrb[0].mxu0 %v71
  %v158 = vpop.f32.mrb[0].mxu0
  %v159 = vadd.f32 %v58, %v158
  %v160 = vpop.f32.mrb[0].mxu0
  %161 = vdwg.mxu0
  %v162 = vmax.f32 %v144, 0.0
  %v163 = vmax.f32 %v149, 0.0
  %v164 = vmax.f32 %v154, 0.0
  %v165 = vmax.f32 %v159, 0.0
  %v166 = vld [vmem:[%s3] sm:$0x3f]
  %v167 = vld [vmem:[%s4] sm:$0x3f]
  %169 = vset.pattern.permute.xlu0 0
  %170 = vperm.xlu0 %169, %v167
  %v171 = vpop.permute.xlu0 %170
  %vm173 = vcmask 261120
  %v175 = vsel %vm173, %v166, 0
  %177 = vmatprep.subr.mxu0 0.0
  %178 = vmatpush1.msra.mxu0 %v162
  %179 = vmatprep.subr.mxu0 0.0
  %180 = vmatpush1.msra.mxu0 %v163
  %181 = vmatprep.subr.mxu0 0.0
  %182 = vmatpush1.msra.mxu0 %v164
  %183 = vmatprep.subr.mxu0 0.0
  %184 = vmatpush1.msra.mxu0 %v165
  %185 = vmatprep.subr.mxu0 0.0
  %186 = vmatpush1.msra.mxu0 0.0
  %187 = vmatprep.subr.mxu0 0.0
  %188 = vmatpush1.msra.mxu0 0.0
  %189 = vmatprep.subr.mxu0 0.0
  %190 = vmatpush1.msra.mxu0 0.0
  %191 = vmatprep.subr.mxu0 0.0
  %192 = vmatpush1.msra.mxu0 0.0
  %193 = vmatprep.subr.mxu0 0.0
  %194 = vmatpush1.msra.mxu0 0.0
  %195 = vmatprep.subr.mxu0 0.0
  %196 = vmatpush1.msra.mxu0 0.0
  %197 = vmatprep.subr.mxu0 0.0
  %198 = vmatpush1.msra.mxu0 0.0
  %199 = vmatprep.subr.mxu0 0.0
  %200 = vmatpush1.msra.mxu0 0.0
  %201 = vmatprep.subr.mxu0 0.0
  %202 = vmatpush1.msra.mxu0 0.0
  %203 = vmatprep.subr.mxu0 0.0
  %204 = vmatpush1.msra.mxu0 0.0
  %205 = vmatprep.subr.mxu0 0.0
  %206 = vmatpush1.msra.mxu0 0.0
  %207 = vmatprep.subr.mxu0 0.0
  %208 = vmatpush1.msra.mxu0 0.0
  %209 = vmatprep.subr.mxu0 0.0
  %210 = vmatpush1.msra.mxu0 0.0
  %211 = vmatprep.subr.mxu0 0.0
  %212 = vmatpush1.msra.mxu0 0.0
  %213 = vmatprep.subr.mxu0 0.0
  %214 = vmatpush1.msra.mxu0 0.0
  %215 = vmatprep.subr.mxu0 0.0
  %216 = vmatpush1.msra.mxu0 0.0
  %217 = vmatprep.subr.mxu0 0.0
  %218 = vmatpush1.msra.mxu0 0.0
  %219 = vmatprep.subr.mxu0 0.0
  %220 = vmatpush1.msra.mxu0 0.0
  %221 = vmatprep.subr.mxu0 0.0
  %222 = vmatpush1.msra.mxu0 0.0
  %223 = vmatprep.subr.mxu0 0.0
  %224 = vmatpush1.msra.mxu0 0.0
  %225 = vmatprep.subr.mxu0 0.0
  %226 = vmatpush1.msra.mxu0 0.0
  %227 = vmatprep.subr.mxu0 0.0
  %228 = vmatpush1.msra.mxu0 0.0
  %229 = vmatprep.subr.mxu0 0.0
  %230 = vmatpush1.msra.mxu0 0.0
  %231 = vmatprep.subr.mxu0 0.0
  %232 = vmatpush1.msra.mxu0 0.0
  %233 = vmatprep.subr.mxu0 0.0
  %234 = vmatpush1.msra.mxu0 0.0
  %235 = vmatprep.subr.mxu0 0.0
  %236 = vmatpush1.msra.mxu0 0.0
  %237 = vmatprep.subr.mxu0 0.0
  %238 = vmatpush1.msra.mxu0 0.0
  %239 = vmatprep.subr.mxu0 0.0
  %240 = vmatpush1.msra.mxu0 0.0
  %241 = vmatprep.mubr.f32.mxu0 0.0
  %242 = vmatmul.mubr.f32.gmra.mrb[0].mxu0 %v175
  %v243 = vpop.f32.mrb[0].mxu0
  %v244 = vadd.f32 %v171, %v243
  %v245 = vpop.f32.mrb[0].mxu0
  %246 = vdwg.mxu0
  %247 = vst [vmem:[%s5] sm:$0x3f] %v244
  // Predicated region
  $region22: #{forward.15} parent=0 // pred_check
    _
  $region23: #{forward.15} parent=0 // pred_check_branch
    %249 = sbr.rel (0) target = $region25
  $region24: #{forward.15} parent=0 // pred_region
    _
  $region25: #{forward.15} parent=0 // pred_fallthru
    _
  // Predicated region
  $region26: #{forward.15} parent=0 // pred_check
    _
  $region27: #{forward.15} parent=0 // pred_check_branch
    %251 = sbr.rel (0) target = $region29
  $region28: #{forward.15} parent=0 // pred_region
    _
  $region29: #{forward.15} parent=0 // pred_fallthru
    _

// kernel: forward.17
$region0: #{forward.17}
  #allocation0 [shape = 'u32[]', space=smem, size = 0x4, offset = 0x4, fixed_abs, tag = 'smem constant byte address 0x4 - core index']
  #allocation1 [shape = 'u32[144,128]{1,0:T(1,128)}', space=vmem, size = 0x12000, scoped, tag = 'internal scratch']
  %s0 = inlined_call_operand.vmem [shape: bf16[10,25], index: 0, kind: input, shape index: {}]
  %s1 = inlined_call_operand.vmem [shape: bf16[25,1536], index: 1, kind: input, shape index: {}]
  %s2 = inlined_call_operand.vmem [shape: f32[10,1], index: 2, kind: input, shape index: {}]
  %s3 = inlined_call_operand.vmem [shape: f32[10,1536], index: 3, kind: output, shape index: {}]
  %s4 = sld [smem:[#allocation0]]
  $region87: #{forward.17} parent=0
    _
  %s6 = ssub.s32 1, %s4
  %s7 = scalar_select 0, %s6, %s4
  $region1: #{forward.17} parent=0
    #allocation2 [shape = 'u8[65536]{0}', space=vmem, size = 0x10000, scoped, tag = 'input window, operand 1']
    #allocation3 [shape = 'u8[65536]{0}', space=vmem, size = 0x10000, scoped, tag = 'output window, operand 0']
    loop: start=0, step=1, limit=5
    $region2: #{forward.17} parent=1 // loop_pre_header
      _
    $region3: #{forward.17} parent=1 // loop_header
      %s9 = sphi 0, %s13
      %p10 = scmp.ge.s32.totalorder %s9, 5
      %s17 = sphi 0, %s17
      %s19 = sphi 0, %s17
      %s20 = sphi 0, %s19
      %s34 = sphi 0, %s20
      %s40 = sphi 0, %s42
      %s43 = sphi 0, %s40
      %s44 = sphi 0, %s43
      %s60 = sphi 0, %s44
      %s64 = sphi 0, %s64
      %s66 = sphi 0, %s64
      %s67 = sphi 0, %s66
      %s81 = sphi 0, %s67
      %s87 = sphi 0, %s89
      %s90 = sphi 0, %s87
      %s91 = sphi 0, %s90
      %s107 = sphi 0, %s91
    $region4: #{forward.17} parent=1 // loop_header_branch
      %12 = sbr.rel (%p10) target = $region8
    $region5: #{forward.17} parent=1 // loop_body
      %s14 = ssub.s32 %s9, 1
      %s15 = ssub.s32 %s9, 2
      %s16 = sadd.s32 %s9, 1
      %s18 = sadd.s32 %s17, 1
      %p21 = scmp.eq.s32.totalorder %s9, 2
      %p22 = scmp.ne.s32.totalorder %s17, %s19
      %p23 = scmp.eq.s32.totalorder %s9, 0
      %p24 = por %p22, %p23
      %p25 = scmp.ne.s32.totalorder %s17, %s19
      %p26 = scmp.eq.s32.totalorder %s14, 2
      %p27 = por %p25, %p26
      %p28 = scmp.ne.s32.totalorder %s19, %s20
      %p29 = scmp.eq.s32.totalorder %s14, 0
      %p30 = por %p28, %p29
      %p31 = scmp.ne.s32.totalorder %s19, %s20
      %p32 = scmp.eq.s32.totalorder %s15, 2
      %p33 = por %p31, %p32
      %p35 = scmp.ne.s32.totalorder %s20, %s34
      %p36 = scmp.eq.s32.totalorder %s15, 0
      %p37 = por %p35, %p36
      %s38 = ssub.s32 %s9, %s16
      %p39 = scmp.eq.s32.totalorder %s38, 0
      %s41 = sadd.s32 %s40, 1
      %s42 = scalar_select %p39, %s40, %s41
      %p45 = pneg %p39
      %p46 = scmp.eq.s32.totalorder %s9, 2
      %p47 = por %p45, %p46
      %p48 = scmp.ne.s32.totalorder %s40, %s43
      %p49 = scmp.eq.s32.totalorder %s9, 0
      %p50 = por %p48, %p49
      %p51 = scmp.ne.s32.totalorder %s40, %s43
      %p52 = scmp.eq.s32.totalorder %s14, 2
      %p53 = por %p51, %p52
      %p54 = scmp.ne.s32.totalorder %s43, %s44
      %p55 = scmp.eq.s32.totalorder %s14, 0
      %p56 = por %p54, %p55
      %p57 = scmp.ne.s32.totalorder %s43, %s44
      %p58 = scmp.eq.s32.totalorder %s15, 2
      %p59 = por %p57, %p58
      %p61 = scmp.ne.s32.totalorder %s44, %s60
      %p62 = scmp.eq.s32.totalorder %s15, 0
      %p63 = por %p61, %p62
      %s65 = sadd.s32 %s64, 1
      %p68 = scmp.eq.s32.totalorder %s9, 2
      %p69 = scmp.ne.s32.totalorder %s64, %s66
      %p70 = scmp.eq.s32.totalorder %s9, 0
      %p71 = por %p69, %p70
      %p72 = scmp.ne.s32.totalorder %s64, %s66
      %p73 = scmp.eq.s32.totalorder %s14, 2
      %p74 = por %p72, %p73
      %p75 = scmp.ne.s32.totalorder %s66, %s67
      %p76 = scmp.eq.s32.totalorder %s14, 0
      %p77 = por %p75, %p76
      %p78 = scmp.ne.s32.totalorder %s66, %s67
      %p79 = scmp.eq.s32.totalorder %s15, 2
      %p80 = por %p78, %p79
      %p82 = scmp.ne.s32.totalorder %s67, %s81
      %p83 = scmp.eq.s32.totalorder %s15, 0
      %p84 = por %p82, %p83
      %s85 = ssub.s32 %s9, %s16
      %p86 = scmp.eq.s32.totalorder %s85, 0
      %s88 = sadd.s32 %s87, 1
      %s89 = scalar_select %p86, %s87, %s88
      %p92 = pneg %p86
      %p93 = scmp.eq.s32.totalorder %s9, 2
      %p94 = por %p92, %p93
      %p95 = scmp.ne.s32.totalorder %s87, %s90
      %p96 = scmp.eq.s32.totalorder %s9, 0
      %p97 = por %p95, %p96
      %p98 = scmp.ne.s32.totalorder %s87, %s90
      %p99 = scmp.eq.s32.totalorder %s14, 2
      %p100 = por %p98, %p99
      %p101 = scmp.ne.s32.totalorder %s90, %s91
      %p102 = scmp.eq.s32.totalorder %s14, 0
      %p103 = por %p101, %p102
      %p104 = scmp.ne.s32.totalorder %s90, %s91
      %p105 = scmp.eq.s32.totalorder %s15, 2
      %p106 = por %p104, %p105
      %p108 = scmp.ne.s32.totalorder %s91, %s107
      %p109 = scmp.eq.s32.totalorder %s15, 0
      %p110 = por %p108, %p109
      %p111 = scmp.le.s32.totalorder 1, %s9
      %p112 = scmp.lt.s32.totalorder %s9, 4
      %p113 = pnand %p111, %p112
      %p114 = pneg %p113
      // Predicated region
      $region9: #{forward.17} parent=5 // pred_check
        _
      $region10: #{forward.17} parent=5 // pred_check_branch
        %116 = sbr.rel (%p113) target = $region12
      $region11: #{forward.17} parent=5 // pred_region
        %s117 = ssub.s32 %s9, 1
        // Predicated region
        $region13: #{forward.17} parent=11 // pred_check
          %p118 = pneg %p30
        $region14: #{forward.17} parent=11 // pred_check_branch
          %120 = sbr.rel (%p118) target = $region16
        $region15: #{forward.17} parent=11 // pred_region
          _
        $region16: #{forward.17} parent=11 // pred_fallthru
          _
        // Predicated region
        $region17: #{forward.17} parent=11 // pred_check
          %p121 = pneg %p77
        $region18: #{forward.17} parent=11 // pred_check_branch
          %123 = sbr.rel (%p121) target = $region20
        $region19: #{forward.17} parent=11 // pred_region
          _
        $region20: #{forward.17} parent=11 // pred_fallthru
          _
      $region12: #{forward.17} parent=5 // pred_fallthru
        _
      %p124 = scmp.lt.s32.totalorder %s9, 3
      // Predicated region
      $region21: #{forward.17} parent=5 // pred_check
        %p125 = pneg %p124
      $region22: #{forward.17} parent=5 // pred_check_branch
        %127 = sbr.rel (%p125) target = $region24
      $region23: #{forward.17} parent=5 // pred_region
        // Predicated region
        $region25: #{forward.17} parent=23 // pred_check
          %p128 = pneg %p50
        $region26: #{forward.17} parent=23 // pred_check_branch
          %130 = sbr.rel (%p128) target = $region28
        $region27: #{forward.17} parent=23 // pred_region
          %s131 = sand.u32 %s40, 1
          %s132 = sand.u32 %s40, 1
          %s133 = smul.addr %s132, 64
          %s134 = scalar_lea.vmem [#allocation2], %s133
          %s135 = smul.u32 4, %s9
          %s136 = smul.addr %s135, 4
          %s137 = scalar_lea.vmem %s1, %s136
          // Predicated region
          $region29: #{forward.17} parent=27 // pred_check
            _
          $region30: #{forward.17} parent=27 // pred_check_branch
            %139 = sbr.rel (0) target = $region32
          $region31: #{forward.17} parent=27 // pred_region
            // Predicated region
            $region33: #{forward.17} parent=31 // pred_check
              _
            $region34: #{forward.17} parent=31 // pred_check_branch
              %141 = sbr.rel (0) target = $region36
            $region35: #{forward.17} parent=31 // pred_region
              loop: start=0, step=1, limit=1
              $region37: #{forward.17} parent=35 // loop_pre_header
                _
              $region38: #{forward.17} parent=35 // loop_header
                %s143 = sphi 0, %s147
                %p144 = scmp.ge.s32.totalorder %s143, 1
                %s148 = sphi %s137, %s137
                %s149 = sphi %s134, %s134
              $region39: #{forward.17} parent=35 // loop_header_branch
                %146 = sbr.rel (%p144) target = $region43
              $region40: #{forward.17} parent=35 // loop_body
                %v150 = vld [vmem:[%s148] sm:$0xff]
                %151 = vst [vmem:[%s149] sm:$0xff] %v150
                %v152 = vld [vmem:[%s148 + $0x8] sm:$0xff]
                %153 = vst [vmem:[%s149 + $0x8] sm:$0xff] %v152
                %v154 = vld [vmem:[%s148 + $0x30] sm:$0xff]
                %155 = vst [vmem:[%s149 + $0x10] sm:$0xff] %v154
                %v156 = vld [vmem:[%s148 + $0x38] sm:$0xff]
                %157 = vst [vmem:[%s149 + $0x18] sm:$0xff] %v156
                %v158 = vld [vmem:[%s148 + $0x60] sm:$0xff]
                %159 = vst [vmem:[%s149 + $0x20] sm:$0xff] %v158
                %v160 = vld [vmem:[%s148 + $0x68] sm:$0xff]
                %161 = vst [vmem:[%s149 + $0x28] sm:$0xff] %v160
                %v162 = vld [vmem:[%s148 + $0x90] sm:$0xff]
                %163 = vst [vmem:[%s149 + $0x30] sm:$0xff] %v162
                %v164 = vld [vmem:[%s148 + $0x98] sm:$0xff]
                %165 = vst [vmem:[%s149 + $0x38] sm:$0xff] %v164
              $region41: #{forward.17} parent=35 // loop_footer
                %s147 = sadd.s32 1, %s143
              $region42: #{forward.17} parent=35 // loop_footer_branch
                %142 = sbr.rel target = $region38
              $region43: #{forward.17} parent=35 // loop_exit
                _
            $region36: #{forward.17} parent=31 // pred_fallthru
              _
            // Predicated region
            $region44: #{forward.17} parent=31 // pred_check
              _
            $region45: #{forward.17} parent=31 // pred_check_branch
              %167 = sbr.rel target = $region47
            $region46: #{forward.17} parent=31 // pred_region
              _
            $region47: #{forward.17} parent=31 // pred_fallthru
              _
          $region32: #{forward.17} parent=27 // pred_fallthru
            _
          %168 = vnop
        $region28: #{forward.17} parent=23 // pred_fallthru
          _
      $region24: #{forward.17} parent=5 // pred_fallthru
        _
      %p169 = scmp.le.s32.totalorder 1, %s9
      %p170 = scmp.lt.s32.totalorder %s9, 4
      %p171 = pnand %p169, %p170
      %p172 = pneg %p171
      // Predicated region
      $region48: #{forward.17} parent=5 // pred_check
        _
      $region49: #{forward.17} parent=5 // pred_check_branch
        %174 = sbr.rel (%p171) target = $region51
      $region50: #{forward.17} parent=5 // pred_region
        %s175 = ssub.s32 %s9, 1
        %s176 = sand.u32 %s43, 1
        %s177 = sand.u32 %s43, 1
        %s178 = smul.addr %s177, 64
        %s179 = scalar_lea.vmem [#allocation2], %s178
        // Predicated region
        $region52: #{forward.17} parent=50 // pred_check
          %p180 = pneg %p56
        $region53: #{forward.17} parent=50 // pred_check_branch
          %182 = sbr.rel (%p180) target = $region55
        $region54: #{forward.17} parent=50 // pred_region
          _
        $region55: #{forward.17} parent=50 // pred_fallthru
          _
        %p183 = pneg %p30
        %p184 = pneg %p27
        %s185 = sand.u32 %s43, 1
        %s186 = sand.u32 %s43, 1
        %s187 = smul.addr %s186, 64
        %s188 = scalar_lea.vmem [#allocation2], %s187
        %p189 = pneg %p56
        %p190 = pneg %p53
        %p191 = pneg %p77
        %p192 = pneg %p74
        %p193 = pneg %p103
        %p194 = pneg %p100
        %s195 = sand.u32 %s90, 1
        %s196 = sand.u32 %s90, 1
        %s197 = smul.addr %s196, 64
        %s198 = scalar_lea.vmem [#allocation3], %s197
        %s199 = smul.u32 4, %s14
        %s200 = smul.u32 4, %s14
        %v202 = vld [vmem:[%s0] sm:$0xf]
        %v203 = vld [vmem:[%s0 + $0x4] sm:$0x1]
        %v204 = vld [vmem:[%s179] sm:$0xff]
        %v205 = vld [vmem:[%s179 + $0x8] sm:$0xff]
        %v206 = vld [vmem:[%s179 + $0x10] sm:$0xff]
        %v207 = vld [vmem:[%s179 + $0x18] sm:$0xff]
        %v208 = vld [vmem:[%s179 + $0x20] sm:$0xff]
        %v209 = vld [vmem:[%s179 + $0x28] sm:$0xff]
        %v210 = vld [vmem:[%s179 + $0x30] sm:$0x11]
        %v211 = vld [vmem:[%s179 + $0x38] sm:$0x11]
        %v212 = vld [vmem:[%s2] sm:$0xff]
        %v213 = vld [vmem:[%s2 + $0x8] sm:$0x3]
        %215 = vset.pattern.permute.xlu0 0
        %216 = vperm.xlu0 %215, %v212
        %v217 = vpop.permute.xlu0 %216
        %220 = vset.pattern.permute.xlu0 0
        %221 = vperm.xlu0 %220, %v213
        %v222 = vpop.permute.xlu0 %221
        %v226 = vunpack.c.l.b16 %v202
        %v227 = vunpack.c.l.b16 %v203
        %v228 = vpack.c.b16 %v227, %v226
        %v237 = vunpack.c.l.b16 %v204
        %v238 = vunpack.c.h.b16 %v204
        %v239 = vunpack.c.l.b16 %v205
        %v240 = vunpack.c.h.b16 %v205
        %v241 = vunpack.c.l.b16 %v206
        %v242 = vunpack.c.h.b16 %v206
        %v243 = vunpack.c.l.b16 %v207
        %v244 = vunpack.c.h.b16 %v207
        %v245 = vunpack.c.l.b16 %v208
        %v246 = vunpack.c.h.b16 %v208
        %v247 = vunpack.c.l.b16 %v209
        %v248 = vunpack.c.h.b16 %v209
        %v249 = vunpack.c.l.b16 %v210
        %v250 = vunpack.c.h.b16 %v210
        %v251 = vunpack.c.l.b16 %v211
        %v252 = vunpack.c.h.b16 %v211
        %v253 = vpack.c.b16 %v241, %v237
        %v254 = vpack.c.b16 %v242, %v238
        %v255 = vpack.c.b16 %v243, %v239
        %v256 = vpack.c.b16 %v244, %v240
        %v257 = vpack.c.b16 %v249, %v245
        %v258 = vpack.c.b16 %v250, %v246
        %v259 = vpack.c.b16 %v251, %v247
        %v260 = vpack.c.b16 %v252, %v248
        %vm265 = vcmask 203776
        %v267 = vsel %vm265, %v228, 0
        %vm269 = vcmask 1043456
        %vm270 = vcmask 1044480
        %v271 = vsel %vm269, 4294967295, 65535
        %v272 = vsel %vm270, %v271, 0
        %v274 = vand.u32 %v257, %v272
        %v277 = vand.u32 %v258, %v272
        %v280 = vand.u32 %v259, %v272
        %v283 = vand.u32 %v260, %v272
        %285 = vmatprep.subr.bf16.mxu0 %v254
        %286 = vmatpush1.bf16.msra.mxu0 %v253
        %287 = vmatprep.subr.bf16.mxu0 %v277
        %288 = vmatpush1.bf16.msra.mxu0 %v274
        %289 = vmatprep.subr.bf16.mxu0 0
        %290 = vmatpush1.bf16.msra.mxu0 0
        %291 = vmatprep.subr.bf16.mxu0 0
        %292 = vmatpush1.bf16.msra.mxu0 0
        %293 = vmatprep.subr.bf16.mxu0 0
        %294 = vmatpush1.bf16.msra.mxu0 0
        %295 = vmatprep.subr.bf16.mxu0 0
        %296 = vmatpush1.bf16.msra.mxu0 0
        %297 = vmatprep.subr.bf16.mxu0 0
        %298 = vmatpush1.bf16.msra.mxu0 0
        %299 = vmatprep.subr.bf16.mxu0 0
        %300 = vmatpush1.bf16.msra.mxu0 0
        %301 = vmatprep.subr.bf16.mxu0 0
        %302 = vmatpush1.bf16.msra.mxu0 0
        %303 = vmatprep.subr.bf16.mxu0 0
        %304 = vmatpush1.bf16.msra.mxu0 0
        %305 = vmatprep.subr.bf16.mxu0 0
        %306 = vmatpush1.bf16.msra.mxu0 0
        %307 = vmatprep.subr.bf16.mxu0 0
        %308 = vmatpush1.bf16.msra.mxu0 0
        %309 = vmatprep.subr.bf16.mxu0 0
        %310 = vmatpush1.bf16.msra.mxu0 0
        %311 = vmatprep.subr.bf16.mxu0 0
        %312 = vmatpush1.bf16.msra.mxu0 0
        %313 = vmatprep.subr.bf16.mxu0 0
        %314 = vmatpush1.bf16.msra.mxu0 0
        %315 = vmatprep.subr.bf16.mxu0 0
        %316 = vmatpush1.bf16.msra.mxu0 0
        %317 = vmatprep.mubr.bf16.mxu0 0
        %318 = vmatmul.mubr.bf16.gmra.mrb[0].mxu0 %v267
        %v319 = vpop.f32.mrb[0].mxu0
        %v320 = vadd.f32 %v217, %v319
        %v321 = vpop.f32.mrb[0].mxu0
        %v322 = vadd.f32 %v217, %v321
        %v323 = vpop.f32.mrb[0].mxu0
        %v324 = vadd.f32 %v222, %v323
        %v325 = vpop.f32.mrb[0].mxu0
        %v326 = vadd.f32 %v222, %v325
        %327 = vdwg.mxu0
        %328 = vmatprep.subr.bf16.mxu0 %v256
        %329 = vmatpush1.bf16.msra.mxu0 %v255
        %330 = vmatprep.subr.bf16.mxu0 %v283
        %331 = vmatpush1.bf16.msra.mxu0 %v280
        %332 = vmatprep.subr.bf16.mxu0 0
        %333 = vmatpush1.bf16.msra.mxu0 0
        %334 = vmatprep.subr.bf16.mxu0 0
        %335 = vmatpush1.bf16.msra.mxu0 0
        %336 = vmatprep.subr.bf16.mxu0 0
        %337 = vmatpush1.bf16.msra.mxu0 0
        %338 = vmatprep.subr.bf16.mxu0 0
        %339 = vmatpush1.bf16.msra.mxu0 0
        %340 = vmatprep.subr.bf16.mxu0 0
        %341 = vmatpush1.bf16.msra.mxu0 0
        %342 = vmatprep.subr.bf16.mxu0 0
        %343 = vmatpush1.bf16.msra.mxu0 0
        %344 = vmatprep.subr.bf16.mxu0 0
        %345 = vmatpush1.bf16.msra.mxu0 0
        %346 = vmatprep.subr.bf16.mxu0 0
        %347 = vmatpush1.bf16.msra.mxu0 0
        %348 = vmatprep.subr.bf16.mxu0 0
        %349 = vmatpush1.bf16.msra.mxu0 0
        %350 = vmatprep.subr.bf16.mxu0 0
        %351 = vmatpush1.bf16.msra.mxu0 0
        %352 = vmatprep.subr.bf16.mxu0 0
        %353 = vmatpush1.bf16.msra.mxu0 0
        %354 = vmatprep.subr.bf16.mxu0 0
        %355 = vmatpush1.bf16.msra.mxu0 0
        %356 = vmatprep.subr.bf16.mxu0 0
        %357 = vmatpush1.bf16.msra.mxu0 0
        %358 = vmatprep.subr.bf16.mxu0 0
        %359 = vmatpush1.bf16.msra.mxu0 0
        %360 = vmatprep.mubr.bf16.mxu0 0
        %361 = vmatmul.mubr.bf16.gmra.mrb[0].mxu0 %v267
        %v362 = vpop.f32.mrb[0].mxu0
        %v363 = vadd.f32 %v217, %v362
        %v364 = vpop.f32.mrb[0].mxu0
        %v365 = vadd.f32 %v217, %v364
        %v366 = vpop.f32.mrb[0].mxu0
        %v367 = vadd.f32 %v222, %v366
        %v368 = vpop.f32.mrb[0].mxu0
        %v369 = vadd.f32 %v222, %v368
        %370 = vdwg.mxu0
        %v371 = vmax.f32 %v320, 0.0
        %v372 = vmax.f32 %v322, 0.0
        %v373 = vmax.f32 %v363, 0.0
        %v374 = vmax.f32 %v365, 0.0
        %v375 = vmax.f32 %v324, 0.0
        %v376 = vmax.f32 %v326, 0.0
        %v377 = vmax.f32 %v367, 0.0
        %v378 = vmax.f32 %v369, 0.0
        %379 = vst [vmem:[%s198] sm:$0xff] %v371
        %380 = vst [vmem:[%s198 + $0x8] sm:$0xff] %v372
        %381 = vst [vmem:[%s198 + $0x10] sm:$0xff] %v373
        %382 = vst [vmem:[%s198 + $0x18] sm:$0xff] %v374
        %383 = vst [vmem:[%s198 + $0x20] sm:$0x3] %v375
        %384 = vst [vmem:[%s198 + $0x28] sm:$0x3] %v376
        %385 = vst [vmem:[%s198 + $0x30] sm:$0x3] %v377
        %386 = vst [vmem:[%s198 + $0x38] sm:$0x3] %v378
        %s387 = sand.u32 %s90, 1
        %s388 = sand.u32 %s90, 1
        %s389 = smul.addr %s388, 64
        %s390 = scalar_lea.vmem [#allocation3], %s389
        // Predicated region
        $region56: #{forward.17} parent=50 // pred_check
          %p391 = pneg %p100
        $region57: #{forward.17} parent=50 // pred_check_branch
          %393 = sbr.rel (%p391) target = $region59
        $region58: #{forward.17} parent=50 // pred_region
          %s394 = smul.u32 4, %s14
          %s395 = smul.addr %s394, 8
          %s396 = scalar_lea.vmem %s3, %s395
          // Predicated region
          $region60: #{forward.17} parent=58 // pred_check
            _
          $region61: #{forward.17} parent=58 // pred_check_branch
            %398 = sbr.rel (0) target = $region63
          $region62: #{forward.17} parent=58 // pred_region
            // Predicated region
            $region64: #{forward.17} parent=62 // pred_check
              _
            $region65: #{forward.17} parent=62 // pred_check_branch
              %400 = sbr.rel (0) target = $region67
            $region66: #{forward.17} parent=62 // pred_region
              loop: start=0, step=1, limit=1
              $region68: #{forward.17} parent=66 // loop_pre_header
                _
              $region69: #{forward.17} parent=66 // loop_header
                %s402 = sphi 0, %s406
                %p403 = scmp.ge.s32.totalorder %s402, 1
                %s407 = sphi %s390, %s390
                %s408 = sphi %s396, %s396
              $region70: #{forward.17} parent=66 // loop_header_branch
                %405 = sbr.rel (%p403) target = $region74
              $region71: #{forward.17} parent=66 // loop_body
                %v409 = vld [vmem:[%s407] sm:$0xff]
                %410 = vst [vmem:[%s408] sm:$0xff] %v409
                %v411 = vld [vmem:[%s407 + $0x8] sm:$0xff]
                %412 = vst [vmem:[%s408 + $0x8] sm:$0xff] %v411
                %v413 = vld [vmem:[%s407 + $0x10] sm:$0xff]
                %414 = vst [vmem:[%s408 + $0x10] sm:$0xff] %v413
                %v415 = vld [vmem:[%s407 + $0x18] sm:$0xff]
                %416 = vst [vmem:[%s408 + $0x18] sm:$0xff] %v415
                %v417 = vld [vmem:[%s407 + $0x20] sm:$0xff]
                %418 = vst [vmem:[%s408 + $0x60] sm:$0xff] %v417
                %v419 = vld [vmem:[%s407 + $0x28] sm:$0xff]
                %420 = vst [vmem:[%s408 + $0x68] sm:$0xff] %v419
                %v421 = vld [vmem:[%s407 + $0x30] sm:$0xff]
                %422 = vst [vmem:[%s408 + $0x70] sm:$0xff] %v421
                %v423 = vld [vmem:[%s407 + $0x38] sm:$0xff]
                %424 = vst [vmem:[%s408 + $0x78] sm:$0xff] %v423
              $region72: #{forward.17} parent=66 // loop_footer
                %s406 = sadd.s32 1, %s402
              $region73: #{forward.17} parent=66 // loop_footer_branch
                %401 = sbr.rel target = $region69
              $region74: #{forward.17} parent=66 // loop_exit
                _
            $region67: #{forward.17} parent=62 // pred_fallthru
              _
            // Predicated region
            $region75: #{forward.17} parent=62 // pred_check
              _
            $region76: #{forward.17} parent=62 // pred_check_branch
              %426 = sbr.rel target = $region78
            $region77: #{forward.17} parent=62 // pred_region
              _
            $region78: #{forward.17} parent=62 // pred_fallthru
              _
          $region63: #{forward.17} parent=58 // pred_fallthru
            _
          %427 = vnop
        $region59: #{forward.17} parent=50 // pred_fallthru
          _
      $region51: #{forward.17} parent=5 // pred_fallthru
        _
      %p428 = scmp.le.s32.totalorder 2, %s9
      // Predicated region
      $region79: #{forward.17} parent=5 // pred_check
        %p429 = pneg %p428
      $region80: #{forward.17} parent=5 // pred_check_branch
        %431 = sbr.rel (%p429) target = $region82
      $region81: #{forward.17} parent=5 // pred_region
        %s432 = ssub.s32 %s9, 2
        // Predicated region
        $region83: #{forward.17} parent=81 // pred_check
          %p433 = pneg %p106
        $region84: #{forward.17} parent=81 // pred_check_branch
          %435 = sbr.rel (%p433) target = $region86
        $region85: #{forward.17} parent=81 // pred_region
          %s436 = sand.u32 %s91, 1
          %s437 = sand.u32 %s91, 1
          %s438 = smul.addr %s437, 64
          %s439 = scalar_lea.vmem [#allocation3], %s438
        $region86: #{forward.17} parent=81 // pred_fallthru
          _
      $region82: #{forward.17} parent=5 // pred_fallthru
        _
    $region6: #{forward.17} parent=1 // loop_footer
      %s13 = sadd.s32 1, %s9
    $region7: #{forward.17} parent=1 // loop_footer_branch
      %8 = sbr.rel target = $region3
    $region8: #{forward.17} parent=1 // loop_exit
      _

// kernel: forward.16
$region0: #{forward.16}
  #allocation0 [shape = 'u32[]', space=smem, size = 0x4, offset = 0x4, fixed_abs, tag = 'smem constant byte address 0x4 - core index']
  #allocation1 [shape = 'u32[144,128]{1,0:T(1,128)}', space=vmem, size = 0x12000, scoped, tag = 'internal scratch']
  %s0 = inlined_call_operand.vmem [shape: bf16[8,28,784], index: 0, kind: input, shape index: {}]
  %s1 = inlined_call_operand.vmem [shape: bf16[8,28,28], index: 1, kind: input, shape index: {}]
  %s2 = inlined_call_operand.vmem [shape: bf16[8,28,784], index: 2, kind: input, shape index: {}]
  %s3 = inlined_call_operand.vmem [shape: f32[8,784], index: 3, kind: output, shape index: {}]
  %s4 = sld [smem:[#allocation0]]
  $region22: #{forward.16} parent=0
    _
  %s6 = ssub.s32 1, %s4
  %s7 = scalar_select 0, %s6, %s4
  // Predicated region
  $region2: #{forward.16} parent=0 // pred_check
    _
  $region3: #{forward.16} parent=0 // pred_check_branch
    %9 = sbr.rel (0) target = $region5
  $region4: #{forward.16} parent=0 // pred_region
    _
  $region5: #{forward.16} parent=0 // pred_fallthru
    _
  // Predicated region
  $region6: #{forward.16} parent=0 // pred_check
    _
  $region7: #{forward.16} parent=0 // pred_check_branch
    %11 = sbr.rel (0) target = $region9
  $region8: #{forward.16} parent=0 // pred_region
    _
  $region9: #{forward.16} parent=0 // pred_fallthru
    _
  // Predicated region
  $region10: #{forward.16} parent=0 // pred_check
    _
  $region11: #{forward.16} parent=0 // pred_check_branch
    %13 = sbr.rel (0) target = $region13
  $region12: #{forward.16} parent=0 // pred_region
    _
  $region13: #{forward.16} parent=0 // pred_fallthru
    _
  %v15 = vld [vmem:[%s1] sm:$0xf]
  %v16 = vld [vmem:[%s1 + $0x4] sm:$0xf]
  %v17 = vld [vmem:[%s1 + $0x8] sm:$0xf]
  %v18 = vld [vmem:[%s1 + $0xc] sm:$0x3]
  %v19 = vld [vmem:[%s1 + $0x10] sm:$0xf]
  %v20 = vld [vmem:[%s1 + $0x14] sm:$0xf]
  %v21 = vld [vmem:[%s1 + $0x18] sm:$0xf]
  %v22 = vld [vmem:[%s1 + $0x1c] sm:$0x3]
  %v23 = vld [vmem:[%s1 + $0x20] sm:$0xf]
  %v24 = vld [vmem:[%s1 + $0x24] sm:$0xf]
  %v25 = vld [vmem:[%s1 + $0x28] sm:$0xf]
  %v26 = vld [vmem:[%s1 + $0x2c] sm:$0x3]
  %v27 = vld [vmem:[%s1 + $0x30] sm:$0xf]
  %v28 = vld [vmem:[%s1 + $0x34] sm:$0xf]
  %v29 = vld [vmem:[%s1 + $0x38] sm:$0xf]
  %v30 = vld [vmem:[%s1 + $0x3c] sm:$0x3]
  %v31 = vld [vmem:[%s1 + $0x40] sm:$0xf]
  %v32 = vld [vmem:[%s1 + $0x44] sm:$0xf]
  %v33 = vld [vmem:[%s1 + $0x48] sm:$0xf]
  %v34 = vld [vmem:[%s1 + $0x4c] sm:$0x3]
  %v35 = vld [vmem:[%s1 + $0x50] sm:$0xf]
  %v36 = vld [vmem:[%s1 + $0x54] sm:$0xf]
  %v37 = vld [vmem:[%s1 + $0x58] sm:$0xf]
  %v38 = vld [vmem:[%s1 + $0x5c] sm:$0x3]
  %v39 = vld [vmem:[%s1 + $0x60] sm:$0xf]
  %v40 = vld [vmem:[%s1 + $0x64] sm:$0xf]
  %v41 = vld [vmem:[%s1 + $0x68] sm:$0xf]
  %v42 = vld [vmem:[%s1 + $0x6c] sm:$0x3]
  %v43 = vld [vmem:[%s1 + $0x70] sm:$0xf]
  %v44 = vld [vmem:[%s1 + $0x74] sm:$0xf]
  %v45 = vld [vmem:[%s1 + $0x78] sm:$0xf]
  %v46 = vld [vmem:[%s1 + $0x7c] sm:$0x3]
  %v47 = vld [vmem:[%s0] sm:$0xff]
  %v48 = vld [vmem:[%s0 + $0x8] sm:$0xff]
  %v49 = vld [vmem:[%s0 + $0x10] sm:$0xff]
  %v50 = vld [vmem:[%s0 + $0x18] sm:$0xf]
  %v51 = vld [vmem:[%s0 + $0x1c] sm:$0xff]
  %v52 = vld [vmem:[%s0 + $0x24] sm:$0xff]
  %v53 = vld [vmem:[%s0 + $0x2c] sm:$0xff]
  %v54 = vld [vmem:[%s0 + $0x34] sm:$0xf]
  %v55 = vld [vmem:[%s0 + $0x38] sm:$0xff]
  %v56 = vld [vmem:[%s0 + $0x40] sm:$0xff]
  %v57 = vld [vmem:[%s0 + $0x48] sm:$0xff]
  %v58 = vld [vmem:[%s0 + $0x50] sm:$0xf]
  %v59 = vld [vmem:[%s0 + $0x54] sm:$0x33]
  %v60 = vld [vmem:[%s0 + $0x5c] sm:$0x33]
  %v61 = vld [vmem:[%s0 + $0x64] sm:$0x33]
  %v62 = vld [vmem:[%s0 + $0x6c] sm:$0x3]
  %v63 = vld [vmem:[%s0 + $0x70] sm:$0xff]
  %v64 = vld [vmem:[%s0 + $0x78] sm:$0xff]
  %v65 = vld [vmem:[%s0 + $0x80] sm:$0xff]
  %v66 = vld [vmem:[%s0 + $0x88] sm:$0xf]
  %v67 = vld [vmem:[%s0 + $0x8c] sm:$0xff]
  %v68 = vld [vmem:[%s0 + $0x94] sm:$0xff]
  %v69 = vld [vmem:[%s0 + $0x9c] sm:$0xff]
  %v70 = vld [vmem:[%s0 + $0xa4] sm:$0xf]
  %v71 = vld [vmem:[%s0 + $0xa8] sm:$0xff]
  %v72 = vld [vmem:[%s0 + $0xb0] sm:$0xff]
  %v73 = vld [vmem:[%s0 + $0xb8] sm:$0xff]
  %v74 = vld [vmem:[%s0 + $0xc0] sm:$0xf]
  %v75 = vld [vmem:[%s0 + $0xc4] sm:$0x33]
  %v76 = vld [vmem:[%s0 + $0xcc] sm:$0x33]
  %v77 = vld [vmem:[%s0 + $0xd4] sm:$0x33]
  %v78 = vld [vmem:[%s0 + $0xdc] sm:$0x3]
  %v79 = vld [vmem:[%s0 + $0xe0] sm:$0xff]
  %v80 = vld [vmem:[%s0 + $0xe8] sm:$0xff]
  %v81 = vld [vmem:[%s0 + $0xf0] sm:$0xff]
  %v82 = vld [vmem:[%s0 + $0xf8] sm:$0xf]
  %v83 = vld [vmem:[%s0 + $0xfc] sm:$0xff]
  %v84 = vld [vmem:[%s0 + $0x104] sm:$0xff]
  %v85 = vld [vmem:[%s0 + $0x10c] sm:$0xff]
  %v86 = vld [vmem:[%s0 + $0x114] sm:$0xf]
  %v87 = vld [vmem:[%s0 + $0x118] sm:$0xff]
  %v88 = vld [vmem:[%s0 + $0x120] sm:$0xff]
  %v89 = vld [vmem:[%s0 + $0x128] sm:$0xff]
  %v90 = vld [vmem:[%s0 + $0x130] sm:$0xf]
  %v91 = vld [vmem:[%s0 + $0x134] sm:$0x33]
  %v92 = vld [vmem:[%s0 + $0x13c] sm:$0x33]
  %v93 = vld [vmem:[%s0 + $0x144] sm:$0x33]
  %v94 = vld [vmem:[%s0 + $0x14c] sm:$0x3]
  %v95 = vld [vmem:[%s0 + $0x150] sm:$0xff]
  %v96 = vld [vmem:[%s0 + $0x158] sm:$0xff]
  %v97 = vld [vmem:[%s0 + $0x160] sm:$0xff]
  %v98 = vld [vmem:[%s0 + $0x168] sm:$0xf]
  %v99 = vld [vmem:[%s0 + $0x16c] sm:$0xff]
  %v100 = vld [vmem:[%s0 + $0x174] sm:$0xff]
  %v101 = vld [vmem:[%s0 + $0x17c] sm:$0xff]
  %v102 = vld [vmem:[%s0 + $0x184] sm:$0xf]
  %v103 = vld [vmem:[%s0 + $0x188] sm:$0xff]
  %v104 = vld [vmem:[%s0 + $0x190] sm:$0xff]
  %v105 = vld [vmem:[%s0 + $0x198] sm:$0xff]
  %v106 = vld [vmem:[%s0 + $0x1a0] sm:$0xf]
  %v107 = vld [vmem:[%s0 + $0x1a4] sm:$0x33]
  %v108 = vld [vmem:[%s0 + $0x1ac] sm:$0x33]
  %v109 = vld [vmem:[%s0 + $0x1b4] sm:$0x33]
  %v110 = vld [vmem:[%s0 + $0x1bc] sm:$0x3]
  %v111 = vld [vmem:[%s0 + $0x1c0] sm:$0xff]
  %v112 = vld [vmem:[%s0 + $0x1c8] sm:$0xff]
  %v113 = vld [vmem:[%s0 + $0x1d0] sm:$0xff]
  %v114 = vld [vmem:[%s0 + $0x1d8] sm:$0xf]
  %v115 = vld [vmem:[%s0 + $0x1dc] sm:$0xff]
  %v116 = vld [vmem:[%s0 + $0x1e4] sm:$0xff]
  %v117 = vld [vmem:[%s0 + $0x1ec] sm:$0xff]
  %v118 = vld [vmem:[%s0 + $0x1f4] sm:$0xf]
  %v119 = vld [vmem:[%s0 + $0x1f8] sm:$0xff]
  %v120 = vld [vmem:[%s0 + $0x200] sm:$0xff]
  %v121 = vld [vmem:[%s0 + $0x208] sm:$0xff]
  %v122 = vld [vmem:[%s0 + $0x210] sm:$0xf]
  %v123 = vld [vmem:[%s0 + $0x214] sm:$0x33]
  %v124 = vld [vmem:[%s0 + $0x21c] sm:$0x33]
  %v125 = vld [vmem:[%s0 + $0x224] sm:$0x33]
  %v126 = vld [vmem:[%s0 + $0x22c] sm:$0x3]
  %v127 = vld [vmem:[%s0 + $0x230] sm:$0xff]
  %v128 = vld [vmem:[%s0 + $0x238] sm:$0xff]
  %v129 = vld [vmem:[%s0 + $0x240] sm:$0xff]
  %v130 = vld [vmem:[%s0 + $0x248] sm:$0xf]
  %v131 = vld [vmem:[%s0 + $0x24c] sm:$0xff]
  %v132 = vld [vmem:[%s0 + $0x254] sm:$0xff]
  %v133 = vld [vmem:[%s0 + $0x25c] sm:$0xff]
  %v134 = vld [vmem:[%s0 + $0x264] sm:$0xf]
  %v135 = vld [vmem:[%s0 + $0x268] sm:$0xff]
  %v136 = vld [vmem:[%s0 + $0x270] sm:$0xff]
  %v137 = vld [vmem:[%s0 + $0x278] sm:$0xff]
  %v138 = vld [vmem:[%s0 + $0x280] sm:$0xf]
  %v139 = vld [vmem:[%s0 + $0x284] sm:$0x33]
  %v140 = vld [vmem:[%s0 + $0x28c] sm:$0x33]
  %v141 = vld [vmem:[%s0 + $0x294] sm:$0x33]
  %v142 = vld [vmem:[%s0 + $0x29c] sm:$0x3]
  %v143 = vld [vmem:[%s0 + $0x2a0] sm:$0xff]
  %v144 = vld [vmem:[%s0 + $0x2a8] sm:$0xff]
  %v145 = vld [vmem:[%s0 + $0x2b0] sm:$0xff]
  %v146 = vld [vmem:[%s0 + $0x2b8] sm:$0xf]
  %v147 = vld [vmem:[%s0 + $0x2bc] sm:$0xff]
  %v148 = vld [vmem:[%s0 + $0x2c4] sm:$0xff]
  %v149 = vld [vmem:[%s0 + $0x2cc] sm:$0xff]
  %v150 = vld [vmem:[%s0 + $0x2d4] sm:$0xf]
  %v151 = vld [vmem:[%s0 + $0x2d8] sm:$0xff]
  %v152 = vld [vmem:[%s0 + $0x2e0] sm:$0xff]
  %v153 = vld [vmem:[%s0 + $0x2e8] sm:$0xff]
  %v154 = vld [vmem:[%s0 + $0x2f0] sm:$0xf]
  %v155 = vld [vmem:[%s0 + $0x2f4] sm:$0x33]
  %v156 = vld [vmem:[%s0 + $0x2fc] sm:$0x33]
  %v157 = vld [vmem:[%s0 + $0x304] sm:$0x33]
  %v158 = vld [vmem:[%s0 + $0x30c] sm:$0x3]
  %v159 = vld [vmem:[%s0 + $0x310] sm:$0xff]
  %v160 = vld [vmem:[%s0 + $0x318] sm:$0xff]
  %v161 = vld [vmem:[%s0 + $0x320] sm:$0xff]
  %v162 = vld [vmem:[%s0 + $0x328] sm:$0xf]
  %v163 = vld [vmem:[%s0 + $0x32c] sm:$0xff]
  %v164 = vld [vmem:[%s0 + $0x334] sm:$0xff]
  %v165 = vld [vmem:[%s0 + $0x33c] sm:$0xff]
  %v166 = vld [vmem:[%s0 + $0x344] sm:$0xf]
  %v167 = vld [vmem:[%s0 + $0x348] sm:$0xff]
  %v168 = vld [vmem:[%s0 + $0x350] sm:$0xff]
  %v169 = vld [vmem:[%s0 + $0x358] sm:$0xff]
  %v170 = vld [vmem:[%s0 + $0x360] sm:$0xf]
  %v171 = vld [vmem:[%s0 + $0x364] sm:$0x33]
  %v172 = vld [vmem:[%s0 + $0x36c] sm:$0x33]
  %v173 = vld [vmem:[%s0 + $0x374] sm:$0x33]
  %v174 = vld [vmem:[%s0 + $0x37c] sm:$0x3]
  %v179 = vunpack.c.l.b16 %v15
  %v180 = vunpack.c.l.b16 %v16
  %v181 = vunpack.c.l.b16 %v17
  %v182 = vunpack.c.l.b16 %v18
  %v183 = vpack.c.b16 %v180, %v179
  %v184 = vpack.c.b16 %v182, %v181
  %187 = vxpose.xlu0.c.b16.start [1/8] %v183, 128
  %188 = vxpose.xlu0.c.b16.cont [2/8] %v184, 128
  %189 = vxpose.xlu0.c.b16.cont [3/8] 0, 128
  %190 = vxpose.xlu0.c.b16.cont [4/8] 0, 128
  %191 = vxpose.xlu0.c.b16.cont [5/8] 0, 128
  %192 = vxpose.xlu0.c.b16.cont [6/8] 0, 128
  %193 = vxpose.xlu0.c.b16.cont [7/8] 0, 128
  %194 = vxpose.xlu0.c.b16.end [8/8] 0, 128
  %v195 = vpop.trf.xlu0
  %v196 = vpop.trf.xlu0
  %v197 = vpop.trf.xlu0
  %v198 = vpop.trf.xlu0
  %v199 = vpop.trf.xlu0
  %v200 = vpop.trf.xlu0
  %v201 = vpop.trf.xlu0
  %v202 = vpop.trf.xlu0
  %v219 = vunpack.c.l.b16 %v47
  %v220 = vunpack.c.h.b16 %v47
  %v221 = vunpack.c.l.b16 %v48
  %v222 = vunpack.c.h.b16 %v48
  %v223 = vunpack.c.l.b16 %v49
  %v224 = vunpack.c.h.b16 %v49
  %v225 = vunpack.c.l.b16 %v50
  %v226 = vunpack.c.l.b16 %v51
  %v227 = vunpack.c.h.b16 %v51
  %v228 = vunpack.c.l.b16 %v52
  %v229 = vunpack.c.h.b16 %v52
  %v230 = vunpack.c.l.b16 %v53
  %v231 = vunpack.c.h.b16 %v53
  %v232 = vunpack.c.l.b16 %v54
  %v233 = vunpack.c.l.b16 %v55
  %v234 = vunpack.c.h.b16 %v55
  %v235 = vunpack.c.l.b16 %v56
  %v236 = vunpack.c.h.b16 %v56
  %v237 = vunpack.c.l.b16 %v57
  %v238 = vunpack.c.h.b16 %v57
  %v239 = vunpack.c.l.b16 %v58
  %v240 = vunpack.c.l.b16 %v59
  %v241 = vunpack.c.h.b16 %v59
  %v242 = vunpack.c.l.b16 %v60
  %v243 = vunpack.c.h.b16 %v60
  %v244 = vunpack.c.l.b16 %v61
  %v245 = vunpack.c.h.b16 %v61
  %v246 = vunpack.c.l.b16 %v62
  %v247 = vpack.c.b16 %v226, %v219
  %v248 = vpack.c.b16 %v227, %v220
  %v249 = vpack.c.b16 %v228, %v221
  %v250 = vpack.c.b16 %v229, %v222
  %v251 = vpack.c.b16 %v230, %v223
  %v252 = vpack.c.b16 %v231, %v224
  %v253 = vpack.c.b16 %v232, %v225
  %v254 = vpack.c.b16 %v240, %v233
  %v255 = vpack.c.b16 %v241, %v234
  %v256 = vpack.c.b16 %v242, %v235
  %v257 = vpack.c.b16 %v243, %v236
  %v258 = vpack.c.b16 %v244, %v237
  %v259 = vpack.c.b16 %v245, %v238
  %v260 = vpack.c.b16 %v246, %v239
  %vm268 = vcmask 228352
  %v270 = vsel %vm268, %v195, 0
  %v273 = vsel %vm268, %v196, 0
  %vm275 = vcmask 1045504
  %v277 = vsel %vm275, %v254, 0
  %v280 = vsel %vm275, %v255, 0
  %v283 = vsel %vm275, %v256, 0
  %v286 = vsel %vm275, %v257, 0
  %v289 = vsel %vm275, %v258, 0
  %v292 = vsel %vm275, %v259, 0
  %v295 = vsel %vm275, %v260, 0
  %297 = vmatprep.subr.bf16.mxu0 %v248
  %298 = vmatpush1.bf16.msra.mxu0 %v247
  %299 = vmatprep.subr.bf16.mxu0 %v280
  %300 = vmatpush1.bf16.msra.mxu0 %v277
  %301 = vmatprep.subr.bf16.mxu0 0
  %302 = vmatpush1.bf16.msra.mxu0 0
  %303 = vmatprep.subr.bf16.mxu0 0
  %304 = vmatpush1.bf16.msra.mxu0 0
  %305 = vmatprep.subr.bf16.mxu0 0
  %306 = vmatpush1.bf16.msra.mxu0 0
  %307 = vmatprep.subr.bf16.mxu0 0
  %308 = vmatpush1.bf16.msra.mxu0 0
  %309 = vmatprep.subr.bf16.mxu0 0
  %310 = vmatpush1.bf16.msra.mxu0 0
  %311 = vmatprep.subr.bf16.mxu0 0
  %312 = vmatpush1.bf16.msra.mxu0 0
  %313 = vmatprep.subr.bf16.mxu0 0
  %314 = vmatpush1.bf16.msra.mxu0 0
  %315 = vmatprep.subr.bf16.mxu0 0
  %316 = vmatpush1.bf16.msra.mxu0 0
  %317 = vmatprep.subr.bf16.mxu0 0
  %318 = vmatpush1.bf16.msra.mxu0 0
  %319 = vmatprep.subr.bf16.mxu0 0
  %320 = vmatpush1.bf16.msra.mxu0 0
  %321 = vmatprep.subr.bf16.mxu0 0
  %322 = vmatpush1.bf16.msra.mxu0 0
  %323 = vmatprep.subr.bf16.mxu0 0
  %324 = vmatpush1.bf16.msra.mxu0 0
  %325 = vmatprep.subr.bf16.mxu0 0
  %326 = vmatpush1.bf16.msra.mxu0 0
  %327 = vmatprep.subr.bf16.mxu0 0
  %328 = vmatpush1.bf16.msra.mxu0 0
  %329 = vmatprep.mubr.bf16.mxu0 0
  %330 = vmatmul.mubr.bf16.gmra.mrb[0].mxu0 %v270
  %v331 = vpop.f32.mrb[0].mxu0
  %v332 = vadd.f32 0.0, %v331
  %v333 = vpop.f32.mrb[0].mxu0
  %v334 = vadd.f32 0.0, %v333
  %v335 = vpop.f32.mrb[0].mxu0
  %v336 = vadd.f32 0.0, %v335
  %v337 = vpop.f32.mrb[0].mxu0
  %v338 = vadd.f32 0.0, %v337
  %339 = vmatprep.mubr.bf16.mxu0 0
  %340 = vmatmul.mubr.bf16.gmra.mrb[0].mxu0 %v273
  %v341 = vpop.f32.mrb[0].mxu0
  %v342 = vadd.f32 0.0, %v341
  %v343 = vpop.f32.mrb[0].mxu0
  %v344 = vadd.f32 0.0, %v343
  %v345 = vpop.f32.mrb[0].mxu0
  %v346 = vadd.f32 0.0, %v345
  %v347 = vpop.f32.mrb[0].mxu0
  %v348 = vadd.f32 0.0, %v347
  %349 = vdwg.mxu0
  %350 = vmatprep.subr.bf16.mxu0 %v250
  %351 = vmatpush1.bf16.msra.mxu0 %v249
  %352 = vmatprep.subr.bf16.mxu0 %v286
  %353 = vmatpush1.bf16.msra.mxu0 %v283
  %354 = vmatprep.subr.bf16.mxu0 0
  %355 = vmatpush1.bf16.msra.mxu0 0
  %356 = vmatprep.subr.bf16.mxu0 0
  %357 = vmatpush1.bf16.msra.mxu0 0
  %358 = vmatprep.subr.bf16.mxu0 0
  %359 = vmatpush1.bf16.msra.mxu0 0
  %360 = vmatprep.subr.bf16.mxu0 0
  %361 = vmatpush1.bf16.msra.mxu0 0
  %362 = vmatprep.subr.bf16.mxu0 0
  %363 = vmatpush1.bf16.msra.mxu0 0
  %364 = vmatprep.subr.bf16.mxu0 0
  %365 = vmatpush1.bf16.msra.mxu0 0
  %366 = vmatprep.subr.bf16.mxu0 0
  %367 = vmatpush1.bf16.msra.mxu0 0
  %368 = vmatprep.subr.bf16.mxu0 0
  %369 = vmatpush1.bf16.msra.mxu0 0
  %370 = vmatprep.subr.bf16.mxu0 0
  %371 = vmatpush1.bf16.msra.mxu0 0
  %372 = vmatprep.subr.bf16.mxu0 0
  %373 = vmatpush1.bf16.msra.mxu0 0
  %374 = vmatprep.subr.bf16.mxu0 0
  %375 = vmatpush1.bf16.msra.mxu0 0
  %376 = vmatprep.subr.bf16.mxu0 0
  %377 = vmatpush1.bf16.msra.mxu0 0
  %378 = vmatprep.subr.bf16.mxu0 0
  %379 = vmatpush1.bf16.msra.mxu0 0
  %380 = vmatprep.subr.bf16.mxu0 0
  %381 = vmatpush1.bf16.msra.mxu0 0
  %382 = vmatprep.mubr.bf16.mxu0 0
  %383 = vmatmul.mubr.bf16.gmra.mrb[0].mxu0 %v270
  %v384 = vpop.f32.mrb[0].mxu0
  %v385 = vadd.f32 0.0, %v384
  %v386 = vpop.f32.mrb[0].mxu0
  %v387 = vadd.f32 0.0, %v386
  %v388 = vpop.f32.mrb[0].mxu0
  %v389 = vadd.f32 0.0, %v388
  %v390 = vpop.f32.mrb[0].mxu0
  %v391 = vadd.f32 0.0, %v390
  %392 = vmatprep.mubr.bf16.mxu0 0
  %393 = vmatmul.mubr.bf16.gmra.mrb[0].mxu0 %v273
  %v394 = vpop.f32.mrb[0].mxu0
  %v395 = vadd.f32 0.0, %v394
  %v396 = vpop.f32.mrb[0].mxu0
  %v397 = vadd.f32 0.0, %v396
  %v398 = vpop.f32.mrb[0].mxu0
  %v399 = vadd.f32 0.0, %v398
  %v400 = vpop.f32.mrb[0].mxu0
  %v401 = vadd.f32 0.0, %v400
  %402 = vdwg.mxu0
  %403 = vmatprep.subr.bf16.mxu0 %v252
  %404 = vmatpush1.bf16.msra.mxu0 %v251
  %405 = vmatprep.subr.bf16.mxu0 %v292
  %406 = vmatpush1.bf16.msra.mxu0 %v289
  %407 = vmatprep.subr.bf16.mxu0 0
  %408 = vmatpush1.bf16.msra.mxu0 0
  %409 = vmatprep.subr.bf16.mxu0 0
  %410 = vmatpush1.bf16.msra.mxu0 0
  %411 = vmatprep.subr.bf16.mxu0 0
  %412 = vmatpush1.bf16.msra.mxu0 0
  %413 = vmatprep.subr.bf16.mxu0 0
  %414 = vmatpush1.bf16.msra.mxu0 0
  %415 = vmatprep.subr.bf16.mxu0 0
  %416 = vmatpush1.bf16.msra.mxu0 0
  %417 = vmatprep.subr.bf16.mxu0 0
  %418 = vmatpush1.bf16.msra.mxu0 0
  %419 = vmatprep.subr.bf16.mxu0 0
  %420 = vmatpush1.bf16.msra.mxu0 0
  %421 = vmatprep.subr.bf16.mxu0 0
  %422 = vmatpush1.bf16.msra.mxu0 0
  %423 = vmatprep.subr.bf16.mxu0 0
  %424 = vmatpush1.bf16.msra.mxu0 0
  %425 = vmatprep.subr.bf16.mxu0 0
  %426 = vmatpush1.bf16.msra.mxu0 0
  %427 = vmatprep.subr.bf16.mxu0 0
  %428 = vmatpush1.bf16.msra.mxu0 0
  %429 = vmatprep.subr.bf16.mxu0 0
  %430 = vmatpush1.bf16.msra.mxu0 0
  %431 = vmatprep.subr.bf16.mxu0 0
  %432 = vmatpush1.bf16.msra.mxu0 0
  %433 = vmatprep.subr.bf16.mxu0 0
  %434 = vmatpush1.bf16.msra.mxu0 0
  %435 = vmatprep.mubr.bf16.mxu0 0
  %436 = vmatmul.mubr.bf16.gmra.mrb[0].mxu0 %v270
  %v437 = vpop.f32.mrb[0].mxu0
  %v438 = vadd.f32 0.0, %v437
  %v439 = vpop.f32.mrb[0].mxu0
  %v440 = vadd.f32 0.0, %v439
  %v441 = vpop.f32.mrb[0].mxu0
  %v442 = vadd.f32 0.0, %v441
  %v443 = vpop.f32.mrb[0].mxu0
  %v444 = vadd.f32 0.0, %v443
  %445 = vmatprep.mubr.bf16.mxu0 0
  %446 = vmatmul.mubr.bf16.gmra.mrb[0].mxu0 %v273
  %v447 = vpop.f32.mrb[0].mxu0
  %v448 = vadd.f32 0.0, %v447
  %v449 = vpop.f32.mrb[0].mxu0
  %v450 = vadd.f32 0.0, %v449
  %v451 = vpop.f32.mrb[0].mxu0
  %v452 = vadd.f32 0.0, %v451
  %v453 = vpop.f32.mrb[0].mxu0
  %v454 = vadd.f32 0.0, %v453
  %455 = vdwg.mxu0
  %456 = vmatprep.subr.bf16.mxu0 0
  %457 = vmatpush1.bf16.msra.mxu0 %v253
  %458 = vmatprep.subr.bf16.mxu0 0
  %459 = vmatpush1.bf16.msra.mxu0 %v295
  %460 = vmatprep.subr.bf16.mxu0 0
  %461 = vmatpush1.bf16.msra.mxu0 0
  %462 = vmatprep.subr.bf16.mxu0 0
  %463 = vmatpush1.bf16.msra.mxu0 0
  %464 = vmatprep.subr.bf16.mxu0 0
  %465 = vmatpush1.bf16.msra.mxu0 0
  %466 = vmatprep.subr.bf16.mxu0 0
  %467 = vmatpush1.bf16.msra.mxu0 0
  %468 = vmatprep.subr.bf16.mxu0 0
  %469 = vmatpush1.bf16.msra.mxu0 0
  %470 = vmatprep.subr.bf16.mxu0 0
  %471 = vmatpush1.bf16.msra.mxu0 0
  %472 = vmatprep.subr.bf16.mxu0 0
  %473 = vmatpush1.bf16.msra.mxu0 0
  %474 = vmatprep.subr.bf16.mxu0 0
  %475 = vmatpush1.bf16.msra.mxu0 0
  %476 = vmatprep.subr.bf16.mxu0 0
  %477 = vmatpush1.bf16.msra.mxu0 0
  %478 = vmatprep.subr.bf16.mxu0 0
  %479 = vmatpush1.bf16.msra.mxu0 0
  %480 = vmatprep.subr.bf16.mxu0 0
  %481 = vmatpush1.bf16.msra.mxu0 0
  %482 = vmatprep.subr.bf16.mxu0 0
  %483 = vmatpush1.bf16.msra.mxu0 0
  %484 = vmatprep.subr.bf16.mxu0 0
  %485 = vmatpush1.bf16.msra.mxu0 0
  %486 = vmatprep.subr.bf16.mxu0 0
  %487 = vmatpush1.bf16.msra.mxu0 0
  %488 = vmatprep.mubr.bf16.mxu0 0
  %489 = vmatmul.mubr.bf16.gmra.mrb[0].mxu0 %v270
  %v490 = vpop.f32.mrb[0].mxu0
  %v491 = vadd.f32 0.0, %v490
  %v492 = vpop.f32.mrb[0].mxu0
  %v493 = vpop.f32.mrb[0].mxu0
  %v494 = vadd.f32 0.0, %v493
  %v495 = vpop.f32.mrb[0].mxu0
  %496 = vmatprep.mubr.bf16.mxu0 0
  %497 = vmatmul.mubr.bf16.gmra.mrb[0].mxu0 %v273
  %v498 = vpop.f32.mrb[0].mxu0
  %v499 = vadd.f32 0.0, %v498
  %v500 = vpop.f32.mrb[0].mxu0
  %v501 = vpop.f32.mrb[0].mxu0
  %v502 = vadd.f32 0.0, %v501
  %v503 = vpop.f32.mrb[0].mxu0
  %504 = vdwg.mxu0
  %v509 = vunpack.c.l.b16 %v19
  %v510 = vunpack.c.l.b16 %v20
  %v511 = vunpack.c.l.b16 %v21
  %v512 = vunpack.c.l.b16 %v22
  %v513 = vpack.c.b16 %v510, %v509
  %v514 = vpack.c.b16 %v512, %v511
  %517 = vxpose.xlu0.c.b16.start [1/8] %v513, 128
  %518 = vxpose.xlu0.c.b16.cont [2/8] %v514, 128
  %519 = vxpose.xlu0.c.b16.cont [3/8] 0, 128
  %520 = vxpose.xlu0.c.b16.cont [4/8] 0, 128
  %521 = vxpose.xlu0.c.b16.cont [5/8] 0, 128
  %522 = vxpose.xlu0.c.b16.cont [6/8] 0, 128
  %523 = vxpose.xlu0.c.b16.cont [7/8] 0, 128
  %524 = vxpose.xlu0.c.b16.end [8/8] 0, 128
  %v525 = vpop.trf.xlu0
  %v526 = vpop.trf.xlu0
  %v527 = vpop.trf.xlu0
  %v528 = vpop.trf.xlu0
  %v529 = vpop.trf.xlu0
  %v530 = vpop.trf.xlu0
  %v531 = vpop.trf.xlu0
  %v532 = vpop.trf.xlu0
  %v549 = vunpack.c.l.b16 %v63
  %v550 = vunpack.c.h.b16 %v63
  %v551 = vunpack.c.l.b16 %v64
  %v552 = vunpack.c.h.b16 %v64
  %v553 = vunpack.c.l.b16 %v65
  %v554 = vunpack.c.h.b16 %v65
  %v555 = vunpack.c.l.b16 %v66
  %v556 = vunpack.c.l.b16 %v67
  %v557 = vunpack.c.h.b16 %v67
  %v558 = vunpack.c.l.b16 %v68
  %v559 = vunpack.c.h.b16 %v68
  %v560 = vunpack.c.l.b16 %v69
  %v561 = vunpack.c.h.b16 %v69
  %v562 = vunpack.c.l.b16 %v70
  %v563 = vunpack.c.l.b16 %v71
  %v564 = vunpack.c.h.b16 %v71
  %v565 = vunpack.c.l.b16 %v72
  %v566 = vunpack.c.h.b16 %v72
  %v567 = vunpack.c.l.b16 %v73
  %v568 = vunpack.c.h.b16 %v73
  %v569 = vunpack.c.l.b16 %v74
  %v570 = vunpack.c.l.b16 %v75
  %v571 = vunpack.c.h.b16 %v75
  %v572 = vunpack.c.l.b16 %v76
  %v573 = vunpack.c.h.b16 %v76
  %v574 = vunpack.c.l.b16 %v77
  %v575 = vunpack.c.h.b16 %v77
  %v576 = vunpack.c.l.b16 %v78
  %v577 = vpack.c.b16 %v556, %v549
  %v578 = vpack.c.b16 %v557, %v550
  %v579 = vpack.c.b16 %v558, %v551
  %v580 = vpack.c.b16 %v559, %v552
  %v581 = vpack.c.b16 %v560, %v553
  %v582 = vpack.c.b16 %v561, %v554
  %v583 = vpack.c.b16 %v562, %v555
  %v584 = vpack.c.b16 %v570, %v563
  %v585 = vpack.c.b16 %v571, %v564
  %v586 = vpack.c.b16 %v572, %v565
  %v587 = vpack.c.b16 %v573, %v566
  %v588 = vpack.c.b16 %v574, %v567
  %v589 = vpack.c.b16 %v575, %v568
  %v590 = vpack.c.b16 %v576, %v569
  %v599 = vsel %vm268, %v525, 0
  %v602 = vsel %vm268, %v526, 0
  %v605 = vsel %vm275, %v584, 0
  %v608 = vsel %vm275, %v585, 0
  %v611 = vsel %vm275, %v586, 0
  %v614 = vsel %vm275, %v587, 0
  %v617 = vsel %vm275, %v588, 0
  %v620 = vsel %vm275, %v589, 0
  %v623 = vsel %vm275, %v590, 0
  %625 = vmatprep.subr.bf16.mxu0 %v578
  %626 = vmatpush1.bf16.msra.mxu0 %v577
  %627 = vmatprep.subr.bf16.mxu0 %v608
  %628 = vmatpush1.bf16.msra.mxu0 %v605
  %629 = vmatprep.subr.bf16.mxu0 0
  %630 = vmatpush1.bf16.msra.mxu0 0
  %631 = vmatprep.subr.bf16.mxu0 0
  %632 = vmatpush1.bf16.msra.mxu0 0
  %633 = vmatprep.subr.bf16.mxu0 0
  %634 = vmatpush1.bf16.msra.mxu0 0
  %635 = vmatprep.subr.bf16.mxu0 0
  %636 = vmatpush1.bf16.msra.mxu0 0
  %637 = vmatprep.subr.bf16.mxu0 0
  %638 = vmatpush1.bf16.msra.mxu0 0
  %639 = vmatprep.subr.bf16.mxu0 0
  %640 = vmatpush1.bf16.msra.mxu0 0
  %641 = vmatprep.subr.bf16.mxu0 0
  %642 = vmatpush1.bf16.msra.mxu0 0
  %643 = vmatprep.subr.bf16.mxu0 0
  %644 = vmatpush1.bf16.msra.mxu0 0
  %645 = vmatprep.subr.bf16.mxu0 0
  %646 = vmatpush1.bf16.msra.mxu0 0
  %647 = vmatprep.subr.bf16.mxu0 0
  %648 = vmatpush1.bf16.msra.mxu0 0
  %649 = vmatprep.subr.bf16.mxu0 0
  %650 = vmatpush1.bf16.msra.mxu0 0
  %651 = vmatprep.subr.bf16.mxu0 0
  %652 = vmatpush1.bf16.msra.mxu0 0
  %653 = vmatprep.subr.bf16.mxu0 0
  %654 = vmatpush1.bf16.msra.mxu0 0
  %655 = vmatprep.subr.bf16.mxu0 0
  %656 = vmatpush1.bf16.msra.mxu0 0
  %657 = vmatprep.mubr.bf16.mxu0 0
  %658 = vmatmul.mubr.bf16.gmra.mrb[0].mxu0 %v599
  %v659 = vpop.f32.mrb[0].mxu0
  %v660 = vadd.f32 0.0, %v659
  %v661 = vpop.f32.mrb[0].mxu0
  %v662 = vadd.f32 0.0, %v661
  %v663 = vpop.f32.mrb[0].mxu0
  %v664 = vadd.f32 0.0, %v663
  %v665 = vpop.f32.mrb[0].mxu0
  %v666 = vadd.f32 0.0, %v665
  %667 = vmatprep.mubr.bf16.mxu0 0
  %668 = vmatmul.mubr.bf16.gmra.mrb[0].mxu0 %v602
  %v669 = vpop.f32.mrb[0].mxu0
  %v670 = vadd.f32 0.0, %v669
  %v671 = vpop.f32.mrb[0].mxu0
  %v672 = vadd.f32 0.0, %v671
  %v673 = vpop.f32.mrb[0].mxu0
  %v674 = vadd.f32 0.0, %v673
  %v675 = vpop.f32.mrb[0].mxu0
  %v676 = vadd.f32 0.0, %v675
  %677 = vdwg.mxu0
  %678 = vmatprep.subr.bf16.mxu0 %v580
  %679 = vmatpush1.bf16.msra.mxu0 %v579
  %680 = vmatprep.subr.bf16.mxu0 %v614
  %681 = vmatpush1.bf16.msra.mxu0 %v611
  %682 = vmatprep.subr.bf16.mxu0 0
  %683 = vmatpush1.bf16.msra.mxu0 0
  %684 = vmatprep.subr.bf16.mxu0 0
  %685 = vmatpush1.bf16.msra.mxu0 0
  %686 = vmatprep.subr.bf16.mxu0 0
  %687 = vmatpush1.bf16.msra.mxu0 0
  %688 = vmatprep.subr.bf16.mxu0 0
  %689 = vmatpush1.bf16.msra.mxu0 0
  %690 = vmatprep.subr.bf16.mxu0 0
  %691 = vmatpush1.bf16.msra.mxu0 0
  %692 = vmatprep.subr.bf16.mxu0 0
  %693 = vmatpush1.bf16.msra.mxu0 0
  %694 = vmatprep.subr.bf16.mxu0 0
  %695 = vmatpush1.bf16.msra.mxu0 0
  %696 = vmatprep.subr.bf16.mxu0 0
  %697 = vmatpush1.bf16.msra.mxu0 0
  %698 = vmatprep.subr.bf16.mxu0 0
  %699 = vmatpush1.bf16.msra.mxu0 0
  %700 = vmatprep.subr.bf16.mxu0 0
  %701 = vmatpush1.bf16.msra.mxu0 0
  %702 = vmatprep.subr.bf16.mxu0 0
  %703 = vmatpush1.bf16.msra.mxu0 0
  %704 = vmatprep.subr.bf16.mxu0 0
  %705 = vmatpush1.bf16.msra.mxu0 0
  %706 = vmatprep.subr.bf16.mxu0 0
  %707 = vmatpush1.bf16.msra.mxu0 0
  %708 = vmatprep.subr.bf16.mxu0 0
  %709 = vmatpush1.bf16.msra.mxu0 0
  %710 = vmatprep.mubr.bf16.mxu0 0
  %711 = vmatmul.mubr.bf16.gmra.mrb[0].mxu0 %v599
  %v712 = vpop.f32.mrb[0].mxu0
  %v713 = vadd.f32 0.0, %v712
  %v714 = vpop.f32.mrb[0].mxu0
  %v715 = vadd.f32 0.0, %v714
  %v716 = vpop.f32.mrb[0].mxu0
  %v717 = vadd.f32 0.0, %v716
  %v718 = vpop.f32.mrb[0].mxu0
  %v719 = vadd.f32 0.0, %v718
  %720 = vmatprep.mubr.bf16.mxu0 0
  %721 = vmatmul.mubr.bf16.gmra.mrb[0].mxu0 %v602
  %v722 = vpop.f32.mrb[0].mxu0
  %v723 = vadd.f32 0.0, %v722
  %v724 = vpop.f32.mrb[0].mxu0
  %v725 = vadd.f32 0.0, %v724
  %v726 = vpop.f32.mrb[0].mxu0
  %v727 = vadd.f32 0.0, %v726
  %v728 = vpop.f32.mrb[0].mxu0
  %v729 = vadd.f32 0.0, %v728
  %730 = vdwg.mxu0
  %731 = vmatprep.subr.bf16.mxu0 %v582
  %732 = vmatpush1.bf16.msra.mxu0 %v581
  %733 = vmatprep.subr.bf16.mxu0 %v620
  %734 = vmatpush1.bf16.msra.mxu0 %v617
  %735 = vmatprep.subr.bf16.mxu0 0
  %736 = vmatpush1.bf16.msra.mxu0 0
  %737 = vmatprep.subr.bf16.mxu0 0
  %738 = vmatpush1.bf16.msra.mxu0 0
  %739 = vmatprep.subr.bf16.mxu0 0
  %740 = vmatpush1.bf16.msra.mxu0 0
  %741 = vmatprep.subr.bf16.mxu0 0
  %742 = vmatpush1.bf16.msra.mxu0 0
  %743 = vmatprep.subr.bf16.mxu0 0
  %744 = vmatpush1.bf16.msra.mxu0 0
  %745 = vmatprep.subr.bf16.mxu0 0
  %746 = vmatpush1.bf16.msra.mxu0 0
  %747 = vmatprep.subr.bf16.mxu0 0
  %748 = vmatpush1.bf16.msra.mxu0 0
  %749 = vmatprep.subr.bf16.mxu0 0
  %750 = vmatpush1.bf16.msra.mxu0 0
  %751 = vmatprep.subr.bf16.mxu0 0
  %752 = vmatpush1.bf16.msra.mxu0 0
  %753 = vmatprep.subr.bf16.mxu0 0
  %754 = vmatpush1.bf16.msra.mxu0 0
  %755 = vmatprep.subr.bf16.mxu0 0
  %756 = vmatpush1.bf16.msra.mxu0 0
  %757 = vmatprep.subr.bf16.mxu0 0
  %758 = vmatpush1.bf16.msra.mxu0 0
  %759 = vmatprep.subr.bf16.mxu0 0
  %760 = vmatpush1.bf16.msra.mxu0 0
  %761 = vmatprep.subr.bf16.mxu0 0
  %762 = vmatpush1.bf16.msra.mxu0 0
  %763 = vmatprep.mubr.bf16.mxu0 0
  %764 = vmatmul.mubr.bf16.gmra.mrb[0].mxu0 %v599
  %v765 = vpop.f32.mrb[0].mxu0
  %v766 = vadd.f32 0.0, %v765
  %v767 = vpop.f32.mrb[0].mxu0
  %v768 = vadd.f32 0.0, %v767
  %v769 = vpop.f32.mrb[0].mxu0
  %v770 = vadd.f32 0.0, %v769
  %v771 = vpop.f32.mrb[0].mxu0
  %v772 = vadd.f32 0.0, %v771
  %773 = vmatprep.mubr.bf16.mxu0 0
  %774 = vmatmul.mubr.bf16.gmra.mrb[0].mxu0 %v602
  %v775 = vpop.f32.mrb[0].mxu0
  %v776 = vadd.f32 0.0, %v775
  %v777 = vpop.f32.mrb[0].mxu0
  %v778 = vadd.f32 0.0, %v777
  %v779 = vpop.f32.mrb[0].mxu0
  %v780 = vadd.f32 0.0, %v779
  %v781 = vpop.f32.mrb[0].mxu0
  %v782 = vadd.f32 0.0, %v781
  %783 = vdwg.mxu0
  %784 = vmatprep.subr.bf16.mxu0 0
  %785 = vmatpush1.bf16.msra.mxu0 %v583
  %786 = vmatprep.subr.bf16.mxu0 0
  %787 = vmatpush1.bf16.msra.mxu0 %v623
  %788 = vmatprep.subr.bf16.mxu0 0
  %789 = vmatpush1.bf16.msra.mxu0 0
  %790 = vmatprep.subr.bf16.mxu0 0
  %791 = vmatpush1.bf16.msra.mxu0 0
  %792 = vmatprep.subr.bf16.mxu0 0
  %793 = vmatpush1.bf16.msra.mxu0 0
  %794 = vmatprep.subr.bf16.mxu0 0
  %795 = vmatpush1.bf16.msra.mxu0 0
  %796 = vmatprep.subr.bf16.mxu0 0
  %797 = vmatpush1.bf16.msra.mxu0 0
  %798 = vmatprep.subr.bf16.mxu0 0
  %799 = vmatpush1.bf16.msra.mxu0 0
  %800 = vmatprep.subr.bf16.mxu0 0
  %801 = vmatpush1.bf16.msra.mxu0 0
  %802 = vmatprep.subr.bf16.mxu0 0
  %803 = vmatpush1.bf16.msra.mxu0 0
  %804 = vmatprep.subr.bf16.mxu0 0
  %805 = vmatpush1.bf16.msra.mxu0 0
  %806 = vmatprep.subr.bf16.mxu0 0
  %807 = vmatpush1.bf16.msra.mxu0 0
  %808 = vmatprep.subr.bf16.mxu0 0
  %809 = vmatpush1.bf16.msra.mxu0 0
  %810 = vmatprep.subr.bf16.mxu0 0
  %811 = vmatpush1.bf16.msra.mxu0 0
  %812 = vmatprep.subr.bf16.mxu0 0
  %813 = vmatpush1.bf16.msra.mxu0 0
  %814 = vmatprep.subr.bf16.mxu0 0
  %815 = vmatpush1.bf16.msra.mxu0 0
  %816 = vmatprep.mubr.bf16.mxu0 0
  %817 = vmatmul.mubr.bf16.gmra.mrb[0].mxu0 %v599
  %v818 = vpop.f32.mrb[0].mxu0
  %v819 = vadd.f32 0.0, %v818
  %v820 = vpop.f32.mrb[0].mxu0
  %v821 = vpop.f32.mrb[0].mxu0
  %v822 = vadd.f32 0.0, %v821
  %v823 = vpop.f32.mrb[0].mxu0
  %824 = vmatprep.mubr.bf16.mxu0 0
  %825 = vmatmul.mubr.bf16.gmra.mrb[0].mxu0 %v602
  %v826 = vpop.f32.mrb[0].mxu0
  %v827 = vadd.f32 0.0, %v826
  %v828 = vpop.f32.mrb[0].mxu0
  %v829 = vpop.f32.mrb[0].mxu0
  %v830 = vadd.f32 0.0, %v829
  %v831 = vpop.f32.mrb[0].mxu0
  %832 = vdwg.mxu0
  %v837 = vunpack.c.l.b16 %v23
  %v838 = vunpack.c.l.b16 %v24
  %v839 = vunpack.c.l.b16 %v25
  %v840 = vunpack.c.l.b16 %v26
  %v841 = vpack.c.b16 %v838, %v837
  %v842 = vpack.c.b16 %v840, %v839
  %845 = vxpose.xlu0.c.b16.start [1/8] %v841, 128
  %846 = vxpose.xlu0.c.b16.cont [2/8] %v842, 128
  %847 = vxpose.xlu0.c.b16.cont [3/8] 0, 128
  %848 = vxpose.xlu0.c.b16.cont [4/8] 0, 128
  %849 = vxpose.xlu0.c.b16.cont [5/8] 0, 128
  %850 = vxpose.xlu0.c.b16.cont [6/8] 0, 128
  %851 = vxpose.xlu0.c.b16.cont [7/8] 0, 128
  %852 = vxpose.xlu0.c.b16.end [8/8] 0, 128
  %v853 = vpop.trf.xlu0
  %v854 = vpop.trf.xlu0
  %v855 = vpop.trf.xlu0
  %v856 = vpop.trf.xlu0
  %v857 = vpop.trf.xlu0
  %v858 = vpop.trf.xlu0
  %v859 = vpop.trf.xlu0
  %v860 = vpop.trf.xlu0
  %v877 = vunpack.c.l.b16 %v79
  %v878 = vunpack.c.h.b16 %v79
  %v879 = vunpack.c.l.b16 %v80
  %v880 = vunpack.c.h.b16 %v80
  %v881 = vunpack.c.l.b16 %v81
  %v882 = vunpack.c.h.b16 %v81
  %v883 = vunpack.c.l.b16 %v82
  %v884 = vunpack.c.l.b16 %v83
  %v885 = vunpack.c.h.b16 %v83
  %v886 = vunpack.c.l.b16 %v84
  %v887 = vunpack.c.h.b16 %v84
  %v888 = vunpack.c.l.b16 %v85
  %v889 = vunpack.c.h.b16 %v85
  %v890 = vunpack.c.l.b16 %v86
  %v891 = vunpack.c.l.b16 %v87
  %v892 = vunpack.c.h.b16 %v87
  %v893 = vunpack.c.l.b16 %v88
  %v894 = vunpack.c.h.b16 %v88
  %v895 = vunpack.c.l.b16 %v89
  %v896 = vunpack.c.h.b16 %v89
  %v897 = vunpack.c.l.b16 %v90
  %v898 = vunpack.c.l.b16 %v91
  %v899 = vunpack.c.h.b16 %v91
  %v900 = vunpack.c.l.b16 %v92
  %v901 = vunpack.c.h.b16 %v92
  %v902 = vunpack.c.l.b16 %v93
  %v903 = vunpack.c.h.b16 %v93
  %v904 = vunpack.c.l.b16 %v94
  %v905 = vpack.c.b16 %v884, %v877
  %v906 = vpack.c.b16 %v885, %v878
  %v907 = vpack.c.b16 %v886, %v879
  %v908 = vpack.c.b16 %v887, %v880
  %v909 = vpack.c.b16 %v888, %v881
  %v910 = vpack.c.b16 %v889, %v882
  %v911 = vpack.c.b16 %v890, %v883
  %v912 = vpack.c.b16 %v898, %v891
  %v913 = vpack.c.b16 %v899, %v892
  %v914 = vpack.c.b16 %v900, %v893
  %v915 = vpack.c.b16 %v901, %v894
  %v916 = vpack.c.b16 %v902, %v895
  %v917 = vpack.c.b16 %v903, %v896
  %v918 = vpack.c.b16 %v904, %v897
  %v927 = vsel %vm268, %v853, 0
  %v930 = vsel %vm268, %v854, 0
  %v933 = vsel %vm275, %v912, 0
  %v936 = vsel %vm275, %v913, 0
  %v939 = vsel %vm275, %v914, 0
  %v942 = vsel %vm275, %v915, 0
  %v945 = vsel %vm275, %v916, 0
  %v948 = vsel %vm275, %v917, 0
  %v951 = vsel %vm275, %v918, 0
  %953 = vmatprep.subr.bf16.mxu0 %v906
  %954 = vmatpush1.bf16.msra.mxu0 %v905
  %955 = vmatprep.subr.bf16.mxu0 %v936
  %956 = vmatpush1.bf16.msra.mxu0 %v933
  %957 = vmatprep.subr.bf16.mxu0 0
  %958 = vmatpush1.bf16.msra.mxu0 0
  %959 = vmatprep.subr.bf16.mxu0 0
  %960 = vmatpush1.bf16.msra.mxu0 0
  %961 = vmatprep.subr.bf16.mxu0 0
  %962 = vmatpush1.bf16.msra.mxu0 0
  %963 = vmatprep.subr.bf16.mxu0 0
  %964 = vmatpush1.bf16.msra.mxu0 0
  %965 = vmatprep.subr.bf16.mxu0 0
  %966 = vmatpush1.bf16.msra.mxu0 0
  %967 = vmatprep.subr.bf16.mxu0 0
  %968 = vmatpush1.bf16.msra.mxu0 0
  %969 = vmatprep.subr.bf16.mxu0 0
  %970 = vmatpush1.bf16.msra.mxu0 0
  %971 = vmatprep.subr.bf16.mxu0 0
  %972 = vmatpush1.bf16.msra.mxu0 0
  %973 = vmatprep.subr.bf16.mxu0 0
  %974 = vmatpush1.bf16.msra.mxu0 0
  %975 = vmatprep.subr.bf16.mxu0 0
  %976 = vmatpush1.bf16.msra.mxu0 0
  %977 = vmatprep.subr.bf16.mxu0 0
  %978 = vmatpush1.bf16.msra.mxu0 0
  %979 = vmatprep.subr.bf16.mxu0 0
  %980 = vmatpush1.bf16.msra.mxu0 0
  %981 = vmatprep.subr.bf16.mxu0 0
  %982 = vmatpush1.bf16.msra.mxu0 0
  %983 = vmatprep.subr.bf16.mxu0 0
  %984 = vmatpush1.bf16.msra.mxu0 0
  %985 = vmatprep.mubr.bf16.mxu0 0
  %986 = vmatmul.mubr.bf16.gmra.mrb[0].mxu0 %v927
  %v987 = vpop.f32.mrb[0].mxu0
  %v988 = vadd.f32 0.0, %v987
  %v989 = vpop.f32.mrb[0].mxu0
  %v990 = vadd.f32 0.0, %v989
  %v991 = vpop.f32.mrb[0].mxu0
  %v992 = vadd.f32 0.0, %v991
  %v993 = vpop.f32.mrb[0].mxu0
  %v994 = vadd.f32 0.0, %v993
  %995 = vmatprep.mubr.bf16.mxu0 0
  %996 = vmatmul.mubr.bf16.gmra.mrb[0].mxu0 %v930
  %v997 = vpop.f32.mrb[0].mxu0
  %v998 = vadd.f32 0.0, %v997
  %v999 = vpop.f32.mrb[0].mxu0
  %v1000 = vadd.f32 0.0, %v999
  %v1001 = vpop.f32.mrb[0].mxu0
  %v1002 = vadd.f32 0.0, %v1001
  %v1003 = vpop.f32.mrb[0].mxu0
  %v1004 = vadd.f32 0.0, %v1003
  %1005 = vdwg.mxu0
  %1006 = vmatprep.subr.bf16.mxu0 %v908
  %1007 = vmatpush1.bf16.msra.mxu0 %v907
  %1008 = vmatprep.subr.bf16.mxu0 %v942
  %1009 = vmatpush1.bf16.msra.mxu0 %v939
  %1010 = vmatprep.subr.bf16.mxu0 0
  %1011 = vmatpush1.bf16.msra.mxu0 0
  %1012 = vmatprep.subr.bf16.mxu0 0
  %1013 = vmatpush1.bf16.msra.mxu0 0
  %1014 = vmatprep.subr.bf16.mxu0 0
  %1015 = vmatpush1.bf16.msra.mxu0 0
  %1016 = vmatprep.subr.bf16.mxu0 0
  %1017 = vmatpush1.bf16.msra.mxu0 0
  %1018 = vmatprep.subr.bf16.mxu0 0
  %1019 = vmatpush1.bf16.msra.mxu0 0
  %1020 = vmatprep.subr.bf16.mxu0 0
  %1021 = vmatpush1.bf16.msra.mxu0 0
  %1022 = vmatprep.subr.bf16.mxu0 0
  %1023 = vmatpush1.bf16.msra.mxu0 0
  %1024 = vmatprep.subr.bf16.mxu0 0
  %1025 = vmatpush1.bf16.msra.mxu0 0
  %1026 = vmatprep.subr.bf16.mxu0 0
  %1027 = vmatpush1.bf16.msra.mxu0 0
  %1028 = vmatprep.subr.bf16.mxu0 0
  %1029 = vmatpush1.bf16.msra.mxu0 0
  %1030 = vmatprep.subr.bf16.mxu0 0
  %1031 = vmatpush1.bf16.msra.mxu0 0
  %1032 = vmatprep.subr.bf16.mxu0 0
  %1033 = vmatpush1.bf16.msra.mxu0 0
  %1034 = vmatprep.subr.bf16.mxu0 0
  %1035 = vmatpush1.bf16.msra.mxu0 0
  %1036 = vmatprep.subr.bf16.mxu0 0
  %1037 = vmatpush1.bf16.msra.mxu0 0
  %1038 = vmatprep.mubr.bf16.mxu0 0
  %1039 = vmatmul.mubr.bf16.gmra.mrb[0].mxu0 %v927
  %v1040 = vpop.f32.mrb[0].mxu0
  %v1041 = vadd.f32 0.0, %v1040
  %v1042 = vpop.f32.mrb[0].mxu0
  %v1043 = vadd.f32 0.0, %v1042
  %v1044 = vpop.f32.mrb[0].mxu0
  %v1045 = vadd.f32 0.0, %v1044
  %v1046 = vpop.f32.mrb[0].mxu0
  %v1047 = vadd.f32 0.0, %v1046
  %1048 = vmatprep.mubr.bf16.mxu0 0
  %1049 = vmatmul.mubr.bf16.gmra.mrb[0].mxu0 %v930
  %v1050 = vpop.f32.mrb[0].mxu0
  %v1051 = vadd.f32 0.0, %v1050
  %v1052 = vpop.f32.mrb[0].mxu0
  %v1053 = vadd.f32 0.0, %v1052
  %v1054 = vpop.f32.mrb[0].mxu0
  %v1055 = vadd.f32 0.0, %v1054
  %v1056 = vpop.f32.mrb[0].mxu0
  %v1057 = vadd.f32 0.0, %v1056
  %1058 = vdwg.mxu0
  %1059 = vmatprep.subr.bf16.mxu0 %v910
  %1060 = vmatpush1.bf16.msra.mxu0 %v909
  %1061 = vmatprep.subr.bf16.mxu0 %v948
  %1062 = vmatpush1.bf16.msra.mxu0 %v945
  %1063 = vmatprep.subr.bf16.mxu0 0
  %1064 = vmatpush1.bf16.msra.mxu0 0
  %1065 = vmatprep.subr.bf16.mxu0 0
  %1066 = vmatpush1.bf16.msra.mxu0 0
  %1067 = vmatprep.subr.bf16.mxu0 0
  %1068 = vmatpush1.bf16.msra.mxu0 0
  %1069 = vmatprep.subr.bf16.mxu0 0
  %1070 = vmatpush1.bf16.msra.mxu0 0
  %1071 = vmatprep.subr.bf16.mxu0 0
  %1072 = vmatpush1.bf16.msra.mxu0 0
  %1073 = vmatprep.subr.bf16.mxu0 0
  %1074 = vmatpush1.bf16.msra.mxu0 0
  %1075 = vmatprep.subr.bf16.mxu0 0
  %1076 = vmatpush1.bf16.msra.mxu0 0
  %1077 = vmatprep.subr.bf16.mxu0 0
  %1078 = vmatpush1.bf16.msra.mxu0 0
  %1079 = vmatprep.subr.bf16.mxu0 0
  %1080 = vmatpush1.bf16.msra.mxu0 0
  %1081 = vmatprep.subr.bf16.mxu0 0
  %1082 = vmatpush1.bf16.msra.mxu0 0
  %1083 = vmatprep.subr.bf16.mxu0 0
  %1084 = vmatpush1.bf16.msra.mxu0 0
  %1085 = vmatprep.subr.bf16.mxu0 0
  %1086 = vmatpush1.bf16.msra.mxu0 0
  %1087 = vmatprep.subr.bf16.mxu0 0
  %1088 = vmatpush1.bf16.msra.mxu0 0
  %1089 = vmatprep.subr.bf16.mxu0 0
  %1090 = vmatpush1.bf16.msra.mxu0 0
  %1091 = vmatprep.mubr.bf16.mxu0 0
  %1092 = vmatmul.mubr.bf16.gmra.mrb[0].mxu0 %v927
  %v1093 = vpop.f32.mrb[0].mxu0
  %v1094 = vadd.f32 0.0, %v1093
  %v1095 = vpop.f32.mrb[0].mxu0
  %v1096 = vadd.f32 0.0, %v1095
  %v1097 = vpop.f32.mrb[0].mxu0
  %v1098 = vadd.f32 0.0, %v1097
  %v1099 = vpop.f32.mrb[0].mxu0
  %v1100 = vadd.f32 0.0, %v1099
  %1101 = vmatprep.mubr.bf16.mxu0 0
  %1102 = vmatmul.mubr.bf16.gmra.mrb[0].mxu0 %v930
  %v1103 = vpop.f32.mrb[0].mxu0
  %v1104 = vadd.f32 0.0, %v1103
  %v1105 = vpop.f32.mrb[0].mxu0
  %v1106 = vadd.f32 0.0, %v1105
  %v1107 = vpop.f32.mrb[0].mxu0
  %v1108 = vadd.f32 0.0, %v1107
  %v1109 = vpop.f32.mrb[0].mxu0
  %v1110 = vadd.f32 0.0, %v1109
  %1111 = vdwg.mxu0
  %1112 = vmatprep.subr.bf16.mxu0 0
  %1113 = vmatpush1.bf16.msra.mxu0 %v911
  %1114 = vmatprep.subr.bf16.mxu0 0
  %1115 = vmatpush1.bf16.msra.mxu0 %v951
  %1116 = vmatprep.subr.bf16.mxu0 0
  %1117 = vmatpush1.bf16.msra.mxu0 0
  %1118 = vmatprep.subr.bf16.mxu0 0
  %1119 = vmatpush1.bf16.msra.mxu0 0
  %1120 = vmatprep.subr.bf16.mxu0 0
  %1121 = vmatpush1.bf16.msra.mxu0 0
  %1122 = vmatprep.subr.bf16.mxu0 0
  %1123 = vmatpush1.bf16.msra.mxu0 0
  %1124 = vmatprep.subr.bf16.mxu0 0
  %1125 = vmatpush1.bf16.msra.mxu0 0
  %1126 = vmatprep.subr.bf16.mxu0 0
  %1127 = vmatpush1.bf16.msra.mxu0 0
  %1128 = vmatprep.subr.bf16.mxu0 0
  %1129 = vmatpush1.bf16.msra.mxu0 0
  %1130 = vmatprep.subr.bf16.mxu0 0
  %1131 = vmatpush1.bf16.msra.mxu0 0
  %1132 = vmatprep.subr.bf16.mxu0 0
  %1133 = vmatpush1.bf16.msra.mxu0 0
  %1134 = vmatprep.subr.bf16.mxu0 0
  %1135 = vmatpush1.bf16.msra.mxu0 0
  %1136 = vmatprep.subr.bf16.mxu0 0
  %1137 = vmatpush1.bf16.msra.mxu0 0
  %1138 = vmatprep.subr.bf16.mxu0 0
  %1139 = vmatpush1.bf16.msra.mxu0 0
  %1140 = vmatprep.subr.bf16.mxu0 0
  %1141 = vmatpush1.bf16.msra.mxu0 0
  %1142 = vmatprep.subr.bf16.mxu0 0
  %1143 = vmatpush1.bf16.msra.mxu0 0
  %1144 = vmatprep.mubr.bf16.mxu0 0
  %1145 = vmatmul.mubr.bf16.gmra.mrb[0].mxu0 %v927
  %v1146 = vpop.f32.mrb[0].mxu0
  %v1147 = vadd.f32 0.0, %v1146
  %v1148 = vpop.f32.mrb[0].mxu0
  %v1149 = vpop.f32.mrb[0].mxu0
  %v1150 = vadd.f32 0.0, %v1149
  %v1151 = vpop.f32.mrb[0].mxu0
  %1152 = vmatprep.mubr.bf16.mxu0 0
  %1153 = vmatmul.mubr.bf16.gmra.mrb[0].mxu0 %v930
  %v1154 = vpop.f32.mrb[0].mxu0
  %v1155 = vadd.f32 0.0, %v1154
  %v1156 = vpop.f32.mrb[0].mxu0
  %v1157 = vpop.f32.mrb[0].mxu0
  %v1158 = vadd.f32 0.0, %v1157
  %v1159 = vpop.f32.mrb[0].mxu0
  %1160 = vdwg.mxu0
  %v1165 = vunpack.c.l.b16 %v27
  %v1166 = vunpack.c.l.b16 %v28
  %v1167 = vunpack.c.l.b16 %v29
  %v1168 = vunpack.c.l.b16 %v30
  %v1169 = vpack.c.b16 %v1166, %v1165
  %v1170 = vpack.c.b16 %v1168, %v1167
  %1173 = vxpose.xlu0.c.b16.start [1/8] %v1169, 128
  %1174 = vxpose.xlu0.c.b16.cont [2/8] %v1170, 128
  %1175 = vxpose.xlu0.c.b16.cont [3/8] 0, 128
  %1176 = vxpose.xlu0.c.b16.cont [4/8] 0, 128
  %1177 = vxpose.xlu0.c.b16.cont [5/8] 0, 128
  %1178 = vxpose.xlu0.c.b16.cont [6/8] 0, 128
  %1179 = vxpose.xlu0.c.b16.cont [7/8] 0, 128
  %1180 = vxpose.xlu0.c.b16.end [8/8] 0, 128
  %v1181 = vpop.trf.xlu0
  %v1182 = vpop.trf.xlu0
  %v1183 = vpop.trf.xlu0
  %v1184 = vpop.trf.xlu0
  %v1185 = vpop.trf.xlu0
  %v1186 = vpop.trf.xlu0
  %v1187 = vpop.trf.xlu0
  %v1188 = vpop.trf.xlu0
  %v1205 = vunpack.c.l.b16 %v95
  %v1206 = vunpack.c.h.b16 %v95
  %v1207 = vunpack.c.l.b16 %v96
  %v1208 = vunpack.c.h.b16 %v96
  %v1209 = vunpack.c.l.b16 %v97
  %v1210 = vunpack.c.h.b16 %v97
  %v1211 = vunpack.c.l.b16 %v98
  %v1212 = vunpack.c.l.b16 %v99
  %v1213 = vunpack.c.h.b16 %v99
  %v1214 = vunpack.c.l.b16 %v100
  %v1215 = vunpack.c.h.b16 %v100
  %v1216 = vunpack.c.l.b16 %v101
  %v1217 = vunpack.c.h.b16 %v101
  %v1218 = vunpack.c.l.b16 %v102
  %v1219 = vunpack.c.l.b16 %v103
  %v1220 = vunpack.c.h.b16 %v103
  %v1221 = vunpack.c.l.b16 %v104
  %v1222 = vunpack.c.h.b16 %v104
  %v1223 = vunpack.c.l.b16 %v105
  %v1224 = vunpack.c.h.b16 %v105
  %v1225 = vunpack.c.l.b16 %v106
  %v1226 = vunpack.c.l.b16 %v107
  %v1227 = vunpack.c.h.b16 %v107
  %v1228 = vunpack.c.l.b16 %v108
  %v1229 = vunpack.c.h.b16 %v108
  %v1230 = vunpack.c.l.b16 %v109
  %v1231 = vunpack.c.h.b16 %v109
  %v1232 = vunpack.c.l.b16 %v110
  %v1233 = vpack.c.b16 %v1212, %v1205
  %v1234 = vpack.c.b16 %v1213, %v1206
  %v1235 = vpack.c.b16 %v1214, %v1207
  %v1236 = vpack.c.b16 %v1215, %v1208
  %v1237 = vpack.c.b16 %v1216, %v1209
  %v1238 = vpack.c.b16 %v1217, %v1210
  %v1239 = vpack.c.b16 %v1218, %v1211
  %v1240 = vpack.c.b16 %v1226, %v1219
  %v1241 = vpack.c.b16 %v1227, %v1220
  %v1242 = vpack.c.b16 %v1228, %v1221
  %v1243 = vpack.c.b16 %v1229, %v1222
  %v1244 = vpack.c.b16 %v1230, %v1223
  %v1245 = vpack.c.b16 %v1231, %v1224
  %v1246 = vpack.c.b16 %v1232, %v1225
  %v1255 = vsel %vm268, %v1181, 0
  %v1258 = vsel %vm268, %v1182, 0
  %v1261 = vsel %vm275, %v1240, 0
  %v1264 = vsel %vm275, %v1241, 0
  %v1267 = vsel %vm275, %v1242, 0
  %v1270 = vsel %vm275, %v1243, 0
  %v1273 = vsel %vm275, %v1244, 0
  %v1276 = vsel %vm275, %v1245, 0
  %v1279 = vsel %vm275, %v1246, 0
  %1281 = vmatprep.subr.bf16.mxu0 %v1234
  %1282 = vmatpush1.bf16.msra.mxu0 %v1233
  %1283 = vmatprep.subr.bf16.mxu0 %v1264
  %1284 = vmatpush1.bf16.msra.mxu0 %v1261
  %1285 = vmatprep.subr.bf16.mxu0 0
  %1286 = vmatpush1.bf16.msra.mxu0 0
  %1287 = vmatprep.subr.bf16.mxu0 0
  %1288 = vmatpush1.bf16.msra.mxu0 0
  %1289 = vmatprep.subr.bf16.mxu0 0
  %1290 = vmatpush1.bf16.msra.mxu0 0
  %1291 = vmatprep.subr.bf16.mxu0 0
  %1292 = vmatpush1.bf16.msra.mxu0 0
  %1293 = vmatprep.subr.bf16.mxu0 0
  %1294 = vmatpush1.bf16.msra.mxu0 0
  %1295 = vmatprep.subr.bf16.mxu0 0
  %1296 = vmatpush1.bf16.msra.mxu0 0
  %1297 = vmatprep.subr.bf16.mxu0 0
  %1298 = vmatpush1.bf16.msra.mxu0 0
  %1299 = vmatprep.subr.bf16.mxu0 0
  %1300 = vmatpush1.bf16.msra.mxu0 0
  %1301 = vmatprep.subr.bf16.mxu0 0
  %1302 = vmatpush1.bf16.msra.mxu0 0
  %1303 = vmatprep.subr.bf16.mxu0 0
  %1304 = vmatpush1.bf16.msra.mxu0 0
  %1305 = vmatprep.subr.bf16.mxu0 0
  %1306 = vmatpush1.bf16.msra.mxu0 0
  %1307 = vmatprep.subr.bf16.mxu0 0
  %1308 = vmatpush1.bf16.msra.mxu0 0
  %1309 = vmatprep.subr.bf16.mxu0 0
  %1310 = vmatpush1.bf16.msra.mxu0 0
  %1311 = vmatprep.subr.bf16.mxu0 0
  %1312 = vmatpush1.bf16.msra.mxu0 0
  %1313 = vmatprep.mubr.bf16.mxu0 0
  %1314 = vmatmul.mubr.bf16.gmra.mrb[0].mxu0 %v1255
  %v1315 = vpop.f32.mrb[0].mxu0
  %v1316 = vadd.f32 0.0, %v1315
  %v1317 = vpop.f32.mrb[0].mxu0
  %v1318 = vadd.f32 0.0, %v1317
  %v1319 = vpop.f32.mrb[0].mxu0
  %v1320 = vadd.f32 0.0, %v1319
  %v1321 = vpop.f32.mrb[0].mxu0
  %v1322 = vadd.f32 0.0, %v1321
  %1323 = vmatprep.mubr.bf16.mxu0 0
  %1324 = vmatmul.mubr.bf16.gmra.mrb[0].mxu0 %v1258
  %v1325 = vpop.f32.mrb[0].mxu0
  %v1326 = vadd.f32 0.0, %v1325
  %v1327 = vpop.f32.mrb[0].mxu0
  %v1328 = vadd.f32 0.0, %v1327
  %v1329 = vpop.f32.mrb[0].mxu0
  %v1330 = vadd.f32 0.0, %v1329
  %v1331 = vpop.f32.mrb[0].mxu0
  %v1332 = vadd.f32 0.0, %v1331
  %1333 = vdwg.mxu0
  %1334 = vmatprep.subr.bf16.mxu0 %v1236
  %1335 = vmatpush1.bf16.msra.mxu0 %v1235
  %1336 = vmatprep.subr.bf16.mxu0 %v1270
  %1337 = vmatpush1.bf16.msra.mxu0 %v1267
  %1338 = vmatprep.subr.bf16.mxu0 0
  %1339 = vmatpush1.bf16.msra.mxu0 0
  %1340 = vmatprep.subr.bf16.mxu0 0
  %1341 = vmatpush1.bf16.msra.mxu0 0
  %1342 = vmatprep.subr.bf16.mxu0 0
  %1343 = vmatpush1.bf16.msra.mxu0 0
  %1344 = vmatprep.subr.bf16.mxu0 0
  %1345 = vmatpush1.bf16.msra.mxu0 0
  %1346 = vmatprep.subr.bf16.mxu0 0
  %1347 = vmatpush1.bf16.msra.mxu0 0
  %1348 = vmatprep.subr.bf16.mxu0 0
  %1349 = vmatpush1.bf16.msra.mxu0 0
  %1350 = vmatprep.subr.bf16.mxu0 0
  %1351 = vmatpush1.bf16.msra.mxu0 0
  %1352 = vmatprep.subr.bf16.mxu0 0
  %1353 = vmatpush1.bf16.msra.mxu0 0
  %1354 = vmatprep.subr.bf16.mxu0 0
  %1355 = vmatpush1.bf16.msra.mxu0 0
  %1356 = vmatprep.subr.bf16.mxu0 0
  %1357 = vmatpush1.bf16.msra.mxu0 0
  %1358 = vmatprep.subr.bf16.mxu0 0
  %1359 = vmatpush1.bf16.msra.mxu0 0
  %1360 = vmatprep.subr.bf16.mxu0 0
  %1361 = vmatpush1.bf16.msra.mxu0 0
  %1362 = vmatprep.subr.bf16.mxu0 0
  %1363 = vmatpush1.bf16.msra.mxu0 0
  %1364 = vmatprep.subr.bf16.mxu0 0
  %1365 = vmatpush1.bf16.msra.mxu0 0
  %1366 = vmatprep.mubr.bf16.mxu0 0
  %1367 = vmatmul.mubr.bf16.gmra.mrb[0].mxu0 %v1255
  %v1368 = vpop.f32.mrb[0].mxu0
  %v1369 = vadd.f32 0.0, %v1368
  %v1370 = vpop.f32.mrb[0].mxu0
  %v1371 = vadd.f32 0.0, %v1370
  %v1372 = vpop.f32.mrb[0].mxu0
  %v1373 = vadd.f32 0.0, %v1372
  %v1374 = vpop.f32.mrb[0].mxu0
  %v1375 = vadd.f32 0.0, %v1374
  %1376 = vmatprep.mubr.bf16.mxu0 0
  %1377 = vmatmul.mubr.bf16.gmra.mrb[0].mxu0 %v1258
  %v1378 = vpop.f32.mrb[0].mxu0
  %v1379 = vadd.f32 0.0, %v1378
  %v1380 = vpop.f32.mrb[0].mxu0
  %v1381 = vadd.f32 0.0, %v1380
  %v1382 = vpop.f32.mrb[0].mxu0
  %v1383 = vadd.f32 0.0, %v1382
  %v1384 = vpop.f32.mrb[0].mxu0
  %v1385 = vadd.f32 0.0, %v1384
  %1386 = vdwg.mxu0
  %1387 = vmatprep.subr.bf16.mxu0 %v1238
  %1388 = vmatpush1.bf16.msra.mxu0 %v1237
  %1389 = vmatprep.subr.bf16.mxu0 %v1276
  %1390 = vmatpush1.bf16.msra.mxu0 %v1273
  %1391 = vmatprep.subr.bf16.mxu0 0
  %1392 = vmatpush1.bf16.msra.mxu0 0
  %1393 = vmatprep.subr.bf16.mxu0 0
  %1394 = vmatpush1.bf16.msra.mxu0 0
  %1395 = vmatprep.subr.bf16.mxu0 0
  %1396 = vmatpush1.bf16.msra.mxu0 0
  %1397 = vmatprep.subr.bf16.mxu0 0
  %1398 = vmatpush1.bf16.msra.mxu0 0
  %1399 = vmatprep.subr.bf16.mxu0 0
  %1400 = vmatpush1.bf16.msra.mxu0 0
  %1401 = vmatprep.subr.bf16.mxu0 0
  %1402 = vmatpush1.bf16.msra.mxu0 0
  %1403 = vmatprep.subr.bf16.mxu0 0
  %1404 = vmatpush1.bf16.msra.mxu0 0
  %1405 = vmatprep.subr.bf16.mxu0 0
  %1406 = vmatpush1.bf16.msra.mxu0 0
  %1407 = vmatprep.subr.bf16.mxu0 0
  %1408 = vmatpush1.bf16.msra.mxu0 0
  %1409 = vmatprep.subr.bf16.mxu0 0
  %1410 = vmatpush1.bf16.msra.mxu0 0
  %1411 = vmatprep.subr.bf16.mxu0 0
  %1412 = vmatpush1.bf16.msra.mxu0 0
  %1413 = vmatprep.subr.bf16.mxu0 0
  %1414 = vmatpush1.bf16.msra.mxu0 0
  %1415 = vmatprep.subr.bf16.mxu0 0
  %1416 = vmatpush1.bf16.msra.mxu0 0
  %1417 = vmatprep.subr.bf16.mxu0 0
  %1418 = vmatpush1.bf16.msra.mxu0 0
  %1419 = vmatprep.mubr.bf16.mxu0 0
  %1420 = vmatmul.mubr.bf16.gmra.mrb[0].mxu0 %v1255
  %v1421 = vpop.f32.mrb[0].mxu0
  %v1422 = vadd.f32 0.0, %v1421
  %v1423 = vpop.f32.mrb[0].mxu0
  %v1424 = vadd.f32 0.0, %v1423
  %v1425 = vpop.f32.mrb[0].mxu0
  %v1426 = vadd.f32 0.0, %v1425
  %v1427 = vpop.f32.mrb[0].mxu0
  %v1428 = vadd.f32 0.0, %v1427
  %1429 = vmatprep.mubr.bf16.mxu0 0
  %1430 = vmatmul.mubr.bf16.gmra.mrb[0].mxu0 %v1258
  %v1431 = vpop.f32.mrb[0].mxu0
  %v1432 = vadd.f32 0.0, %v1431
  %v1433 = vpop.f32.mrb[0].mxu0
  %v1434 = vadd.f32 0.0, %v1433
  %v1435 = vpop.f32.mrb[0].mxu0
  %v1436 = vadd.f32 0.0, %v1435
  %v1437 = vpop.f32.mrb[0].mxu0
  %v1438 = vadd.f32 0.0, %v1437
  %1439 = vdwg.mxu0
  %1440 = vmatprep.subr.bf16.mxu0 0
  %1441 = vmatpush1.bf16.msra.mxu0 %v1239
  %1442 = vmatprep.subr.bf16.mxu0 0
  %1443 = vmatpush1.bf16.msra.mxu0 %v1279
  %1444 = vmatprep.subr.bf16.mxu0 0
  %1445 = vmatpush1.bf16.msra.mxu0 0
  %1446 = vmatprep.subr.bf16.mxu0 0
  %1447 = vmatpush1.bf16.msra.mxu0 0
  %1448 = vmatprep.subr.bf16.mxu0 0
  %1449 = vmatpush1.bf16.msra.mxu0 0
  %1450 = vmatprep.subr.bf16.mxu0 0
  %1451 = vmatpush1.bf16.msra.mxu0 0
  %1452 = vmatprep.subr.bf16.mxu0 0
  %1453 = vmatpush1.bf16.msra.mxu0 0
  %1454 = vmatprep.subr.bf16.mxu0 0
  %1455 = vmatpush1.bf16.msra.mxu0 0
  %1456 = vmatprep.subr.bf16.mxu0 0
  %1457 = vmatpush1.bf16.msra.mxu0 0
  %1458 = vmatprep.subr.bf16.mxu0 0
  %1459 = vmatpush1.bf16.msra.mxu0 0
  %1460 = vmatprep.subr.bf16.mxu0 0
  %1461 = vmatpush1.bf16.msra.mxu0 0
  %1462 = vmatprep.subr.bf16.mxu0 0
  %1463 = vmatpush1.bf16.msra.mxu0 0
  %1464 = vmatprep.subr.bf16.mxu0 0
  %1465 = vmatpush1.bf16.msra.mxu0 0
  %1466 = vmatprep.subr.bf16.mxu0 0
  %1467 = vmatpush1.bf16.msra.mxu0 0
  %1468 = vmatprep.subr.bf16.mxu0 0
  %1469 = vmatpush1.bf16.msra.mxu0 0
  %1470 = vmatprep.subr.bf16.mxu0 0
  %1471 = vmatpush1.bf16.msra.mxu0 0
  %1472 = vmatprep.mubr.bf16.mxu0 0
  %1473 = vmatmul.mubr.bf16.gmra.mrb[0].mxu0 %v1255
  %v1474 = vpop.f32.mrb[0].mxu0
  %v1475 = vadd.f32 0.0, %v1474
  %v1476 = vpop.f32.mrb[0].mxu0
  %v1477 = vpop.f32.mrb[0].mxu0
  %v1478 = vadd.f32 0.0, %v1477
  %v1479 = vpop.f32.mrb[0].mxu0
  %1480 = vmatprep.mubr.bf16.mxu0 0
  %1481 = vmatmul.mubr.bf16.gmra.mrb[0].mxu0 %v1258
  %v1482 = vpop.f32.mrb[0].mxu0
  %v1483 = vadd.f32 0.0, %v1482
  %v1484 = vpop.f32.mrb[0].mxu0
  %v1485 = vpop.f32.mrb[0].mxu0
  %v1486 = vadd.f32 0.0, %v1485
  %v1487 = vpop.f32.mrb[0].mxu0
  %1488 = vdwg.mxu0
  %v1493 = vunpack.c.l.b16 %v31
  %v1494 = vunpack.c.l.b16 %v32
  %v1495 = vunpack.c.l.b16 %v33
  %v1496 = vunpack.c.l.b16 %v34
  %v1497 = vpack.c.b16 %v1494, %v1493
  %v1498 = vpack.c.b16 %v1496, %v1495
  %1501 = vxpose.xlu0.c.b16.start [1/8] %v1497, 128
  %1502 = vxpose.xlu0.c.b16.cont [2/8] %v1498, 128
  %1503 = vxpose.xlu0.c.b16.cont [3/8] 0, 128
  %1504 = vxpose.xlu0.c.b16.cont [4/8] 0, 128
  %1505 = vxpose.xlu0.c.b16.cont [5/8] 0, 128
  %1506 = vxpose.xlu0.c.b16.cont [6/8] 0, 128
  %1507 = vxpose.xlu0.c.b16.cont [7/8] 0, 128
  %1508 = vxpose.xlu0.c.b16.end [8/8] 0, 128
  %v1509 = vpop.trf.xlu0
  %v1510 = vpop.trf.xlu0
  %v1511 = vpop.trf.xlu0
  %v1512 = vpop.trf.xlu0
  %v1513 = vpop.trf.xlu0
  %v1514 = vpop.trf.xlu0
  %v1515 = vpop.trf.xlu0
  %v1516 = vpop.trf.xlu0
  %v1533 = vunpack.c.l.b16 %v111
  %v1534 = vunpack.c.h.b16 %v111
  %v1535 = vunpack.c.l.b16 %v112
  %v1536 = vunpack.c.h.b16 %v112
  %v1537 = vunpack.c.l.b16 %v113
  %v1538 = vunpack.c.h.b16 %v113
  %v1539 = vunpack.c.l.b16 %v114
  %v1540 = vunpack.c.l.b16 %v115
  %v1541 = vunpack.c.h.b16 %v115
  %v1542 = vunpack.c.l.b16 %v116
  %v1543 = vunpack.c.h.b16 %v116
  %v1544 = vunpack.c.l.b16 %v117
  %v1545 = vunpack.c.h.b16 %v117
  %v1546 = vunpack.c.l.b16 %v118
  %v1547 = vunpack.c.l.b16 %v119
  %v1548 = vunpack.c.h.b16 %v119
  %v1549 = vunpack.c.l.b16 %v120
  %v1550 = vunpack.c.h.b16 %v120
  %v1551 = vunpack.c.l.b16 %v121
  %v1552 = vunpack.c.h.b16 %v121
  %v1553 = vunpack.c.l.b16 %v122
  %v1554 = vunpack.c.l.b16 %v123
  %v1555 = vunpack.c.h.b16 %v123
  %v1556 = vunpack.c.l.b16 %v124
  %v1557 = vunpack.c.h.b16 %v124
  %v1558 = vunpack.c.l.b16 %v125
  %v1559 = vunpack.c.h.b16 %v125
  %v1560 = vunpack.c.l.b16 %v126
  %v1561 = vpack.c.b16 %v1540, %v1533
  %v1562 = vpack.c.b16 %v1541, %v1534
  %v1563 = vpack.c.b16 %v1542, %v1535
  %v1564 = vpack.c.b16 %v1543, %v1536
  %v1565 = vpack.c.b16 %v1544, %v1537
  %v1566 = vpack.c.b16 %v1545, %v1538
  %v1567 = vpack.c.b16 %v1546, %v1539
  %v1568 = vpack.c.b16 %v1554, %v1547
  %v1569 = vpack.c.b16 %v1555, %v1548
  %v1570 = vpack.c.b16 %v1556, %v1549
  %v1571 = vpack.c.b16 %v1557, %v1550
  %v1572 = vpack.c.b16 %v1558, %v1551
  %v1573 = vpack.c.b16 %v1559, %v1552
  %v1574 = vpack.c.b16 %v1560, %v1553
  %v1583 = vsel %vm268, %v1509, 0
  %v1586 = vsel %vm268, %v1510, 0
  %v1589 = vsel %vm275, %v1568, 0
  %v1592 = vsel %vm275, %v1569, 0
  %v1595 = vsel %vm275, %v1570, 0
  %v1598 = vsel %vm275, %v1571, 0
  %v1601 = vsel %vm275, %v1572, 0
  %v1604 = vsel %vm275, %v1573, 0
  %v1607 = vsel %vm275, %v1574, 0
  %1609 = vmatprep.subr.bf16.mxu0 %v1562
  %1610 = vmatpush1.bf16.msra.mxu0 %v1561
  %1611 = vmatprep.subr.bf16.mxu0 %v1592
  %1612 = vmatpush1.bf16.msra.mxu0 %v1589
  %1613 = vmatprep.subr.bf16.mxu0 0
  %1614 = vmatpush1.bf16.msra.mxu0 0
  %1615 = vmatprep.subr.bf16.mxu0 0
  %1616 = vmatpush1.bf16.msra.mxu0 0
  %1617 = vmatprep.subr.bf16.mxu0 0
  %1618 = vmatpush1.bf16.msra.mxu0 0
  %1619 = vmatprep.subr.bf16.mxu0 0
  %1620 = vmatpush1.bf16.msra.mxu0 0
  %1621 = vmatprep.subr.bf16.mxu0 0
  %1622 = vmatpush1.bf16.msra.mxu0 0
  %1623 = vmatprep.subr.bf16.mxu0 0
  %1624 = vmatpush1.bf16.msra.mxu0 0
  %1625 = vmatprep.subr.bf16.mxu0 0
  %1626 = vmatpush1.bf16.msra.mxu0 0
  %1627 = vmatprep.subr.bf16.mxu0 0
  %1628 = vmatpush1.bf16.msra.mxu0 0
  %1629 = vmatprep.subr.bf16.mxu0 0
  %1630 = vmatpush1.bf16.msra.mxu0 0
  %1631 = vmatprep.subr.bf16.mxu0 0
  %1632 = vmatpush1.bf16.msra.mxu0 0
  %1633 = vmatprep.subr.bf16.mxu0 0
  %1634 = vmatpush1.bf16.msra.mxu0 0
  %1635 = vmatprep.subr.bf16.mxu0 0
  %1636 = vmatpush1.bf16.msra.mxu0 0
  %1637 = vmatprep.subr.bf16.mxu0 0
  %1638 = vmatpush1.bf16.msra.mxu0 0
  %1639 = vmatprep.subr.bf16.mxu0 0
  %1640 = vmatpush1.bf16.msra.mxu0 0
  %1641 = vmatprep.mubr.bf16.mxu0 0
  %1642 = vmatmul.mubr.bf16.gmra.mrb[0].mxu0 %v1583
  %v1643 = vpop.f32.mrb[0].mxu0
  %v1644 = vadd.f32 0.0, %v1643
  %v1645 = vpop.f32.mrb[0].mxu0
  %v1646 = vadd.f32 0.0, %v1645
  %v1647 = vpop.f32.mrb[0].mxu0
  %v1648 = vadd.f32 0.0, %v1647
  %v1649 = vpop.f32.mrb[0].mxu0
  %v1650 = vadd.f32 0.0, %v1649
  %1651 = vmatprep.mubr.bf16.mxu0 0
  %1652 = vmatmul.mubr.bf16.gmra.mrb[0].mxu0 %v1586
  %v1653 = vpop.f32.mrb[0].mxu0
  %v1654 = vadd.f32 0.0, %v1653
  %v1655 = vpop.f32.mrb[0].mxu0
  %v1656 = vadd.f32 0.0, %v1655
  %v1657 = vpop.f32.mrb[0].mxu0
  %v1658 = vadd.f32 0.0, %v1657
  %v1659 = vpop.f32.mrb[0].mxu0
  %v1660 = vadd.f32 0.0, %v1659
  %1661 = vdwg.mxu0
  %1662 = vmatprep.subr.bf16.mxu0 %v1564
  %1663 = vmatpush1.bf16.msra.mxu0 %v1563
  %1664 = vmatprep.subr.bf16.mxu0 %v1598
  %1665 = vmatpush1.bf16.msra.mxu0 %v1595
  %1666 = vmatprep.subr.bf16.mxu0 0
  %1667 = vmatpush1.bf16.msra.mxu0 0
  %1668 = vmatprep.subr.bf16.mxu0 0
  %1669 = vmatpush1.bf16.msra.mxu0 0
  %1670 = vmatprep.subr.bf16.mxu0 0
  %1671 = vmatpush1.bf16.msra.mxu0 0
  %1672 = vmatprep.subr.bf16.mxu0 0
  %1673 = vmatpush1.bf16.msra.mxu0 0
  %1674 = vmatprep.subr.bf16.mxu0 0
  %1675 = vmatpush1.bf16.msra.mxu0 0
  %1676 = vmatprep.subr.bf16.mxu0 0
  %1677 = vmatpush1.bf16.msra.mxu0 0
  %1678 = vmatprep.subr.bf16.mxu0 0
  %1679 = vmatpush1.bf16.msra.mxu0 0
  %1680 = vmatprep.subr.bf16.mxu0 0
  %1681 = vmatpush1.bf16.msra.mxu0 0
  %1682 = vmatprep.subr.bf16.mxu0 0
  %1683 = vmatpush1.bf16.msra.mxu0 0
  %1684 = vmatprep.subr.bf16.mxu0 0
  %1685 = vmatpush1.bf16.msra.mxu0 0
  %1686 = vmatprep.subr.bf16.mxu0 0
  %1687 = vmatpush1.bf16.msra.mxu0 0
  %1688 = vmatprep.subr.bf16.mxu0 0
  %1689 = vmatpush1.bf16.msra.mxu0 0
  %1690 = vmatprep.subr.bf16.mxu0 0
  %1691 = vmatpush1.bf16.msra.mxu0 0
  %1692 = vmatprep.subr.bf16.mxu0 0
  %1693 = vmatpush1.bf16.msra.mxu0 0
  %1694 = vmatprep.mubr.bf16.mxu0 0
  %1695 = vmatmul.mubr.bf16.gmra.mrb[0].mxu0 %v1583
  %v1696 = vpop.f32.mrb[0].mxu0
  %v1697 = vadd.f32 0.0, %v1696
  %v1698 = vpop.f32.mrb[0].mxu0
  %v1699 = vadd.f32 0.0, %v1698
  %v1700 = vpop.f32.mrb[0].mxu0
  %v1701 = vadd.f32 0.0, %v1700
  %v1702 = vpop.f32.mrb[0].mxu0
  %v1703 = vadd.f32 0.0, %v1702
  %1704 = vmatprep.mubr.bf16.mxu0 0
  %1705 = vmatmul.mubr.bf16.gmra.mrb[0].mxu0 %v1586
  %v1706 = vpop.f32.mrb[0].mxu0
  %v1707 = vadd.f32 0.0, %v1706
  %v1708 = vpop.f32.mrb[0].mxu0
  %v1709 = vadd.f32 0.0, %v1708
  %v1710 = vpop.f32.mrb[0].mxu0
  %v1711 = vadd.f32 0.0, %v1710
  %v1712 = vpop.f32.mrb[0].mxu0
  %v1713 = vadd.f32 0.0, %v1712
  %1714 = vdwg.mxu0
  %1715 = vmatprep.subr.bf16.mxu0 %v1566
  %1716 = vmatpush1.bf16.msra.mxu0 %v1565
  %1717 = vmatprep.subr.bf16.mxu0 %v1604
  %1718 = vmatpush1.bf16.msra.mxu0 %v1601
  %1719 = vmatprep.subr.bf16.mxu0 0
  %1720 = vmatpush1.bf16.msra.mxu0 0
  %1721 = vmatprep.subr.bf16.mxu0 0
  %1722 = vmatpush1.bf16.msra.mxu0 0
  %1723 = vmatprep.subr.bf16.mxu0 0
  %1724 = vmatpush1.bf16.msra.mxu0 0
  %1725 = vmatprep.subr.bf16.mxu0 0
  %1726 = vmatpush1.bf16.msra.mxu0 0
  %1727 = vmatprep.subr.bf16.mxu0 0
  %1728 = vmatpush1.bf16.msra.mxu0 0
  %1729 = vmatprep.subr.bf16.mxu0 0
  %1730 = vmatpush1.bf16.msra.mxu0 0
  %1731 = vmatprep.subr.bf16.mxu0 0
  %1732 = vmatpush1.bf16.msra.mxu0 0
  %1733 = vmatprep.subr.bf16.mxu0 0
  %1734 = vmatpush1.bf16.msra.mxu0 0
  %1735 = vmatprep.subr.bf16.mxu0 0
  %1736 = vmatpush1.bf16.msra.mxu0 0
  %1737 = vmatprep.subr.bf16.mxu0 0
  %1738 = vmatpush1.bf16.msra.mxu0 0
  %1739 = vmatprep.subr.bf16.mxu0 0
  %1740 = vmatpush1.bf16.msra.mxu0 0
  %1741 = vmatprep.subr.bf16.mxu0 0
  %1742 = vmatpush1.bf16.msra.mxu0 0
  %1743 = vmatprep.subr.bf16.mxu0 0
  %1744 = vmatpush1.bf16.msra.mxu0 0
  %1745 = vmatprep.subr.bf16.mxu0 0
  %1746 = vmatpush1.bf16.msra.mxu0 0
  %1747 = vmatprep.mubr.bf16.mxu0 0
  %1748 = vmatmul.mubr.bf16.gmra.mrb[0].mxu0 %v1583
  %v1749 = vpop.f32.mrb[0].mxu0
  %v1750 = vadd.f32 0.0, %v1749
  %v1751 = vpop.f32.mrb[0].mxu0
  %v1752 = vadd.f32 0.0, %v1751
  %v1753 = vpop.f32.mrb[0].mxu0
  %v1754 = vadd.f32 0.0, %v1753
  %v1755 = vpop.f32.mrb[0].mxu0
  %v1756 = vadd.f32 0.0, %v1755
  %1757 = vmatprep.mubr.bf16.mxu0 0
  %1758 = vmatmul.mubr.bf16.gmra.mrb[0].mxu0 %v1586
  %v1759 = vpop.f32.mrb[0].mxu0
  %v1760 = vadd.f32 0.0, %v1759
  %v1761 = vpop.f32.mrb[0].mxu0
  %v1762 = vadd.f32 0.0, %v1761
  %v1763 = vpop.f32.mrb[0].mxu0
  %v1764 = vadd.f32 0.0, %v1763
  %v1765 = vpop.f32.mrb[0].mxu0
  %v1766 = vadd.f32 0.0, %v1765
  %1767 = vdwg.mxu0
  %1768 = vmatprep.subr.bf16.mxu0 0
  %1769 = vmatpush1.bf16.msra.mxu0 %v1567
  %1770 = vmatprep.subr.bf16.mxu0 0
  %1771 = vmatpush1.bf16.msra.mxu0 %v1607
  %1772 = vmatprep.subr.bf16.mxu0 0
  %1773 = vmatpush1.bf16.msra.mxu0 0
  %1774 = vmatprep.subr.bf16.mxu0 0
  %1775 = vmatpush1.bf16.msra.mxu0 0
  %1776 = vmatprep.subr.bf16.mxu0 0
  %1777 = vmatpush1.bf16.msra.mxu0 0
  %1778 = vmatprep.subr.bf16.mxu0 0
  %1779 = vmatpush1.bf16.msra.mxu0 0
  %1780 = vmatprep.subr.bf16.mxu0 0
  %1781 = vmatpush1.bf16.msra.mxu0 0
  %1782 = vmatprep.subr.bf16.mxu0 0
  %1783 = vmatpush1.bf16.msra.mxu0 0
  %1784 = vmatprep.subr.bf16.mxu0 0
  %1785 = vmatpush1.bf16.msra.mxu0 0
  %1786 = vmatprep.subr.bf16.mxu0 0
  %1787 = vmatpush1.bf16.msra.mxu0 0
  %1788 = vmatprep.subr.bf16.mxu0 0
  %1789 = vmatpush1.bf16.msra.mxu0 0
  %1790 = vmatprep.subr.bf16.mxu0 0
  %1791 = vmatpush1.bf16.msra.mxu0 0
  %1792 = vmatprep.subr.bf16.mxu0 0
  %1793 = vmatpush1.bf16.msra.mxu0 0
  %1794 = vmatprep.subr.bf16.mxu0 0
  %1795 = vmatpush1.bf16.msra.mxu0 0
  %1796 = vmatprep.subr.bf16.mxu0 0
  %1797 = vmatpush1.bf16.msra.mxu0 0
  %1798 = vmatprep.subr.bf16.mxu0 0
  %1799 = vmatpush1.bf16.msra.mxu0 0
  %1800 = vmatprep.mubr.bf16.mxu0 0
  %1801 = vmatmul.mubr.bf16.gmra.mrb[0].mxu0 %v1583
  %v1802 = vpop.f32.mrb[0].mxu0
  %v1803 = vadd.f32 0.0, %v1802
  %v1804 = vpop.f32.mrb[0].mxu0
  %v1805 = vpop.f32.mrb[0].mxu0
  %v1806 = vadd.f32 0.0, %v1805
  %v1807 = vpop.f32.mrb[0].mxu0
  %1808 = vmatprep.mubr.bf16.mxu0 0
  %1809 = vmatmul.mubr.bf16.gmra.mrb[0].mxu0 %v1586
  %v1810 = vpop.f32.mrb[0].mxu0
  %v1811 = vadd.f32 0.0, %v1810
  %v1812 = vpop.f32.mrb[0].mxu0
  %v1813 = vpop.f32.mrb[0].mxu0
  %v1814 = vadd.f32 0.0, %v1813
  %v1815 = vpop.f32.mrb[0].mxu0
  %1816 = vdwg.mxu0
  %v1821 = vunpack.c.l.b16 %v35
  %v1822 = vunpack.c.l.b16 %v36
  %v1823 = vunpack.c.l.b16 %v37
  %v1824 = vunpack.c.l.b16 %v38
  %v1825 = vpack.c.b16 %v1822, %v1821
  %v1826 = vpack.c.b16 %v1824, %v1823
  %1829 = vxpose.xlu0.c.b16.start [1/8] %v1825, 128
  %1830 = vxpose.xlu0.c.b16.cont [2/8] %v1826, 128
  %1831 = vxpose.xlu0.c.b16.cont [3/8] 0, 128
  %1832 = vxpose.xlu0.c.b16.cont [4/8] 0, 128
  %1833 = vxpose.xlu0.c.b16.cont [5/8] 0, 128
  %1834 = vxpose.xlu0.c.b16.cont [6/8] 0, 128
  %1835 = vxpose.xlu0.c.b16.cont [7/8] 0, 128
  %1836 = vxpose.xlu0.c.b16.end [8/8] 0, 128
  %v1837 = vpop.trf.xlu0
  %v1838 = vpop.trf.xlu0
  %v1839 = vpop.trf.xlu0
  %v1840 = vpop.trf.xlu0
  %v1841 = vpop.trf.xlu0
  %v1842 = vpop.trf.xlu0
  %v1843 = vpop.trf.xlu0
  %v1844 = vpop.trf.xlu0
  %v1861 = vunpack.c.l.b16 %v127
  %v1862 = vunpack.c.h.b16 %v127
  %v1863 = vunpack.c.l.b16 %v128
  %v1864 = vunpack.c.h.b16 %v128
  %v1865 = vunpack.c.l.b16 %v129
  %v1866 = vunpack.c.h.b16 %v129
  %v1867 = vunpack.c.l.b16 %v130
  %v1868 = vunpack.c.l.b16 %v131
  %v1869 = vunpack.c.h.b16 %v131
  %v1870 = vunpack.c.l.b16 %v132
  %v1871 = vunpack.c.h.b16 %v132
  %v1872 = vunpack.c.l.b16 %v133
  %v1873 = vunpack.c.h.b16 %v133
  %v1874 = vunpack.c.l.b16 %v134
  %v1875 = vunpack.c.l.b16 %v135
  %v1876 = vunpack.c.h.b16 %v135
  %v1877 = vunpack.c.l.b16 %v136
  %v1878 = vunpack.c.h.b16 %v136
  %v1879 = vunpack.c.l.b16 %v137
  %v1880 = vunpack.c.h.b16 %v137
  %v1881 = vunpack.c.l.b16 %v138
  %v1882 = vunpack.c.l.b16 %v139
  %v1883 = vunpack.c.h.b16 %v139
  %v1884 = vunpack.c.l.b16 %v140
  %v1885 = vunpack.c.h.b16 %v140
  %v1886 = vunpack.c.l.b16 %v141
  %v1887 = vunpack.c.h.b16 %v141
  %v1888 = vunpack.c.l.b16 %v142
  %v1889 = vpack.c.b16 %v1868, %v1861
  %v1890 = vpack.c.b16 %v1869, %v1862
  %v1891 = vpack.c.b16 %v1870, %v1863
  %v1892 = vpack.c.b16 %v1871, %v1864
  %v1893 = vpack.c.b16 %v1872, %v1865
  %v1894 = vpack.c.b16 %v1873, %v1866
  %v1895 = vpack.c.b16 %v1874, %v1867
  %v1896 = vpack.c.b16 %v1882, %v1875
  %v1897 = vpack.c.b16 %v1883, %v1876
  %v1898 = vpack.c.b16 %v1884, %v1877
  %v1899 = vpack.c.b16 %v1885, %v1878
  %v1900 = vpack.c.b16 %v1886, %v1879
  %v1901 = vpack.c.b16 %v1887, %v1880
  %v1902 = vpack.c.b16 %v1888, %v1881
  %v1911 = vsel %vm268, %v1837, 0
  %v1914 = vsel %vm268, %v1838, 0
  %v1917 = vsel %vm275, %v1896, 0
  %v1920 = vsel %vm275, %v1897, 0
  %v1923 = vsel %vm275, %v1898, 0
  %v1926 = vsel %vm275, %v1899, 0
  %v1929 = vsel %vm275, %v1900, 0
  %v1932 = vsel %vm275, %v1901, 0
  %v1935 = vsel %vm275, %v1902, 0
  %1937 = vmatprep.subr.bf16.mxu0 %v1890
  %1938 = vmatpush1.bf16.msra.mxu0 %v1889
  %1939 = vmatprep.subr.bf16.mxu0 %v1920
  %1940 = vmatpush1.bf16.msra.mxu0 %v1917
  %1941 = vmatprep.subr.bf16.mxu0 0
  %1942 = vmatpush1.bf16.msra.mxu0 0
  %1943 = vmatprep.subr.bf16.mxu0 0
  %1944 = vmatpush1.bf16.msra.mxu0 0
  %1945 = vmatprep.subr.bf16.mxu0 0
  %1946 = vmatpush1.bf16.msra.mxu0 0
  %1947 = vmatprep.subr.bf16.mxu0 0
  %1948 = vmatpush1.bf16.msra.mxu0 0
  %1949 = vmatprep.subr.bf16.mxu0 0
  %1950 = vmatpush1.bf16.msra.mxu0 0
  %1951 = vmatprep.subr.bf16.mxu0 0
  %1952 = vmatpush1.bf16.msra.mxu0 0
  %1953 = vmatprep.subr.bf16.mxu0 0
  %1954 = vmatpush1.bf16.msra.mxu0 0
  %1955 = vmatprep.subr.bf16.mxu0 0
  %1956 = vmatpush1.bf16.msra.mxu0 0
  %1957 = vmatprep.subr.bf16.mxu0 0
  %1958 = vmatpush1.bf16.msra.mxu0 0
  %1959 = vmatprep.subr.bf16.mxu0 0
  %1960 = vmatpush1.bf16.msra.mxu0 0
  %1961 = vmatprep.subr.bf16.mxu0 0
  %1962 = vmatpush1.bf16.msra.mxu0 0
  %1963 = vmatprep.subr.bf16.mxu0 0
  %1964 = vmatpush1.bf16.msra.mxu0 0
  %1965 = vmatprep.subr.bf16.mxu0 0
  %1966 = vmatpush1.bf16.msra.mxu0 0
  %1967 = vmatprep.subr.bf16.mxu0 0
  %1968 = vmatpush1.bf16.msra.mxu0 0
  %1969 = vmatprep.mubr.bf16.mxu0 0
  %1970 = vmatmul.mubr.bf16.gmra.mrb[0].mxu0 %v1911
  %v1971 = vpop.f32.mrb[0].mxu0
  %v1972 = vadd.f32 0.0, %v1971
  %v1973 = vpop.f32.mrb[0].mxu0
  %v1974 = vadd.f32 0.0, %v1973
  %v1975 = vpop.f32.mrb[0].mxu0
  %v1976 = vadd.f32 0.0, %v1975
  %v1977 = vpop.f32.mrb[0].mxu0
  %v1978 = vadd.f32 0.0, %v1977
  %1979 = vmatprep.mubr.bf16.mxu0 0
  %1980 = vmatmul.mubr.bf16.gmra.mrb[0].mxu0 %v1914
  %v1981 = vpop.f32.mrb[0].mxu0
  %v1982 = vadd.f32 0.0, %v1981
  %v1983 = vpop.f32.mrb[0].mxu0
  %v1984 = vadd.f32 0.0, %v1983
  %v1985 = vpop.f32.mrb[0].mxu0
  %v1986 = vadd.f32 0.0, %v1985
  %v1987 = vpop.f32.mrb[0].mxu0
  %v1988 = vadd.f32 0.0, %v1987
  %1989 = vdwg.mxu0
  %1990 = vmatprep.subr.bf16.mxu0 %v1892
  %1991 = vmatpush1.bf16.msra.mxu0 %v1891
  %1992 = vmatprep.subr.bf16.mxu0 %v1926
  %1993 = vmatpush1.bf16.msra.mxu0 %v1923
  %1994 = vmatprep.subr.bf16.mxu0 0
  %1995 = vmatpush1.bf16.msra.mxu0 0
  %1996 = vmatprep.subr.bf16.mxu0 0
  %1997 = vmatpush1.bf16.msra.mxu0 0
  %1998 = vmatprep.subr.bf16.mxu0 0
  %1999 = vmatpush1.bf16.msra.mxu0 0
  %2000 = vmatprep.subr.bf16.mxu0 0
  %2001 = vmatpush1.bf16.msra.mxu0 0
  %2002 = vmatprep.subr.bf16.mxu0 0
  %2003 = vmatpush1.bf16.msra.mxu0 0
  %2004 = vmatprep.subr.bf16.mxu0 0
  %2005 = vmatpush1.bf16.msra.mxu0 0
  %2006 = vmatprep.subr.bf16.mxu0 0
  %2007 = vmatpush1.bf16.msra.mxu0 0
  %2008 = vmatprep.subr.bf16.mxu0 0
  %2009 = vmatpush1.bf16.msra.mxu0 0
  %2010 = vmatprep.subr.bf16.mxu0 0
  %2011 = vmatpush1.bf16.msra.mxu0 0
  %2012 = vmatprep.subr.bf16.mxu0 0
  %2013 = vmatpush1.bf16.msra.mxu0 0
  %2014 = vmatprep.subr.bf16.mxu0 0
  %2015 = vmatpush1.bf16.msra.mxu0 0
  %2016 = vmatprep.subr.bf16.mxu0 0
  %2017 = vmatpush1.bf16.msra.mxu0 0
  %2018 = vmatprep.subr.bf16.mxu0 0
  %2019 = vmatpush1.bf16.msra.mxu0 0
  %2020 = vmatprep.subr.bf16.mxu0 0
  %2021 = vmatpush1.bf16.msra.mxu0 0
  %2022 = vmatprep.mubr.bf16.mxu0 0
  %2023 = vmatmul.mubr.bf16.gmra.mrb[0].mxu0 %v1911
  %v2024 = vpop.f32.mrb[0].mxu0
  %v2025 = vadd.f32 0.0, %v2024
  %v2026 = vpop.f32.mrb[0].mxu0
  %v2027 = vadd.f32 0.0, %v2026
  %v2028 = vpop.f32.mrb[0].mxu0
  %v2029 = vadd.f32 0.0, %v2028
  %v2030 = vpop.f32.mrb[0].mxu0
  %v2031 = vadd.f32 0.0, %v2030
  %2032 = vmatprep.mubr.bf16.mxu0 0
  %2033 = vmatmul.mubr.bf16.gmra.mrb[0].mxu0 %v1914
  %v2034 = vpop.f32.mrb[0].mxu0
  %v2035 = vadd.f32 0.0, %v2034
  %v2036 = vpop.f32.mrb[0].mxu0
  %v2037 = vadd.f32 0.0, %v2036
  %v2038 = vpop.f32.mrb[0].mxu0
  %v2039 = vadd.f32 0.0, %v2038
  %v2040 = vpop.f32.mrb[0].mxu0
  %v2041 = vadd.f32 0.0, %v2040
  %2042 = vdwg.mxu0
  %2043 = vmatprep.subr.bf16.mxu0 %v1894
  %2044 = vmatpush1.bf16.msra.mxu0 %v1893
  %2045 = vmatprep.subr.bf16.mxu0 %v1932
  %2046 = vmatpush1.bf16.msra.mxu0 %v1929
  %2047 = vmatprep.subr.bf16.mxu0 0
  %2048 = vmatpush1.bf16.msra.mxu0 0
  %2049 = vmatprep.subr.bf16.mxu0 0
  %2050 = vmatpush1.bf16.msra.mxu0 0
  %2051 = vmatprep.subr.bf16.mxu0 0
  %2052 = vmatpush1.bf16.msra.mxu0 0
  %2053 = vmatprep.subr.bf16.mxu0 0
  %2054 = vmatpush1.bf16.msra.mxu0 0
  %2055 = vmatprep.subr.bf16.mxu0 0
  %2056 = vmatpush1.bf16.msra.mxu0 0
  %2057 = vmatprep.subr.bf16.mxu0 0
  %2058 = vmatpush1.bf16.msra.mxu0 0
  %2059 = vmatprep.subr.bf16.mxu0 0
  %2060 = vmatpush1.bf16.msra.mxu0 0
  %2061 = vmatprep.subr.bf16.mxu0 0
  %2062 = vmatpush1.bf16.msra.mxu0 0
  %2063 = vmatprep.subr.bf16.mxu0 0
  %2064 = vmatpush1.bf16.msra.mxu0 0
  %2065 = vmatprep.subr.bf16.mxu0 0
  %2066 = vmatpush1.bf16.msra.mxu0 0
  %2067 = vmatprep.subr.bf16.mxu0 0
  %2068 = vmatpush1.bf16.msra.mxu0 0
  %2069 = vmatprep.subr.bf16.mxu0 0
  %2070 = vmatpush1.bf16.msra.mxu0 0
  %2071 = vmatprep.subr.bf16.mxu0 0
  %2072 = vmatpush1.bf16.msra.mxu0 0
  %2073 = vmatprep.subr.bf16.mxu0 0
  %2074 = vmatpush1.bf16.msra.mxu0 0
  %2075 = vmatprep.mubr.bf16.mxu0 0
  %2076 = vmatmul.mubr.bf16.gmra.mrb[0].mxu0 %v1911
  %v2077 = vpop.f32.mrb[0].mxu0
  %v2078 = vadd.f32 0.0, %v2077
  %v2079 = vpop.f32.mrb[0].mxu0
  %v2080 = vadd.f32 0.0, %v2079
  %v2081 = vpop.f32.mrb[0].mxu0
  %v2082 = vadd.f32 0.0, %v2081
  %v2083 = vpop.f32.mrb[0].mxu0
  %v2084 = vadd.f32 0.0, %v2083
  %2085 = vmatprep.mubr.bf16.mxu0 0
  %2086 = vmatmul.mubr.bf16.gmra.mrb[0].mxu0 %v1914
  %v2087 = vpop.f32.mrb[0].mxu0
  %v2088 = vadd.f32 0.0, %v2087
  %v2089 = vpop.f32.mrb[0].mxu0
  %v2090 = vadd.f32 0.0, %v2089
  %v2091 = vpop.f32.mrb[0].mxu0
  %v2092 = vadd.f32 0.0, %v2091
  %v2093 = vpop.f32.mrb[0].mxu0
  %v2094 = vadd.f32 0.0, %v2093
  %2095 = vdwg.mxu0
  %2096 = vmatprep.subr.bf16.mxu0 0
  %2097 = vmatpush1.bf16.msra.mxu0 %v1895
  %2098 = vmatprep.subr.bf16.mxu0 0
  %2099 = vmatpush1.bf16.msra.mxu0 %v1935
  %2100 = vmatprep.subr.bf16.mxu0 0
  %2101 = vmatpush1.bf16.msra.mxu0 0
  %2102 = vmatprep.subr.bf16.mxu0 0
  %2103 = vmatpush1.bf16.msra.mxu0 0
  %2104 = vmatprep.subr.bf16.mxu0 0
  %2105 = vmatpush1.bf16.msra.mxu0 0
  %2106 = vmatprep.subr.bf16.mxu0 0
  %2107 = vmatpush1.bf16.msra.mxu0 0
  %2108 = vmatprep.subr.bf16.mxu0 0
  %2109 = vmatpush1.bf16.msra.mxu0 0
  %2110 = vmatprep.subr.bf16.mxu0 0
  %2111 = vmatpush1.bf16.msra.mxu0 0
  %2112 = vmatprep.subr.bf16.mxu0 0
  %2113 = vmatpush1.bf16.msra.mxu0 0
  %2114 = vmatprep.subr.bf16.mxu0 0
  %2115 = vmatpush1.bf16.msra.mxu0 0
  %2116 = vmatprep.subr.bf16.mxu0 0
  %2117 = vmatpush1.bf16.msra.mxu0 0
  %2118 = vmatprep.subr.bf16.mxu0 0
  %2119 = vmatpush1.bf16.msra.mxu0 0
  %2120 = vmatprep.subr.bf16.mxu0 0
  %2121 = vmatpush1.bf16.msra.mxu0 0
  %2122 = vmatprep.subr.bf16.mxu0 0
  %2123 = vmatpush1.bf16.msra.mxu0 0
  %2124 = vmatprep.subr.bf16.mxu0 0
  %2125 = vmatpush1.bf16.msra.mxu0 0
  %2126 = vmatprep.subr.bf16.mxu0 0
  %2127 = vmatpush1.bf16.msra.mxu0 0
  %2128 = vmatprep.mubr.bf16.mxu0 0
  %2129 = vmatmul.mubr.bf16.gmra.mrb[0].mxu0 %v1911
  %v2130 = vpop.f32.mrb[0].mxu0
  %v2131 = vadd.f32 0.0, %v2130
  %v2132 = vpop.f32.mrb[0].mxu0
  %v2133 = vpop.f32.mrb[0].mxu0
  %v2134 = vadd.f32 0.0, %v2133
  %v2135 = vpop.f32.mrb[0].mxu0
  %2136 = vmatprep.mubr.bf16.mxu0 0
  %2137 = vmatmul.mubr.bf16.gmra.mrb[0].mxu0 %v1914
  %v2138 = vpop.f32.mrb[0].mxu0
  %v2139 = vadd.f32 0.0, %v2138
  %v2140 = vpop.f32.mrb[0].mxu0
  %v2141 = vpop.f32.mrb[0].mxu0
  %v2142 = vadd.f32 0.0, %v2141
  %v2143 = vpop.f32.mrb[0].mxu0
  %2144 = vdwg.mxu0
  %v2149 = vunpack.c.l.b16 %v39
  %v2150 = vunpack.c.l.b16 %v40
  %v2151 = vunpack.c.l.b16 %v41
  %v2152 = vunpack.c.l.b16 %v42
  %v2153 = vpack.c.b16 %v2150, %v2149
  %v2154 = vpack.c.b16 %v2152, %v2151
  %2157 = vxpose.xlu0.c.b16.start [1/8] %v2153, 128
  %2158 = vxpose.xlu0.c.b16.cont [2/8] %v2154, 128
  %2159 = vxpose.xlu0.c.b16.cont [3/8] 0, 128
  %2160 = vxpose.xlu0.c.b16.cont [4/8] 0, 128
  %2161 = vxpose.xlu0.c.b16.cont [5/8] 0, 128
  %2162 = vxpose.xlu0.c.b16.cont [6/8] 0, 128
  %2163 = vxpose.xlu0.c.b16.cont [7/8] 0, 128
  %2164 = vxpose.xlu0.c.b16.end [8/8] 0, 128
  %v2165 = vpop.trf.xlu0
  %v2166 = vpop.trf.xlu0
  %v2167 = vpop.trf.xlu0
  %v2168 = vpop.trf.xlu0
  %v2169 = vpop.trf.xlu0
  %v2170 = vpop.trf.xlu0
  %v2171 = vpop.trf.xlu0
  %v2172 = vpop.trf.xlu0
  %v2189 = vunpack.c.l.b16 %v143
  %v2190 = vunpack.c.h.b16 %v143
  %v2191 = vunpack.c.l.b16 %v144
  %v2192 = vunpack.c.h.b16 %v144
  %v2193 = vunpack.c.l.b16 %v145
  %v2194 = vunpack.c.h.b16 %v145
  %v2195 = vunpack.c.l.b16 %v146
  %v2196 = vunpack.c.l.b16 %v147
  %v2197 = vunpack.c.h.b16 %v147
  %v2198 = vunpack.c.l.b16 %v148
  %v2199 = vunpack.c.h.b16 %v148
  %v2200 = vunpack.c.l.b16 %v149
  %v2201 = vunpack.c.h.b16 %v149
  %v2202 = vunpack.c.l.b16 %v150
  %v2203 = vunpack.c.l.b16 %v151
  %v2204 = vunpack.c.h.b16 %v151
  %v2205 = vunpack.c.l.b16 %v152
  %v2206 = vunpack.c.h.b16 %v152
  %v2207 = vunpack.c.l.b16 %v153
  %v2208 = vunpack.c.h.b16 %v153
  %v2209 = vunpack.c.l.b16 %v154
  %v2210 = vunpack.c.l.b16 %v155
  %v2211 = vunpack.c.h.b16 %v155
  %v2212 = vunpack.c.l.b16 %v156
  %v2213 = vunpack.c.h.b16 %v156
  %v2214 = vunpack.c.l.b16 %v157
  %v2215 = vunpack.c.h.b16 %v157
  %v2216 = vunpack.c.l.b16 %v158
  %v2217 = vpack.c.b16 %v2196, %v2189
  %v2218 = vpack.c.b16 %v2197, %v2190
  %v2219 = vpack.c.b16 %v2198, %v2191
  %v2220 = vpack.c.b16 %v2199, %v2192
  %v2221 = vpack.c.b16 %v2200, %v2193
  %v2222 = vpack.c.b16 %v2201, %v2194
  %v2223 = vpack.c.b16 %v2202, %v2195
  %v2224 = vpack.c.b16 %v2210, %v2203
  %v2225 = vpack.c.b16 %v2211, %v2204
  %v2226 = vpack.c.b16 %v2212, %v2205
  %v2227 = vpack.c.b16 %v2213, %v2206
  %v2228 = vpack.c.b16 %v2214, %v2207
  %v2229 = vpack.c.b16 %v2215, %v2208
  %v2230 = vpack.c.b16 %v2216, %v2209
  %v2239 = vsel %vm268, %v2165, 0
  %v2242 = vsel %vm268, %v2166, 0
  %v2245 = vsel %vm275, %v2224, 0
  %v2248 = vsel %vm275, %v2225, 0
  %v2251 = vsel %vm275, %v2226, 0
  %v2254 = vsel %vm275, %v2227, 0
  %v2257 = vsel %vm275, %v2228, 0
  %v2260 = vsel %vm275, %v2229, 0
  %v2263 = vsel %vm275, %v2230, 0
  %2265 = vmatprep.subr.bf16.mxu0 %v2218
  %2266 = vmatpush1.bf16.msra.mxu0 %v2217
  %2267 = vmatprep.subr.bf16.mxu0 %v2248
  %2268 = vmatpush1.bf16.msra.mxu0 %v2245
  %2269 = vmatprep.subr.bf16.mxu0 0
  %2270 = vmatpush1.bf16.msra.mxu0 0
  %2271 = vmatprep.subr.bf16.mxu0 0
  %2272 = vmatpush1.bf16.msra.mxu0 0
  %2273 = vmatprep.subr.bf16.mxu0 0
  %2274 = vmatpush1.bf16.msra.mxu0 0
  %2275 = vmatprep.subr.bf16.mxu0 0
  %2276 = vmatpush1.bf16.msra.mxu0 0
  %2277 = vmatprep.subr.bf16.mxu0 0
  %2278 = vmatpush1.bf16.msra.mxu0 0
  %2279 = vmatprep.subr.bf16.mxu0 0
  %2280 = vmatpush1.bf16.msra.mxu0 0
  %2281 = vmatprep.subr.bf16.mxu0 0
  %2282 = vmatpush1.bf16.msra.mxu0 0
  %2283 = vmatprep.subr.bf16.mxu0 0
  %2284 = vmatpush1.bf16.msra.mxu0 0
  %2285 = vmatprep.subr.bf16.mxu0 0
  %2286 = vmatpush1.bf16.msra.mxu0 0
  %2287 = vmatprep.subr.bf16.mxu0 0
  %2288 = vmatpush1.bf16.msra.mxu0 0
  %2289 = vmatprep.subr.bf16.mxu0 0
  %2290 = vmatpush1.bf16.msra.mxu0 0
  %2291 = vmatprep.subr.bf16.mxu0 0
  %2292 = vmatpush1.bf16.msra.mxu0 0
  %2293 = vmatprep.subr.bf16.mxu0 0
  %2294 = vmatpush1.bf16.msra.mxu0 0
  %2295 = vmatprep.subr.bf16.mxu0 0
  %2296 = vmatpush1.bf16.msra.mxu0 0
  %2297 = vmatprep.mubr.bf16.mxu0 0
  %2298 = vmatmul.mubr.bf16.gmra.mrb[0].mxu0 %v2239
  %v2299 = vpop.f32.mrb[0].mxu0
  %v2300 = vadd.f32 0.0, %v2299
  %v2301 = vpop.f32.mrb[0].mxu0
  %v2302 = vadd.f32 0.0, %v2301
  %v2303 = vpop.f32.mrb[0].mxu0
  %v2304 = vadd.f32 0.0, %v2303
  %v2305 = vpop.f32.mrb[0].mxu0
  %v2306 = vadd.f32 0.0, %v2305
  %2307 = vmatprep.mubr.bf16.mxu0 0
  %2308 = vmatmul.mubr.bf16.gmra.mrb[0].mxu0 %v2242
  %v2309 = vpop.f32.mrb[0].mxu0
  %v2310 = vadd.f32 0.0, %v2309
  %v2311 = vpop.f32.mrb[0].mxu0
  %v2312 = vadd.f32 0.0, %v2311
  %v2313 = vpop.f32.mrb[0].mxu0
  %v2314 = vadd.f32 0.0, %v2313
  %v2315 = vpop.f32.mrb[0].mxu0
  %v2316 = vadd.f32 0.0, %v2315
  %2317 = vdwg.mxu0
  %2318 = vmatprep.subr.bf16.mxu0 %v2220
  %2319 = vmatpush1.bf16.msra.mxu0 %v2219
  %2320 = vmatprep.subr.bf16.mxu0 %v2254
  %2321 = vmatpush1.bf16.msra.mxu0 %v2251
  %2322 = vmatprep.subr.bf16.mxu0 0
  %2323 = vmatpush1.bf16.msra.mxu0 0
  %2324 = vmatprep.subr.bf16.mxu0 0
  %2325 = vmatpush1.bf16.msra.mxu0 0
  %2326 = vmatprep.subr.bf16.mxu0 0
  %2327 = vmatpush1.bf16.msra.mxu0 0
  %2328 = vmatprep.subr.bf16.mxu0 0
  %2329 = vmatpush1.bf16.msra.mxu0 0
  %2330 = vmatprep.subr.bf16.mxu0 0
  %2331 = vmatpush1.bf16.msra.mxu0 0
  %2332 = vmatprep.subr.bf16.mxu0 0
  %2333 = vmatpush1.bf16.msra.mxu0 0
  %2334 = vmatprep.subr.bf16.mxu0 0
  %2335 = vmatpush1.bf16.msra.mxu0 0
  %2336 = vmatprep.subr.bf16.mxu0 0
  %2337 = vmatpush1.bf16.msra.mxu0 0
  %2338 = vmatprep.subr.bf16.mxu0 0
  %2339 = vmatpush1.bf16.msra.mxu0 0
  %2340 = vmatprep.subr.bf16.mxu0 0
  %2341 = vmatpush1.bf16.msra.mxu0 0
  %2342 = vmatprep.subr.bf16.mxu0 0
  %2343 = vmatpush1.bf16.msra.mxu0 0
  %2344 = vmatprep.subr.bf16.mxu0 0
  %2345 = vmatpush1.bf16.msra.mxu0 0
  %2346 = vmatprep.subr.bf16.mxu0 0
  %2347 = vmatpush1.bf16.msra.mxu0 0
  %2348 = vmatprep.subr.bf16.mxu0 0
  %2349 = vmatpush1.bf16.msra.mxu0 0
  %2350 = vmatprep.mubr.bf16.mxu0 0
  %2351 = vmatmul.mubr.bf16.gmra.mrb[0].mxu0 %v2239
  %v2352 = vpop.f32.mrb[0].mxu0
  %v2353 = vadd.f32 0.0, %v2352
  %v2354 = vpop.f32.mrb[0].mxu0
  %v2355 = vadd.f32 0.0, %v2354
  %v2356 = vpop.f32.mrb[0].mxu0
  %v2357 = vadd.f32 0.0, %v2356
  %v2358 = vpop.f32.mrb[0].mxu0
  %v2359 = vadd.f32 0.0, %v2358
  %2360 = vmatprep.mubr.bf16.mxu0 0
  %2361 = vmatmul.mubr.bf16.gmra.mrb[0].mxu0 %v2242
  %v2362 = vpop.f32.mrb[0].mxu0
  %v2363 = vadd.f32 0.0, %v2362
  %v2364 = vpop.f32.mrb[0].mxu0
  %v2365 = vadd.f32 0.0, %v2364
  %v2366 = vpop.f32.mrb[0].mxu0
  %v2367 = vadd.f32 0.0, %v2366
  %v2368 = vpop.f32.mrb[0].mxu0
  %v2369 = vadd.f32 0.0, %v2368
  %2370 = vdwg.mxu0
  %2371 = vmatprep.subr.bf16.mxu0 %v2222
  %2372 = vmatpush1.bf16.msra.mxu0 %v2221
  %2373 = vmatprep.subr.bf16.mxu0 %v2260
  %2374 = vmatpush1.bf16.msra.mxu0 %v2257
  %2375 = vmatprep.subr.bf16.mxu0 0
  %2376 = vmatpush1.bf16.msra.mxu0 0
  %2377 = vmatprep.subr.bf16.mxu0 0
  %2378 = vmatpush1.bf16.msra.mxu0 0
  %2379 = vmatprep.subr.bf16.mxu0 0
  %2380 = vmatpush1.bf16.msra.mxu0 0
  %2381 = vmatprep.subr.bf16.mxu0 0
  %2382 = vmatpush1.bf16.msra.mxu0 0
  %2383 = vmatprep.subr.bf16.mxu0 0
  %2384 = vmatpush1.bf16.msra.mxu0 0
  %2385 = vmatprep.subr.bf16.mxu0 0
  %2386 = vmatpush1.bf16.msra.mxu0 0
  %2387 = vmatprep.subr.bf16.mxu0 0
  %2388 = vmatpush1.bf16.msra.mxu0 0
  %2389 = vmatprep.subr.bf16.mxu0 0
  %2390 = vmatpush1.bf16.msra.mxu0 0
  %2391 = vmatprep.subr.bf16.mxu0 0
  %2392 = vmatpush1.bf16.msra.mxu0 0
  %2393 = vmatprep.subr.bf16.mxu0 0
  %2394 = vmatpush1.bf16.msra.mxu0 0
  %2395 = vmatprep.subr.bf16.mxu0 0
  %2396 = vmatpush1.bf16.msra.mxu0 0
  %2397 = vmatprep.subr.bf16.mxu0 0
  %2398 = vmatpush1.bf16.msra.mxu0 0
  %2399 = vmatprep.subr.bf16.mxu0 0
  %2400 = vmatpush1.bf16.msra.mxu0 0
  %2401 = vmatprep.subr.bf16.mxu0 0
  %2402 = vmatpush1.bf16.msra.mxu0 0
  %2403 = vmatprep.mubr.bf16.mxu0 0
  %2404 = vmatmul.mubr.bf16.gmra.mrb[0].mxu0 %v2239
  %v2405 = vpop.f32.mrb[0].mxu0
  %v2406 = vadd.f32 0.0, %v2405
  %v2407 = vpop.f32.mrb[0].mxu0
  %v2408 = vadd.f32 0.0, %v2407
  %v2409 = vpop.f32.mrb[0].mxu0
  %v2410 = vadd.f32 0.0, %v2409
  %v2411 = vpop.f32.mrb[0].mxu0
  %v2412 = vadd.f32 0.0, %v2411
  %2413 = vmatprep.mubr.bf16.mxu0 0
  %2414 = vmatmul.mubr.bf16.gmra.mrb[0].mxu0 %v2242
  %v2415 = vpop.f32.mrb[0].mxu0
  %v2416 = vadd.f32 0.0, %v2415
  %v2417 = vpop.f32.mrb[0].mxu0
  %v2418 = vadd.f32 0.0, %v2417
  %v2419 = vpop.f32.mrb[0].mxu0
  %v2420 = vadd.f32 0.0, %v2419
  %v2421 = vpop.f32.mrb[0].mxu0
  %v2422 = vadd.f32 0.0, %v2421
  %2423 = vdwg.mxu0
  %2424 = vmatprep.subr.bf16.mxu0 0
  %2425 = vmatpush1.bf16.msra.mxu0 %v2223
  %2426 = vmatprep.subr.bf16.mxu0 0
  %2427 = vmatpush1.bf16.msra.mxu0 %v2263
  %2428 = vmatprep.subr.bf16.mxu0 0
  %2429 = vmatpush1.bf16.msra.mxu0 0
  %2430 = vmatprep.subr.bf16.mxu0 0
  %2431 = vmatpush1.bf16.msra.mxu0 0
  %2432 = vmatprep.subr.bf16.mxu0 0
  %2433 = vmatpush1.bf16.msra.mxu0 0
  %2434 = vmatprep.subr.bf16.mxu0 0
  %2435 = vmatpush1.bf16.msra.mxu0 0
  %2436 = vmatprep.subr.bf16.mxu0 0
  %2437 = vmatpush1.bf16.msra.mxu0 0
  %2438 = vmatprep.subr.bf16.mxu0 0
  %2439 = vmatpush1.bf16.msra.mxu0 0
  %2440 = vmatprep.subr.bf16.mxu0 0
  %2441 = vmatpush1.bf16.msra.mxu0 0
  %2442 = vmatprep.subr.bf16.mxu0 0
  %2443 = vmatpush1.bf16.msra.mxu0 0
  %2444 = vmatprep.subr.bf16.mxu0 0
  %2445 = vmatpush1.bf16.msra.mxu0 0
  %2446 = vmatprep.subr.bf16.mxu0 0
  %2447 = vmatpush1.bf16.msra.mxu0 0
  %2448 = vmatprep.subr.bf16.mxu0 0
  %2449 = vmatpush1.bf16.msra.mxu0 0
  %2450 = vmatprep.subr.bf16.mxu0 0
  %2451 = vmatpush1.bf16.msra.mxu0 0
  %2452 = vmatprep.subr.bf16.mxu0 0
  %2453 = vmatpush1.bf16.msra.mxu0 0
  %2454 = vmatprep.subr.bf16.mxu0 0
  %2455 = vmatpush1.bf16.msra.mxu0 0
  %2456 = vmatprep.mubr.bf16.mxu0 0
  %2457 = vmatmul.mubr.bf16.gmra.mrb[0].mxu0 %v2239
  %v2458 = vpop.f32.mrb[0].mxu0
  %v2459 = vadd.f32 0.0, %v2458
  %v2460 = vpop.f32.mrb[0].mxu0
  %v2461 = vpop.f32.mrb[0].mxu0
  %v2462 = vadd.f32 0.0, %v2461
  %v2463 = vpop.f32.mrb[0].mxu0
  %2464 = vmatprep.mubr.bf16.mxu0 0
  %2465 = vmatmul.mubr.bf16.gmra.mrb[0].mxu0 %v2242
  %v2466 = vpop.f32.mrb[0].mxu0
  %v2467 = vadd.f32 0.0, %v2466
  %v2468 = vpop.f32.mrb[0].mxu0
  %v2469 = vpop.f32.mrb[0].mxu0
  %v2470 = vadd.f32 0.0, %v2469
  %v2471 = vpop.f32.mrb[0].mxu0
  %2472 = vdwg.mxu0
  %v2477 = vunpack.c.l.b16 %v43
  %v2478 = vunpack.c.l.b16 %v44
  %v2479 = vunpack.c.l.b16 %v45
  %v2480 = vunpack.c.l.b16 %v46
  %v2481 = vpack.c.b16 %v2478, %v2477
  %v2482 = vpack.c.b16 %v2480, %v2479
  %2485 = vxpose.xlu0.c.b16.start [1/8] %v2481, 128
  %2486 = vxpose.xlu0.c.b16.cont [2/8] %v2482, 128
  %2487 = vxpose.xlu0.c.b16.cont [3/8] 0, 128
  %2488 = vxpose.xlu0.c.b16.cont [4/8] 0, 128
  %2489 = vxpose.xlu0.c.b16.cont [5/8] 0, 128
  %2490 = vxpose.xlu0.c.b16.cont [6/8] 0, 128
  %2491 = vxpose.xlu0.c.b16.cont [7/8] 0, 128
  %2492 = vxpose.xlu0.c.b16.end [8/8] 0, 128
  %v2493 = vpop.trf.xlu0
  %v2494 = vpop.trf.xlu0
  %v2495 = vpop.trf.xlu0
  %v2496 = vpop.trf.xlu0
  %v2497 = vpop.trf.xlu0
  %v2498 = vpop.trf.xlu0
  %v2499 = vpop.trf.xlu0
  %v2500 = vpop.trf.xlu0
  %v2517 = vunpack.c.l.b16 %v159
  %v2518 = vunpack.c.h.b16 %v159
  %v2519 = vunpack.c.l.b16 %v160
  %v2520 = vunpack.c.h.b16 %v160
  %v2521 = vunpack.c.l.b16 %v161
  %v2522 = vunpack.c.h.b16 %v161
  %v2523 = vunpack.c.l.b16 %v162
  %v2524 = vunpack.c.l.b16 %v163
  %v2525 = vunpack.c.h.b16 %v163
  %v2526 = vunpack.c.l.b16 %v164
  %v2527 = vunpack.c.h.b16 %v164
  %v2528 = vunpack.c.l.b16 %v165
  %v2529 = vunpack.c.h.b16 %v165
  %v2530 = vunpack.c.l.b16 %v166
  %v2531 = vunpack.c.l.b16 %v167
  %v2532 = vunpack.c.h.b16 %v167
  %v2533 = vunpack.c.l.b16 %v168
  %v2534 = vunpack.c.h.b16 %v168
  %v2535 = vunpack.c.l.b16 %v169
  %v2536 = vunpack.c.h.b16 %v169
  %v2537 = vunpack.c.l.b16 %v170
  %v2538 = vunpack.c.l.b16 %v171
  %v2539 = vunpack.c.h.b16 %v171
  %v2540 = vunpack.c.l.b16 %v172
  %v2541 = vunpack.c.h.b16 %v172
  %v2542 = vunpack.c.l.b16 %v173
  %v2543 = vunpack.c.h.b16 %v173
  %v2544 = vunpack.c.l.b16 %v174
  %v2545 = vpack.c.b16 %v2524, %v2517
  %v2546 = vpack.c.b16 %v2525, %v2518
  %v2547 = vpack.c.b16 %v2526, %v2519
  %v2548 = vpack.c.b16 %v2527, %v2520
  %v2549 = vpack.c.b16 %v2528, %v2521
  %v2550 = vpack.c.b16 %v2529, %v2522
  %v2551 = vpack.c.b16 %v2530, %v2523
  %v2552 = vpack.c.b16 %v2538, %v2531
  %v2553 = vpack.c.b16 %v2539, %v2532
  %v2554 = vpack.c.b16 %v2540, %v2533
  %v2555 = vpack.c.b16 %v2541, %v2534
  %v2556 = vpack.c.b16 %v2542, %v2535
  %v2557 = vpack.c.b16 %v2543, %v2536
  %v2558 = vpack.c.b16 %v2544, %v2537
  %v2567 = vsel %vm268, %v2493, 0
  %v2570 = vsel %vm268, %v2494, 0
  %v2573 = vsel %vm275, %v2552, 0
  %v2576 = vsel %vm275, %v2553, 0
  %v2579 = vsel %vm275, %v2554, 0
  %v2582 = vsel %vm275, %v2555, 0
  %v2585 = vsel %vm275, %v2556, 0
  %v2588 = vsel %vm275, %v2557, 0
  %v2591 = vsel %vm275, %v2558, 0
  %2593 = vmatprep.subr.bf16.mxu0 %v2546
  %2594 = vmatpush1.bf16.msra.mxu0 %v2545
  %2595 = vmatprep.subr.bf16.mxu0 %v2576
  %2596 = vmatpush1.bf16.msra.mxu0 %v2573
  %2597 = vmatprep.subr.bf16.mxu0 0
  %2598 = vmatpush1.bf16.msra.mxu0 0
  %2599 = vmatprep.subr.bf16.mxu0 0
  %2600 = vmatpush1.bf16.msra.mxu0 0
  %2601 = vmatprep.subr.bf16.mxu0 0
  %2602 = vmatpush1.bf16.msra.mxu0 0
  %2603 = vmatprep.subr.bf16.mxu0 0
  %2604 = vmatpush1.bf16.msra.mxu0 0
  %2605 = vmatprep.subr.bf16.mxu0 0
  %2606 = vmatpush1.bf16.msra.mxu0 0
  %2607 = vmatprep.subr.bf16.mxu0 0
  %2608 = vmatpush1.bf16.msra.mxu0 0
  %2609 = vmatprep.subr.bf16.mxu0 0
  %2610 = vmatpush1.bf16.msra.mxu0 0
  %2611 = vmatprep.subr.bf16.mxu0 0
  %2612 = vmatpush1.bf16.msra.mxu0 0
  %2613 = vmatprep.subr.bf16.mxu0 0
  %2614 = vmatpush1.bf16.msra.mxu0 0
  %2615 = vmatprep.subr.bf16.mxu0 0
  %2616 = vmatpush1.bf16.msra.mxu0 0
  %2617 = vmatprep.subr.bf16.mxu0 0
  %2618 = vmatpush1.bf16.msra.mxu0 0
  %2619 = vmatprep.subr.bf16.mxu0 0
  %2620 = vmatpush1.bf16.msra.mxu0 0
  %2621 = vmatprep.subr.bf16.mxu0 0
  %2622 = vmatpush1.bf16.msra.mxu0 0
  %2623 = vmatprep.subr.bf16.mxu0 0
  %2624 = vmatpush1.bf16.msra.mxu0 0
  %2625 = vmatprep.mubr.bf16.mxu0 0
  %2626 = vmatmul.mubr.bf16.gmra.mrb[0].mxu0 %v2567
  %v2627 = vpop.f32.mrb[0].mxu0
  %v2628 = vadd.f32 0.0, %v2627
  %v2629 = vpop.f32.mrb[0].mxu0
  %v2630 = vadd.f32 0.0, %v2629
  %v2631 = vpop.f32.mrb[0].mxu0
  %v2632 = vadd.f32 0.0, %v2631
  %v2633 = vpop.f32.mrb[0].mxu0
  %v2634 = vadd.f32 0.0, %v2633
  %2635 = vmatprep.mubr.bf16.mxu0 0
  %2636 = vmatmul.mubr.bf16.gmra.mrb[0].mxu0 %v2570
  %v2637 = vpop.f32.mrb[0].mxu0
  %v2638 = vadd.f32 0.0, %v2637
  %v2639 = vpop.f32.mrb[0].mxu0
  %v2640 = vadd.f32 0.0, %v2639
  %v2641 = vpop.f32.mrb[0].mxu0
  %v2642 = vadd.f32 0.0, %v2641
  %v2643 = vpop.f32.mrb[0].mxu0
  %v2644 = vadd.f32 0.0, %v2643
  %2645 = vdwg.mxu0
  %2646 = vmatprep.subr.bf16.mxu0 %v2548
  %2647 = vmatpush1.bf16.msra.mxu0 %v2547
  %2648 = vmatprep.subr.bf16.mxu0 %v2582
  %2649 = vmatpush1.bf16.msra.mxu0 %v2579
  %2650 = vmatprep.subr.bf16.mxu0 0
  %2651 = vmatpush1.bf16.msra.mxu0 0
  %2652 = vmatprep.subr.bf16.mxu0 0
  %2653 = vmatpush1.bf16.msra.mxu0 0
  %2654 = vmatprep.subr.bf16.mxu0 0
  %2655 = vmatpush1.bf16.msra.mxu0 0
  %2656 = vmatprep.subr.bf16.mxu0 0
  %2657 = vmatpush1.bf16.msra.mxu0 0
  %2658 = vmatprep.subr.bf16.mxu0 0
  %2659 = vmatpush1.bf16.msra.mxu0 0
  %2660 = vmatprep.subr.bf16.mxu0 0
  %2661 = vmatpush1.bf16.msra.mxu0 0
  %2662 = vmatprep.subr.bf16.mxu0 0
  %2663 = vmatpush1.bf16.msra.mxu0 0
  %2664 = vmatprep.subr.bf16.mxu0 0
  %2665 = vmatpush1.bf16.msra.mxu0 0
  %2666 = vmatprep.subr.bf16.mxu0 0
  %2667 = vmatpush1.bf16.msra.mxu0 0
  %2668 = vmatprep.subr.bf16.mxu0 0
  %2669 = vmatpush1.bf16.msra.mxu0 0
  %2670 = vmatprep.subr.bf16.mxu0 0
  %2671 = vmatpush1.bf16.msra.mxu0 0
  %2672 = vmatprep.subr.bf16.mxu0 0
  %2673 = vmatpush1.bf16.msra.mxu0 0
  %2674 = vmatprep.subr.bf16.mxu0 0
  %2675 = vmatpush1.bf16.msra.mxu0 0
  %2676 = vmatprep.subr.bf16.mxu0 0
  %2677 = vmatpush1.bf16.msra.mxu0 0
  %2678 = vmatprep.mubr.bf16.mxu0 0
  %2679 = vmatmul.mubr.bf16.gmra.mrb[0].mxu0 %v2567
  %v2680 = vpop.f32.mrb[0].mxu0
  %v2681 = vadd.f32 0.0, %v2680
  %v2682 = vpop.f32.mrb[0].mxu0
  %v2683 = vadd.f32 0.0, %v2682
  %v2684 = vpop.f32.mrb[0].mxu0
  %v2685 = vadd.f32 0.0, %v2684
  %v2686 = vpop.f32.mrb[0].mxu0
  %v2687 = vadd.f32 0.0, %v2686
  %2688 = vmatprep.mubr.bf16.mxu0 0
  %2689 = vmatmul.mubr.bf16.gmra.mrb[0].mxu0 %v2570
  %v2690 = vpop.f32.mrb[0].mxu0
  %v2691 = vadd.f32 0.0, %v2690
  %v2692 = vpop.f32.mrb[0].mxu0
  %v2693 = vadd.f32 0.0, %v2692
  %v2694 = vpop.f32.mrb[0].mxu0
  %v2695 = vadd.f32 0.0, %v2694
  %v2696 = vpop.f32.mrb[0].mxu0
  %v2697 = vadd.f32 0.0, %v2696
  %2698 = vdwg.mxu0
  %2699 = vmatprep.subr.bf16.mxu0 %v2550
  %2700 = vmatpush1.bf16.msra.mxu0 %v2549
  %2701 = vmatprep.subr.bf16.mxu0 %v2588
  %2702 = vmatpush1.bf16.msra.mxu0 %v2585
  %2703 = vmatprep.subr.bf16.mxu0 0
  %2704 = vmatpush1.bf16.msra.mxu0 0
  %2705 = vmatprep.subr.bf16.mxu0 0
  %2706 = vmatpush1.bf16.msra.mxu0 0
  %2707 = vmatprep.subr.bf16.mxu0 0
  %2708 = vmatpush1.bf16.msra.mxu0 0
  %2709 = vmatprep.subr.bf16.mxu0 0
  %2710 = vmatpush1.bf16.msra.mxu0 0
  %2711 = vmatprep.subr.bf16.mxu0 0
  %2712 = vmatpush1.bf16.msra.mxu0 0
  %2713 = vmatprep.subr.bf16.mxu0 0
  %2714 = vmatpush1.bf16.msra.mxu0 0
  %2715 = vmatprep.subr.bf16.mxu0 0
  %2716 = vmatpush1.bf16.msra.mxu0 0
  %2717 = vmatprep.subr.bf16.mxu0 0
  %2718 = vmatpush1.bf16.msra.mxu0 0
  %2719 = vmatprep.subr.bf16.mxu0 0
  %2720 = vmatpush1.bf16.msra.mxu0 0
  %2721 = vmatprep.subr.bf16.mxu0 0
  %2722 = vmatpush1.bf16.msra.mxu0 0
  %2723 = vmatprep.subr.bf16.mxu0 0
  %2724 = vmatpush1.bf16.msra.mxu0 0
  %2725 = vmatprep.subr.bf16.mxu0 0
  %2726 = vmatpush1.bf16.msra.mxu0 0
  %2727 = vmatprep.subr.bf16.mxu0 0
  %2728 = vmatpush1.bf16.msra.mxu0 0
  %2729 = vmatprep.subr.bf16.mxu0 0
  %2730 = vmatpush1.bf16.msra.mxu0 0
  %2731 = vmatprep.mubr.bf16.mxu0 0
  %2732 = vmatmul.mubr.bf16.gmra.mrb[0].mxu0 %v2567
  %v2733 = vpop.f32.mrb[0].mxu0
  %v2734 = vadd.f32 0.0, %v2733
  %v2735 = vpop.f32.mrb[0].mxu0
  %v2736 = vadd.f32 0.0, %v2735
  %v2737 = vpop.f32.mrb[0].mxu0
  %v2738 = vadd.f32 0.0, %v2737
  %v2739 = vpop.f32.mrb[0].mxu0
  %v2740 = vadd.f32 0.0, %v2739
  %2741 = vmatprep.mubr.bf16.mxu0 0
  %2742 = vmatmul.mubr.bf16.gmra.mrb[0].mxu0 %v2570
  %v2743 = vpop.f32.mrb[0].mxu0
  %v2744 = vadd.f32 0.0, %v2743
  %v2745 = vpop.f32.mrb[0].mxu0
  %v2746 = vadd.f32 0.0, %v2745
  %v2747 = vpop.f32.mrb[0].mxu0
  %v2748 = vadd.f32 0.0, %v2747
  %v2749 = vpop.f32.mrb[0].mxu0
  %v2750 = vadd.f32 0.0, %v2749
  %2751 = vdwg.mxu0
  %2752 = vmatprep.subr.bf16.mxu0 0
  %2753 = vmatpush1.bf16.msra.mxu0 %v2551
  %2754 = vmatprep.subr.bf16.mxu0 0
  %2755 = vmatpush1.bf16.msra.mxu0 %v2591
  %2756 = vmatprep.subr.bf16.mxu0 0
  %2757 = vmatpush1.bf16.msra.mxu0 0
  %2758 = vmatprep.subr.bf16.mxu0 0
  %2759 = vmatpush1.bf16.msra.mxu0 0
  %2760 = vmatprep.subr.bf16.mxu0 0
  %2761 = vmatpush1.bf16.msra.mxu0 0
  %2762 = vmatprep.subr.bf16.mxu0 0
  %2763 = vmatpush1.bf16.msra.mxu0 0
  %2764 = vmatprep.subr.bf16.mxu0 0
  %2765 = vmatpush1.bf16.msra.mxu0 0
  %2766 = vmatprep.subr.bf16.mxu0 0
  %2767 = vmatpush1.bf16.msra.mxu0 0
  %2768 = vmatprep.subr.bf16.mxu0 0
  %2769 = vmatpush1.bf16.msra.mxu0 0
  %2770 = vmatprep.subr.bf16.mxu0 0
  %2771 = vmatpush1.bf16.msra.mxu0 0
  %2772 = vmatprep.subr.bf16.mxu0 0
  %2773 = vmatpush1.bf16.msra.mxu0 0
  %2774 = vmatprep.subr.bf16.mxu0 0
  %2775 = vmatpush1.bf16.msra.mxu0 0
  %2776 = vmatprep.subr.bf16.mxu0 0
  %2777 = vmatpush1.bf16.msra.mxu0 0
  %2778 = vmatprep.subr.bf16.mxu0 0
  %2779 = vmatpush1.bf16.msra.mxu0 0
  %2780 = vmatprep.subr.bf16.mxu0 0
  %2781 = vmatpush1.bf16.msra.mxu0 0
  %2782 = vmatprep.subr.bf16.mxu0 0
  %2783 = vmatpush1.bf16.msra.mxu0 0
  %2784 = vmatprep.mubr.bf16.mxu0 0
  %2785 = vmatmul.mubr.bf16.gmra.mrb[0].mxu0 %v2567
  %v2786 = vpop.f32.mrb[0].mxu0
  %v2787 = vadd.f32 0.0, %v2786
  %v2788 = vpop.f32.mrb[0].mxu0
  %v2789 = vpop.f32.mrb[0].mxu0
  %v2790 = vadd.f32 0.0, %v2789
  %v2791 = vpop.f32.mrb[0].mxu0
  %2792 = vmatprep.mubr.bf16.mxu0 0
  %2793 = vmatmul.mubr.bf16.gmra.mrb[0].mxu0 %v2570
  %v2794 = vpop.f32.mrb[0].mxu0
  %v2795 = vadd.f32 0.0, %v2794
  %v2796 = vpop.f32.mrb[0].mxu0
  %v2797 = vpop.f32.mrb[0].mxu0
  %v2798 = vadd.f32 0.0, %v2797
  %v2799 = vpop.f32.mrb[0].mxu0
  %2800 = vdwg.mxu0
  %v2801 = vld [vmem:[%s2] sm:$0xff]
  %v2802 = vld [vmem:[%s2 + $0x8] sm:$0xff]
  %v2803 = vld [vmem:[%s2 + $0x10] sm:$0xff]
  %v2804 = vld [vmem:[%s2 + $0x18] sm:$0xf]
  %v2805 = vld [vmem:[%s2 + $0x1c] sm:$0xff]
  %v2806 = vld [vmem:[%s2 + $0x24] sm:$0xff]
  %v2807 = vld [vmem:[%s2 + $0x2c] sm:$0xff]
  %v2808 = vld [vmem:[%s2 + $0x34] sm:$0xf]
  %v2809 = vld [vmem:[%s2 + $0x38] sm:$0xff]
  %v2810 = vld [vmem:[%s2 + $0x40] sm:$0xff]
  %v2811 = vld [vmem:[%s2 + $0x48] sm:$0xff]
  %v2812 = vld [vmem:[%s2 + $0x50] sm:$0xf]
  %v2813 = vld [vmem:[%s2 + $0x54] sm:$0x33]
  %v2814 = vld [vmem:[%s2 + $0x5c] sm:$0x33]
  %v2815 = vld [vmem:[%s2 + $0x64] sm:$0x33]
  %v2816 = vld [vmem:[%s2 + $0x6c] sm:$0x3]
  %v2817 = vld [vmem:[%s2 + $0x70] sm:$0xff]
  %v2818 = vld [vmem:[%s2 + $0x78] sm:$0xff]
  %v2819 = vld [vmem:[%s2 + $0x80] sm:$0xff]
  %v2820 = vld [vmem:[%s2 + $0x88] sm:$0xf]
  %v2821 = vld [vmem:[%s2 + $0x8c] sm:$0xff]
  %v2822 = vld [vmem:[%s2 + $0x94] sm:$0xff]
  %v2823 = vld [vmem:[%s2 + $0x9c] sm:$0xff]
  %v2824 = vld [vmem:[%s2 + $0xa4] sm:$0xf]
  %v2825 = vld [vmem:[%s2 + $0xa8] sm:$0xff]
  %v2826 = vld [vmem:[%s2 + $0xb0] sm:$0xff]
  %v2827 = vld [vmem:[%s2 + $0xb8] sm:$0xff]
  %v2828 = vld [vmem:[%s2 + $0xc0] sm:$0xf]
  %v2829 = vld [vmem:[%s2 + $0xc4] sm:$0x33]
  %v2830 = vld [vmem:[%s2 + $0xcc] sm:$0x33]
  %v2831 = vld [vmem:[%s2 + $0xd4] sm:$0x33]
  %v2832 = vld [vmem:[%s2 + $0xdc] sm:$0x3]
  %v2833 = vld [vmem:[%s2 + $0xe0] sm:$0xff]
  %v2834 = vld [vmem:[%s2 + $0xe8] sm:$0xff]
  %v2835 = vld [vmem:[%s2 + $0xf0] sm:$0xff]
  %v2836 = vld [vmem:[%s2 + $0xf8] sm:$0xf]
  %v2837 = vld [vmem:[%s2 + $0xfc] sm:$0xff]
  %v2838 = vld [vmem:[%s2 + $0x104] sm:$0xff]
  %v2839 = vld [vmem:[%s2 + $0x10c] sm:$0xff]
  %v2840 = vld [vmem:[%s2 + $0x114] sm:$0xf]
  %v2841 = vld [vmem:[%s2 + $0x118] sm:$0xff]
  %v2842 = vld [vmem:[%s2 + $0x120] sm:$0xff]
  %v2843 = vld [vmem:[%s2 + $0x128] sm:$0xff]
  %v2844 = vld [vmem:[%s2 + $0x130] sm:$0xf]
  %v2845 = vld [vmem:[%s2 + $0x134] sm:$0x33]
  %v2846 = vld [vmem:[%s2 + $0x13c] sm:$0x33]
  %v2847 = vld [vmem:[%s2 + $0x144] sm:$0x33]
  %v2848 = vld [vmem:[%s2 + $0x14c] sm:$0x3]
  %v2849 = vld [vmem:[%s2 + $0x150] sm:$0xff]
  %v2850 = vld [vmem:[%s2 + $0x158] sm:$0xff]
  %v2851 = vld [vmem:[%s2 + $0x160] sm:$0xff]
  %v2852 = vld [vmem:[%s2 + $0x168] sm:$0xf]
  %v2853 = vld [vmem:[%s2 + $0x16c] sm:$0xff]
  %v2854 = vld [vmem:[%s2 + $0x174] sm:$0xff]
  %v2855 = vld [vmem:[%s2 + $0x17c] sm:$0xff]
  %v2856 = vld [vmem:[%s2 + $0x184] sm:$0xf]
  %v2857 = vld [vmem:[%s2 + $0x188] sm:$0xff]
  %v2858 = vld [vmem:[%s2 + $0x190] sm:$0xff]
  %v2859 = vld [vmem:[%s2 + $0x198] sm:$0xff]
  %v2860 = vld [vmem:[%s2 + $0x1a0] sm:$0xf]
  %v2861 = vld [vmem:[%s2 + $0x1a4] sm:$0x33]
  %v2862 = vld [vmem:[%s2 + $0x1ac] sm:$0x33]
  %v2863 = vld [vmem:[%s2 + $0x1b4] sm:$0x33]
  %v2864 = vld [vmem:[%s2 + $0x1bc] sm:$0x3]
  %v2865 = vld [vmem:[%s2 + $0x1c0] sm:$0xff]
  %v2866 = vld [vmem:[%s2 + $0x1c8] sm:$0xff]
  %v2867 = vld [vmem:[%s2 + $0x1d0] sm:$0xff]
  %v2868 = vld [vmem:[%s2 + $0x1d8] sm:$0xf]
  %v2869 = vld [vmem:[%s2 + $0x1dc] sm:$0xff]
  %v2870 = vld [vmem:[%s2 + $0x1e4] sm:$0xff]
  %v2871 = vld [vmem:[%s2 + $0x1ec] sm:$0xff]
  %v2872 = vld [vmem:[%s2 + $0x1f4] sm:$0xf]
  %v2873 = vld [vmem:[%s2 + $0x1f8] sm:$0xff]
  %v2874 = vld [vmem:[%s2 + $0x200] sm:$0xff]
  %v2875 = vld [vmem:[%s2 + $0x208] sm:$0xff]
  %v2876 = vld [vmem:[%s2 + $0x210] sm:$0xf]
  %v2877 = vld [vmem:[%s2 + $0x214] sm:$0x33]
  %v2878 = vld [vmem:[%s2 + $0x21c] sm:$0x33]
  %v2879 = vld [vmem:[%s2 + $0x224] sm:$0x33]
  %v2880 = vld [vmem:[%s2 + $0x22c] sm:$0x3]
  %v2881 = vld [vmem:[%s2 + $0x230] sm:$0xff]
  %v2882 = vld [vmem:[%s2 + $0x238] sm:$0xff]
  %v2883 = vld [vmem:[%s2 + $0x240] sm:$0xff]
  %v2884 = vld [vmem:[%s2 + $0x248] sm:$0xf]
  %v2885 = vld [vmem:[%s2 + $0x24c] sm:$0xff]
  %v2886 = vld [vmem:[%s2 + $0x254] sm:$0xff]
  %v2887 = vld [vmem:[%s2 + $0x25c] sm:$0xff]
  %v2888 = vld [vmem:[%s2 + $0x264] sm:$0xf]
  %v2889 = vld [vmem:[%s2 + $0x268] sm:$0xff]
  %v2890 = vld [vmem:[%s2 + $0x270] sm:$0xff]
  %v2891 = vld [vmem:[%s2 + $0x278] sm:$0xff]
  %v2892 = vld [vmem:[%s2 + $0x280] sm:$0xf]
  %v2893 = vld [vmem:[%s2 + $0x284] sm:$0x33]
  %v2894 = vld [vmem:[%s2 + $0x28c] sm:$0x33]
  %v2895 = vld [vmem:[%s2 + $0x294] sm:$0x33]
  %v2896 = vld [vmem:[%s2 + $0x29c] sm:$0x3]
  %v2897 = vld [vmem:[%s2 + $0x2a0] sm:$0xff]
  %v2898 = vld [vmem:[%s2 + $0x2a8] sm:$0xff]
  %v2899 = vld [vmem:[%s2 + $0x2b0] sm:$0xff]
  %v2900 = vld [vmem:[%s2 + $0x2b8] sm:$0xf]
  %v2901 = vld [vmem:[%s2 + $0x2bc] sm:$0xff]
  %v2902 = vld [vmem:[%s2 + $0x2c4] sm:$0xff]
  %v2903 = vld [vmem:[%s2 + $0x2cc] sm:$0xff]
  %v2904 = vld [vmem:[%s2 + $0x2d4] sm:$0xf]
  %v2905 = vld [vmem:[%s2 + $0x2d8] sm:$0xff]
  %v2906 = vld [vmem:[%s2 + $0x2e0] sm:$0xff]
  %v2907 = vld [vmem:[%s2 + $0x2e8] sm:$0xff]
  %v2908 = vld [vmem:[%s2 + $0x2f0] sm:$0xf]
  %v2909 = vld [vmem:[%s2 + $0x2f4] sm:$0x33]
  %v2910 = vld [vmem:[%s2 + $0x2fc] sm:$0x33]
  %v2911 = vld [vmem:[%s2 + $0x304] sm:$0x33]
  %v2912 = vld [vmem:[%s2 + $0x30c] sm:$0x3]
  %v2913 = vld [vmem:[%s2 + $0x310] sm:$0xff]
  %v2914 = vld [vmem:[%s2 + $0x318] sm:$0xff]
  %v2915 = vld [vmem:[%s2 + $0x320] sm:$0xff]
  %v2916 = vld [vmem:[%s2 + $0x328] sm:$0xf]
  %v2917 = vld [vmem:[%s2 + $0x32c] sm:$0xff]
  %v2918 = vld [vmem:[%s2 + $0x334] sm:$0xff]
  %v2919 = vld [vmem:[%s2 + $0x33c] sm:$0xff]
  %v2920 = vld [vmem:[%s2 + $0x344] sm:$0xf]
  %v2921 = vld [vmem:[%s2 + $0x348] sm:$0xff]
  %v2922 = vld [vmem:[%s2 + $0x350] sm:$0xff]
  %v2923 = vld [vmem:[%s2 + $0x358] sm:$0xff]
  %v2924 = vld [vmem:[%s2 + $0x360] sm:$0xf]
  %v2925 = vld [vmem:[%s2 + $0x364] sm:$0x33]
  %v2926 = vld [vmem:[%s2 + $0x36c] sm:$0x33]
  %v2927 = vld [vmem:[%s2 + $0x374] sm:$0x33]
  %v2928 = vld [vmem:[%s2 + $0x37c] sm:$0x3]
  %v2929 = vunpack.c.l.bf16 %v2801
  %v2930 = vunpack.c.h.bf16 %v2801
  %v2931 = vunpack.c.l.bf16 %v2802
  %v2932 = vunpack.c.h.bf16 %v2802
  %v2933 = vunpack.c.l.bf16 %v2803
  %v2934 = vunpack.c.h.bf16 %v2803
  %v2935 = vunpack.c.l.bf16 %v2804
  %v2936 = vunpack.c.l.bf16 %v2805
  %v2937 = vunpack.c.h.bf16 %v2805
  %v2938 = vunpack.c.l.bf16 %v2806
  %v2939 = vunpack.c.h.bf16 %v2806
  %v2940 = vunpack.c.l.bf16 %v2807
  %v2941 = vunpack.c.h.bf16 %v2807
  %v2942 = vunpack.c.l.bf16 %v2808
  %v2943 = vunpack.c.l.bf16 %v2809
  %v2944 = vunpack.c.h.bf16 %v2809
  %v2945 = vunpack.c.l.bf16 %v2810
  %v2946 = vunpack.c.h.bf16 %v2810
  %v2947 = vunpack.c.l.bf16 %v2811
  %v2948 = vunpack.c.h.bf16 %v2811
  %v2949 = vunpack.c.l.bf16 %v2812
  %v2950 = vunpack.c.l.bf16 %v2813
  %v2951 = vunpack.c.h.bf16 %v2813
  %v2952 = vunpack.c.l.bf16 %v2814
  %v2953 = vunpack.c.h.bf16 %v2814
  %v2954 = vunpack.c.l.bf16 %v2815
  %v2955 = vunpack.c.h.bf16 %v2815
  %v2956 = vunpack.c.l.bf16 %v2816
  %v2957 = vunpack.c.l.bf16 %v2817
  %v2958 = vunpack.c.h.bf16 %v2817
  %v2959 = vunpack.c.l.bf16 %v2818
  %v2960 = vunpack.c.h.bf16 %v2818
  %v2961 = vunpack.c.l.bf16 %v2819
  %v2962 = vunpack.c.h.bf16 %v2819
  %v2963 = vunpack.c.l.bf16 %v2820
  %v2964 = vunpack.c.l.bf16 %v2821
  %v2965 = vunpack.c.h.bf16 %v2821
  %v2966 = vunpack.c.l.bf16 %v2822
  %v2967 = vunpack.c.h.bf16 %v2822
  %v2968 = vunpack.c.l.bf16 %v2823
  %v2969 = vunpack.c.h.bf16 %v2823
  %v2970 = vunpack.c.l.bf16 %v2824
  %v2971 = vunpack.c.l.bf16 %v2825
  %v2972 = vunpack.c.h.bf16 %v2825
  %v2973 = vunpack.c.l.bf16 %v2826
  %v2974 = vunpack.c.h.bf16 %v2826
  %v2975 = vunpack.c.l.bf16 %v2827
  %v2976 = vunpack.c.h.bf16 %v2827
  %v2977 = vunpack.c.l.bf16 %v2828
  %v2978 = vunpack.c.l.bf16 %v2829
  %v2979 = vunpack.c.h.bf16 %v2829
  %v2980 = vunpack.c.l.bf16 %v2830
  %v2981 = vunpack.c.h.bf16 %v2830
  %v2982 = vunpack.c.l.bf16 %v2831
  %v2983 = vunpack.c.h.bf16 %v2831
  %v2984 = vunpack.c.l.bf16 %v2832
  %v2985 = vunpack.c.l.bf16 %v2833
  %v2986 = vunpack.c.h.bf16 %v2833
  %v2987 = vunpack.c.l.bf16 %v2834
  %v2988 = vunpack.c.h.bf16 %v2834
  %v2989 = vunpack.c.l.bf16 %v2835
  %v2990 = vunpack.c.h.bf16 %v2835
  %v2991 = vunpack.c.l.bf16 %v2836
  %v2992 = vunpack.c.l.bf16 %v2837
  %v2993 = vunpack.c.h.bf16 %v2837
  %v2994 = vunpack.c.l.bf16 %v2838
  %v2995 = vunpack.c.h.bf16 %v2838
  %v2996 = vunpack.c.l.bf16 %v2839
  %v2997 = vunpack.c.h.bf16 %v2839
  %v2998 = vunpack.c.l.bf16 %v2840
  %v2999 = vunpack.c.l.bf16 %v2841
  %v3000 = vunpack.c.h.bf16 %v2841
  %v3001 = vunpack.c.l.bf16 %v2842
  %v3002 = vunpack.c.h.bf16 %v2842
  %v3003 = vunpack.c.l.bf16 %v2843
  %v3004 = vunpack.c.h.bf16 %v2843
  %v3005 = vunpack.c.l.bf16 %v2844
  %v3006 = vunpack.c.l.bf16 %v2845
  %v3007 = vunpack.c.h.bf16 %v2845
  %v3008 = vunpack.c.l.bf16 %v2846
  %v3009 = vunpack.c.h.bf16 %v2846
  %v3010 = vunpack.c.l.bf16 %v2847
  %v3011 = vunpack.c.h.bf16 %v2847
  %v3012 = vunpack.c.l.bf16 %v2848
  %v3013 = vunpack.c.l.bf16 %v2849
  %v3014 = vunpack.c.h.bf16 %v2849
  %v3015 = vunpack.c.l.bf16 %v2850
  %v3016 = vunpack.c.h.bf16 %v2850
  %v3017 = vunpack.c.l.bf16 %v2851
  %v3018 = vunpack.c.h.bf16 %v2851
  %v3019 = vunpack.c.l.bf16 %v2852
  %v3020 = vunpack.c.l.bf16 %v2853
  %v3021 = vunpack.c.h.bf16 %v2853
  %v3022 = vunpack.c.l.bf16 %v2854
  %v3023 = vunpack.c.h.bf16 %v2854
  %v3024 = vunpack.c.l.bf16 %v2855
  %v3025 = vunpack.c.h.bf16 %v2855
  %v3026 = vunpack.c.l.bf16 %v2856
  %v3027 = vunpack.c.l.bf16 %v2857
  %v3028 = vunpack.c.h.bf16 %v2857
  %v3029 = vunpack.c.l.bf16 %v2858
  %v3030 = vunpack.c.h.bf16 %v2858
  %v3031 = vunpack.c.l.bf16 %v2859
  %v3032 = vunpack.c.h.bf16 %v2859
  %v3033 = vunpack.c.l.bf16 %v2860
  %v3034 = vunpack.c.l.bf16 %v2861
  %v3035 = vunpack.c.h.bf16 %v2861
  %v3036 = vunpack.c.l.bf16 %v2862
  %v3037 = vunpack.c.h.bf16 %v2862
  %v3038 = vunpack.c.l.bf16 %v2863
  %v3039 = vunpack.c.h.bf16 %v2863
  %v3040 = vunpack.c.l.bf16 %v2864
  %v3041 = vunpack.c.l.bf16 %v2865
  %v3042 = vunpack.c.h.bf16 %v2865
  %v3043 = vunpack.c.l.bf16 %v2866
  %v3044 = vunpack.c.h.bf16 %v2866
  %v3045 = vunpack.c.l.bf16 %v2867
  %v3046 = vunpack.c.h.bf16 %v2867
  %v3047 = vunpack.c.l.bf16 %v2868
  %v3048 = vunpack.c.l.bf16 %v2869
  %v3049 = vunpack.c.h.bf16 %v2869
  %v3050 = vunpack.c.l.bf16 %v2870
  %v3051 = vunpack.c.h.bf16 %v2870
  %v3052 = vunpack.c.l.bf16 %v2871
  %v3053 = vunpack.c.h.bf16 %v2871
  %v3054 = vunpack.c.l.bf16 %v2872
  %v3055 = vunpack.c.l.bf16 %v2873
  %v3056 = vunpack.c.h.bf16 %v2873
  %v3057 = vunpack.c.l.bf16 %v2874
  %v3058 = vunpack.c.h.bf16 %v2874
  %v3059 = vunpack.c.l.bf16 %v2875
  %v3060 = vunpack.c.h.bf16 %v2875
  %v3061 = vunpack.c.l.bf16 %v2876
  %v3062 = vunpack.c.l.bf16 %v2877
  %v3063 = vunpack.c.h.bf16 %v2877
  %v3064 = vunpack.c.l.bf16 %v2878
  %v3065 = vunpack.c.h.bf16 %v2878
  %v3066 = vunpack.c.l.bf16 %v2879
  %v3067 = vunpack.c.h.bf16 %v2879
  %v3068 = vunpack.c.l.bf16 %v2880
  %v3069 = vunpack.c.l.bf16 %v2881
  %v3070 = vunpack.c.h.bf16 %v2881
  %v3071 = vunpack.c.l.bf16 %v2882
  %v3072 = vunpack.c.h.bf16 %v2882
  %v3073 = vunpack.c.l.bf16 %v2883
  %v3074 = vunpack.c.h.bf16 %v2883
  %v3075 = vunpack.c.l.bf16 %v2884
  %v3076 = vunpack.c.l.bf16 %v2885
  %v3077 = vunpack.c.h.bf16 %v2885
  %v3078 = vunpack.c.l.bf16 %v2886
  %v3079 = vunpack.c.h.bf16 %v2886
  %v3080 = vunpack.c.l.bf16 %v2887
  %v3081 = vunpack.c.h.bf16 %v2887
  %v3082 = vunpack.c.l.bf16 %v2888
  %v3083 = vunpack.c.l.bf16 %v2889
  %v3084 = vunpack.c.h.bf16 %v2889
  %v3085 = vunpack.c.l.bf16 %v2890
  %v3086 = vunpack.c.h.bf16 %v2890
  %v3087 = vunpack.c.l.bf16 %v2891
  %v3088 = vunpack.c.h.bf16 %v2891
  %v3089 = vunpack.c.l.bf16 %v2892
  %v3090 = vunpack.c.l.bf16 %v2893
  %v3091 = vunpack.c.h.bf16 %v2893
  %v3092 = vunpack.c.l.bf16 %v2894
  %v3093 = vunpack.c.h.bf16 %v2894
  %v3094 = vunpack.c.l.bf16 %v2895
  %v3095 = vunpack.c.h.bf16 %v2895
  %v3096 = vunpack.c.l.bf16 %v2896
  %v3097 = vunpack.c.l.bf16 %v2897
  %v3098 = vunpack.c.h.bf16 %v2897
  %v3099 = vunpack.c.l.bf16 %v2898
  %v3100 = vunpack.c.h.bf16 %v2898
  %v3101 = vunpack.c.l.bf16 %v2899
  %v3102 = vunpack.c.h.bf16 %v2899
  %v3103 = vunpack.c.l.bf16 %v2900
  %v3104 = vunpack.c.l.bf16 %v2901
  %v3105 = vunpack.c.h.bf16 %v2901
  %v3106 = vunpack.c.l.bf16 %v2902
  %v3107 = vunpack.c.h.bf16 %v2902
  %v3108 = vunpack.c.l.bf16 %v2903
  %v3109 = vunpack.c.h.bf16 %v2903
  %v3110 = vunpack.c.l.bf16 %v2904
  %v3111 = vunpack.c.l.bf16 %v2905
  %v3112 = vunpack.c.h.bf16 %v2905
  %v3113 = vunpack.c.l.bf16 %v2906
  %v3114 = vunpack.c.h.bf16 %v2906
  %v3115 = vunpack.c.l.bf16 %v2907
  %v3116 = vunpack.c.h.bf16 %v2907
  %v3117 = vunpack.c.l.bf16 %v2908
  %v3118 = vunpack.c.l.bf16 %v2909
  %v3119 = vunpack.c.h.bf16 %v2909
  %v3120 = vunpack.c.l.bf16 %v2910
  %v3121 = vunpack.c.h.bf16 %v2910
  %v3122 = vunpack.c.l.bf16 %v2911
  %v3123 = vunpack.c.h.bf16 %v2911
  %v3124 = vunpack.c.l.bf16 %v2912
  %v3125 = vunpack.c.l.bf16 %v2913
  %v3126 = vunpack.c.h.bf16 %v2913
  %v3127 = vunpack.c.l.bf16 %v2914
  %v3128 = vunpack.c.h.bf16 %v2914
  %v3129 = vunpack.c.l.bf16 %v2915
  %v3130 = vunpack.c.h.bf16 %v2915
  %v3131 = vunpack.c.l.bf16 %v2916
  %v3132 = vunpack.c.l.bf16 %v2917
  %v3133 = vunpack.c.h.bf16 %v2917
  %v3134 = vunpack.c.l.bf16 %v2918
  %v3135 = vunpack.c.h.bf16 %v2918
  %v3136 = vunpack.c.l.bf16 %v2919
  %v3137 = vunpack.c.h.bf16 %v2919
  %v3138 = vunpack.c.l.bf16 %v2920
  %v3139 = vunpack.c.l.bf16 %v2921
  %v3140 = vunpack.c.h.bf16 %v2921
  %v3141 = vunpack.c.l.bf16 %v2922
  %v3142 = vunpack.c.h.bf16 %v2922
  %v3143 = vunpack.c.l.bf16 %v2923
  %v3144 = vunpack.c.h.bf16 %v2923
  %v3145 = vunpack.c.l.bf16 %v2924
  %v3146 = vunpack.c.l.bf16 %v2925
  %v3147 = vunpack.c.h.bf16 %v2925
  %v3148 = vunpack.c.l.bf16 %v2926
  %v3149 = vunpack.c.h.bf16 %v2926
  %v3150 = vunpack.c.l.bf16 %v2927
  %v3151 = vunpack.c.h.bf16 %v2927
  %v3152 = vunpack.c.l.bf16 %v2928
  %v3153 = vmul.f32 %v332, %v2929
  %v3154 = vmul.f32 %v334, %v2930
  %v3155 = vmul.f32 %v385, %v2931
  %v3156 = vmul.f32 %v387, %v2932
  %v3157 = vmul.f32 %v438, %v2933
  %v3158 = vmul.f32 %v440, %v2934
  %v3159 = vmul.f32 %v491, %v2935
  %v3160 = vmul.f32 %v336, %v2936
  %v3161 = vmul.f32 %v338, %v2937
  %v3162 = vmul.f32 %v389, %v2938
  %v3163 = vmul.f32 %v391, %v2939
  %v3164 = vmul.f32 %v442, %v2940
  %v3165 = vmul.f32 %v444, %v2941
  %v3166 = vmul.f32 %v494, %v2942
  %v3167 = vmul.f32 %v342, %v2943
  %v3168 = vmul.f32 %v344, %v2944
  %v3169 = vmul.f32 %v395, %v2945
  %v3170 = vmul.f32 %v397, %v2946
  %v3171 = vmul.f32 %v448, %v2947
  %v3172 = vmul.f32 %v450, %v2948
  %v3173 = vmul.f32 %v499, %v2949
  %v3174 = vmul.f32 %v346, %v2950
  %v3175 = vmul.f32 %v348, %v2951
  %v3176 = vmul.f32 %v399, %v2952
  %v3177 = vmul.f32 %v401, %v2953
  %v3178 = vmul.f32 %v452, %v2954
  %v3179 = vmul.f32 %v454, %v2955
  %v3180 = vmul.f32 %v502, %v2956
  %v3181 = vmul.f32 %v660, %v2957
  %v3182 = vmul.f32 %v662, %v2958
  %v3183 = vmul.f32 %v713, %v2959
  %v3184 = vmul.f32 %v715, %v2960
  %v3185 = vmul.f32 %v766, %v2961
  %v3186 = vmul.f32 %v768, %v2962
  %v3187 = vmul.f32 %v819, %v2963
  %v3188 = vmul.f32 %v664, %v2964
  %v3189 = vmul.f32 %v666, %v2965
  %v3190 = vmul.f32 %v717, %v2966
  %v3191 = vmul.f32 %v719, %v2967
  %v3192 = vmul.f32 %v770, %v2968
  %v3193 = vmul.f32 %v772, %v2969
  %v3194 = vmul.f32 %v822, %v2970
  %v3195 = vmul.f32 %v670, %v2971
  %v3196 = vmul.f32 %v672, %v2972
  %v3197 = vmul.f32 %v723, %v2973
  %v3198 = vmul.f32 %v725, %v2974
  %v3199 = vmul.f32 %v776, %v2975
  %v3200 = vmul.f32 %v778, %v2976
  %v3201 = vmul.f32 %v827, %v2977
  %v3202 = vmul.f32 %v674, %v2978
  %v3203 = vmul.f32 %v676, %v2979
  %v3204 = vmul.f32 %v727, %v2980
  %v3205 = vmul.f32 %v729, %v2981
  %v3206 = vmul.f32 %v780, %v2982
  %v3207 = vmul.f32 %v782, %v2983
  %v3208 = vmul.f32 %v830, %v2984
  %v3209 = vmul.f32 %v988, %v2985
  %v3210 = vmul.f32 %v990, %v2986
  %v3211 = vmul.f32 %v1041, %v2987
  %v3212 = vmul.f32 %v1043, %v2988
  %v3213 = vmul.f32 %v1094, %v2989
  %v3214 = vmul.f32 %v1096, %v2990
  %v3215 = vmul.f32 %v1147, %v2991
  %v3216 = vmul.f32 %v992, %v2992
  %v3217 = vmul.f32 %v994, %v2993
  %v3218 = vmul.f32 %v1045, %v2994
  %v3219 = vmul.f32 %v1047, %v2995
  %v3220 = vmul.f32 %v1098, %v2996
  %v3221 = vmul.f32 %v1100, %v2997
  %v3222 = vmul.f32 %v1150, %v2998
  %v3223 = vmul.f32 %v998, %v2999
  %v3224 = vmul.f32 %v1000, %v3000
  %v3225 = vmul.f32 %v1051, %v3001
  %v3226 = vmul.f32 %v1053, %v3002
  %v3227 = vmul.f32 %v1104, %v3003
  %v3228 = vmul.f32 %v1106, %v3004
  %v3229 = vmul.f32 %v1155, %v3005
  %v3230 = vmul.f32 %v1002, %v3006
  %v3231 = vmul.f32 %v1004, %v3007
  %v3232 = vmul.f32 %v1055, %v3008
  %v3233 = vmul.f32 %v1057, %v3009
  %v3234 = vmul.f32 %v1108, %v3010
  %v3235 = vmul.f32 %v1110, %v3011
  %v3236 = vmul.f32 %v1158, %v3012
  %v3237 = vmul.f32 %v1316, %v3013
  %v3238 = vmul.f32 %v1318, %v3014
  %v3239 = vmul.f32 %v1369, %v3015
  %v3240 = vmul.f32 %v1371, %v3016
  %v3241 = vmul.f32 %v1422, %v3017
  %v3242 = vmul.f32 %v1424, %v3018
  %v3243 = vmul.f32 %v1475, %v3019
  %v3244 = vmul.f32 %v1320, %v3020
  %v3245 = vmul.f32 %v1322, %v3021
  %v3246 = vmul.f32 %v1373, %v3022
  %v3247 = vmul.f32 %v1375, %v3023
  %v3248 = vmul.f32 %v1426, %v3024
  %v3249 = vmul.f32 %v1428, %v3025
  %v3250 = vmul.f32 %v1478, %v3026
  %v3251 = vmul.f32 %v1326, %v3027
  %v3252 = vmul.f32 %v1328, %v3028
  %v3253 = vmul.f32 %v1379, %v3029
  %v3254 = vmul.f32 %v1381, %v3030
  %v3255 = vmul.f32 %v1432, %v3031
  %v3256 = vmul.f32 %v1434, %v3032
  %v3257 = vmul.f32 %v1483, %v3033
  %v3258 = vmul.f32 %v1330, %v3034
  %v3259 = vmul.f32 %v1332, %v3035
  %v3260 = vmul.f32 %v1383, %v3036
  %v3261 = vmul.f32 %v1385, %v3037
  %v3262 = vmul.f32 %v1436, %v3038
  %v3263 = vmul.f32 %v1438, %v3039
  %v3264 = vmul.f32 %v1486, %v3040
  %v3265 = vmul.f32 %v1644, %v3041
  %v3266 = vmul.f32 %v1646, %v3042
  %v3267 = vmul.f32 %v1697, %v3043
  %v3268 = vmul.f32 %v1699, %v3044
  %v3269 = vmul.f32 %v1750, %v3045
  %v3270 = vmul.f32 %v1752, %v3046
  %v3271 = vmul.f32 %v1803, %v3047
  %v3272 = vmul.f32 %v1648, %v3048
  %v3273 = vmul.f32 %v1650, %v3049
  %v3274 = vmul.f32 %v1701, %v3050
  %v3275 = vmul.f32 %v1703, %v3051
  %v3276 = vmul.f32 %v1754, %v3052
  %v3277 = vmul.f32 %v1756, %v3053
  %v3278 = vmul.f32 %v1806, %v3054
  %v3279 = vmul.f32 %v1654, %v3055
  %v3280 = vmul.f32 %v1656, %v3056
  %v3281 = vmul.f32 %v1707, %v3057
  %v3282 = vmul.f32 %v1709, %v3058
  %v3283 = vmul.f32 %v1760, %v3059
  %v3284 = vmul.f32 %v1762, %v3060
  %v3285 = vmul.f32 %v1811, %v3061
  %v3286 = vmul.f32 %v1658, %v3062
  %v3287 = vmul.f32 %v1660, %v3063
  %v3288 = vmul.f32 %v1711, %v3064
  %v3289 = vmul.f32 %v1713, %v3065
  %v3290 = vmul.f32 %v1764, %v3066
  %v3291 = vmul.f32 %v1766, %v3067
  %v3292 = vmul.f32 %v1814, %v3068
  %v3293 = vmul.f32 %v1972, %v3069
  %v3294 = vmul.f32 %v1974, %v3070
  %v3295 = vmul.f32 %v2025, %v3071
  %v3296 = vmul.f32 %v2027, %v3072
  %v3297 = vmul.f32 %v2078, %v3073
  %v3298 = vmul.f32 %v2080, %v3074
  %v3299 = vmul.f32 %v2131, %v3075
  %v3300 = vmul.f32 %v1976, %v3076
  %v3301 = vmul.f32 %v1978, %v3077
  %v3302 = vmul.f32 %v2029, %v3078
  %v3303 = vmul.f32 %v2031, %v3079
  %v3304 = vmul.f32 %v2082, %v3080
  %v3305 = vmul.f32 %v2084, %v3081
  %v3306 = vmul.f32 %v2134, %v3082
  %v3307 = vmul.f32 %v1982, %v3083
  %v3308 = vmul.f32 %v1984, %v3084
  %v3309 = vmul.f32 %v2035, %v3085
  %v3310 = vmul.f32 %v2037, %v3086
  %v3311 = vmul.f32 %v2088, %v3087
  %v3312 = vmul.f32 %v2090, %v3088
  %v3313 = vmul.f32 %v2139, %v3089
  %v3314 = vmul.f32 %v1986, %v3090
  %v3315 = vmul.f32 %v1988, %v3091
  %v3316 = vmul.f32 %v2039, %v3092
  %v3317 = vmul.f32 %v2041, %v3093
  %v3318 = vmul.f32 %v2092, %v3094
  %v3319 = vmul.f32 %v2094, %v3095
  %v3320 = vmul.f32 %v2142, %v3096
  %v3321 = vmul.f32 %v2300, %v3097
  %v3322 = vmul.f32 %v2302, %v3098
  %v3323 = vmul.f32 %v2353, %v3099
  %v3324 = vmul.f32 %v2355, %v3100
  %v3325 = vmul.f32 %v2406, %v3101
  %v3326 = vmul.f32 %v2408, %v3102
  %v3327 = vmul.f32 %v2459, %v3103
  %v3328 = vmul.f32 %v2304, %v3104
  %v3329 = vmul.f32 %v2306, %v3105
  %v3330 = vmul.f32 %v2357, %v3106
  %v3331 = vmul.f32 %v2359, %v3107
  %v3332 = vmul.f32 %v2410, %v3108
  %v3333 = vmul.f32 %v2412, %v3109
  %v3334 = vmul.f32 %v2462, %v3110
  %v3335 = vmul.f32 %v2310, %v3111
  %v3336 = vmul.f32 %v2312, %v3112
  %v3337 = vmul.f32 %v2363, %v3113
  %v3338 = vmul.f32 %v2365, %v3114
  %v3339 = vmul.f32 %v2416, %v3115
  %v3340 = vmul.f32 %v2418, %v3116
  %v3341 = vmul.f32 %v2467, %v3117
  %v3342 = vmul.f32 %v2314, %v3118
  %v3343 = vmul.f32 %v2316, %v3119
  %v3344 = vmul.f32 %v2367, %v3120
  %v3345 = vmul.f32 %v2369, %v3121
  %v3346 = vmul.f32 %v2420, %v3122
  %v3347 = vmul.f32 %v2422, %v3123
  %v3348 = vmul.f32 %v2470, %v3124
  %v3349 = vmul.f32 %v2628, %v3125
  %v3350 = vmul.f32 %v2630, %v3126
  %v3351 = vmul.f32 %v2681, %v3127
  %v3352 = vmul.f32 %v2683, %v3128
  %v3353 = vmul.f32 %v2734, %v3129
  %v3354 = vmul.f32 %v2736, %v3130
  %v3355 = vmul.f32 %v2787, %v3131
  %v3356 = vmul.f32 %v2632, %v3132
  %v3357 = vmul.f32 %v2634, %v3133
  %v3358 = vmul.f32 %v2685, %v3134
  %v3359 = vmul.f32 %v2687, %v3135
  %v3360 = vmul.f32 %v2738, %v3136
  %v3361 = vmul.f32 %v2740, %v3137
  %v3362 = vmul.f32 %v2790, %v3138
  %v3363 = vmul.f32 %v2638, %v3139
  %v3364 = vmul.f32 %v2640, %v3140
  %v3365 = vmul.f32 %v2691, %v3141
  %v3366 = vmul.f32 %v2693, %v3142
  %v3367 = vmul.f32 %v2744, %v3143
  %v3368 = vmul.f32 %v2746, %v3144
  %v3369 = vmul.f32 %v2795, %v3145
  %v3370 = vmul.f32 %v2642, %v3146
  %v3371 = vmul.f32 %v2644, %v3147
  %v3372 = vmul.f32 %v2695, %v3148
  %v3373 = vmul.f32 %v2697, %v3149
  %v3374 = vmul.f32 %v2748, %v3150
  %v3375 = vmul.f32 %v2750, %v3151
  %v3376 = vmul.f32 %v2798, %v3152
  %v3377 = vadd.f32 %v3153, %v3160
  %v3378 = vadd.f32 %v3377, %v3167
  %vm3379 = vcmask 1043456
  %v3380 = vsel %vm3379, %v3174, 0.0
  %v3381 = vadd.f32 %v3378, %v3380
  %v3382 = vrot.slane %v3381, 4
  %v3383 = vadd.f32 %v3381, %v3382
  %v3384 = vrot.slane %v3383, 2
  %v3385 = vadd.f32 %v3383, %v3384
  %v3386 = vrot.slane %v3385, 1
  %v3387 = vadd.f32 %v3385, %v3386
  %v3388 = vadd.f32 %v3154, %v3161
  %v3389 = vadd.f32 %v3388, %v3168
  %v3390 = vsel %vm3379, %v3175, 0.0
  %v3391 = vadd.f32 %v3389, %v3390
  %v3392 = vrot.slane %v3391, 4
  %v3393 = vadd.f32 %v3391, %v3392
  %v3394 = vrot.slane %v3393, 2
  %v3395 = vadd.f32 %v3393, %v3394
  %v3396 = vrot.slane %v3395, 1
  %v3397 = vadd.f32 %v3395, %v3396
  %v3398 = vadd.f32 %v3155, %v3162
  %v3399 = vadd.f32 %v3398, %v3169
  %v3400 = vsel %vm3379, %v3176, 0.0
  %v3401 = vadd.f32 %v3399, %v3400
  %v3402 = vrot.slane %v3401, 4
  %v3403 = vadd.f32 %v3401, %v3402
  %v3404 = vrot.slane %v3403, 2
  %v3405 = vadd.f32 %v3403, %v3404
  %v3406 = vrot.slane %v3405, 1
  %v3407 = vadd.f32 %v3405, %v3406
  %v3408 = vadd.f32 %v3156, %v3163
  %v3409 = vadd.f32 %v3408, %v3170
  %v3410 = vsel %vm3379, %v3177, 0.0
  %v3411 = vadd.f32 %v3409, %v3410
  %v3412 = vrot.slane %v3411, 4
  %v3413 = vadd.f32 %v3411, %v3412
  %v3414 = vrot.slane %v3413, 2
  %v3415 = vadd.f32 %v3413, %v3414
  %v3416 = vrot.slane %v3415, 1
  %v3417 = vadd.f32 %v3415, %v3416
  %v3418 = vadd.f32 %v3157, %v3164
  %v3419 = vadd.f32 %v3418, %v3171
  %v3420 = vsel %vm3379, %v3178, 0.0
  %v3421 = vadd.f32 %v3419, %v3420
  %v3422 = vrot.slane %v3421, 4
  %v3423 = vadd.f32 %v3421, %v3422
  %v3424 = vrot.slane %v3423, 2
  %v3425 = vadd.f32 %v3423, %v3424
  %v3426 = vrot.slane %v3425, 1
  %v3427 = vadd.f32 %v3425, %v3426
  %v3428 = vadd.f32 %v3158, %v3165
  %v3429 = vadd.f32 %v3428, %v3172
  %v3430 = vsel %vm3379, %v3179, 0.0
  %v3431 = vadd.f32 %v3429, %v3430
  %v3432 = vrot.slane %v3431, 4
  %v3433 = vadd.f32 %v3431, %v3432
  %v3434 = vrot.slane %v3433, 2
  %v3435 = vadd.f32 %v3433, %v3434
  %v3436 = vrot.slane %v3435, 1
  %v3437 = vadd.f32 %v3435, %v3436
  %vm3438 = vcmask 130048
  %v3439 = vsel %vm3438, %v3159, 0.0
  %v3440 = vsel %vm3438, %v3166, 0.0
  %v3441 = vadd.f32 %v3439, %v3440
  %v3442 = vsel %vm3438, %v3173, 0.0
  %v3443 = vadd.f32 %v3441, %v3442
  %vm3444 = vcmask 125952
  %v3445 = vsel %vm3444, %v3180, 0.0
  %v3446 = vadd.f32 %v3443, %v3445
  %v3447 = vrot.slane %v3446, 4
  %v3448 = vadd.f32 %v3446, %v3447
  %v3449 = vrot.slane %v3448, 2
  %v3450 = vadd.f32 %v3448, %v3449
  %v3451 = vrot.slane %v3450, 1
  %v3452 = vadd.f32 %v3450, %v3451
  %v3453 = vadd.f32 %v3181, %v3188
  %v3454 = vadd.f32 %v3453, %v3195
  %v3455 = vsel %vm3379, %v3202, 0.0
  %v3456 = vadd.f32 %v3454, %v3455
  %v3457 = vrot.slane %v3456, 4
  %v3458 = vadd.f32 %v3456, %v3457
  %v3459 = vrot.slane %v3458, 2
  %v3460 = vadd.f32 %v3458, %v3459
  %v3461 = vrot.slane %v3460, 1
  %v3462 = vadd.f32 %v3460, %v3461
  %v3463 = vadd.f32 %v3182, %v3189
  %v3464 = vadd.f32 %v3463, %v3196
  %v3465 = vsel %vm3379, %v3203, 0.0
  %v3466 = vadd.f32 %v3464, %v3465
  %v3467 = vrot.slane %v3466, 4
  %v3468 = vadd.f32 %v3466, %v3467
  %v3469 = vrot.slane %v3468, 2
  %v3470 = vadd.f32 %v3468, %v3469
  %v3471 = vrot.slane %v3470, 1
  %v3472 = vadd.f32 %v3470, %v3471
  %v3473 = vadd.f32 %v3183, %v3190
  %v3474 = vadd.f32 %v3473, %v3197
  %v3475 = vsel %vm3379, %v3204, 0.0
  %v3476 = vadd.f32 %v3474, %v3475
  %v3477 = vrot.slane %v3476, 4
  %v3478 = vadd.f32 %v3476, %v3477
  %v3479 = vrot.slane %v3478, 2
  %v3480 = vadd.f32 %v3478, %v3479
  %v3481 = vrot.slane %v3480, 1
  %v3482 = vadd.f32 %v3480, %v3481
  %v3483 = vadd.f32 %v3184, %v3191
  %v3484 = vadd.f32 %v3483, %v3198
  %v3485 = vsel %vm3379, %v3205, 0.0
  %v3486 = vadd.f32 %v3484, %v3485
  %v3487 = vrot.slane %v3486, 4
  %v3488 = vadd.f32 %v3486, %v3487
  %v3489 = vrot.slane %v3488, 2
  %v3490 = vadd.f32 %v3488, %v3489
  %v3491 = vrot.slane %v3490, 1
  %v3492 = vadd.f32 %v3490, %v3491
  %v3493 = vadd.f32 %v3185, %v3192
  %v3494 = vadd.f32 %v3493, %v3199
  %v3495 = vsel %vm3379, %v3206, 0.0
  %v3496 = vadd.f32 %v3494, %v3495
  %v3497 = vrot.slane %v3496, 4
  %v3498 = vadd.f32 %v3496, %v3497
  %v3499 = vrot.slane %v3498, 2
  %v3500 = vadd.f32 %v3498, %v3499
  %v3501 = vrot.slane %v3500, 1
  %v3502 = vadd.f32 %v3500, %v3501
  %v3503 = vadd.f32 %v3186, %v3193
  %v3504 = vadd.f32 %v3503, %v3200
  %v3505 = vsel %vm3379, %v3207, 0.0
  %v3506 = vadd.f32 %v3504, %v3505
  %v3507 = vrot.slane %v3506, 4
  %v3508 = vadd.f32 %v3506, %v3507
  %v3509 = vrot.slane %v3508, 2
  %v3510 = vadd.f32 %v3508, %v3509
  %v3511 = vrot.slane %v3510, 1
  %v3512 = vadd.f32 %v3510, %v3511
  %v3513 = vsel %vm3438, %v3187, 0.0
  %v3514 = vsel %vm3438, %v3194, 0.0
  %v3515 = vadd.f32 %v3513, %v3514
  %v3516 = vsel %vm3438, %v3201, 0.0
  %v3517 = vadd.f32 %v3515, %v3516
  %v3518 = vsel %vm3444, %v3208, 0.0
  %v3519 = vadd.f32 %v3517, %v3518
  %v3520 = vrot.slane %v3519, 4
  %v3521 = vadd.f32 %v3519, %v3520
  %v3522 = vrot.slane %v3521, 2
  %v3523 = vadd.f32 %v3521, %v3522
  %v3524 = vrot.slane %v3523, 1
  %v3525 = vadd.f32 %v3523, %v3524
  %v3526 = vadd.f32 %v3209, %v3216
  %v3527 = vadd.f32 %v3526, %v3223
  %v3528 = vsel %vm3379, %v3230, 0.0
  %v3529 = vadd.f32 %v3527, %v3528
  %v3530 = vrot.slane %v3529, 4
  %v3531 = vadd.f32 %v3529, %v3530
  %v3532 = vrot.slane %v3531, 2
  %v3533 = vadd.f32 %v3531, %v3532
  %v3534 = vrot.slane %v3533, 1
  %v3535 = vadd.f32 %v3533, %v3534
  %v3536 = vadd.f32 %v3210, %v3217
  %v3537 = vadd.f32 %v3536, %v3224
  %v3538 = vsel %vm3379, %v3231, 0.0
  %v3539 = vadd.f32 %v3537, %v3538
  %v3540 = vrot.slane %v3539, 4
  %v3541 = vadd.f32 %v3539, %v3540
  %v3542 = vrot.slane %v3541, 2
  %v3543 = vadd.f32 %v3541, %v3542
  %v3544 = vrot.slane %v3543, 1
  %v3545 = vadd.f32 %v3543, %v3544
  %v3546 = vadd.f32 %v3211, %v3218
  %v3547 = vadd.f32 %v3546, %v3225
  %v3548 = vsel %vm3379, %v3232, 0.0
  %v3549 = vadd.f32 %v3547, %v3548
  %v3550 = vrot.slane %v3549, 4
  %v3551 = vadd.f32 %v3549, %v3550
  %v3552 = vrot.slane %v3551, 2
  %v3553 = vadd.f32 %v3551, %v3552
  %v3554 = vrot.slane %v3553, 1
  %v3555 = vadd.f32 %v3553, %v3554
  %v3556 = vadd.f32 %v3212, %v3219
  %v3557 = vadd.f32 %v3556, %v3226
  %v3558 = vsel %vm3379, %v3233, 0.0
  %v3559 = vadd.f32 %v3557, %v3558
  %v3560 = vrot.slane %v3559, 4
  %v3561 = vadd.f32 %v3559, %v3560
  %v3562 = vrot.slane %v3561, 2
  %v3563 = vadd.f32 %v3561, %v3562
  %v3564 = vrot.slane %v3563, 1
  %v3565 = vadd.f32 %v3563, %v3564
  %v3566 = vadd.f32 %v3213, %v3220
  %v3567 = vadd.f32 %v3566, %v3227
  %v3568 = vsel %vm3379, %v3234, 0.0
  %v3569 = vadd.f32 %v3567, %v3568
  %v3570 = vrot.slane %v3569, 4
  %v3571 = vadd.f32 %v3569, %v3570
  %v3572 = vrot.slane %v3571, 2
  %v3573 = vadd.f32 %v3571, %v3572
  %v3574 = vrot.slane %v3573, 1
  %v3575 = vadd.f32 %v3573, %v3574
  %v3576 = vadd.f32 %v3214, %v3221
  %v3577 = vadd.f32 %v3576, %v3228
  %v3578 = vsel %vm3379, %v3235, 0.0
  %v3579 = vadd.f32 %v3577, %v3578
  %v3580 = vrot.slane %v3579, 4
  %v3581 = vadd.f32 %v3579, %v3580
  %v3582 = vrot.slane %v3581, 2
  %v3583 = vadd.f32 %v3581, %v3582
  %v3584 = vrot.slane %v3583, 1
  %v3585 = vadd.f32 %v3583, %v3584
  %v3586 = vsel %vm3438, %v3215, 0.0
  %v3587 = vsel %vm3438, %v3222, 0.0
  %v3588 = vadd.f32 %v3586, %v3587
  %v3589 = vsel %vm3438, %v3229, 0.0
  %v3590 = vadd.f32 %v3588, %v3589
  %v3591 = vsel %vm3444, %v3236, 0.0
  %v3592 = vadd.f32 %v3590, %v3591
  %v3593 = vrot.slane %v3592, 4
  %v3594 = vadd.f32 %v3592, %v3593
  %v3595 = vrot.slane %v3594, 2
  %v3596 = vadd.f32 %v3594, %v3595
  %v3597 = vrot.slane %v3596, 1
  %v3598 = vadd.f32 %v3596, %v3597
  %v3599 = vadd.f32 %v3237, %v3244
  %v3600 = vadd.f32 %v3599, %v3251
  %v3601 = vsel %vm3379, %v3258, 0.0
  %v3602 = vadd.f32 %v3600, %v3601
  %v3603 = vrot.slane %v3602, 4
  %v3604 = vadd.f32 %v3602, %v3603
  %v3605 = vrot.slane %v3604, 2
  %v3606 = vadd.f32 %v3604, %v3605
  %v3607 = vrot.slane %v3606, 1
  %v3608 = vadd.f32 %v3606, %v3607
  %v3609 = vadd.f32 %v3238, %v3245
  %v3610 = vadd.f32 %v3609, %v3252
  %v3611 = vsel %vm3379, %v3259, 0.0
  %v3612 = vadd.f32 %v3610, %v3611
  %v3613 = vrot.slane %v3612, 4
  %v3614 = vadd.f32 %v3612, %v3613
  %v3615 = vrot.slane %v3614, 2
  %v3616 = vadd.f32 %v3614, %v3615
  %v3617 = vrot.slane %v3616, 1
  %v3618 = vadd.f32 %v3616, %v3617
  %v3619 = vadd.f32 %v3239, %v3246
  %v3620 = vadd.f32 %v3619, %v3253
  %v3621 = vsel %vm3379, %v3260, 0.0
  %v3622 = vadd.f32 %v3620, %v3621
  %v3623 = vrot.slane %v3622, 4
  %v3624 = vadd.f32 %v3622, %v3623
  %v3625 = vrot.slane %v3624, 2
  %v3626 = vadd.f32 %v3624, %v3625
  %v3627 = vrot.slane %v3626, 1
  %v3628 = vadd.f32 %v3626, %v3627
  %v3629 = vadd.f32 %v3240, %v3247
  %v3630 = vadd.f32 %v3629, %v3254
  %v3631 = vsel %vm3379, %v3261, 0.0
  %v3632 = vadd.f32 %v3630, %v3631
  %v3633 = vrot.slane %v3632, 4
  %v3634 = vadd.f32 %v3632, %v3633
  %v3635 = vrot.slane %v3634, 2
  %v3636 = vadd.f32 %v3634, %v3635
  %v3637 = vrot.slane %v3636, 1
  %v3638 = vadd.f32 %v3636, %v3637
  %v3639 = vadd.f32 %v3241, %v3248
  %v3640 = vadd.f32 %v3639, %v3255
  %v3641 = vsel %vm3379, %v3262, 0.0
  %v3642 = vadd.f32 %v3640, %v3641
  %v3643 = vrot.slane %v3642, 4
  %v3644 = vadd.f32 %v3642, %v3643
  %v3645 = vrot.slane %v3644, 2
  %v3646 = vadd.f32 %v3644, %v3645
  %v3647 = vrot.slane %v3646, 1
  %v3648 = vadd.f32 %v3646, %v3647
  %v3649 = vadd.f32 %v3242, %v3249
  %v3650 = vadd.f32 %v3649, %v3256
  %v3651 = vsel %vm3379, %v3263, 0.0
  %v3652 = vadd.f32 %v3650, %v3651
  %v3653 = vrot.slane %v3652, 4
  %v3654 = vadd.f32 %v3652, %v3653
  %v3655 = vrot.slane %v3654, 2
  %v3656 = vadd.f32 %v3654, %v3655
  %v3657 = vrot.slane %v3656, 1
  %v3658 = vadd.f32 %v3656, %v3657
  %v3659 = vsel %vm3438, %v3243, 0.0
  %v3660 = vsel %vm3438, %v3250, 0.0
  %v3661 = vadd.f32 %v3659, %v3660
  %v3662 = vsel %vm3438, %v3257, 0.0
  %v3663 = vadd.f32 %v3661, %v3662
  %v3664 = vsel %vm3444, %v3264, 0.0
  %v3665 = vadd.f32 %v3663, %v3664
  %v3666 = vrot.slane %v3665, 4
  %v3667 = vadd.f32 %v3665, %v3666
  %v3668 = vrot.slane %v3667, 2
  %v3669 = vadd.f32 %v3667, %v3668
  %v3670 = vrot.slane %v3669, 1
  %v3671 = vadd.f32 %v3669, %v3670
  %v3672 = vadd.f32 %v3265, %v3272
  %v3673 = vadd.f32 %v3672, %v3279
  %v3674 = vsel %vm3379, %v3286, 0.0
  %v3675 = vadd.f32 %v3673, %v3674
  %v3676 = vrot.slane %v3675, 4
  %v3677 = vadd.f32 %v3675, %v3676
  %v3678 = vrot.slane %v3677, 2
  %v3679 = vadd.f32 %v3677, %v3678
  %v3680 = vrot.slane %v3679, 1
  %v3681 = vadd.f32 %v3679, %v3680
  %v3682 = vadd.f32 %v3266, %v3273
  %v3683 = vadd.f32 %v3682, %v3280
  %v3684 = vsel %vm3379, %v3287, 0.0
  %v3685 = vadd.f32 %v3683, %v3684
  %v3686 = vrot.slane %v3685, 4
  %v3687 = vadd.f32 %v3685, %v3686
  %v3688 = vrot.slane %v3687, 2
  %v3689 = vadd.f32 %v3687, %v3688
  %v3690 = vrot.slane %v3689, 1
  %v3691 = vadd.f32 %v3689, %v3690
  %v3692 = vadd.f32 %v3267, %v3274
  %v3693 = vadd.f32 %v3692, %v3281
  %v3694 = vsel %vm3379, %v3288, 0.0
  %v3695 = vadd.f32 %v3693, %v3694
  %v3696 = vrot.slane %v3695, 4
  %v3697 = vadd.f32 %v3695, %v3696
  %v3698 = vrot.slane %v3697, 2
  %v3699 = vadd.f32 %v3697, %v3698
  %v3700 = vrot.slane %v3699, 1
  %v3701 = vadd.f32 %v3699, %v3700
  %v3702 = vadd.f32 %v3268, %v3275
  %v3703 = vadd.f32 %v3702, %v3282
  %v3704 = vsel %vm3379, %v3289, 0.0
  %v3705 = vadd.f32 %v3703, %v3704
  %v3706 = vrot.slane %v3705, 4
  %v3707 = vadd.f32 %v3705, %v3706
  %v3708 = vrot.slane %v3707, 2
  %v3709 = vadd.f32 %v3707, %v3708
  %v3710 = vrot.slane %v3709, 1
  %v3711 = vadd.f32 %v3709, %v3710
  %v3712 = vadd.f32 %v3269, %v3276
  %v3713 = vadd.f32 %v3712, %v3283
  %v3714 = vsel %vm3379, %v3290, 0.0
  %v3715 = vadd.f32 %v3713, %v3714
  %v3716 = vrot.slane %v3715, 4
  %v3717 = vadd.f32 %v3715, %v3716
  %v3718 = vrot.slane %v3717, 2
  %v3719 = vadd.f32 %v3717, %v3718
  %v3720 = vrot.slane %v3719, 1
  %v3721 = vadd.f32 %v3719, %v3720
  %v3722 = vadd.f32 %v3270, %v3277
  %v3723 = vadd.f32 %v3722, %v3284
  %v3724 = vsel %vm3379, %v3291, 0.0
  %v3725 = vadd.f32 %v3723, %v3724
  %v3726 = vrot.slane %v3725, 4
  %v3727 = vadd.f32 %v3725, %v3726
  %v3728 = vrot.slane %v3727, 2
  %v3729 = vadd.f32 %v3727, %v3728
  %v3730 = vrot.slane %v3729, 1
  %v3731 = vadd.f32 %v3729, %v3730
  %v3732 = vsel %vm3438, %v3271, 0.0
  %v3733 = vsel %vm3438, %v3278, 0.0
  %v3734 = vadd.f32 %v3732, %v3733
  %v3735 = vsel %vm3438, %v3285, 0.0
  %v3736 = vadd.f32 %v3734, %v3735
  %v3737 = vsel %vm3444, %v3292, 0.0
  %v3738 = vadd.f32 %v3736, %v3737
  %v3739 = vrot.slane %v3738, 4
  %v3740 = vadd.f32 %v3738, %v3739
  %v3741 = vrot.slane %v3740, 2
  %v3742 = vadd.f32 %v3740, %v3741
  %v3743 = vrot.slane %v3742, 1
  %v3744 = vadd.f32 %v3742, %v3743
  %v3745 = vadd.f32 %v3293, %v3300
  %v3746 = vadd.f32 %v3745, %v3307
  %v3747 = vsel %vm3379, %v3314, 0.0
  %v3748 = vadd.f32 %v3746, %v3747
  %v3749 = vrot.slane %v3748, 4
  %v3750 = vadd.f32 %v3748, %v3749
  %v3751 = vrot.slane %v3750, 2
  %v3752 = vadd.f32 %v3750, %v3751
  %v3753 = vrot.slane %v3752, 1
  %v3754 = vadd.f32 %v3752, %v3753
  %v3755 = vadd.f32 %v3294, %v3301
  %v3756 = vadd.f32 %v3755, %v3308
  %v3757 = vsel %vm3379, %v3315, 0.0
  %v3758 = vadd.f32 %v3756, %v3757
  %v3759 = vrot.slane %v3758, 4
  %v3760 = vadd.f32 %v3758, %v3759
  %v3761 = vrot.slane %v3760, 2
  %v3762 = vadd.f32 %v3760, %v3761
  %v3763 = vrot.slane %v3762, 1
  %v3764 = vadd.f32 %v3762, %v3763
  %v3765 = vadd.f32 %v3295, %v3302
  %v3766 = vadd.f32 %v3765, %v3309
  %v3767 = vsel %vm3379, %v3316, 0.0
  %v3768 = vadd.f32 %v3766, %v3767
  %v3769 = vrot.slane %v3768, 4
  %v3770 = vadd.f32 %v3768, %v3769
  %v3771 = vrot.slane %v3770, 2
  %v3772 = vadd.f32 %v3770, %v3771
  %v3773 = vrot.slane %v3772, 1
  %v3774 = vadd.f32 %v3772, %v3773
  %v3775 = vadd.f32 %v3296, %v3303
  %v3776 = vadd.f32 %v3775, %v3310
  %v3777 = vsel %vm3379, %v3317, 0.0
  %v3778 = vadd.f32 %v3776, %v3777
  %v3779 = vrot.slane %v3778, 4
  %v3780 = vadd.f32 %v3778, %v3779
  %v3781 = vrot.slane %v3780, 2
  %v3782 = vadd.f32 %v3780, %v3781
  %v3783 = vrot.slane %v3782, 1
  %v3784 = vadd.f32 %v3782, %v3783
  %v3785 = vadd.f32 %v3297, %v3304
  %v3786 = vadd.f32 %v3785, %v3311
  %v3787 = vsel %vm3379, %v3318, 0.0
  %v3788 = vadd.f32 %v3786, %v3787
  %v3789 = vrot.slane %v3788, 4
  %v3790 = vadd.f32 %v3788, %v3789
  %v3791 = vrot.slane %v3790, 2
  %v3792 = vadd.f32 %v3790, %v3791
  %v3793 = vrot.slane %v3792, 1
  %v3794 = vadd.f32 %v3792, %v3793
  %v3795 = vadd.f32 %v3298, %v3305
  %v3796 = vadd.f32 %v3795, %v3312
  %v3797 = vsel %vm3379, %v3319, 0.0
  %v3798 = vadd.f32 %v3796, %v3797
  %v3799 = vrot.slane %v3798, 4
  %v3800 = vadd.f32 %v3798, %v3799
  %v3801 = vrot.slane %v3800, 2
  %v3802 = vadd.f32 %v3800, %v3801
  %v3803 = vrot.slane %v3802, 1
  %v3804 = vadd.f32 %v3802, %v3803
  %v3805 = vsel %vm3438, %v3299, 0.0
  %v3806 = vsel %vm3438, %v3306, 0.0
  %v3807 = vadd.f32 %v3805, %v3806
  %v3808 = vsel %vm3438, %v3313, 0.0
  %v3809 = vadd.f32 %v3807, %v3808
  %v3810 = vsel %vm3444, %v3320, 0.0
  %v3811 = vadd.f32 %v3809, %v3810
  %v3812 = vrot.slane %v3811, 4
  %v3813 = vadd.f32 %v3811, %v3812
  %v3814 = vrot.slane %v3813, 2
  %v3815 = vadd.f32 %v3813, %v3814
  %v3816 = vrot.slane %v3815, 1
  %v3817 = vadd.f32 %v3815, %v3816
  %v3818 = vadd.f32 %v3321, %v3328
  %v3819 = vadd.f32 %v3818, %v3335
  %v3820 = vsel %vm3379, %v3342, 0.0
  %v3821 = vadd.f32 %v3819, %v3820
  %v3822 = vrot.slane %v3821, 4
  %v3823 = vadd.f32 %v3821, %v3822
  %v3824 = vrot.slane %v3823, 2
  %v3825 = vadd.f32 %v3823, %v3824
  %v3826 = vrot.slane %v3825, 1
  %v3827 = vadd.f32 %v3825, %v3826
  %v3828 = vadd.f32 %v3322, %v3329
  %v3829 = vadd.f32 %v3828, %v3336
  %v3830 = vsel %vm3379, %v3343, 0.0
  %v3831 = vadd.f32 %v3829, %v3830
  %v3832 = vrot.slane %v3831, 4
  %v3833 = vadd.f32 %v3831, %v3832
  %v3834 = vrot.slane %v3833, 2
  %v3835 = vadd.f32 %v3833, %v3834
  %v3836 = vrot.slane %v3835, 1
  %v3837 = vadd.f32 %v3835, %v3836
  %v3838 = vadd.f32 %v3323, %v3330
  %v3839 = vadd.f32 %v3838, %v3337
  %v3840 = vsel %vm3379, %v3344, 0.0
  %v3841 = vadd.f32 %v3839, %v3840
  %v3842 = vrot.slane %v3841, 4
  %v3843 = vadd.f32 %v3841, %v3842
  %v3844 = vrot.slane %v3843, 2
  %v3845 = vadd.f32 %v3843, %v3844
  %v3846 = vrot.slane %v3845, 1
  %v3847 = vadd.f32 %v3845, %v3846
  %v3848 = vadd.f32 %v3324, %v3331
  %v3849 = vadd.f32 %v3848, %v3338
  %v3850 = vsel %vm3379, %v3345, 0.0
  %v3851 = vadd.f32 %v3849, %v3850
  %v3852 = vrot.slane %v3851, 4
  %v3853 = vadd.f32 %v3851, %v3852
  %v3854 = vrot.slane %v3853, 2
  %v3855 = vadd.f32 %v3853, %v3854
  %v3856 = vrot.slane %v3855, 1
  %v3857 = vadd.f32 %v3855, %v3856
  %v3858 = vadd.f32 %v3325, %v3332
  %v3859 = vadd.f32 %v3858, %v3339
  %v3860 = vsel %vm3379, %v3346, 0.0
  %v3861 = vadd.f32 %v3859, %v3860
  %v3862 = vrot.slane %v3861, 4
  %v3863 = vadd.f32 %v3861, %v3862
  %v3864 = vrot.slane %v3863, 2
  %v3865 = vadd.f32 %v3863, %v3864
  %v3866 = vrot.slane %v3865, 1
  %v3867 = vadd.f32 %v3865, %v3866
  %v3868 = vadd.f32 %v3326, %v3333
  %v3869 = vadd.f32 %v3868, %v3340
  %v3870 = vsel %vm3379, %v3347, 0.0
  %v3871 = vadd.f32 %v3869, %v3870
  %v3872 = vrot.slane %v3871, 4
  %v3873 = vadd.f32 %v3871, %v3872
  %v3874 = vrot.slane %v3873, 2
  %v3875 = vadd.f32 %v3873, %v3874
  %v3876 = vrot.slane %v3875, 1
  %v3877 = vadd.f32 %v3875, %v3876
  %v3878 = vsel %vm3438, %v3327, 0.0
  %v3879 = vsel %vm3438, %v3334, 0.0
  %v3880 = vadd.f32 %v3878, %v3879
  %v3881 = vsel %vm3438, %v3341, 0.0
  %v3882 = vadd.f32 %v3880, %v3881
  %v3883 = vsel %vm3444, %v3348, 0.0
  %v3884 = vadd.f32 %v3882, %v3883
  %v3885 = vrot.slane %v3884, 4
  %v3886 = vadd.f32 %v3884, %v3885
  %v3887 = vrot.slane %v3886, 2
  %v3888 = vadd.f32 %v3886, %v3887
  %v3889 = vrot.slane %v3888, 1
  %v3890 = vadd.f32 %v3888, %v3889
  %v3891 = vadd.f32 %v3349, %v3356
  %v3892 = vadd.f32 %v3891, %v3363
  %v3893 = vsel %vm3379, %v3370, 0.0
  %v3894 = vadd.f32 %v3892, %v3893
  %v3895 = vrot.slane %v3894, 4
  %v3896 = vadd.f32 %v3894, %v3895
  %v3897 = vrot.slane %v3896, 2
  %v3898 = vadd.f32 %v3896, %v3897
  %v3899 = vrot.slane %v3898, 1
  %v3900 = vadd.f32 %v3898, %v3899
  %v3901 = vadd.f32 %v3350, %v3357
  %v3902 = vadd.f32 %v3901, %v3364
  %v3903 = vsel %vm3379, %v3371, 0.0
  %v3904 = vadd.f32 %v3902, %v3903
  %v3905 = vrot.slane %v3904, 4
  %v3906 = vadd.f32 %v3904, %v3905
  %v3907 = vrot.slane %v3906, 2
  %v3908 = vadd.f32 %v3906, %v3907
  %v3909 = vrot.slane %v3908, 1
  %v3910 = vadd.f32 %v3908, %v3909
  %v3911 = vadd.f32 %v3351, %v3358
  %v3912 = vadd.f32 %v3911, %v3365
  %v3913 = vsel %vm3379, %v3372, 0.0
  %v3914 = vadd.f32 %v3912, %v3913
  %v3915 = vrot.slane %v3914, 4
  %v3916 = vadd.f32 %v3914, %v3915
  %v3917 = vrot.slane %v3916, 2
  %v3918 = vadd.f32 %v3916, %v3917
  %v3919 = vrot.slane %v3918, 1
  %v3920 = vadd.f32 %v3918, %v3919
  %v3921 = vadd.f32 %v3352, %v3359
  %v3922 = vadd.f32 %v3921, %v3366
  %v3923 = vsel %vm3379, %v3373, 0.0
  %v3924 = vadd.f32 %v3922, %v3923
  %v3925 = vrot.slane %v3924, 4
  %v3926 = vadd.f32 %v3924, %v3925
  %v3927 = vrot.slane %v3926, 2
  %v3928 = vadd.f32 %v3926, %v3927
  %v3929 = vrot.slane %v3928, 1
  %v3930 = vadd.f32 %v3928, %v3929
  %v3931 = vadd.f32 %v3353, %v3360
  %v3932 = vadd.f32 %v3931, %v3367
  %v3933 = vsel %vm3379, %v3374, 0.0
  %v3934 = vadd.f32 %v3932, %v3933
  %v3935 = vrot.slane %v3934, 4
  %v3936 = vadd.f32 %v3934, %v3935
  %v3937 = vrot.slane %v3936, 2
  %v3938 = vadd.f32 %v3936, %v3937
  %v3939 = vrot.slane %v3938, 1
  %v3940 = vadd.f32 %v3938, %v3939
  %v3941 = vadd.f32 %v3354, %v3361
  %v3942 = vadd.f32 %v3941, %v3368
  %v3943 = vsel %vm3379, %v3375, 0.0
  %v3944 = vadd.f32 %v3942, %v3943
  %v3945 = vrot.slane %v3944, 4
  %v3946 = vadd.f32 %v3944, %v3945
  %v3947 = vrot.slane %v3946, 2
  %v3948 = vadd.f32 %v3946, %v3947
  %v3949 = vrot.slane %v3948, 1
  %v3950 = vadd.f32 %v3948, %v3949
  %v3951 = vsel %vm3438, %v3355, 0.0
  %v3952 = vsel %vm3438, %v3362, 0.0
  %v3953 = vadd.f32 %v3951, %v3952
  %v3954 = vsel %vm3438, %v3369, 0.0
  %v3955 = vadd.f32 %v3953, %v3954
  %v3956 = vsel %vm3444, %v3376, 0.0
  %v3957 = vadd.f32 %v3955, %v3956
  %v3958 = vrot.slane %v3957, 4
  %v3959 = vadd.f32 %v3957, %v3958
  %v3960 = vrot.slane %v3959, 2
  %v3961 = vadd.f32 %v3959, %v3960
  %v3962 = vrot.slane %v3961, 1
  %v3963 = vadd.f32 %v3961, %v3962
  %vm4020 = vcmask 1041409
  %v4021 = vsel %vm4020, %v3462, %v3387
  %vm4022 = vcmask 1042434
  %v4023 = vsel %vm4022, %v3535, %v4021
  %vm4024 = vcmask 1043459
  %v4025 = vsel %vm4024, %v3608, %v4023
  %vm4026 = vcmask 1044484
  %v4027 = vsel %vm4026, %v3681, %v4025
  %vm4028 = vcmask 1045509
  %v4029 = vsel %vm4028, %v3754, %v4027
  %vm4030 = vcmask 1046534
  %v4031 = vsel %vm4030, %v3827, %v4029
  %vm4032 = vcmask 1047559
  %v4033 = vsel %vm4032, %v3900, %v4031
  %v4034 = vsel %vm4020, %v3472, %v3397
  %v4035 = vsel %vm4022, %v3545, %v4034
  %v4036 = vsel %vm4024, %v3618, %v4035
  %v4037 = vsel %vm4026, %v3691, %v4036
  %v4038 = vsel %vm4028, %v3764, %v4037
  %v4039 = vsel %vm4030, %v3837, %v4038
  %v4040 = vsel %vm4032, %v3910, %v4039
  %v4041 = vsel %vm4020, %v3482, %v3407
  %v4042 = vsel %vm4022, %v3555, %v4041
  %v4043 = vsel %vm4024, %v3628, %v4042
  %v4044 = vsel %vm4026, %v3701, %v4043
  %v4045 = vsel %vm4028, %v3774, %v4044
  %v4046 = vsel %vm4030, %v3847, %v4045
  %v4047 = vsel %vm4032, %v3920, %v4046
  %v4048 = vsel %vm4020, %v3492, %v3417
  %v4049 = vsel %vm4022, %v3565, %v4048
  %v4050 = vsel %vm4024, %v3638, %v4049
  %v4051 = vsel %vm4026, %v3711, %v4050
  %v4052 = vsel %vm4028, %v3784, %v4051
  %v4053 = vsel %vm4030, %v3857, %v4052
  %v4054 = vsel %vm4032, %v3930, %v4053
  %v4055 = vsel %vm4020, %v3502, %v3427
  %v4056 = vsel %vm4022, %v3575, %v4055
  %v4057 = vsel %vm4024, %v3648, %v4056
  %v4058 = vsel %vm4026, %v3721, %v4057
  %v4059 = vsel %vm4028, %v3794, %v4058
  %v4060 = vsel %vm4030, %v3867, %v4059
  %v4061 = vsel %vm4032, %v3940, %v4060
  %v4062 = vsel %vm4020, %v3512, %v3437
  %v4063 = vsel %vm4022, %v3585, %v4062
  %v4064 = vsel %vm4024, %v3658, %v4063
  %v4065 = vsel %vm4026, %v3731, %v4064
  %v4066 = vsel %vm4028, %v3804, %v4065
  %v4067 = vsel %vm4030, %v3877, %v4066
  %v4068 = vsel %vm4032, %v3950, %v4067
  %v4069 = vsel %vm4020, %v3525, %v3452
  %v4070 = vsel %vm4022, %v3598, %v4069
  %v4071 = vsel %vm4024, %v3671, %v4070
  %v4072 = vsel %vm4026, %v3744, %v4071
  %v4073 = vsel %vm4028, %v3817, %v4072
  %v4074 = vsel %vm4030, %v3890, %v4073
  %v4075 = vsel %vm4032, %v3963, %v4074
  %4083 = vst [vmem:[%s3] sm:$0xff] %v4033
  %4084 = vst [vmem:[%s3 + $0x8] sm:$0xff] %v4040
  %4085 = vst [vmem:[%s3 + $0x10] sm:$0xff] %v4047
  %4086 = vst [vmem:[%s3 + $0x18] sm:$0xff] %v4054
  %4087 = vst [vmem:[%s3 + $0x20] sm:$0xff] %v4061
  %4088 = vst [vmem:[%s3 + $0x28] sm:$0xff] %v4068
  %4089 = vst.msk [vmem:[%s3 + $0x30] sm:$0xff] %vm3438, %v4075
  // Predicated region
  $region14: #{forward.16} parent=0 // pred_check
    _
  $region15: #{forward.16} parent=0 // pred_check_branch
    %4091 = sbr.rel (0) target = $region17
  $region16: #{forward.16} parent=0 // pred_region
    _
  $region17: #{forward.16} parent=0 // pred_fallthru
    _
  // Predicated region
  $region18: #{forward.16} parent=0 // pred_check
    _
  $region19: #{forward.16} parent=0 // pred_check_branch
    %4093 = sbr.rel (0) target = $region21
  $region20: #{forward.16} parent=0 // pred_region
    _
  $region21: #{forward.16} parent=0 // pred_fallthru
    _

// kernel: forward.18
$region0: #{forward.18}
  #allocation0 [shape = 'u32[]', space=smem, size = 0x4, offset = 0x4, fixed_abs, tag = 'smem constant byte address 0x4 - core index']
  #allocation1 [shape = 'u32[144,128]{1,0:T(1,128)}', space=vmem, size = 0x12000, scoped, tag = 'internal scratch']
  %s0 = inlined_call_operand.vmem [shape: f32[4,10,384], index: 0, kind: input, shape index: {}]
  %s1 = inlined_call_operand.vmem [shape: f32[10,384], index: 1, kind: output, shape index: {}]
  %s2 = sld [smem:[#allocation0]]
  $region14: #{forward.18} parent=0
    _
  %s4 = ssub.s32 1, %s2
  %s5 = scalar_select 0, %s4, %s2
  // Predicated region
  $region2: #{forward.18} parent=0 // pred_check
    _
  $region3: #{forward.18} parent=0 // pred_check_branch
    %7 = sbr.rel (0) target = $region5
  $region4: #{forward.18} parent=0 // pred_region
    _
  $region5: #{forward.18} parent=0 // pred_fallthru
    _
  %v8 = vld [vmem:[%s0] sm:$0xff]
  %v9 = vld [vmem:[%s0 + $0x8] sm:$0xff]
  %v10 = vld [vmem:[%s0 + $0x10] sm:$0xff]
  %v11 = vld [vmem:[%s0 + $0x18] sm:$0x3]
  %v12 = vld [vmem:[%s0 + $0x20] sm:$0x3]
  %v13 = vld [vmem:[%s0 + $0x28] sm:$0x3]
  %v14 = vld [vmem:[%s0 + $0x30] sm:$0xff]
  %v15 = vld [vmem:[%s0 + $0x38] sm:$0xff]
  %v16 = vld [vmem:[%s0 + $0x40] sm:$0xff]
  %v17 = vld [vmem:[%s0 + $0x48] sm:$0x3]
  %v18 = vld [vmem:[%s0 + $0x50] sm:$0x3]
  %v19 = vld [vmem:[%s0 + $0x58] sm:$0x3]
  %v20 = vld [vmem:[%s0 + $0x60] sm:$0xff]
  %v21 = vld [vmem:[%s0 + $0x68] sm:$0xff]
  %v22 = vld [vmem:[%s0 + $0x70] sm:$0xff]
  %v23 = vld [vmem:[%s0 + $0x78] sm:$0x3]
  %v24 = vld [vmem:[%s0 + $0x80] sm:$0x3]
  %v25 = vld [vmem:[%s0 + $0x88] sm:$0x3]
  %v26 = vld [vmem:[%s0 + $0x90] sm:$0xff]
  %v27 = vld [vmem:[%s0 + $0x98] sm:$0xff]
  %v28 = vld [vmem:[%s0 + $0xa0] sm:$0xff]
  %v29 = vld [vmem:[%s0 + $0xa8] sm:$0x3]
  %v30 = vld [vmem:[%s0 + $0xb0] sm:$0x3]
  %v31 = vld [vmem:[%s0 + $0xb8] sm:$0x3]
  %v32 = vmax.f32 %v8, %v14
  %v33 = vmax.f32 %v32, %v20
  %v34 = vmax.f32 %v33, %v26
  %v35 = vmax.f32 %v9, %v15
  %v36 = vmax.f32 %v35, %v21
  %v37 = vmax.f32 %v36, %v27
  %v38 = vmax.f32 %v10, %v16
  %v39 = vmax.f32 %v38, %v22
  %v40 = vmax.f32 %v39, %v28
  %vm41 = vcmask 1041408
  %v42 = vsel %vm41, %v11, -inf
  %v43 = vsel %vm41, %v17, -inf
  %v44 = vmax.f32 %v42, %v43
  %v45 = vsel %vm41, %v23, -inf
  %v46 = vmax.f32 %v44, %v45
  %v47 = vsel %vm41, %v29, -inf
  %v48 = vmax.f32 %v46, %v47
  %v49 = vsel %vm41, %v12, -inf
  %v50 = vsel %vm41, %v18, -inf
  %v51 = vmax.f32 %v49, %v50
  %v52 = vsel %vm41, %v24, -inf
  %v53 = vmax.f32 %v51, %v52
  %v54 = vsel %vm41, %v30, -inf
  %v55 = vmax.f32 %v53, %v54
  %v56 = vsel %vm41, %v13, -inf
  %v57 = vsel %vm41, %v19, -inf
  %v58 = vmax.f32 %v56, %v57
  %v59 = vsel %vm41, %v25, -inf
  %v60 = vmax.f32 %v58, %v59
  %v61 = vsel %vm41, %v31, -inf
  %v62 = vmax.f32 %v60, %v61
  %63 = vst [vmem:[%s1] sm:$0xff] %v34
  %64 = vst [vmem:[%s1 + $0x8] sm:$0xff] %v37
  %65 = vst [vmem:[%s1 + $0x10] sm:$0xff] %v40
  %66 = vst [vmem:[%s1 + $0x18] sm:$0x3] %v48
  %67 = vst [vmem:[%s1 + $0x20] sm:$0x3] %v55
  %68 = vst [vmem:[%s1 + $0x28] sm:$0x3] %v62
  // Predicated region
  $region6: #{forward.18} parent=0 // pred_check
    _
  $region7: #{forward.18} parent=0 // pred_check_branch
    %70 = sbr.rel (0) target = $region9
  $region8: #{forward.18} parent=0 // pred_region
    _
  $region9: #{forward.18} parent=0 // pred_fallthru
    _
  // Predicated region
  $region10: #{forward.18} parent=0 // pred_check
    _
  $region11: #{forward.18} parent=0 // pred_check_branch
    %72 = sbr.rel (0) target = $region13
  $region12: #{forward.18} parent=0 // pred_region
    _
  $region13: #{forward.18} parent=0 // pred_fallthru
    _

// kernel: forward.19
$region0: #{forward.19}
  #allocation0 [shape = 'u32[]', space=smem, size = 0x4, offset = 0x4, fixed_abs, tag = 'smem constant byte address 0x4 - core index']
  #allocation1 [shape = 'u32[144,128]{1,0:T(1,128)}', space=vmem, size = 0x12000, scoped, tag = 'internal scratch']
  %s0 = inlined_call_operand.vmem [shape: bf16[20,250], index: 0, kind: input, shape index: {}]
  %s1 = inlined_call_operand.vmem [shape: bf16[250,128], index: 1, kind: input, shape index: {}]
  %s2 = inlined_call_operand.vmem [shape: f32[20,1], index: 2, kind: input, shape index: {}]
  %s3 = inlined_call_operand.vmem [shape: f32[20,128], index: 3, kind: output, shape index: {}]
  %s4 = sld [smem:[#allocation0]]
  $region22: #{forward.19} parent=0
    _
  %s6 = ssub.s32 1, %s4
  %s7 = scalar_select 0, %s6, %s4
  // Predicated region
  $region2: #{forward.19} parent=0 // pred_check
    _
  $region3: #{forward.19} parent=0 // pred_check_branch
    %9 = sbr.rel (0) target = $region5
  $region4: #{forward.19} parent=0 // pred_region
    _
  $region5: #{forward.19} parent=0 // pred_fallthru
    _
  // Predicated region
  $region6: #{forward.19} parent=0 // pred_check
    _
  $region7: #{forward.19} parent=0 // pred_check_branch
    %11 = sbr.rel (0) target = $region9
  $region8: #{forward.19} parent=0 // pred_region
    _
  $region9: #{forward.19} parent=0 // pred_fallthru
    _
  // Predicated region
  $region10: #{forward.19} parent=0 // pred_check
    _
  $region11: #{forward.19} parent=0 // pred_check_branch
    %13 = sbr.rel (0) target = $region13
  $region12: #{forward.19} parent=0 // pred_region
    _
  $region13: #{forward.19} parent=0 // pred_fallthru
    _
  %v15 = vld [vmem:[%s0] sm:$0xff]
  %v16 = vld [vmem:[%s0 + $0x8] sm:$0xff]
  %v17 = vld [vmem:[%s0 + $0x10] sm:$0x33]
  %v18 = vld [vmem:[%s1] sm:$0xf]
  %v19 = vld [vmem:[%s1 + $0x4] sm:$0xf]
  %v20 = vld [vmem:[%s1 + $0x8] sm:$0xf]
  %v21 = vld [vmem:[%s1 + $0xc] sm:$0xf]
  %v22 = vld [vmem:[%s1 + $0x10] sm:$0xf]
  %v23 = vld [vmem:[%s1 + $0x14] sm:$0xf]
  %v24 = vld [vmem:[%s1 + $0x18] sm:$0xf]
  %v25 = vld [vmem:[%s1 + $0x1c] sm:$0xf]
  %v26 = vld [vmem:[%s1 + $0x20] sm:$0xf]
  %v27 = vld [vmem:[%s1 + $0x24] sm:$0xf]
  %v28 = vld [vmem:[%s1 + $0x28] sm:$0xf]
  %v29 = vld [vmem:[%s1 + $0x2c] sm:$0xf]
  %v30 = vld [vmem:[%s1 + $0x30] sm:$0xf]
  %v31 = vld [vmem:[%s1 + $0x34] sm:$0xf]
  %v32 = vld [vmem:[%s1 + $0x38] sm:$0xf]
  %v33 = vld [vmem:[%s1 + $0x3c] sm:$0xf]
  %v34 = vld [vmem:[%s1 + $0x40] sm:$0xf]
  %v35 = vld [vmem:[%s1 + $0x44] sm:$0xf]
  %v36 = vld [vmem:[%s1 + $0x48] sm:$0xf]
  %v37 = vld [vmem:[%s1 + $0x4c] sm:$0xf]
  %v38 = vld [vmem:[%s1 + $0x50] sm:$0xf]
  %v39 = vld [vmem:[%s1 + $0x54] sm:$0xf]
  %v40 = vld [vmem:[%s1 + $0x58] sm:$0xf]
  %v41 = vld [vmem:[%s1 + $0x5c] sm:$0xf]
  %v42 = vld [vmem:[%s1 + $0x60] sm:$0xf]
  %v43 = vld [vmem:[%s1 + $0x64] sm:$0xf]
  %v44 = vld [vmem:[%s1 + $0x68] sm:$0xf]
  %v45 = vld [vmem:[%s1 + $0x6c] sm:$0xf]
  %v46 = vld [vmem:[%s1 + $0x70] sm:$0xf]
  %v47 = vld [vmem:[%s1 + $0x74] sm:$0xf]
  %v48 = vld [vmem:[%s1 + $0x78] sm:$0xf]
  %v49 = vld [vmem:[%s1 + $0x7c] sm:$0x1]
  %v50 = vld [vmem:[%s2] sm:$0xff]
  %v51 = vld [vmem:[%s2 + $0x8] sm:$0xff]
  %v52 = vld [vmem:[%s2 + $0x10] sm:$0xf]
  %54 = vset.pattern.permute.xlu0 0
  %55 = vperm.xlu0 %54, %v50
  %v56 = vpop.permute.xlu0 %55
  %59 = vset.pattern.permute.xlu0 0
  %60 = vperm.xlu0 %59, %v51
  %v61 = vpop.permute.xlu0 %60
  %64 = vset.pattern.permute.xlu0 0
  %65 = vperm.xlu0 %64, %v52
  %v66 = vpop.permute.xlu0 %65
  %v71 = vunpack.c.l.b16 %v15
  %v72 = vunpack.c.h.b16 %v15
  %v73 = vunpack.c.l.b16 %v16
  %v74 = vunpack.c.h.b16 %v16
  %v75 = vunpack.c.l.b16 %v17
  %v76 = vunpack.c.h.b16 %v17
  %v77 = vpack.c.b16 %v73, %v71
  %v78 = vpack.c.b16 %v74, %v72
  %v79 = vpack.c.b16 %v75, %v75
  %v80 = vpack.c.b16 %v76, %v76
  %v115 = vunpack.c.l.b16 %v18
  %v116 = vunpack.c.l.b16 %v19
  %v117 = vunpack.c.l.b16 %v20
  %v118 = vunpack.c.l.b16 %v21
  %v119 = vunpack.c.l.b16 %v22
  %v120 = vunpack.c.l.b16 %v23
  %v121 = vunpack.c.l.b16 %v24
  %v122 = vunpack.c.l.b16 %v25
  %v123 = vunpack.c.l.b16 %v26
  %v124 = vunpack.c.l.b16 %v27
  %v125 = vunpack.c.l.b16 %v28
  %v126 = vunpack.c.l.b16 %v29
  %v127 = vunpack.c.l.b16 %v30
  %v128 = vunpack.c.l.b16 %v31
  %v129 = vunpack.c.l.b16 %v32
  %v130 = vunpack.c.l.b16 %v33
  %v131 = vunpack.c.l.b16 %v34
  %v132 = vunpack.c.l.b16 %v35
  %v133 = vunpack.c.l.b16 %v36
  %v134 = vunpack.c.l.b16 %v37
  %v135 = vunpack.c.l.b16 %v38
  %v136 = vunpack.c.l.b16 %v39
  %v137 = vunpack.c.l.b16 %v40
  %v138 = vunpack.c.l.b16 %v41
  %v139 = vunpack.c.l.b16 %v42
  %v140 = vunpack.c.l.b16 %v43
  %v141 = vunpack.c.l.b16 %v44
  %v142 = vunpack.c.l.b16 %v45
  %v143 = vunpack.c.l.b16 %v46
  %v144 = vunpack.c.l.b16 %v47
  %v145 = vunpack.c.l.b16 %v48
  %v146 = vunpack.c.l.b16 %v49
  %v147 = vpack.c.b16 %v116, %v115
  %v148 = vpack.c.b16 %v118, %v117
  %v149 = vpack.c.b16 %v120, %v119
  %v150 = vpack.c.b16 %v122, %v121
  %v151 = vpack.c.b16 %v124, %v123
  %v152 = vpack.c.b16 %v126, %v125
  %v153 = vpack.c.b16 %v128, %v127
  %v154 = vpack.c.b16 %v130, %v129
  %v155 = vpack.c.b16 %v132, %v131
  %v156 = vpack.c.b16 %v134, %v133
  %v157 = vpack.c.b16 %v136, %v135
  %v158 = vpack.c.b16 %v138, %v137
  %v159 = vpack.c.b16 %v140, %v139
  %v160 = vpack.c.b16 %v142, %v141
  %v161 = vpack.c.b16 %v144, %v143
  %v162 = vpack.c.b16 %v146, %v145
  %vm178 = vcmask 998400
  %v180 = vsel %vm178, %v78, 0
  %v183 = vsel %vm178, %v80, 0
  %vm185 = vcmask 1044480
  %v187 = vsel %vm185, %v162, 0
  %189 = vmatprep.subr.bf16.mxu0 0
  %190 = vmatpush1.bf16.msra.mxu0 %v147
  %191 = vmatprep.subr.bf16.mxu0 0
  %192 = vmatpush1.bf16.msra.mxu0 %v148
  %193 = vmatprep.subr.bf16.mxu0 0
  %194 = vmatpush1.bf16.msra.mxu0 %v149
  %195 = vmatprep.subr.bf16.mxu0 0
  %196 = vmatpush1.bf16.msra.mxu0 %v150
  %197 = vmatprep.subr.bf16.mxu0 0
  %198 = vmatpush1.bf16.msra.mxu0 %v151
  %199 = vmatprep.subr.bf16.mxu0 0
  %200 = vmatpush1.bf16.msra.mxu0 %v152
  %201 = vmatprep.subr.bf16.mxu0 0
  %202 = vmatpush1.bf16.msra.mxu0 %v153
  %203 = vmatprep.subr.bf16.mxu0 0
  %204 = vmatpush1.bf16.msra.mxu0 %v154
  %205 = vmatprep.subr.bf16.mxu0 0
  %206 = vmatpush1.bf16.msra.mxu0 %v155
  %207 = vmatprep.subr.bf16.mxu0 0
  %208 = vmatpush1.bf16.msra.mxu0 %v156
  %209 = vmatprep.subr.bf16.mxu0 0
  %210 = vmatpush1.bf16.msra.mxu0 %v157
  %211 = vmatprep.subr.bf16.mxu0 0
  %212 = vmatpush1.bf16.msra.mxu0 %v158
  %213 = vmatprep.subr.bf16.mxu0 0
  %214 = vmatpush1.bf16.msra.mxu0 %v159
  %215 = vmatprep.subr.bf16.mxu0 0
  %216 = vmatpush1.bf16.msra.mxu0 %v160
  %217 = vmatprep.subr.bf16.mxu0 0
  %218 = vmatpush1.bf16.msra.mxu0 %v161
  %219 = vmatprep.subr.bf16.mxu0 0
  %220 = vmatpush1.bf16.msra.mxu0 %v187
  %221 = vmatprep.mubr.bf16.mxu0 %v180
  %222 = vmatmul.mubr.bf16.gmra.mrb[0].mxu0 %v77
  %v223 = vpop.f32.mrb[0].mxu0
  %v224 = vadd.f32 %v56, %v223
  %v225 = vpop.f32.mrb[0].mxu0
  %v226 = vpop.f32.mrb[0].mxu0
  %v227 = vadd.f32 %v61, %v226
  %v228 = vpop.f32.mrb[0].mxu0
  %229 = vmatprep.mubr.bf16.mxu0 %v183
  %230 = vmatmul.mubr.bf16.gmra.mrb[0].mxu0 %v79
  %v231 = vpop.f32.mrb[0].mxu0
  %v232 = vadd.f32 %v66, %v231
  %v233 = vpop.f32.mrb[0].mxu0
  %v234 = vpop.f32.mrb[0].mxu0
  %v235 = vpop.f32.mrb[0].mxu0
  %236 = vdwg.mxu0
  %v237 = vmax.f32 %v224, 0.0
  %v238 = vmax.f32 %v227, 0.0
  %v239 = vmax.f32 %v232, 0.0
  %240 = vst [vmem:[%s3] sm:$0xff] %v237
  %241 = vst [vmem:[%s3 + $0x8] sm:$0xff] %v238
  %242 = vst [vmem:[%s3 + $0x10] sm:$0xf] %v239
  // Predicated region
  $region14: #{forward.19} parent=0 // pred_check
    _
  $region15: #{forward.19} parent=0 // pred_check_branch
    %244 = sbr.rel (0) target = $region17
  $region16: #{forward.19} parent=0 // pred_region
    _
  $region17: #{forward.19} parent=0 // pred_fallthru
    _
  // Predicated region
  $region18: #{forward.19} parent=0 // pred_check
    _
  $region19: #{forward.19} parent=0 // pred_check_branch
    %246 = sbr.rel (0) target = $region21
  $region20: #{forward.19} parent=0 // pred_region
    _
  $region21: #{forward.19} parent=0 // pred_fallthru
    _

// kernel: forward.20
$region0: #{forward.20}
  #allocation0 [shape = 'u32[]', space=smem, size = 0x4, offset = 0x4, fixed_abs, tag = 'smem constant byte address 0x4 - core index']
  #allocation1 [shape = 'u32[144,128]{1,0:T(1,128)}', space=vmem, size = 0x12000, scoped, tag = 'internal scratch']
  %s0 = inlined_call_operand.vmem [shape: f32[4,20,128], index: 0, kind: input, shape index: {}]
  %s1 = inlined_call_operand.vmem [shape: f32[20,128], index: 1, kind: output, shape index: {}]
  %s2 = sld [smem:[#allocation0]]
  $region14: #{forward.20} parent=0
    _
  %s4 = ssub.s32 1, %s2
  %s5 = scalar_select 0, %s4, %s2
  // Predicated region
  $region2: #{forward.20} parent=0 // pred_check
    _
  $region3: #{forward.20} parent=0 // pred_check_branch
    %7 = sbr.rel (0) target = $region5
  $region4: #{forward.20} parent=0 // pred_region
    _
  $region5: #{forward.20} parent=0 // pred_fallthru
    _
  %v8 = vld [vmem:[%s0] sm:$0xff]
  %v9 = vld [vmem:[%s0 + $0x8] sm:$0xff]
  %v10 = vld [vmem:[%s0 + $0x10] sm:$0xf]
  %v11 = vld [vmem:[%s0 + $0x18] sm:$0xff]
  %v12 = vld [vmem:[%s0 + $0x20] sm:$0xff]
  %v13 = vld [vmem:[%s0 + $0x28] sm:$0xf]
  %v14 = vld [vmem:[%s0 + $0x30] sm:$0xff]
  %v15 = vld [vmem:[%s0 + $0x38] sm:$0xff]
  %v16 = vld [vmem:[%s0 + $0x40] sm:$0xf]
  %v17 = vld [vmem:[%s0 + $0x48] sm:$0xff]
  %v18 = vld [vmem:[%s0 + $0x50] sm:$0xff]
  %v19 = vld [vmem:[%s0 + $0x58] sm:$0xf]
  %v20 = vmax.f32 %v8, %v14
  %v21 = vmax.f32 %v11, %v17
  %v22 = vmax.f32 %v20, %v21
  %v23 = vmax.f32 %v9, %v15
  %v24 = vmax.f32 %v12, %v18
  %v25 = vmax.f32 %v23, %v24
  %vm26 = vcmask 1043456
  %v27 = vsel %vm26, %v10, -inf
  %v28 = vsel %vm26, %v13, -inf
  %v29 = vsel %vm26, %v16, -inf
  %v30 = vmax.f32 %v27, %v29
  %v31 = vsel %vm26, %v19, -inf
  %v32 = vmax.f32 %v28, %v31
  %v33 = vmax.f32 %v30, %v32
  %34 = vst [vmem:[%s1] sm:$0xff] %v22
  %35 = vst [vmem:[%s1 + $0x8] sm:$0xff] %v25
  %36 = vst [vmem:[%s1 + $0x10] sm:$0xf] %v33
  // Predicated region
  $region6: #{forward.20} parent=0 // pred_check
    _
  $region7: #{forward.20} parent=0 // pred_check_branch
    %38 = sbr.rel (0) target = $region9
  $region8: #{forward.20} parent=0 // pred_region
    _
  $region9: #{forward.20} parent=0 // pred_fallthru
    _
  // Predicated region
  $region10: #{forward.20} parent=0 // pred_check
    _
  $region11: #{forward.20} parent=0 // pred_check_branch
    %40 = sbr.rel (0) target = $region13
  $region12: #{forward.20} parent=0 // pred_region
    _
  $region13: #{forward.20} parent=0 // pred_fallthru
    _

// kernel: forward.21
$region0: #{forward.21}
  #allocation0 [shape = 'u32[]', space=smem, size = 0x4, offset = 0x4, fixed_abs, tag = 'smem constant byte address 0x4 - core index']
  #allocation1 [shape = 'u32[144,128]{1,0:T(1,128)}', space=vmem, size = 0x12000, scoped, tag = 'internal scratch']
  %s0 = inlined_call_operand.vmem [shape: f32[320,128], index: 0, kind: input, shape index: {}]
  %s1 = inlined_call_operand.vmem [shape: f32[50,320], index: 1, kind: input, shape index: {}]
  %s2 = inlined_call_operand.vmem [shape: f32[50,1], index: 2, kind: input, shape index: {}]
  %s3 = inlined_call_operand.vmem [shape: f32[10,50], index: 3, kind: input, shape index: {}]
  %s4 = inlined_call_operand.vmem [shape: f32[10,1], index: 4, kind: input, shape index: {}]
  %s5 = inlined_call_operand.vmem [shape: f32[10,128], index: 5, kind: output, shape index: {}]
  %s6 = sld [smem:[#allocation0]]
  $region30: #{forward.21} parent=0
    _
  %s8 = ssub.s32 1, %s6
  %s9 = scalar_select 0, %s8, %s6
  // Predicated region
  $region2: #{forward.21} parent=0 // pred_check
    _
  $region3: #{forward.21} parent=0 // pred_check_branch
    %11 = sbr.rel (0) target = $region5
  $region4: #{forward.21} parent=0 // pred_region
    _
  $region5: #{forward.21} parent=0 // pred_fallthru
    _
  // Predicated region
  $region6: #{forward.21} parent=0 // pred_check
    _
  $region7: #{forward.21} parent=0 // pred_check_branch
    %13 = sbr.rel (0) target = $region9
  $region8: #{forward.21} parent=0 // pred_region
    _
  $region9: #{forward.21} parent=0 // pred_fallthru
    _
  // Predicated region
  $region10: #{forward.21} parent=0 // pred_check
    _
  $region11: #{forward.21} parent=0 // pred_check_branch
    %15 = sbr.rel (0) target = $region13
  $region12: #{forward.21} parent=0 // pred_region
    _
  $region13: #{forward.21} parent=0 // pred_fallthru
    _
  // Predicated region
  $region14: #{forward.21} parent=0 // pred_check
    _
  $region15: #{forward.21} parent=0 // pred_check_branch
    %17 = sbr.rel (0) target = $region17
  $region16: #{forward.21} parent=0 // pred_region
    _
  $region17: #{forward.21} parent=0 // pred_fallthru
    _
  // Predicated region
  $region18: #{forward.21} parent=0 // pred_check
    _
  $region19: #{forward.21} parent=0 // pred_check_branch
    %19 = sbr.rel (0) target = $region21
  $region20: #{forward.21} parent=0 // pred_region
    _
  $region21: #{forward.21} parent=0 // pred_fallthru
    _
  %v20 = vld [vmem:[%s1] sm:$0xff]
  %v21 = vld [vmem:[%s1 + $0x8] sm:$0xff]
  %v22 = vld [vmem:[%s1 + $0x10] sm:$0xff]
  %v23 = vld [vmem:[%s1 + $0x18] sm:$0xff]
  %v24 = vld [vmem:[%s1 + $0x20] sm:$0xff]
  %v25 = vld [vmem:[%s1 + $0x28] sm:$0xff]
  %v26 = vld [vmem:[%s1 + $0x30] sm:$0xff]
  %v27 = vld [vmem:[%s1 + $0x38] sm:$0xff]
  %v28 = vld [vmem:[%s1 + $0x40] sm:$0xff]
  %v29 = vld [vmem:[%s1 + $0x48] sm:$0xff]
  %v30 = vld [vmem:[%s1 + $0x50] sm:$0xff]
  %v31 = vld [vmem:[%s1 + $0x58] sm:$0xff]
  %v32 = vld [vmem:[%s1 + $0x60] sm:$0xff]
  %v33 = vld [vmem:[%s1 + $0x68] sm:$0xff]
  %v34 = vld [vmem:[%s1 + $0x70] sm:$0xff]
  %v35 = vld [vmem:[%s1 + $0x78] sm:$0xff]
  %v36 = vld [vmem:[%s1 + $0x80] sm:$0xff]
  %v37 = vld [vmem:[%s1 + $0x88] sm:$0xff]
  %v38 = vld [vmem:[%s1 + $0x90] sm:$0x3]
  %v39 = vld [vmem:[%s1 + $0x98] sm:$0x3]
  %v40 = vld [vmem:[%s1 + $0xa0] sm:$0x3]
  %v41 = vld [vmem:[%s0] sm:$0xff]
  %v42 = vld [vmem:[%s0 + $0x8] sm:$0xff]
  %v43 = vld [vmem:[%s0 + $0x10] sm:$0xff]
  %v44 = vld [vmem:[%s0 + $0x18] sm:$0xff]
  %v45 = vld [vmem:[%s0 + $0x20] sm:$0xff]
  %v46 = vld [vmem:[%s0 + $0x28] sm:$0xff]
  %v47 = vld [vmem:[%s0 + $0x30] sm:$0xff]
  %v48 = vld [vmem:[%s0 + $0x38] sm:$0xff]
  %v49 = vld [vmem:[%s0 + $0x40] sm:$0xff]
  %v50 = vld [vmem:[%s0 + $0x48] sm:$0xff]
  %v51 = vld [vmem:[%s0 + $0x50] sm:$0xff]
  %v52 = vld [vmem:[%s0 + $0x58] sm:$0xff]
  %v53 = vld [vmem:[%s0 + $0x60] sm:$0xff]
  %v54 = vld [vmem:[%s0 + $0x68] sm:$0xff]
  %v55 = vld [vmem:[%s0 + $0x70] sm:$0xff]
  %v56 = vld [vmem:[%s0 + $0x78] sm:$0xff]
  %v57 = vld [vmem:[%s0 + $0x80] sm:$0xff]
  %v58 = vld [vmem:[%s0 + $0x88] sm:$0xff]
  %v59 = vld [vmem:[%s0 + $0x90] sm:$0xff]
  %v60 = vld [vmem:[%s0 + $0x98] sm:$0xff]
  %v61 = vld [vmem:[%s0 + $0xa0] sm:$0xff]
  %v62 = vld [vmem:[%s0 + $0xa8] sm:$0xff]
  %v63 = vld [vmem:[%s0 + $0xb0] sm:$0xff]
  %v64 = vld [vmem:[%s0 + $0xb8] sm:$0xff]
  %v65 = vld [vmem:[%s0 + $0xc0] sm:$0xff]
  %v66 = vld [vmem:[%s0 + $0xc8] sm:$0xff]
  %v67 = vld [vmem:[%s0 + $0xd0] sm:$0xff]
  %v68 = vld [vmem:[%s0 + $0xd8] sm:$0xff]
  %v69 = vld [vmem:[%s0 + $0xe0] sm:$0xff]
  %v70 = vld [vmem:[%s0 + $0xe8] sm:$0xff]
  %v71 = vld [vmem:[%s0 + $0xf0] sm:$0xff]
  %v72 = vld [vmem:[%s0 + $0xf8] sm:$0xff]
  %v73 = vld [vmem:[%s0 + $0x100] sm:$0xff]
  %v74 = vld [vmem:[%s0 + $0x108] sm:$0xff]
  %v75 = vld [vmem:[%s0 + $0x110] sm:$0xff]
  %v76 = vld [vmem:[%s0 + $0x118] sm:$0xff]
  %v77 = vld [vmem:[%s0 + $0x120] sm:$0xff]
  %v78 = vld [vmem:[%s0 + $0x128] sm:$0xff]
  %v79 = vld [vmem:[%s0 + $0x130] sm:$0xff]
  %v80 = vld [vmem:[%s0 + $0x138] sm:$0xff]
  %v81 = vld [vmem:[%s2] sm:$0xff]
  %v82 = vld [vmem:[%s2 + $0x8] sm:$0xff]
  %v83 = vld [vmem:[%s2 + $0x10] sm:$0xff]
  %v84 = vld [vmem:[%s2 + $0x18] sm:$0xff]
  %v85 = vld [vmem:[%s2 + $0x20] sm:$0xff]
  %v86 = vld [vmem:[%s2 + $0x28] sm:$0xff]
  %v87 = vld [vmem:[%s2 + $0x30] sm:$0x3]
  %89 = vset.pattern.permute.xlu0 0
  %90 = vperm.xlu0 %89, %v81
  %v91 = vpop.permute.xlu0 %90
  %94 = vset.pattern.permute.xlu0 0
  %95 = vperm.xlu0 %94, %v82
  %v96 = vpop.permute.xlu0 %95
  %99 = vset.pattern.permute.xlu0 0
  %100 = vperm.xlu0 %99, %v83
  %v101 = vpop.permute.xlu0 %100
  %104 = vset.pattern.permute.xlu0 0
  %105 = vperm.xlu0 %104, %v84
  %v106 = vpop.permute.xlu0 %105
  %109 = vset.pattern.permute.xlu0 0
  %110 = vperm.xlu0 %109, %v85
  %v111 = vpop.permute.xlu0 %110
  %114 = vset.pattern.permute.xlu0 0
  %115 = vperm.xlu0 %114, %v86
  %v116 = vpop.permute.xlu0 %115
  %119 = vset.pattern.permute.xlu0 0
  %120 = vperm.xlu0 %119, %v87
  %v121 = vpop.permute.xlu0 %120
  %vm123 = vcmask 523264
  %v125 = vsel %vm123, %v22, 0
  %v128 = vsel %vm123, %v25, 0
  %v131 = vsel %vm123, %v28, 0
  %v134 = vsel %vm123, %v31, 0
  %v137 = vsel %vm123, %v34, 0
  %v140 = vsel %vm123, %v37, 0
  %v143 = vsel %vm123, %v40, 0
  %145 = vmatprep.subr.mxu0 0.0
  %146 = vmatpush1.msra.mxu0 %v41
  %147 = vmatprep.subr.mxu0 0.0
  %148 = vmatpush1.msra.mxu0 %v42
  %149 = vmatprep.subr.mxu0 0.0
  %150 = vmatpush1.msra.mxu0 %v43
  %151 = vmatprep.subr.mxu0 0.0
  %152 = vmatpush1.msra.mxu0 %v44
  %153 = vmatprep.subr.mxu0 0.0
  %154 = vmatpush1.msra.mxu0 %v45
  %155 = vmatprep.subr.mxu0 0.0
  %156 = vmatpush1.msra.mxu0 %v46
  %157 = vmatprep.subr.mxu0 0.0
  %158 = vmatpush1.msra.mxu0 %v47
  %159 = vmatprep.subr.mxu0 0.0
  %160 = vmatpush1.msra.mxu0 %v48
  %161 = vmatprep.subr.mxu0 0.0
  %162 = vmatpush1.msra.mxu0 %v49
  %163 = vmatprep.subr.mxu0 0.0
  %164 = vmatpush1.msra.mxu0 %v50
  %165 = vmatprep.subr.mxu0 0.0
  %166 = vmatpush1.msra.mxu0 %v51
  %167 = vmatprep.subr.mxu0 0.0
  %168 = vmatpush1.msra.mxu0 %v52
  %169 = vmatprep.subr.mxu0 0.0
  %170 = vmatpush1.msra.mxu0 %v53
  %171 = vmatprep.subr.mxu0 0.0
  %172 = vmatpush1.msra.mxu0 %v54
  %173 = vmatprep.subr.mxu0 0.0
  %174 = vmatpush1.msra.mxu0 %v55
  %175 = vmatprep.subr.mxu0 0.0
  %176 = vmatpush1.msra.mxu0 %v56
  %177 = vmatprep.subr.mxu0 0.0
  %178 = vmatpush1.msra.mxu0 %v57
  %179 = vmatprep.subr.mxu0 0.0
  %180 = vmatpush1.msra.mxu0 %v58
  %181 = vmatprep.subr.mxu0 0.0
  %182 = vmatpush1.msra.mxu0 %v59
  %183 = vmatprep.subr.mxu0 0.0
  %184 = vmatpush1.msra.mxu0 %v60
  %185 = vmatprep.subr.mxu0 0.0
  %186 = vmatpush1.msra.mxu0 %v61
  %187 = vmatprep.subr.mxu0 0.0
  %188 = vmatpush1.msra.mxu0 %v62
  %189 = vmatprep.subr.mxu0 0.0
  %190 = vmatpush1.msra.mxu0 %v63
  %191 = vmatprep.subr.mxu0 0.0
  %192 = vmatpush1.msra.mxu0 %v64
  %193 = vmatprep.subr.mxu0 0.0
  %194 = vmatpush1.msra.mxu0 %v65
  %195 = vmatprep.subr.mxu0 0.0
  %196 = vmatpush1.msra.mxu0 %v66
  %197 = vmatprep.subr.mxu0 0.0
  %198 = vmatpush1.msra.mxu0 %v67
  %199 = vmatprep.subr.mxu0 0.0
  %200 = vmatpush1.msra.mxu0 %v68
  %201 = vmatprep.subr.mxu0 0.0
  %202 = vmatpush1.msra.mxu0 %v69
  %203 = vmatprep.subr.mxu0 0.0
  %204 = vmatpush1.msra.mxu0 %v70
  %205 = vmatprep.subr.mxu0 0.0
  %206 = vmatpush1.msra.mxu0 %v71
  %207 = vmatprep.subr.mxu0 0.0
  %208 = vmatpush1.msra.mxu0 %v72
  %209 = vmatprep.mubr.f32.mxu0 %v21
  %210 = vmatmul.mubr.f32.gmra.mrb[0].mxu0 %v20
  %v211 = vpop.f32.mrb[0].mxu0
  %v212 = vadd.f32 %v91, %v211
  %v213 = vpop.f32.mrb[0].mxu0
  %214 = vmatprep.mubr.f32.mxu0 %v24
  %215 = vmatmul.mubr.f32.gmra.mrb[0].mxu0 %v23
  %v216 = vpop.f32.mrb[0].mxu0
  %v217 = vadd.f32 %v96, %v216
  %v218 = vpop.f32.mrb[0].mxu0
  %219 = vmatprep.mubr.f32.mxu0 %v27
  %220 = vmatmul.mubr.f32.gmra.mrb[0].mxu0 %v26
  %v221 = vpop.f32.mrb[0].mxu0
  %v222 = vadd.f32 %v101, %v221
  %v223 = vpop.f32.mrb[0].mxu0
  %224 = vmatprep.mubr.f32.mxu0 %v30
  %225 = vmatmul.mubr.f32.gmra.mrb[0].mxu0 %v29
  %v226 = vpop.f32.mrb[0].mxu0
  %v227 = vadd.f32 %v106, %v226
  %v228 = vpop.f32.mrb[0].mxu0
  %229 = vmatprep.mubr.f32.mxu0 %v33
  %230 = vmatmul.mubr.f32.gmra.mrb[0].mxu0 %v32
  %v231 = vpop.f32.mrb[0].mxu0
  %v232 = vadd.f32 %v111, %v231
  %v233 = vpop.f32.mrb[0].mxu0
  %234 = vmatprep.mubr.f32.mxu0 %v36
  %235 = vmatmul.mubr.f32.gmra.mrb[0].mxu0 %v35
  %v236 = vpop.f32.mrb[0].mxu0
  %v237 = vadd.f32 %v116, %v236
  %v238 = vpop.f32.mrb[0].mxu0
  %239 = vmatprep.mubr.f32.mxu0 %v39
  %240 = vmatmul.mubr.f32.gmra.mrb[0].mxu0 %v38
  %v241 = vpop.f32.mrb[0].mxu0
  %v242 = vadd.f32 %v121, %v241
  %v243 = vpop.f32.mrb[0].mxu0
  %244 = vdwg.mxu0
  %245 = vmatprep.subr.mxu0 0.0
  %246 = vmatpush1.msra.mxu0 %v73
  %247 = vmatprep.subr.mxu0 0.0
  %248 = vmatpush1.msra.mxu0 %v74
  %249 = vmatprep.subr.mxu0 0.0
  %250 = vmatpush1.msra.mxu0 %v75
  %251 = vmatprep.subr.mxu0 0.0
  %252 = vmatpush1.msra.mxu0 %v76
  %253 = vmatprep.subr.mxu0 0.0
  %254 = vmatpush1.msra.mxu0 %v77
  %255 = vmatprep.subr.mxu0 0.0
  %256 = vmatpush1.msra.mxu0 %v78
  %257 = vmatprep.subr.mxu0 0.0
  %258 = vmatpush1.msra.mxu0 %v79
  %259 = vmatprep.subr.mxu0 0.0
  %260 = vmatpush1.msra.mxu0 %v80
  %261 = vmatprep.subr.mxu0 0.0
  %262 = vmatpush1.msra.mxu0 0.0
  %263 = vmatprep.subr.mxu0 0.0
  %264 = vmatpush1.msra.mxu0 0.0
  %265 = vmatprep.subr.mxu0 0.0
  %266 = vmatpush1.msra.mxu0 0.0
  %267 = vmatprep.subr.mxu0 0.0
  %268 = vmatpush1.msra.mxu0 0.0
  %269 = vmatprep.subr.mxu0 0.0
  %270 = vmatpush1.msra.mxu0 0.0
  %271 = vmatprep.subr.mxu0 0.0
  %272 = vmatpush1.msra.mxu0 0.0
  %273 = vmatprep.subr.mxu0 0.0
  %274 = vmatpush1.msra.mxu0 0.0
  %275 = vmatprep.subr.mxu0 0.0
  %276 = vmatpush1.msra.mxu0 0.0
  %277 = vmatprep.subr.mxu0 0.0
  %278 = vmatpush1.msra.mxu0 0.0
  %279 = vmatprep.subr.mxu0 0.0
  %280 = vmatpush1.msra.mxu0 0.0
  %281 = vmatprep.subr.mxu0 0.0
  %282 = vmatpush1.msra.mxu0 0.0
  %283 = vmatprep.subr.mxu0 0.0
  %284 = vmatpush1.msra.mxu0 0.0
  %285 = vmatprep.subr.mxu0 0.0
  %286 = vmatpush1.msra.mxu0 0.0
  %287 = vmatprep.subr.mxu0 0.0
  %288 = vmatpush1.msra.mxu0 0.0
  %289 = vmatprep.subr.mxu0 0.0
  %290 = vmatpush1.msra.mxu0 0.0
  %291 = vmatprep.subr.mxu0 0.0
  %292 = vmatpush1.msra.mxu0 0.0
  %293 = vmatprep.subr.mxu0 0.0
  %294 = vmatpush1.msra.mxu0 0.0
  %295 = vmatprep.subr.mxu0 0.0
  %296 = vmatpush1.msra.mxu0 0.0
  %297 = vmatprep.subr.mxu0 0.0
  %298 = vmatpush1.msra.mxu0 0.0
  %299 = vmatprep.subr.mxu0 0.0
  %300 = vmatpush1.msra.mxu0 0.0
  %301 = vmatprep.subr.mxu0 0.0
  %302 = vmatpush1.msra.mxu0 0.0
  %303 = vmatprep.subr.mxu0 0.0
  %304 = vmatpush1.msra.mxu0 0.0
  %305 = vmatprep.subr.mxu0 0.0
  %306 = vmatpush1.msra.mxu0 0.0
  %307 = vmatprep.subr.mxu0 0.0
  %308 = vmatpush1.msra.mxu0 0.0
  %309 = vmatprep.mubr.f32.mxu0 0.0
  %310 = vmatmul.mubr.f32.gmra.mrb[0].mxu0 %v125
  %v311 = vpop.f32.mrb[0].mxu0
  %v312 = vadd.f32 %v212, %v311
  %v313 = vpop.f32.mrb[0].mxu0
  %314 = vmatprep.mubr.f32.mxu0 0.0
  %315 = vmatmul.mubr.f32.gmra.mrb[0].mxu0 %v128
  %v316 = vpop.f32.mrb[0].mxu0
  %v317 = vadd.f32 %v217, %v316
  %v318 = vpop.f32.mrb[0].mxu0
  %319 = vmatprep.mubr.f32.mxu0 0.0
  %320 = vmatmul.mubr.f32.gmra.mrb[0].mxu0 %v131
  %v321 = vpop.f32.mrb[0].mxu0
  %v322 = vadd.f32 %v222, %v321
  %v323 = vpop.f32.mrb[0].mxu0
  %324 = vmatprep.mubr.f32.mxu0 0.0
  %325 = vmatmul.mubr.f32.gmra.mrb[0].mxu0 %v134
  %v326 = vpop.f32.mrb[0].mxu0
  %v327 = vadd.f32 %v227, %v326
  %v328 = vpop.f32.mrb[0].mxu0
  %329 = vmatprep.mubr.f32.mxu0 0.0
  %330 = vmatmul.mubr.f32.gmra.mrb[0].mxu0 %v137
  %v331 = vpop.f32.mrb[0].mxu0
  %v332 = vadd.f32 %v232, %v331
  %v333 = vpop.f32.mrb[0].mxu0
  %334 = vmatprep.mubr.f32.mxu0 0.0
  %335 = vmatmul.mubr.f32.gmra.mrb[0].mxu0 %v140
  %v336 = vpop.f32.mrb[0].mxu0
  %v337 = vadd.f32 %v237, %v336
  %v338 = vpop.f32.mrb[0].mxu0
  %339 = vmatprep.mubr.f32.mxu0 0.0
  %340 = vmatmul.mubr.f32.gmra.mrb[0].mxu0 %v143
  %v341 = vpop.f32.mrb[0].mxu0
  %v342 = vadd.f32 %v242, %v341
  %v343 = vpop.f32.mrb[0].mxu0
  %344 = vdwg.mxu0
  %v345 = vmax.f32 %v312, 0.0
  %v346 = vmax.f32 %v317, 0.0
  %v347 = vmax.f32 %v322, 0.0
  %v348 = vmax.f32 %v327, 0.0
  %v349 = vmax.f32 %v332, 0.0
  %v350 = vmax.f32 %v337, 0.0
  %v351 = vmax.f32 %v342, 0.0
  %v352 = vld [vmem:[%s3] sm:$0xff]
  %v353 = vld [vmem:[%s3 + $0x8] sm:$0x3]
  %v354 = vld [vmem:[%s4] sm:$0xff]
  %v355 = vld [vmem:[%s4 + $0x8] sm:$0x3]
  %357 = vset.pattern.permute.xlu0 0
  %358 = vperm.xlu0 %357, %v354
  %v359 = vpop.permute.xlu0 %358
  %362 = vset.pattern.permute.xlu0 0
  %363 = vperm.xlu0 %362, %v355
  %v364 = vpop.permute.xlu0 %363
  %vm366 = vcmask 408576
  %v368 = vsel %vm366, %v352, 0
  %v371 = vsel %vm366, %v353, 0
  %vm373 = vcmask 1041408
  %v375 = vsel %vm373, %v351, 0
  %377 = vmatprep.subr.mxu0 0.0
  %378 = vmatpush1.msra.mxu0 %v345
  %379 = vmatprep.subr.mxu0 0.0
  %380 = vmatpush1.msra.mxu0 %v346
  %381 = vmatprep.subr.mxu0 0.0
  %382 = vmatpush1.msra.mxu0 %v347
  %383 = vmatprep.subr.mxu0 0.0
  %384 = vmatpush1.msra.mxu0 %v348
  %385 = vmatprep.subr.mxu0 0.0
  %386 = vmatpush1.msra.mxu0 %v349
  %387 = vmatprep.subr.mxu0 0.0
  %388 = vmatpush1.msra.mxu0 %v350
  %389 = vmatprep.subr.mxu0 0.0
  %390 = vmatpush1.msra.mxu0 %v375
  %391 = vmatprep.subr.mxu0 0.0
  %392 = vmatpush1.msra.mxu0 0.0
  %393 = vmatprep.subr.mxu0 0.0
  %394 = vmatpush1.msra.mxu0 0.0
  %395 = vmatprep.subr.mxu0 0.0
  %396 = vmatpush1.msra.mxu0 0.0
  %397 = vmatprep.subr.mxu0 0.0
  %398 = vmatpush1.msra.mxu0 0.0
  %399 = vmatprep.subr.mxu0 0.0
  %400 = vmatpush1.msra.mxu0 0.0
  %401 = vmatprep.subr.mxu0 0.0
  %402 = vmatpush1.msra.mxu0 0.0
  %403 = vmatprep.subr.mxu0 0.0
  %404 = vmatpush1.msra.mxu0 0.0
  %405 = vmatprep.subr.mxu0 0.0
  %406 = vmatpush1.msra.mxu0 0.0
  %407 = vmatprep.subr.mxu0 0.0
  %408 = vmatpush1.msra.mxu0 0.0
  %409 = vmatprep.subr.mxu0 0.0
  %410 = vmatpush1.msra.mxu0 0.0
  %411 = vmatprep.subr.mxu0 0.0
  %412 = vmatpush1.msra.mxu0 0.0
  %413 = vmatprep.subr.mxu0 0.0
  %414 = vmatpush1.msra.mxu0 0.0
  %415 = vmatprep.subr.mxu0 0.0
  %416 = vmatpush1.msra.mxu0 0.0
  %417 = vmatprep.subr.mxu0 0.0
  %418 = vmatpush1.msra.mxu0 0.0
  %419 = vmatprep.subr.mxu0 0.0
  %420 = vmatpush1.msra.mxu0 0.0
  %421 = vmatprep.subr.mxu0 0.0
  %422 = vmatpush1.msra.mxu0 0.0
  %423 = vmatprep.subr.mxu0 0.0
  %424 = vmatpush1.msra.mxu0 0.0
  %425 = vmatprep.subr.mxu0 0.0
  %426 = vmatpush1.msra.mxu0 0.0
  %427 = vmatprep.subr.mxu0 0.0
  %428 = vmatpush1.msra.mxu0 0.0
  %429 = vmatprep.subr.mxu0 0.0
  %430 = vmatpush1.msra.mxu0 0.0
  %431 = vmatprep.subr.mxu0 0.0
  %432 = vmatpush1.msra.mxu0 0.0
  %433 = vmatprep.subr.mxu0 0.0
  %434 = vmatpush1.msra.mxu0 0.0
  %435 = vmatprep.subr.mxu0 0.0
  %436 = vmatpush1.msra.mxu0 0.0
  %437 = vmatprep.subr.mxu0 0.0
  %438 = vmatpush1.msra.mxu0 0.0
  %439 = vmatprep.subr.mxu0 0.0
  %440 = vmatpush1.msra.mxu0 0.0
  %441 = vmatprep.mubr.f32.mxu0 0.0
  %442 = vmatmul.mubr.f32.gmra.mrb[0].mxu0 %v368
  %v443 = vpop.f32.mrb[0].mxu0
  %v444 = vadd.f32 %v359, %v443
  %v445 = vpop.f32.mrb[0].mxu0
  %446 = vmatprep.mubr.f32.mxu0 0.0
  %447 = vmatmul.mubr.f32.gmra.mrb[0].mxu0 %v371
  %v448 = vpop.f32.mrb[0].mxu0
  %v449 = vadd.f32 %v364, %v448
  %v450 = vpop.f32.mrb[0].mxu0
  %451 = vdwg.mxu0
  %v452 = vsel %vm373, %v449, -inf
  %v453 = vmax.f32 %v444, %v452
  %v454 = vrot.slane %v453, 4
  %v455 = vmax.f32 %v453, %v454
  %v456 = vrot.slane %v455, 2
  %v457 = vmax.f32 %v455, %v456
  %v458 = vrot.slane %v457, 1
  %v459 = vmax.f32 %v457, %v458
  %v460 = vsub.f32 %v444, %v459
  %v461 = vsub.f32 %v449, %v459
  %v462 = vmul.f32 %v460, 1.442695
  %v463 = vpow.pop %v462
  %v464 = vmul.f32 %v461, 1.442695
  %v465 = vpow.pop %v464
  %v466 = vsel %vm373, %v465, 0.0
  %v467 = vadd.f32 %v463, %v466
  %v468 = vrot.slane %v467, 4
  %v469 = vadd.f32 %v467, %v468
  %v470 = vrot.slane %v469, 2
  %v471 = vadd.f32 %v469, %v470
  %v472 = vrot.slane %v471, 1
  %v473 = vadd.f32 %v471, %v472
  %v474 = vlog2.pop %v473
  %v475 = vmul.f32 %v474, 0.6931472
  %v476 = vsub.f32 %v460, %v475
  %v477 = vsub.f32 %v461, %v475
  %478 = vst [vmem:[%s5] sm:$0xff] %v476
  %479 = vst [vmem:[%s5 + $0x8] sm:$0x3] %v477
  // Predicated region
  $region22: #{forward.21} parent=0 // pred_check
    _
  $region23: #{forward.21} parent=0 // pred_check_branch
    %481 = sbr.rel (0) target = $region25
  $region24: #{forward.21} parent=0 // pred_region
    _
  $region25: #{forward.21} parent=0 // pred_fallthru
    _
  // Predicated region
  $region26: #{forward.21} parent=0 // pred_check
    _
  $region27: #{forward.21} parent=0 // pred_check_branch
    %483 = sbr.rel (0) target = $region29
  $region28: #{forward.21} parent=0 // pred_region
    _
  $region29: #{forward.21} parent=0 // pred_fallthru
    _

</llo_original>
